<compile_context>
chip_gen: v6e
topology: v6e:2x2x1
jax: 0.10.0
libtpu: 0.0.40
codegen_flags: <defaults>
</compile_context>

<pallas_src>
import math
import functools

import jax
import jax.numpy as jnp
from jax.experimental import pallas as pl
from jax.experimental.pallas import tpu as pltpu


# Order of stacked parameter arrays as passed to the fused kernel.
_PARAM_ORDER = (
    "ln_in_g", "ln_in_b", "ln_mask_g", "ln_mask_b",
    "ln_attn_g", "ln_attn_b", "ln_out_g", "ln_out_b",
    "w_qkv", "b_qkv", "w_o_self", "b_o_self",
    "w_q_src", "b_q_src", "w_kv_src", "b_kv_src",
    "w_o_src", "b_o_src",
    "ffn_w1", "ffn_b1", "ffn_w2", "ffn_b2",
)


# ---------------------------------------------------------------------------
# Fused decoder kernel (one grid step == one batch element, whole layer stack)
# ---------------------------------------------------------------------------

def _decoder_kernel(
    x_ref, mem_ref, tmask_ref, smask_ref,
    ln_in_g_ref, ln_in_b_ref, ln_mask_g_ref, ln_mask_b_ref,
    ln_attn_g_ref, ln_attn_b_ref, ln_out_g_ref, ln_out_b_ref,
    w_qkv_ref, b_qkv_ref, w_o_self_ref, b_o_self_ref,
    w_q_src_ref, b_q_src_ref, w_kv_src_ref, b_kv_src_ref,
    w_o_src_ref, b_o_src_ref,
    ffn_w1_ref, ffn_b1_ref, ffn_w2_ref, ffn_b2_ref,
    o_ref,
    *, num_layers, num_heads,
):
    S = x_ref.shape[1]
    D = x_ref.shape[2]
    dk = D // num_heads
    scale = 1.0 / math.sqrt(dk)

    x = x_ref[0].astype(jnp.float32)        # (S, D)   target stream
    mem = mem_ref[0].astype(jnp.float32)    # (S_src, D) encoder memory

    # Hoisted additive masks: 0 where kept, -1e30 where masked (finite, so a
    # fully-masked row degrades to a uniform softmax instead of NaN).
    neg_t = jnp.where(tmask_ref[0, 0] == 0.0, -1e30, 0.0).astype(jnp.float32)
    neg_s = jnp.where(smask_ref[0, 0] == 0.0, -1e30, 0.0).astype(jnp.float32)

    def layer_norm(v, g_ref, b_ref):
        mu = jnp.mean(v, axis=-1, keepdims=True)
        var = jnp.mean(jnp.square(v - mu), axis=-1, keepdims=True)
        return (v - mu) * jax.lax.rsqrt(var + 1e-5) * g_ref[...] + b_ref[...]

    def attend(q, k, v, add_mask, wo, bo):
        # q: (Sq, D), k/v: (Sk, D).  Heads are static lane slices; the output
        # projection is accumulated per head (bias folded into the init), so
        # the per-head (Sq, dk) context never needs concatenation/transpose.
        out = jnp.broadcast_to(bo, (q.shape[0], D)).astype(jnp.float32)
        for h in range(num_heads):
            sl = slice(h * dk, (h + 1) * dk)
            s = jnp.einsum("qd,kd->qk", q[:, sl], k[:, sl],
                           preferred_element_type=jnp.float32) * scale
            s = s + add_mask                                   # (Sq, Sk)
            m = jnp.max(s, axis=-1, keepdims=True)
            e = jnp.exp(s - m)
            p = e * pl.reciprocal(jnp.sum(e, axis=-1, keepdims=True),
                                  approx=True)
            ctx = jnp.dot(p, v[:, sl], preferred_element_type=jnp.float32)
            out = out + jnp.dot(ctx, wo[sl, :],
                                preferred_element_type=jnp.float32)
        return out

    for l in range(num_layers):
        # --- masked self-attention sublayer (fused QKV projection) ---
        n = layer_norm(x, ln_in_g_ref, ln_in_b_ref)
        qkv = jnp.dot(n, w_qkv_ref[l],
                      preferred_element_type=jnp.float32) + b_qkv_ref[l]
        q, k, v = qkv[:, :D], qkv[:, D:2 * D], qkv[:, 2 * D:]
        x = x + attend(q, k, v, neg_t, w_o_self_ref[l], b_o_self_ref[l])

        # --- cross-attention sublayer (fused K/V projection of memory) ---
        n = layer_norm(x, ln_mask_g_ref, ln_mask_b_ref)
        q = jnp.dot(n, w_q_src_ref[l],
                    preferred_element_type=jnp.float32) + b_q_src_ref[l]
        kv = jnp.dot(mem, w_kv_src_ref[l],
                     preferred_element_type=jnp.float32) + b_kv_src_ref[l]
        k, v = kv[:, :D], kv[:, D:]
        x = x + attend(q, k, v, neg_s, w_o_src_ref[l], b_o_src_ref[l])

        # --- position-wise feed-forward sublayer ---
        n = layer_norm(x, ln_attn_g_ref, ln_attn_b_ref)
        h1 = jnp.maximum(
            jnp.dot(n, ffn_w1_ref[l],
                    preferred_element_type=jnp.float32) + ffn_b1_ref[l],
            0.0)
        x = x + jnp.dot(h1, ffn_w2_ref[l],
                        preferred_element_type=jnp.float32) + ffn_b2_ref[l]

    o_ref[0] = layer_norm(x, ln_out_g_ref, ln_out_b_ref).astype(o_ref.dtype)


# ---------------------------------------------------------------------------
# Wrapper: embedding + positional encoding (XLA), then one fused pallas_call
# ---------------------------------------------------------------------------

def decoder_forward(params, tgt, memory, source_mask, target_mask,
                    *, num_heads, num_layers):
    d_model = params["embed"].shape[1]
    B, S = tgt.shape
    S_src = memory.shape[1]

    # Embedding gather + sqrt(d_model) scale + positional encoding.
    # (Dropout layers are inference-mode identity.)
    x = (params["embed"][tgt] * math.sqrt(d_model)
         + params["pe"][:S][None, :, :]).astype(jnp.float32)

    weight_args = [params[name] for name in _PARAM_ORDER]

    def _rep_spec(arr):
        nd = arr.ndim
        return pl.BlockSpec(arr.shape, lambda b, nd=nd: (0,) * nd)

    in_specs = [
        pl.BlockSpec((1, S, d_model), lambda b: (b, 0, 0)),
        pl.BlockSpec((1, S_src, d_model), lambda b: (b, 0, 0)),
        pl.BlockSpec((1, 1, target_mask.shape[2], target_mask.shape[3]),
                     lambda b: (b, 0, 0, 0)),
        pl.BlockSpec((1, 1, source_mask.shape[2], source_mask.shape[3]),
                     lambda b: (b, 0, 0, 0)),
    ] + [_rep_spec(w) for w in weight_args]

    kernel = functools.partial(_decoder_kernel,
                               num_layers=num_layers, num_heads=num_heads)

    # NOTE: for production doctr sizes (d_model=512, dff=2048, long S) these
    # full-array weight blocks should become row-tiled BlockSpecs with an
    # explicit vmem_limit_bytes; at these shapes everything fits VMEM easily.
    return pl.pallas_call(
        kernel,
        grid=(B,),
        out_shape=jax.ShapeDtypeStruct((B, S, d_model), jnp.float32),
        in_specs=in_specs,
        out_specs=pl.BlockSpec((1, S, d_model), lambda b: (b, 0, 0)),
        compiler_params=pltpu.CompilerParams(
            dimension_semantics=("parallel",)),
    )(x, memory.astype(jnp.float32), target_mask, source_mask, *weight_args)


# ---------------------------------------------------------------------------
# Deterministic parameter init (shapes/init follow the PyTorch module)
# ---------------------------------------------------------------------------

def _init_linear(key, din, dout):
    kw, kb = jax.random.split(key)
    bound = 1.0 / math.sqrt(din)
    w = jax.random.uniform(kw, (din, dout), jnp.float32, -bound, bound)
    b = jax.random.uniform(kb, (1, dout), jnp.float32, -bound, bound)
    return w, b


def init_params(key, *, num_layers, num_heads, d_model, vocab_size, dff, max_pos):
    keys = iter(jax.random.split(key, 1 + num_layers * 10))

    params = {}
    params["embed"] = jax.random.normal(next(keys), (vocab_size, d_model),
                                        jnp.float32)

    # Positional encoding table (same formula as the PyTorch module).
    pos = jnp.arange(max_pos, dtype=jnp.float32)[:, None]
    div = jnp.exp(jnp.arange(0, d_model, 2, dtype=jnp.float32)
                  * -(math.log(10000.0) / d_model))
    pe = jnp.zeros((max_pos, d_model), jnp.float32)
    pe = pe.at[:, 0::2].set(jnp.sin(pos * div))
    pe = pe.at[:, 1::2].set(jnp.cos(pos * div))
    params["pe"] = pe

    # LayerNorms are shared across layers (as in the PyTorch Decoder).
    for name in ("ln_in", "ln_mask", "ln_attn", "ln_out"):
        params[name + "_g"] = jnp.ones((1, d_model), jnp.float32)
        params[name + "_b"] = jnp.zeros((1, d_model), jnp.float32)

    stacked = {k: [] for k in ("w_qkv", "b_qkv", "w_o_self", "b_o_self",
                               "w_q_src", "b_q_src", "w_kv_src", "b_kv_src",
                               "w_o_src", "b_o_src",
                               "ffn_w1", "ffn_b1", "ffn_w2", "ffn_b2")}
    for _ in range(num_layers):
        # Self-attention: fused QKV + output projection.
        wq, bq = _init_linear(next(keys), d_model, d_model)
        wk, bk = _init_linear(next(keys), d_model, d_model)
        wv, bv = _init_linear(next(keys), d_model, d_model)
        stacked["w_qkv"].append(jnp.concatenate([wq, wk, wv], axis=1))
        stacked["b_qkv"].append(jnp.concatenate([bq, bk, bv], axis=1))
        wo, bo = _init_linear(next(keys), d_model, d_model)
        stacked["w_o_self"].append(wo)
        stacked["b_o_self"].append(bo)

        # Cross-attention: Q on the target stream, fused K/V on memory.
        wq, bq = _init_linear(next(keys), d_model, d_model)
        wk, bk = _init_linear(next(keys), d_model, d_model)
        wv, bv = _init_linear(next(keys), d_model, d_model)
        stacked["w_q_src"].append(wq)
        stacked["b_q_src"].append(bq)
        stacked["w_kv_src"].append(jnp.concatenate([wk, wv], axis=1))
        stacked["b_kv_src"].append(jnp.concatenate([bk, bv], axis=1))
        wo, bo = _init_linear(next(keys), d_model, d_model)
        stacked["w_o_src"].append(wo)
        stacked["b_o_src"].append(bo)

        # Position-wise feed-forward.
        w1, b1 = _init_linear(next(keys), d_model, dff)
        w2, b2 = _init_linear(next(keys), dff, d_model)
        stacked["ffn_w1"].append(w1)
        stacked["ffn_b1"].append(b1)
        stacked["ffn_w2"].append(w2)
        stacked["ffn_b2"].append(b2)

    for k, v in stacked.items():
        params[k] = jnp.stack(v, axis=0)
    return params


# ---------------------------------------------------------------------------
# Main
# ---------------------------------------------------------------------------

if __name__ == "__main__":
    num_layers = 2
    num_heads = 4
    d_model = 32
    vocab_size = 20
    dff = 64
    max_pos = 50

    B, S_tgt, S_src = 2, 8, 16

    root = jax.random.PRNGKey(0)
    k_param, k_tgt, k_mem = jax.random.split(root, 3)

    params = init_params(
        k_param,
        num_layers=num_layers,
        num_heads=num_heads,
        d_model=d_model,
        vocab_size=vocab_size,
        dff=dff,
        max_pos=max_pos,
    )

    tgt = jax.random.randint(k_tgt, (B, S_tgt), 0, vocab_size, dtype=jnp.int32)
    memory = jax.random.normal(k_mem, (B, S_src, d_model), jnp.float32)

    # Causal target mask (B, 1, S_tgt, S_tgt); all-ones source mask (B, 1, 1, S_src).
    target_mask = jnp.broadcast_to(
        jnp.tril(jnp.ones((S_tgt, S_tgt), jnp.float32))[None, None],
        (B, 1, S_tgt, S_tgt),
    )
    source_mask = jnp.ones((B, 1, 1, S_src), jnp.float32)

    fwd = jax.jit(functools.partial(decoder_forward,
                                    num_heads=num_heads,
                                    num_layers=num_layers))
    out = fwd(params, tgt, memory, source_mask, target_mask)
    out = jax.block_until_ready(out)

    assert out.shape == (B, S_tgt, d_model)
    assert bool(jnp.all(jnp.isfinite(out)))
    print("KERNEL_OK")
</pallas_src>

<mosaic_0001>
module attributes {stable_mosaic.version = 11 : i64} {
  func.func @_decoder_kernel(%arg0: i32, %arg1: memref<1x8x32xf32, #tpu.memory_space<vmem>>, %arg2: memref<1x16x32xf32, #tpu.memory_space<vmem>>, %arg3: memref<1x1x8x8xf32, #tpu.memory_space<vmem>>, %arg4: memref<1x1x1x16xf32, #tpu.memory_space<vmem>>, %arg5: memref<1x32xf32, #tpu.memory_space<vmem>>, %arg6: memref<1x32xf32, #tpu.memory_space<vmem>>, %arg7: memref<1x32xf32, #tpu.memory_space<vmem>>, %arg8: memref<1x32xf32, #tpu.memory_space<vmem>>, %arg9: memref<1x32xf32, #tpu.memory_space<vmem>>, %arg10: memref<1x32xf32, #tpu.memory_space<vmem>>, %arg11: memref<1x32xf32, #tpu.memory_space<vmem>>, %arg12: memref<1x32xf32, #tpu.memory_space<vmem>>, %arg13: memref<2x32x96xf32, #tpu.memory_space<vmem>>, %arg14: memref<2x1x96xf32, #tpu.memory_space<vmem>>, %arg15: memref<2x32x32xf32, #tpu.memory_space<vmem>>, %arg16: memref<2x1x32xf32, #tpu.memory_space<vmem>>, %arg17: memref<2x32x32xf32, #tpu.memory_space<vmem>>, %arg18: memref<2x1x32xf32, #tpu.memory_space<vmem>>, %arg19: memref<2x32x64xf32, #tpu.memory_space<vmem>>, %arg20: memref<2x1x64xf32, #tpu.memory_space<vmem>>, %arg21: memref<2x32x32xf32, #tpu.memory_space<vmem>>, %arg22: memref<2x1x32xf32, #tpu.memory_space<vmem>>, %arg23: memref<2x32x64xf32, #tpu.memory_space<vmem>>, %arg24: memref<2x1x64xf32, #tpu.memory_space<vmem>>, %arg25: memref<2x64x32xf32, #tpu.memory_space<vmem>>, %arg26: memref<2x1x32xf32, #tpu.memory_space<vmem>>, %arg27: memref<1x8x32xf32, #tpu.memory_space<vmem>>) attributes {dimension_semantics = [#tpu.dimension_semantics<parallel>], iteration_bounds = array<i64: 2>, scalar_prefetch = 0 : i64, scratch_operands = 0 : i64, tpu.core_type = #tpu.core_type<tc>, window_params = [{transform_indices = @transform_0, window_bounds = array<i64: 1, 8, 32>}, {transform_indices = @transform_1, window_bounds = array<i64: 1, 16, 32>}, {transform_indices = @transform_2, window_bounds = array<i64: 1, 1, 8, 8>}, {transform_indices = @transform_3, window_bounds = array<i64: 1, 1, 1, 16>}, {pipeline_mode = #tpu.pipeline_mode<synchronous>, transform_indices = @transform_4, window_bounds = array<i64: 1, 32>}, {pipeline_mode = #tpu.pipeline_mode<synchronous>, transform_indices = @transform_5, window_bounds = array<i64: 1, 32>}, {pipeline_mode = #tpu.pipeline_mode<synchronous>, transform_indices = @transform_6, window_bounds = array<i64: 1, 32>}, {pipeline_mode = #tpu.pipeline_mode<synchronous>, transform_indices = @transform_7, window_bounds = array<i64: 1, 32>}, {pipeline_mode = #tpu.pipeline_mode<synchronous>, transform_indices = @transform_8, window_bounds = array<i64: 1, 32>}, {pipeline_mode = #tpu.pipeline_mode<synchronous>, transform_indices = @transform_9, window_bounds = array<i64: 1, 32>}, {pipeline_mode = #tpu.pipeline_mode<synchronous>, transform_indices = @transform_10, window_bounds = array<i64: 1, 32>}, {pipeline_mode = #tpu.pipeline_mode<synchronous>, transform_indices = @transform_11, window_bounds = array<i64: 1, 32>}, {pipeline_mode = #tpu.pipeline_mode<synchronous>, transform_indices = @transform_12, window_bounds = array<i64: 2, 32, 96>}, {pipeline_mode = #tpu.pipeline_mode<synchronous>, transform_indices = @transform_13, window_bounds = array<i64: 2, 1, 96>}, {pipeline_mode = #tpu.pipeline_mode<synchronous>, transform_indices = @transform_14, window_bounds = array<i64: 2, 32, 32>}, {pipeline_mode = #tpu.pipeline_mode<synchronous>, transform_indices = @transform_15, window_bounds = array<i64: 2, 1, 32>}, {pipeline_mode = #tpu.pipeline_mode<synchronous>, transform_indices = @transform_16, window_bounds = array<i64: 2, 32, 32>}, {pipeline_mode = #tpu.pipeline_mode<synchronous>, transform_indices = @transform_17, window_bounds = array<i64: 2, 1, 32>}, {pipeline_mode = #tpu.pipeline_mode<synchronous>, transform_indices = @transform_18, window_bounds = array<i64: 2, 32, 64>}, {pipeline_mode = #tpu.pipeline_mode<synchronous>, transform_indices = @transform_19, window_bounds = array<i64: 2, 1, 64>}, {pipeline_mode = #tpu.pipeline_mode<synchronous>, transform_indices = @transform_20, window_bounds = array<i64: 2, 32, 32>}, {pipeline_mode = #tpu.pipeline_mode<synchronous>, transform_indices = @transform_21, window_bounds = array<i64: 2, 1, 32>}, {pipeline_mode = #tpu.pipeline_mode<synchronous>, transform_indices = @transform_22, window_bounds = array<i64: 2, 32, 64>}, {pipeline_mode = #tpu.pipeline_mode<synchronous>, transform_indices = @transform_23, window_bounds = array<i64: 2, 1, 64>}, {pipeline_mode = #tpu.pipeline_mode<synchronous>, transform_indices = @transform_24, window_bounds = array<i64: 2, 64, 32>}, {pipeline_mode = #tpu.pipeline_mode<synchronous>, transform_indices = @transform_25, window_bounds = array<i64: 2, 1, 32>}, {transform_indices = @transform_26, window_bounds = array<i64: 1, 8, 32>}]} {
    %c0 = arith.constant 0 : index
    %c0_0 = arith.constant 0 : index
    %c0_1 = arith.constant 0 : index
    %0 = vector.load %arg1[%c0, %c0_0, %c0_1] : memref<1x8x32xf32, #tpu.memory_space<vmem>>, vector<1x8x32xf32>
    %1 = vector.shape_cast %0 : vector<1x8x32xf32> to vector<8x32xf32>
    %c0_2 = arith.constant 0 : index
    %c0_3 = arith.constant 0 : index
    %c0_4 = arith.constant 0 : index
    %2 = vector.load %arg2[%c0_2, %c0_3, %c0_4] : memref<1x16x32xf32, #tpu.memory_space<vmem>>, vector<1x16x32xf32>
    %3 = vector.shape_cast %2 : vector<1x16x32xf32> to vector<16x32xf32>
    %c0_5 = arith.constant 0 : index
    %c0_6 = arith.constant 0 : index
    %c0_7 = arith.constant 0 : index
    %c0_8 = arith.constant 0 : index
    %4 = vector.load %arg3[%c0_5, %c0_6, %c0_7, %c0_8] : memref<1x1x8x8xf32, #tpu.memory_space<vmem>>, vector<1x1x8x8xf32>
    %5 = vector.shape_cast %4 : vector<1x1x8x8xf32> to vector<8x8xf32>
    %cst = arith.constant 0.000000e+00 : f32
    %6 = vector.broadcast %cst : f32 to vector<8x8xf32>
    %7 = arith.cmpf oeq, %5, %6 : vector<8x8xf32>
    %cst_9 = arith.constant -1.000000e+30 : f32
    %cst_10 = arith.constant 0.000000e+00 : f32
    %8 = vector.broadcast %cst_9 : f32 to vector<8x8xf32>
    %9 = vector.broadcast %cst_10 : f32 to vector<8x8xf32>
    %10 = arith.select %7, %8, %9 : vector<8x8xi1>, vector<8x8xf32>
    %c0_11 = arith.constant 0 : index
    %c0_12 = arith.constant 0 : index
    %c0_13 = arith.constant 0 : index
    %c0_14 = arith.constant 0 : index
    %11 = vector.load %arg4[%c0_11, %c0_12, %c0_13, %c0_14] : memref<1x1x1x16xf32, #tpu.memory_space<vmem>>, vector<1x1x1x16xf32>
    %12 = vector.shape_cast %11 : vector<1x1x1x16xf32> to vector<1x16xf32>
    %cst_15 = arith.constant 0.000000e+00 : f32
    %13 = vector.broadcast %cst_15 : f32 to vector<1x16xf32>
    %14 = arith.cmpf oeq, %12, %13 : vector<1x16xf32>
    %cst_16 = arith.constant -1.000000e+30 : f32
    %cst_17 = arith.constant 0.000000e+00 : f32
    %15 = vector.broadcast %cst_16 : f32 to vector<1x16xf32>
    %16 = vector.broadcast %cst_17 : f32 to vector<1x16xf32>
    %17 = arith.select %14, %15, %16 : vector<1x16xi1>, vector<1x16xf32>
    %cst_18 = arith.constant dense<0.000000e+00> : vector<8xf32>
    %18 = vector.multi_reduction <add>, %1, %cst_18 [1] : vector<8x32xf32> to vector<8xf32>
    %19 = vector.shape_cast %18 : vector<8xf32> to vector<8x1xf32>
    %cst_19 = arith.constant 3.200000e+01 : f32
    %20 = vector.broadcast %cst_19 : f32 to vector<8x1xf32>
    %21 = arith.divf %19, %20 : vector<8x1xf32>
    %22 = vector.broadcast %21 : vector<8x1xf32> to vector<8x32xf32>
    %23 = arith.subf %1, %22 : vector<8x32xf32>
    %24 = arith.mulf %23, %23 : vector<8x32xf32>
    %cst_20 = arith.constant dense<0.000000e+00> : vector<8xf32>
    %25 = vector.multi_reduction <add>, %24, %cst_20 [1] : vector<8x32xf32> to vector<8xf32>
    %26 = vector.shape_cast %25 : vector<8xf32> to vector<8x1xf32>
    %cst_21 = arith.constant 3.200000e+01 : f32
    %27 = vector.broadcast %cst_21 : f32 to vector<8x1xf32>
    %28 = arith.divf %26, %27 : vector<8x1xf32>
    %29 = vector.broadcast %21 : vector<8x1xf32> to vector<8x32xf32>
    %30 = arith.subf %1, %29 : vector<8x32xf32>
    %cst_22 = arith.constant 9.99999974E-6 : f32
    %31 = vector.broadcast %cst_22 : f32 to vector<8x1xf32>
    %32 = arith.addf %28, %31 : vector<8x1xf32>
    %33 = math.rsqrt %32 : vector<8x1xf32>
    %34 = vector.broadcast %33 : vector<8x1xf32> to vector<8x32xf32>
    %35 = arith.mulf %30, %34 : vector<8x32xf32>
    %c0_23 = arith.constant 0 : index
    %c0_24 = arith.constant 0 : index
    %36 = vector.load %arg5[%c0_23, %c0_24] : memref<1x32xf32, #tpu.memory_space<vmem>>, vector<1x32xf32>
    %37 = vector.broadcast %36 : vector<1x32xf32> to vector<8x32xf32>
    %38 = arith.mulf %35, %37 : vector<8x32xf32>
    %c0_25 = arith.constant 0 : index
    %c0_26 = arith.constant 0 : index
    %39 = vector.load %arg6[%c0_25, %c0_26] : memref<1x32xf32, #tpu.memory_space<vmem>>, vector<1x32xf32>
    %40 = vector.broadcast %39 : vector<1x32xf32> to vector<8x32xf32>
    %41 = arith.addf %38, %40 : vector<8x32xf32>
    %c0_27 = arith.constant 0 : index
    %c0_28 = arith.constant 0 : index
    %c0_29 = arith.constant 0 : index
    %42 = vector.load %arg13[%c0_27, %c0_28, %c0_29] : memref<2x32x96xf32, #tpu.memory_space<vmem>>, vector<1x32x96xf32>
    %43 = vector.shape_cast %42 : vector<1x32x96xf32> to vector<32x96xf32>
    %cst_30 = arith.constant dense<0.000000e+00> : vector<8x96xf32>
    %44 = tpu.matmul %41, %43, %cst_30 {dimension_numbers = #tpu.dot_dimension_numbers<[1], [0], [0], [1], [0, 0, 1, 1], [], []>} : vector<8x32xf32>, vector<32x96xf32>, vector<8x96xf32> -> vector<8x96xf32>
    %c0_31 = arith.constant 0 : index
    %c0_32 = arith.constant 0 : index
    %c0_33 = arith.constant 0 : index
    %45 = vector.load %arg14[%c0_31, %c0_32, %c0_33] : memref<2x1x96xf32, #tpu.memory_space<vmem>>, vector<1x1x96xf32>
    %46 = vector.shape_cast %45 : vector<1x1x96xf32> to vector<1x96xf32>
    %47 = vector.broadcast %46 : vector<1x96xf32> to vector<8x96xf32>
    %48 = arith.addf %44, %47 : vector<8x96xf32>
    %49 = vector.extract_strided_slice %48 {offsets = [0, 0], sizes = [8, 32], strides = [1, 1]} : vector<8x96xf32> to vector<8x32xf32>
    %50 = vector.extract_strided_slice %48 {offsets = [0, 32], sizes = [8, 32], strides = [1, 1]} : vector<8x96xf32> to vector<8x32xf32>
    %51 = vector.extract_strided_slice %48 {offsets = [0, 64], sizes = [8, 32], strides = [1, 1]} : vector<8x96xf32> to vector<8x32xf32>
    %c0_34 = arith.constant 0 : index
    %c0_35 = arith.constant 0 : index
    %c0_36 = arith.constant 0 : index
    %52 = vector.load %arg15[%c0_34, %c0_35, %c0_36] : memref<2x32x32xf32, #tpu.memory_space<vmem>>, vector<1x32x32xf32>
    %53 = vector.shape_cast %52 : vector<1x32x32xf32> to vector<32x32xf32>
    %c0_37 = arith.constant 0 : index
    %c0_38 = arith.constant 0 : index
    %c0_39 = arith.constant 0 : index
    %54 = vector.load %arg16[%c0_37, %c0_38, %c0_39] : memref<2x1x32xf32, #tpu.memory_space<vmem>>, vector<1x1x32xf32>
    %55 = vector.shape_cast %54 : vector<1x1x32xf32> to vector<1x32xf32>
    %56 = vector.shape_cast %55 : vector<1x32xf32> to vector<1x32xf32>
    %57 = vector.broadcast %56 : vector<1x32xf32> to vector<8x32xf32>
    %58 = vector.extract_strided_slice %49 {offsets = [0, 0], sizes = [8, 8], strides = [1, 1]} : vector<8x32xf32> to vector<8x8xf32>
    %59 = vector.extract_strided_slice %50 {offsets = [0, 0], sizes = [8, 8], strides = [1, 1]} : vector<8x32xf32> to vector<8x8xf32>
    "tpu.trace_start"() <{level = 10 : i32, message = "qd,kd->qk"}> : () -> ()
    %cst_40 = arith.constant dense<0.000000e+00> : vector<8x8xf32>
    %60 = tpu.matmul %58, %59, %cst_40 {dimension_numbers = #tpu.dot_dimension_numbers<[1], [1], [0], [0], [0, 0, 1, 0], [], []>} : vector<8x8xf32>, vector<8x8xf32>, vector<8x8xf32> -> vector<8x8xf32>
    "tpu.trace_stop"() : () -> ()
    %cst_41 = arith.constant 0.353553385 : f32
    %61 = vector.broadcast %cst_41 : f32 to vector<8x8xf32>
    %62 = arith.mulf %60, %61 : vector<8x8xf32>
    %63 = arith.addf %62, %10 : vector<8x8xf32>
    %cst_42 = arith.constant dense<0xFF800000> : vector<8xf32>
    %64 = vector.multi_reduction <maximumf>, %63, %cst_42 [1] : vector<8x8xf32> to vector<8xf32>
    %65 = vector.shape_cast %64 : vector<8xf32> to vector<8x1xf32>
    %66 = vector.broadcast %65 : vector<8x1xf32> to vector<8x8xf32>
    %67 = arith.subf %63, %66 : vector<8x8xf32>
    %68 = math.exp %67 : vector<8x8xf32>
    %cst_43 = arith.constant dense<0.000000e+00> : vector<8xf32>
    %69 = vector.multi_reduction <add>, %68, %cst_43 [1] : vector<8x8xf32> to vector<8xf32>
    %70 = vector.shape_cast %69 : vector<8xf32> to vector<8x1xf32>
    %71 = tpu.reciprocal %70 {approx = true} : vector<8x1xf32> -> vector<8x1xf32>
    %72 = vector.broadcast %71 : vector<8x1xf32> to vector<8x8xf32>
    %73 = arith.mulf %68, %72 : vector<8x8xf32>
    %74 = vector.extract_strided_slice %51 {offsets = [0, 0], sizes = [8, 8], strides = [1, 1]} : vector<8x32xf32> to vector<8x8xf32>
    %cst_44 = arith.constant dense<0.000000e+00> : vector<8x8xf32>
    %75 = tpu.matmul %73, %74, %cst_44 {dimension_numbers = #tpu.dot_dimension_numbers<[1], [0], [0], [1], [0, 0, 1, 1], [], []>} : vector<8x8xf32>, vector<8x8xf32>, vector<8x8xf32> -> vector<8x8xf32>
    %76 = vector.extract_strided_slice %53 {offsets = [0, 0], sizes = [8, 32], strides = [1, 1]} : vector<32x32xf32> to vector<8x32xf32>
    %cst_45 = arith.constant dense<0.000000e+00> : vector<8x32xf32>
    %77 = tpu.matmul %75, %76, %cst_45 {dimension_numbers = #tpu.dot_dimension_numbers<[1], [0], [0], [1], [0, 0, 1, 1], [], []>} : vector<8x8xf32>, vector<8x32xf32>, vector<8x32xf32> -> vector<8x32xf32>
    %78 = arith.addf %57, %77 : vector<8x32xf32>
    %79 = vector.extract_strided_slice %49 {offsets = [0, 8], sizes = [8, 8], strides = [1, 1]} : vector<8x32xf32> to vector<8x8xf32>
    %80 = vector.extract_strided_slice %50 {offsets = [0, 8], sizes = [8, 8], strides = [1, 1]} : vector<8x32xf32> to vector<8x8xf32>
    "tpu.trace_start"() <{level = 10 : i32, message = "qd,kd->qk"}> : () -> ()
    %cst_46 = arith.constant dense<0.000000e+00> : vector<8x8xf32>
    %81 = tpu.matmul %79, %80, %cst_46 {dimension_numbers = #tpu.dot_dimension_numbers<[1], [1], [0], [0], [0, 0, 1, 0], [], []>} : vector<8x8xf32>, vector<8x8xf32>, vector<8x8xf32> -> vector<8x8xf32>
    "tpu.trace_stop"() : () -> ()
    %cst_47 = arith.constant 0.353553385 : f32
    %82 = vector.broadcast %cst_47 : f32 to vector<8x8xf32>
    %83 = arith.mulf %81, %82 : vector<8x8xf32>
    %84 = arith.addf %83, %10 : vector<8x8xf32>
    %cst_48 = arith.constant dense<0xFF800000> : vector<8xf32>
    %85 = vector.multi_reduction <maximumf>, %84, %cst_48 [1] : vector<8x8xf32> to vector<8xf32>
    %86 = vector.shape_cast %85 : vector<8xf32> to vector<8x1xf32>
    %87 = vector.broadcast %86 : vector<8x1xf32> to vector<8x8xf32>
    %88 = arith.subf %84, %87 : vector<8x8xf32>
    %89 = math.exp %88 : vector<8x8xf32>
    %cst_49 = arith.constant dense<0.000000e+00> : vector<8xf32>
    %90 = vector.multi_reduction <add>, %89, %cst_49 [1] : vector<8x8xf32> to vector<8xf32>
    %91 = vector.shape_cast %90 : vector<8xf32> to vector<8x1xf32>
    %92 = tpu.reciprocal %91 {approx = true} : vector<8x1xf32> -> vector<8x1xf32>
    %93 = vector.broadcast %92 : vector<8x1xf32> to vector<8x8xf32>
    %94 = arith.mulf %89, %93 : vector<8x8xf32>
    %95 = vector.extract_strided_slice %51 {offsets = [0, 8], sizes = [8, 8], strides = [1, 1]} : vector<8x32xf32> to vector<8x8xf32>
    %cst_50 = arith.constant dense<0.000000e+00> : vector<8x8xf32>
    %96 = tpu.matmul %94, %95, %cst_50 {dimension_numbers = #tpu.dot_dimension_numbers<[1], [0], [0], [1], [0, 0, 1, 1], [], []>} : vector<8x8xf32>, vector<8x8xf32>, vector<8x8xf32> -> vector<8x8xf32>
    %97 = vector.extract_strided_slice %53 {offsets = [8, 0], sizes = [8, 32], strides = [1, 1]} : vector<32x32xf32> to vector<8x32xf32>
    %cst_51 = arith.constant dense<0.000000e+00> : vector<8x32xf32>
    %98 = tpu.matmul %96, %97, %cst_51 {dimension_numbers = #tpu.dot_dimension_numbers<[1], [0], [0], [1], [0, 0, 1, 1], [], []>} : vector<8x8xf32>, vector<8x32xf32>, vector<8x32xf32> -> vector<8x32xf32>
    %99 = arith.addf %78, %98 : vector<8x32xf32>
    %100 = vector.extract_strided_slice %49 {offsets = [0, 16], sizes = [8, 8], strides = [1, 1]} : vector<8x32xf32> to vector<8x8xf32>
    %101 = vector.extract_strided_slice %50 {offsets = [0, 16], sizes = [8, 8], strides = [1, 1]} : vector<8x32xf32> to vector<8x8xf32>
    "tpu.trace_start"() <{level = 10 : i32, message = "qd,kd->qk"}> : () -> ()
    %cst_52 = arith.constant dense<0.000000e+00> : vector<8x8xf32>
    %102 = tpu.matmul %100, %101, %cst_52 {dimension_numbers = #tpu.dot_dimension_numbers<[1], [1], [0], [0], [0, 0, 1, 0], [], []>} : vector<8x8xf32>, vector<8x8xf32>, vector<8x8xf32> -> vector<8x8xf32>
    "tpu.trace_stop"() : () -> ()
    %cst_53 = arith.constant 0.353553385 : f32
    %103 = vector.broadcast %cst_53 : f32 to vector<8x8xf32>
    %104 = arith.mulf %102, %103 : vector<8x8xf32>
    %105 = arith.addf %104, %10 : vector<8x8xf32>
    %cst_54 = arith.constant dense<0xFF800000> : vector<8xf32>
    %106 = vector.multi_reduction <maximumf>, %105, %cst_54 [1] : vector<8x8xf32> to vector<8xf32>
    %107 = vector.shape_cast %106 : vector<8xf32> to vector<8x1xf32>
    %108 = vector.broadcast %107 : vector<8x1xf32> to vector<8x8xf32>
    %109 = arith.subf %105, %108 : vector<8x8xf32>
    %110 = math.exp %109 : vector<8x8xf32>
    %cst_55 = arith.constant dense<0.000000e+00> : vector<8xf32>
    %111 = vector.multi_reduction <add>, %110, %cst_55 [1] : vector<8x8xf32> to vector<8xf32>
    %112 = vector.shape_cast %111 : vector<8xf32> to vector<8x1xf32>
    %113 = tpu.reciprocal %112 {approx = true} : vector<8x1xf32> -> vector<8x1xf32>
    %114 = vector.broadcast %113 : vector<8x1xf32> to vector<8x8xf32>
    %115 = arith.mulf %110, %114 : vector<8x8xf32>
    %116 = vector.extract_strided_slice %51 {offsets = [0, 16], sizes = [8, 8], strides = [1, 1]} : vector<8x32xf32> to vector<8x8xf32>
    %cst_56 = arith.constant dense<0.000000e+00> : vector<8x8xf32>
    %117 = tpu.matmul %115, %116, %cst_56 {dimension_numbers = #tpu.dot_dimension_numbers<[1], [0], [0], [1], [0, 0, 1, 1], [], []>} : vector<8x8xf32>, vector<8x8xf32>, vector<8x8xf32> -> vector<8x8xf32>
    %118 = vector.extract_strided_slice %53 {offsets = [16, 0], sizes = [8, 32], strides = [1, 1]} : vector<32x32xf32> to vector<8x32xf32>
    %cst_57 = arith.constant dense<0.000000e+00> : vector<8x32xf32>
    %119 = tpu.matmul %117, %118, %cst_57 {dimension_numbers = #tpu.dot_dimension_numbers<[1], [0], [0], [1], [0, 0, 1, 1], [], []>} : vector<8x8xf32>, vector<8x32xf32>, vector<8x32xf32> -> vector<8x32xf32>
    %120 = arith.addf %99, %119 : vector<8x32xf32>
    %121 = vector.extract_strided_slice %49 {offsets = [0, 24], sizes = [8, 8], strides = [1, 1]} : vector<8x32xf32> to vector<8x8xf32>
    %122 = vector.extract_strided_slice %50 {offsets = [0, 24], sizes = [8, 8], strides = [1, 1]} : vector<8x32xf32> to vector<8x8xf32>
    "tpu.trace_start"() <{level = 10 : i32, message = "qd,kd->qk"}> : () -> ()
    %cst_58 = arith.constant dense<0.000000e+00> : vector<8x8xf32>
    %123 = tpu.matmul %121, %122, %cst_58 {dimension_numbers = #tpu.dot_dimension_numbers<[1], [1], [0], [0], [0, 0, 1, 0], [], []>} : vector<8x8xf32>, vector<8x8xf32>, vector<8x8xf32> -> vector<8x8xf32>
    "tpu.trace_stop"() : () -> ()
    %cst_59 = arith.constant 0.353553385 : f32
    %124 = vector.broadcast %cst_59 : f32 to vector<8x8xf32>
    %125 = arith.mulf %123, %124 : vector<8x8xf32>
    %126 = arith.addf %125, %10 : vector<8x8xf32>
    %cst_60 = arith.constant dense<0xFF800000> : vector<8xf32>
    %127 = vector.multi_reduction <maximumf>, %126, %cst_60 [1] : vector<8x8xf32> to vector<8xf32>
    %128 = vector.shape_cast %127 : vector<8xf32> to vector<8x1xf32>
    %129 = vector.broadcast %128 : vector<8x1xf32> to vector<8x8xf32>
    %130 = arith.subf %126, %129 : vector<8x8xf32>
    %131 = math.exp %130 : vector<8x8xf32>
    %cst_61 = arith.constant dense<0.000000e+00> : vector<8xf32>
    %132 = vector.multi_reduction <add>, %131, %cst_61 [1] : vector<8x8xf32> to vector<8xf32>
    %133 = vector.shape_cast %132 : vector<8xf32> to vector<8x1xf32>
    %134 = tpu.reciprocal %133 {approx = true} : vector<8x1xf32> -> vector<8x1xf32>
    %135 = vector.broadcast %134 : vector<8x1xf32> to vector<8x8xf32>
    %136 = arith.mulf %131, %135 : vector<8x8xf32>
    %137 = vector.extract_strided_slice %51 {offsets = [0, 24], sizes = [8, 8], strides = [1, 1]} : vector<8x32xf32> to vector<8x8xf32>
    %cst_62 = arith.constant dense<0.000000e+00> : vector<8x8xf32>
    %138 = tpu.matmul %136, %137, %cst_62 {dimension_numbers = #tpu.dot_dimension_numbers<[1], [0], [0], [1], [0, 0, 1, 1], [], []>} : vector<8x8xf32>, vector<8x8xf32>, vector<8x8xf32> -> vector<8x8xf32>
    %139 = vector.extract_strided_slice %53 {offsets = [24, 0], sizes = [8, 32], strides = [1, 1]} : vector<32x32xf32> to vector<8x32xf32>
    %cst_63 = arith.constant dense<0.000000e+00> : vector<8x32xf32>
    %140 = tpu.matmul %138, %139, %cst_63 {dimension_numbers = #tpu.dot_dimension_numbers<[1], [0], [0], [1], [0, 0, 1, 1], [], []>} : vector<8x8xf32>, vector<8x32xf32>, vector<8x32xf32> -> vector<8x32xf32>
    %141 = arith.addf %120, %140 : vector<8x32xf32>
    %142 = arith.addf %1, %141 : vector<8x32xf32>
    %cst_64 = arith.constant dense<0.000000e+00> : vector<8xf32>
    %143 = vector.multi_reduction <add>, %142, %cst_64 [1] : vector<8x32xf32> to vector<8xf32>
    %144 = vector.shape_cast %143 : vector<8xf32> to vector<8x1xf32>
    %cst_65 = arith.constant 3.200000e+01 : f32
    %145 = vector.broadcast %cst_65 : f32 to vector<8x1xf32>
    %146 = arith.divf %144, %145 : vector<8x1xf32>
    %147 = vector.broadcast %146 : vector<8x1xf32> to vector<8x32xf32>
    %148 = arith.subf %142, %147 : vector<8x32xf32>
    %149 = arith.mulf %148, %148 : vector<8x32xf32>
    %cst_66 = arith.constant dense<0.000000e+00> : vector<8xf32>
    %150 = vector.multi_reduction <add>, %149, %cst_66 [1] : vector<8x32xf32> to vector<8xf32>
    %151 = vector.shape_cast %150 : vector<8xf32> to vector<8x1xf32>
    %cst_67 = arith.constant 3.200000e+01 : f32
    %152 = vector.broadcast %cst_67 : f32 to vector<8x1xf32>
    %153 = arith.divf %151, %152 : vector<8x1xf32>
    %154 = vector.broadcast %146 : vector<8x1xf32> to vector<8x32xf32>
    %155 = arith.subf %142, %154 : vector<8x32xf32>
    %cst_68 = arith.constant 9.99999974E-6 : f32
    %156 = vector.broadcast %cst_68 : f32 to vector<8x1xf32>
    %157 = arith.addf %153, %156 : vector<8x1xf32>
    %158 = math.rsqrt %157 : vector<8x1xf32>
    %159 = vector.broadcast %158 : vector<8x1xf32> to vector<8x32xf32>
    %160 = arith.mulf %155, %159 : vector<8x32xf32>
    %c0_69 = arith.constant 0 : index
    %c0_70 = arith.constant 0 : index
    %161 = vector.load %arg7[%c0_69, %c0_70] : memref<1x32xf32, #tpu.memory_space<vmem>>, vector<1x32xf32>
    %162 = vector.broadcast %161 : vector<1x32xf32> to vector<8x32xf32>
    %163 = arith.mulf %160, %162 : vector<8x32xf32>
    %c0_71 = arith.constant 0 : index
    %c0_72 = arith.constant 0 : index
    %164 = vector.load %arg8[%c0_71, %c0_72] : memref<1x32xf32, #tpu.memory_space<vmem>>, vector<1x32xf32>
    %165 = vector.broadcast %164 : vector<1x32xf32> to vector<8x32xf32>
    %166 = arith.addf %163, %165 : vector<8x32xf32>
    %c0_73 = arith.constant 0 : index
    %c0_74 = arith.constant 0 : index
    %c0_75 = arith.constant 0 : index
    %167 = vector.load %arg17[%c0_73, %c0_74, %c0_75] : memref<2x32x32xf32, #tpu.memory_space<vmem>>, vector<1x32x32xf32>
    %168 = vector.shape_cast %167 : vector<1x32x32xf32> to vector<32x32xf32>
    %cst_76 = arith.constant dense<0.000000e+00> : vector<8x32xf32>
    %169 = tpu.matmul %166, %168, %cst_76 {dimension_numbers = #tpu.dot_dimension_numbers<[1], [0], [0], [1], [0, 0, 1, 1], [], []>} : vector<8x32xf32>, vector<32x32xf32>, vector<8x32xf32> -> vector<8x32xf32>
    %c0_77 = arith.constant 0 : index
    %c0_78 = arith.constant 0 : index
    %c0_79 = arith.constant 0 : index
    %170 = vector.load %arg18[%c0_77, %c0_78, %c0_79] : memref<2x1x32xf32, #tpu.memory_space<vmem>>, vector<1x1x32xf32>
    %171 = vector.shape_cast %170 : vector<1x1x32xf32> to vector<1x32xf32>
    %172 = vector.broadcast %171 : vector<1x32xf32> to vector<8x32xf32>
    %173 = arith.addf %169, %172 : vector<8x32xf32>
    %c0_80 = arith.constant 0 : index
    %c0_81 = arith.constant 0 : index
    %c0_82 = arith.constant 0 : index
    %174 = vector.load %arg19[%c0_80, %c0_81, %c0_82] : memref<2x32x64xf32, #tpu.memory_space<vmem>>, vector<1x32x64xf32>
    %175 = vector.shape_cast %174 : vector<1x32x64xf32> to vector<32x64xf32>
    %cst_83 = arith.constant dense<0.000000e+00> : vector<16x64xf32>
    %176 = tpu.matmul %3, %175, %cst_83 {dimension_numbers = #tpu.dot_dimension_numbers<[1], [0], [0], [1], [0, 0, 1, 1], [], []>} : vector<16x32xf32>, vector<32x64xf32>, vector<16x64xf32> -> vector<16x64xf32>
    %c0_84 = arith.constant 0 : index
    %c0_85 = arith.constant 0 : index
    %c0_86 = arith.constant 0 : index
    %177 = vector.load %arg20[%c0_84, %c0_85, %c0_86] : memref<2x1x64xf32, #tpu.memory_space<vmem>>, vector<1x1x64xf32>
    %178 = vector.shape_cast %177 : vector<1x1x64xf32> to vector<1x64xf32>
    %179 = vector.broadcast %178 : vector<1x64xf32> to vector<16x64xf32>
    %180 = arith.addf %176, %179 : vector<16x64xf32>
    %181 = vector.extract_strided_slice %180 {offsets = [0, 0], sizes = [16, 32], strides = [1, 1]} : vector<16x64xf32> to vector<16x32xf32>
    %182 = vector.extract_strided_slice %180 {offsets = [0, 32], sizes = [16, 32], strides = [1, 1]} : vector<16x64xf32> to vector<16x32xf32>
    %c0_87 = arith.constant 0 : index
    %c0_88 = arith.constant 0 : index
    %c0_89 = arith.constant 0 : index
    %183 = vector.load %arg21[%c0_87, %c0_88, %c0_89] : memref<2x32x32xf32, #tpu.memory_space<vmem>>, vector<1x32x32xf32>
    %184 = vector.shape_cast %183 : vector<1x32x32xf32> to vector<32x32xf32>
    %c0_90 = arith.constant 0 : index
    %c0_91 = arith.constant 0 : index
    %c0_92 = arith.constant 0 : index
    %185 = vector.load %arg22[%c0_90, %c0_91, %c0_92] : memref<2x1x32xf32, #tpu.memory_space<vmem>>, vector<1x1x32xf32>
    %186 = vector.shape_cast %185 : vector<1x1x32xf32> to vector<1x32xf32>
    %187 = vector.shape_cast %186 : vector<1x32xf32> to vector<1x32xf32>
    %188 = vector.broadcast %187 : vector<1x32xf32> to vector<8x32xf32>
    %189 = vector.extract_strided_slice %173 {offsets = [0, 0], sizes = [8, 8], strides = [1, 1]} : vector<8x32xf32> to vector<8x8xf32>
    %190 = vector.extract_strided_slice %181 {offsets = [0, 0], sizes = [16, 8], strides = [1, 1]} : vector<16x32xf32> to vector<16x8xf32>
    "tpu.trace_start"() <{level = 10 : i32, message = "qd,kd->qk"}> : () -> ()
    %cst_93 = arith.constant dense<0.000000e+00> : vector<8x16xf32>
    %191 = tpu.matmul %189, %190, %cst_93 {dimension_numbers = #tpu.dot_dimension_numbers<[1], [1], [0], [0], [0, 0, 1, 0], [], []>} : vector<8x8xf32>, vector<16x8xf32>, vector<8x16xf32> -> vector<8x16xf32>
    "tpu.trace_stop"() : () -> ()
    %cst_94 = arith.constant 0.353553385 : f32
    %192 = vector.broadcast %cst_94 : f32 to vector<8x16xf32>
    %193 = arith.mulf %191, %192 : vector<8x16xf32>
    %194 = vector.broadcast %17 : vector<1x16xf32> to vector<8x16xf32>
    %195 = arith.addf %193, %194 : vector<8x16xf32>
    %cst_95 = arith.constant dense<0xFF800000> : vector<8xf32>
    %196 = vector.multi_reduction <maximumf>, %195, %cst_95 [1] : vector<8x16xf32> to vector<8xf32>
    %197 = vector.shape_cast %196 : vector<8xf32> to vector<8x1xf32>
    %198 = vector.broadcast %197 : vector<8x1xf32> to vector<8x16xf32>
    %199 = arith.subf %195, %198 : vector<8x16xf32>
    %200 = math.exp %199 : vector<8x16xf32>
    %cst_96 = arith.constant dense<0.000000e+00> : vector<8xf32>
    %201 = vector.multi_reduction <add>, %200, %cst_96 [1] : vector<8x16xf32> to vector<8xf32>
    %202 = vector.shape_cast %201 : vector<8xf32> to vector<8x1xf32>
    %203 = tpu.reciprocal %202 {approx = true} : vector<8x1xf32> -> vector<8x1xf32>
    %204 = vector.broadcast %203 : vector<8x1xf32> to vector<8x16xf32>
    %205 = arith.mulf %200, %204 : vector<8x16xf32>
    %206 = vector.extract_strided_slice %182 {offsets = [0, 0], sizes = [16, 8], strides = [1, 1]} : vector<16x32xf32> to vector<16x8xf32>
    %cst_97 = arith.constant dense<0.000000e+00> : vector<8x8xf32>
    %207 = tpu.matmul %205, %206, %cst_97 {dimension_numbers = #tpu.dot_dimension_numbers<[1], [0], [0], [1], [0, 0, 1, 1], [], []>} : vector<8x16xf32>, vector<16x8xf32>, vector<8x8xf32> -> vector<8x8xf32>
    %208 = vector.extract_strided_slice %184 {offsets = [0, 0], sizes = [8, 32], strides = [1, 1]} : vector<32x32xf32> to vector<8x32xf32>
    %cst_98 = arith.constant dense<0.000000e+00> : vector<8x32xf32>
    %209 = tpu.matmul %207, %208, %cst_98 {dimension_numbers = #tpu.dot_dimension_numbers<[1], [0], [0], [1], [0, 0, 1, 1], [], []>} : vector<8x8xf32>, vector<8x32xf32>, vector<8x32xf32> -> vector<8x32xf32>
    %210 = arith.addf %188, %209 : vector<8x32xf32>
    %211 = vector.extract_strided_slice %173 {offsets = [0, 8], sizes = [8, 8], strides = [1, 1]} : vector<8x32xf32> to vector<8x8xf32>
    %212 = vector.extract_strided_slice %181 {offsets = [0, 8], sizes = [16, 8], strides = [1, 1]} : vector<16x32xf32> to vector<16x8xf32>
    "tpu.trace_start"() <{level = 10 : i32, message = "qd,kd->qk"}> : () -> ()
    %cst_99 = arith.constant dense<0.000000e+00> : vector<8x16xf32>
    %213 = tpu.matmul %211, %212, %cst_99 {dimension_numbers = #tpu.dot_dimension_numbers<[1], [1], [0], [0], [0, 0, 1, 0], [], []>} : vector<8x8xf32>, vector<16x8xf32>, vector<8x16xf32> -> vector<8x16xf32>
    "tpu.trace_stop"() : () -> ()
    %cst_100 = arith.constant 0.353553385 : f32
    %214 = vector.broadcast %cst_100 : f32 to vector<8x16xf32>
    %215 = arith.mulf %213, %214 : vector<8x16xf32>
    %216 = vector.broadcast %17 : vector<1x16xf32> to vector<8x16xf32>
    %217 = arith.addf %215, %216 : vector<8x16xf32>
    %cst_101 = arith.constant dense<0xFF800000> : vector<8xf32>
    %218 = vector.multi_reduction <maximumf>, %217, %cst_101 [1] : vector<8x16xf32> to vector<8xf32>
    %219 = vector.shape_cast %218 : vector<8xf32> to vector<8x1xf32>
    %220 = vector.broadcast %219 : vector<8x1xf32> to vector<8x16xf32>
    %221 = arith.subf %217, %220 : vector<8x16xf32>
    %222 = math.exp %221 : vector<8x16xf32>
    %cst_102 = arith.constant dense<0.000000e+00> : vector<8xf32>
    %223 = vector.multi_reduction <add>, %222, %cst_102 [1] : vector<8x16xf32> to vector<8xf32>
    %224 = vector.shape_cast %223 : vector<8xf32> to vector<8x1xf32>
    %225 = tpu.reciprocal %224 {approx = true} : vector<8x1xf32> -> vector<8x1xf32>
    %226 = vector.broadcast %225 : vector<8x1xf32> to vector<8x16xf32>
    %227 = arith.mulf %222, %226 : vector<8x16xf32>
    %228 = vector.extract_strided_slice %182 {offsets = [0, 8], sizes = [16, 8], strides = [1, 1]} : vector<16x32xf32> to vector<16x8xf32>
    %cst_103 = arith.constant dense<0.000000e+00> : vector<8x8xf32>
    %229 = tpu.matmul %227, %228, %cst_103 {dimension_numbers = #tpu.dot_dimension_numbers<[1], [0], [0], [1], [0, 0, 1, 1], [], []>} : vector<8x16xf32>, vector<16x8xf32>, vector<8x8xf32> -> vector<8x8xf32>
    %230 = vector.extract_strided_slice %184 {offsets = [8, 0], sizes = [8, 32], strides = [1, 1]} : vector<32x32xf32> to vector<8x32xf32>
    %cst_104 = arith.constant dense<0.000000e+00> : vector<8x32xf32>
    %231 = tpu.matmul %229, %230, %cst_104 {dimension_numbers = #tpu.dot_dimension_numbers<[1], [0], [0], [1], [0, 0, 1, 1], [], []>} : vector<8x8xf32>, vector<8x32xf32>, vector<8x32xf32> -> vector<8x32xf32>
    %232 = arith.addf %210, %231 : vector<8x32xf32>
    %233 = vector.extract_strided_slice %173 {offsets = [0, 16], sizes = [8, 8], strides = [1, 1]} : vector<8x32xf32> to vector<8x8xf32>
    %234 = vector.extract_strided_slice %181 {offsets = [0, 16], sizes = [16, 8], strides = [1, 1]} : vector<16x32xf32> to vector<16x8xf32>
    "tpu.trace_start"() <{level = 10 : i32, message = "qd,kd->qk"}> : () -> ()
    %cst_105 = arith.constant dense<0.000000e+00> : vector<8x16xf32>
    %235 = tpu.matmul %233, %234, %cst_105 {dimension_numbers = #tpu.dot_dimension_numbers<[1], [1], [0], [0], [0, 0, 1, 0], [], []>} : vector<8x8xf32>, vector<16x8xf32>, vector<8x16xf32> -> vector<8x16xf32>
    "tpu.trace_stop"() : () -> ()
    %cst_106 = arith.constant 0.353553385 : f32
    %236 = vector.broadcast %cst_106 : f32 to vector<8x16xf32>
    %237 = arith.mulf %235, %236 : vector<8x16xf32>
    %238 = vector.broadcast %17 : vector<1x16xf32> to vector<8x16xf32>
    %239 = arith.addf %237, %238 : vector<8x16xf32>
    %cst_107 = arith.constant dense<0xFF800000> : vector<8xf32>
    %240 = vector.multi_reduction <maximumf>, %239, %cst_107 [1] : vector<8x16xf32> to vector<8xf32>
    %241 = vector.shape_cast %240 : vector<8xf32> to vector<8x1xf32>
    %242 = vector.broadcast %241 : vector<8x1xf32> to vector<8x16xf32>
    %243 = arith.subf %239, %242 : vector<8x16xf32>
    %244 = math.exp %243 : vector<8x16xf32>
    %cst_108 = arith.constant dense<0.000000e+00> : vector<8xf32>
    %245 = vector.multi_reduction <add>, %244, %cst_108 [1] : vector<8x16xf32> to vector<8xf32>
    %246 = vector.shape_cast %245 : vector<8xf32> to vector<8x1xf32>
    %247 = tpu.reciprocal %246 {approx = true} : vector<8x1xf32> -> vector<8x1xf32>
    %248 = vector.broadcast %247 : vector<8x1xf32> to vector<8x16xf32>
    %249 = arith.mulf %244, %248 : vector<8x16xf32>
    %250 = vector.extract_strided_slice %182 {offsets = [0, 16], sizes = [16, 8], strides = [1, 1]} : vector<16x32xf32> to vector<16x8xf32>
    %cst_109 = arith.constant dense<0.000000e+00> : vector<8x8xf32>
    %251 = tpu.matmul %249, %250, %cst_109 {dimension_numbers = #tpu.dot_dimension_numbers<[1], [0], [0], [1], [0, 0, 1, 1], [], []>} : vector<8x16xf32>, vector<16x8xf32>, vector<8x8xf32> -> vector<8x8xf32>
    %252 = vector.extract_strided_slice %184 {offsets = [16, 0], sizes = [8, 32], strides = [1, 1]} : vector<32x32xf32> to vector<8x32xf32>
    %cst_110 = arith.constant dense<0.000000e+00> : vector<8x32xf32>
    %253 = tpu.matmul %251, %252, %cst_110 {dimension_numbers = #tpu.dot_dimension_numbers<[1], [0], [0], [1], [0, 0, 1, 1], [], []>} : vector<8x8xf32>, vector<8x32xf32>, vector<8x32xf32> -> vector<8x32xf32>
    %254 = arith.addf %232, %253 : vector<8x32xf32>
    %255 = vector.extract_strided_slice %173 {offsets = [0, 24], sizes = [8, 8], strides = [1, 1]} : vector<8x32xf32> to vector<8x8xf32>
    %256 = vector.extract_strided_slice %181 {offsets = [0, 24], sizes = [16, 8], strides = [1, 1]} : vector<16x32xf32> to vector<16x8xf32>
    "tpu.trace_start"() <{level = 10 : i32, message = "qd,kd->qk"}> : () -> ()
    %cst_111 = arith.constant dense<0.000000e+00> : vector<8x16xf32>
    %257 = tpu.matmul %255, %256, %cst_111 {dimension_numbers = #tpu.dot_dimension_numbers<[1], [1], [0], [0], [0, 0, 1, 0], [], []>} : vector<8x8xf32>, vector<16x8xf32>, vector<8x16xf32> -> vector<8x16xf32>
    "tpu.trace_stop"() : () -> ()
    %cst_112 = arith.constant 0.353553385 : f32
    %258 = vector.broadcast %cst_112 : f32 to vector<8x16xf32>
    %259 = arith.mulf %257, %258 : vector<8x16xf32>
    %260 = vector.broadcast %17 : vector<1x16xf32> to vector<8x16xf32>
    %261 = arith.addf %259, %260 : vector<8x16xf32>
    %cst_113 = arith.constant dense<0xFF800000> : vector<8xf32>
    %262 = vector.multi_reduction <maximumf>, %261, %cst_113 [1] : vector<8x16xf32> to vector<8xf32>
    %263 = vector.shape_cast %262 : vector<8xf32> to vector<8x1xf32>
    %264 = vector.broadcast %263 : vector<8x1xf32> to vector<8x16xf32>
    %265 = arith.subf %261, %264 : vector<8x16xf32>
    %266 = math.exp %265 : vector<8x16xf32>
    %cst_114 = arith.constant dense<0.000000e+00> : vector<8xf32>
    %267 = vector.multi_reduction <add>, %266, %cst_114 [1] : vector<8x16xf32> to vector<8xf32>
    %268 = vector.shape_cast %267 : vector<8xf32> to vector<8x1xf32>
    %269 = tpu.reciprocal %268 {approx = true} : vector<8x1xf32> -> vector<8x1xf32>
    %270 = vector.broadcast %269 : vector<8x1xf32> to vector<8x16xf32>
    %271 = arith.mulf %266, %270 : vector<8x16xf32>
    %272 = vector.extract_strided_slice %182 {offsets = [0, 24], sizes = [16, 8], strides = [1, 1]} : vector<16x32xf32> to vector<16x8xf32>
    %cst_115 = arith.constant dense<0.000000e+00> : vector<8x8xf32>
    %273 = tpu.matmul %271, %272, %cst_115 {dimension_numbers = #tpu.dot_dimension_numbers<[1], [0], [0], [1], [0, 0, 1, 1], [], []>} : vector<8x16xf32>, vector<16x8xf32>, vector<8x8xf32> -> vector<8x8xf32>
    %274 = vector.extract_strided_slice %184 {offsets = [24, 0], sizes = [8, 32], strides = [1, 1]} : vector<32x32xf32> to vector<8x32xf32>
    %cst_116 = arith.constant dense<0.000000e+00> : vector<8x32xf32>
    %275 = tpu.matmul %273, %274, %cst_116 {dimension_numbers = #tpu.dot_dimension_numbers<[1], [0], [0], [1], [0, 0, 1, 1], [], []>} : vector<8x8xf32>, vector<8x32xf32>, vector<8x32xf32> -> vector<8x32xf32>
    %276 = arith.addf %254, %275 : vector<8x32xf32>
    %277 = arith.addf %142, %276 : vector<8x32xf32>
    %cst_117 = arith.constant dense<0.000000e+00> : vector<8xf32>
    %278 = vector.multi_reduction <add>, %277, %cst_117 [1] : vector<8x32xf32> to vector<8xf32>
    %279 = vector.shape_cast %278 : vector<8xf32> to vector<8x1xf32>
    %cst_118 = arith.constant 3.200000e+01 : f32
    %280 = vector.broadcast %cst_118 : f32 to vector<8x1xf32>
    %281 = arith.divf %279, %280 : vector<8x1xf32>
    %282 = vector.broadcast %281 : vector<8x1xf32> to vector<8x32xf32>
    %283 = arith.subf %277, %282 : vector<8x32xf32>
    %284 = arith.mulf %283, %283 : vector<8x32xf32>
    %cst_119 = arith.constant dense<0.000000e+00> : vector<8xf32>
    %285 = vector.multi_reduction <add>, %284, %cst_119 [1] : vector<8x32xf32> to vector<8xf32>
    %286 = vector.shape_cast %285 : vector<8xf32> to vector<8x1xf32>
    %cst_120 = arith.constant 3.200000e+01 : f32
    %287 = vector.broadcast %cst_120 : f32 to vector<8x1xf32>
    %288 = arith.divf %286, %287 : vector<8x1xf32>
    %289 = vector.broadcast %281 : vector<8x1xf32> to vector<8x32xf32>
    %290 = arith.subf %277, %289 : vector<8x32xf32>
    %cst_121 = arith.constant 9.99999974E-6 : f32
    %291 = vector.broadcast %cst_121 : f32 to vector<8x1xf32>
    %292 = arith.addf %288, %291 : vector<8x1xf32>
    %293 = math.rsqrt %292 : vector<8x1xf32>
    %294 = vector.broadcast %293 : vector<8x1xf32> to vector<8x32xf32>
    %295 = arith.mulf %290, %294 : vector<8x32xf32>
    %c0_122 = arith.constant 0 : index
    %c0_123 = arith.constant 0 : index
    %296 = vector.load %arg9[%c0_122, %c0_123] : memref<1x32xf32, #tpu.memory_space<vmem>>, vector<1x32xf32>
    %297 = vector.broadcast %296 : vector<1x32xf32> to vector<8x32xf32>
    %298 = arith.mulf %295, %297 : vector<8x32xf32>
    %c0_124 = arith.constant 0 : index
    %c0_125 = arith.constant 0 : index
    %299 = vector.load %arg10[%c0_124, %c0_125] : memref<1x32xf32, #tpu.memory_space<vmem>>, vector<1x32xf32>
    %300 = vector.broadcast %299 : vector<1x32xf32> to vector<8x32xf32>
    %301 = arith.addf %298, %300 : vector<8x32xf32>
    %c0_126 = arith.constant 0 : index
    %c0_127 = arith.constant 0 : index
    %c0_128 = arith.constant 0 : index
    %302 = vector.load %arg23[%c0_126, %c0_127, %c0_128] : memref<2x32x64xf32, #tpu.memory_space<vmem>>, vector<1x32x64xf32>
    %303 = vector.shape_cast %302 : vector<1x32x64xf32> to vector<32x64xf32>
    %cst_129 = arith.constant dense<0.000000e+00> : vector<8x64xf32>
    %304 = tpu.matmul %301, %303, %cst_129 {dimension_numbers = #tpu.dot_dimension_numbers<[1], [0], [0], [1], [0, 0, 1, 1], [], []>} : vector<8x32xf32>, vector<32x64xf32>, vector<8x64xf32> -> vector<8x64xf32>
    %c0_130 = arith.constant 0 : index
    %c0_131 = arith.constant 0 : index
    %c0_132 = arith.constant 0 : index
    %305 = vector.load %arg24[%c0_130, %c0_131, %c0_132] : memref<2x1x64xf32, #tpu.memory_space<vmem>>, vector<1x1x64xf32>
    %306 = vector.shape_cast %305 : vector<1x1x64xf32> to vector<1x64xf32>
    %307 = vector.broadcast %306 : vector<1x64xf32> to vector<8x64xf32>
    %308 = arith.addf %304, %307 : vector<8x64xf32>
    %cst_133 = arith.constant 0.000000e+00 : f32
    %309 = vector.broadcast %cst_133 : f32 to vector<8x64xf32>
    %310 = arith.maximumf %308, %309 : vector<8x64xf32>
    %c0_134 = arith.constant 0 : index
    %c0_135 = arith.constant 0 : index
    %c0_136 = arith.constant 0 : index
    %311 = vector.load %arg25[%c0_134, %c0_135, %c0_136] : memref<2x64x32xf32, #tpu.memory_space<vmem>>, vector<1x64x32xf32>
    %312 = vector.shape_cast %311 : vector<1x64x32xf32> to vector<64x32xf32>
    %cst_137 = arith.constant dense<0.000000e+00> : vector<8x32xf32>
    %313 = tpu.matmul %310, %312, %cst_137 {dimension_numbers = #tpu.dot_dimension_numbers<[1], [0], [0], [1], [0, 0, 1, 1], [], []>} : vector<8x64xf32>, vector<64x32xf32>, vector<8x32xf32> -> vector<8x32xf32>
    %314 = arith.addf %277, %313 : vector<8x32xf32>
    %c0_138 = arith.constant 0 : index
    %c0_139 = arith.constant 0 : index
    %c0_140 = arith.constant 0 : index
    %315 = vector.load %arg26[%c0_138, %c0_139, %c0_140] : memref<2x1x32xf32, #tpu.memory_space<vmem>>, vector<1x1x32xf32>
    %316 = vector.shape_cast %315 : vector<1x1x32xf32> to vector<1x32xf32>
    %317 = vector.broadcast %316 : vector<1x32xf32> to vector<8x32xf32>
    %318 = arith.addf %314, %317 : vector<8x32xf32>
    %cst_141 = arith.constant dense<0.000000e+00> : vector<8xf32>
    %319 = vector.multi_reduction <add>, %318, %cst_141 [1] : vector<8x32xf32> to vector<8xf32>
    %320 = vector.shape_cast %319 : vector<8xf32> to vector<8x1xf32>
    %cst_142 = arith.constant 3.200000e+01 : f32
    %321 = vector.broadcast %cst_142 : f32 to vector<8x1xf32>
    %322 = arith.divf %320, %321 : vector<8x1xf32>
    %323 = vector.broadcast %322 : vector<8x1xf32> to vector<8x32xf32>
    %324 = arith.subf %318, %323 : vector<8x32xf32>
    %325 = arith.mulf %324, %324 : vector<8x32xf32>
    %cst_143 = arith.constant dense<0.000000e+00> : vector<8xf32>
    %326 = vector.multi_reduction <add>, %325, %cst_143 [1] : vector<8x32xf32> to vector<8xf32>
    %327 = vector.shape_cast %326 : vector<8xf32> to vector<8x1xf32>
    %cst_144 = arith.constant 3.200000e+01 : f32
    %328 = vector.broadcast %cst_144 : f32 to vector<8x1xf32>
    %329 = arith.divf %327, %328 : vector<8x1xf32>
    %330 = vector.broadcast %322 : vector<8x1xf32> to vector<8x32xf32>
    %331 = arith.subf %318, %330 : vector<8x32xf32>
    %cst_145 = arith.constant 9.99999974E-6 : f32
    %332 = vector.broadcast %cst_145 : f32 to vector<8x1xf32>
    %333 = arith.addf %329, %332 : vector<8x1xf32>
    %334 = math.rsqrt %333 : vector<8x1xf32>
    %335 = vector.broadcast %334 : vector<8x1xf32> to vector<8x32xf32>
    %336 = arith.mulf %331, %335 : vector<8x32xf32>
    %c0_146 = arith.constant 0 : index
    %c0_147 = arith.constant 0 : index
    %337 = vector.load %arg5[%c0_146, %c0_147] : memref<1x32xf32, #tpu.memory_space<vmem>>, vector<1x32xf32>
    %338 = vector.broadcast %337 : vector<1x32xf32> to vector<8x32xf32>
    %339 = arith.mulf %336, %338 : vector<8x32xf32>
    %c0_148 = arith.constant 0 : index
    %c0_149 = arith.constant 0 : index
    %340 = vector.load %arg6[%c0_148, %c0_149] : memref<1x32xf32, #tpu.memory_space<vmem>>, vector<1x32xf32>
    %341 = vector.broadcast %340 : vector<1x32xf32> to vector<8x32xf32>
    %342 = arith.addf %339, %341 : vector<8x32xf32>
    %c1 = arith.constant 1 : index
    %c0_150 = arith.constant 0 : index
    %c0_151 = arith.constant 0 : index
    %343 = vector.load %arg13[%c1, %c0_150, %c0_151] : memref<2x32x96xf32, #tpu.memory_space<vmem>>, vector<1x32x96xf32>
    %344 = vector.shape_cast %343 : vector<1x32x96xf32> to vector<32x96xf32>
    %cst_152 = arith.constant dense<0.000000e+00> : vector<8x96xf32>
    %345 = tpu.matmul %342, %344, %cst_152 {dimension_numbers = #tpu.dot_dimension_numbers<[1], [0], [0], [1], [0, 0, 1, 1], [], []>} : vector<8x32xf32>, vector<32x96xf32>, vector<8x96xf32> -> vector<8x96xf32>
    %c1_153 = arith.constant 1 : index
    %c0_154 = arith.constant 0 : index
    %c0_155 = arith.constant 0 : index
    %346 = vector.load %arg14[%c1_153, %c0_154, %c0_155] : memref<2x1x96xf32, #tpu.memory_space<vmem>>, vector<1x1x96xf32>
    %347 = vector.shape_cast %346 : vector<1x1x96xf32> to vector<1x96xf32>
    %348 = vector.broadcast %347 : vector<1x96xf32> to vector<8x96xf32>
    %349 = arith.addf %345, %348 : vector<8x96xf32>
    %350 = vector.extract_strided_slice %349 {offsets = [0, 0], sizes = [8, 32], strides = [1, 1]} : vector<8x96xf32> to vector<8x32xf32>
    %351 = vector.extract_strided_slice %349 {offsets = [0, 32], sizes = [8, 32], strides = [1, 1]} : vector<8x96xf32> to vector<8x32xf32>
    %352 = vector.extract_strided_slice %349 {offsets = [0, 64], sizes = [8, 32], strides = [1, 1]} : vector<8x96xf32> to vector<8x32xf32>
    %c1_156 = arith.constant 1 : index
    %c0_157 = arith.constant 0 : index
    %c0_158 = arith.constant 0 : index
    %353 = vector.load %arg15[%c1_156, %c0_157, %c0_158] : memref<2x32x32xf32, #tpu.memory_space<vmem>>, vector<1x32x32xf32>
    %354 = vector.shape_cast %353 : vector<1x32x32xf32> to vector<32x32xf32>
    %c1_159 = arith.constant 1 : index
    %c0_160 = arith.constant 0 : index
    %c0_161 = arith.constant 0 : index
    %355 = vector.load %arg16[%c1_159, %c0_160, %c0_161] : memref<2x1x32xf32, #tpu.memory_space<vmem>>, vector<1x1x32xf32>
    %356 = vector.shape_cast %355 : vector<1x1x32xf32> to vector<1x32xf32>
    %357 = vector.shape_cast %356 : vector<1x32xf32> to vector<1x32xf32>
    %358 = vector.broadcast %357 : vector<1x32xf32> to vector<8x32xf32>
    %359 = vector.extract_strided_slice %350 {offsets = [0, 0], sizes = [8, 8], strides = [1, 1]} : vector<8x32xf32> to vector<8x8xf32>
    %360 = vector.extract_strided_slice %351 {offsets = [0, 0], sizes = [8, 8], strides = [1, 1]} : vector<8x32xf32> to vector<8x8xf32>
    "tpu.trace_start"() <{level = 10 : i32, message = "qd,kd->qk"}> : () -> ()
    %cst_162 = arith.constant dense<0.000000e+00> : vector<8x8xf32>
    %361 = tpu.matmul %359, %360, %cst_162 {dimension_numbers = #tpu.dot_dimension_numbers<[1], [1], [0], [0], [0, 0, 1, 0], [], []>} : vector<8x8xf32>, vector<8x8xf32>, vector<8x8xf32> -> vector<8x8xf32>
    "tpu.trace_stop"() : () -> ()
    %cst_163 = arith.constant 0.353553385 : f32
    %362 = vector.broadcast %cst_163 : f32 to vector<8x8xf32>
    %363 = arith.mulf %361, %362 : vector<8x8xf32>
    %364 = arith.addf %363, %10 : vector<8x8xf32>
    %cst_164 = arith.constant dense<0xFF800000> : vector<8xf32>
    %365 = vector.multi_reduction <maximumf>, %364, %cst_164 [1] : vector<8x8xf32> to vector<8xf32>
    %366 = vector.shape_cast %365 : vector<8xf32> to vector<8x1xf32>
    %367 = vector.broadcast %366 : vector<8x1xf32> to vector<8x8xf32>
    %368 = arith.subf %364, %367 : vector<8x8xf32>
    %369 = math.exp %368 : vector<8x8xf32>
    %cst_165 = arith.constant dense<0.000000e+00> : vector<8xf32>
    %370 = vector.multi_reduction <add>, %369, %cst_165 [1] : vector<8x8xf32> to vector<8xf32>
    %371 = vector.shape_cast %370 : vector<8xf32> to vector<8x1xf32>
    %372 = tpu.reciprocal %371 {approx = true} : vector<8x1xf32> -> vector<8x1xf32>
    %373 = vector.broadcast %372 : vector<8x1xf32> to vector<8x8xf32>
    %374 = arith.mulf %369, %373 : vector<8x8xf32>
    %375 = vector.extract_strided_slice %352 {offsets = [0, 0], sizes = [8, 8], strides = [1, 1]} : vector<8x32xf32> to vector<8x8xf32>
    %cst_166 = arith.constant dense<0.000000e+00> : vector<8x8xf32>
    %376 = tpu.matmul %374, %375, %cst_166 {dimension_numbers = #tpu.dot_dimension_numbers<[1], [0], [0], [1], [0, 0, 1, 1], [], []>} : vector<8x8xf32>, vector<8x8xf32>, vector<8x8xf32> -> vector<8x8xf32>
    %377 = vector.extract_strided_slice %354 {offsets = [0, 0], sizes = [8, 32], strides = [1, 1]} : vector<32x32xf32> to vector<8x32xf32>
    %cst_167 = arith.constant dense<0.000000e+00> : vector<8x32xf32>
    %378 = tpu.matmul %376, %377, %cst_167 {dimension_numbers = #tpu.dot_dimension_numbers<[1], [0], [0], [1], [0, 0, 1, 1], [], []>} : vector<8x8xf32>, vector<8x32xf32>, vector<8x32xf32> -> vector<8x32xf32>
    %379 = arith.addf %358, %378 : vector<8x32xf32>
    %380 = vector.extract_strided_slice %350 {offsets = [0, 8], sizes = [8, 8], strides = [1, 1]} : vector<8x32xf32> to vector<8x8xf32>
    %381 = vector.extract_strided_slice %351 {offsets = [0, 8], sizes = [8, 8], strides = [1, 1]} : vector<8x32xf32> to vector<8x8xf32>
    "tpu.trace_start"() <{level = 10 : i32, message = "qd,kd->qk"}> : () -> ()
    %cst_168 = arith.constant dense<0.000000e+00> : vector<8x8xf32>
    %382 = tpu.matmul %380, %381, %cst_168 {dimension_numbers = #tpu.dot_dimension_numbers<[1], [1], [0], [0], [0, 0, 1, 0], [], []>} : vector<8x8xf32>, vector<8x8xf32>, vector<8x8xf32> -> vector<8x8xf32>
    "tpu.trace_stop"() : () -> ()
    %cst_169 = arith.constant 0.353553385 : f32
    %383 = vector.broadcast %cst_169 : f32 to vector<8x8xf32>
    %384 = arith.mulf %382, %383 : vector<8x8xf32>
    %385 = arith.addf %384, %10 : vector<8x8xf32>
    %cst_170 = arith.constant dense<0xFF800000> : vector<8xf32>
    %386 = vector.multi_reduction <maximumf>, %385, %cst_170 [1] : vector<8x8xf32> to vector<8xf32>
    %387 = vector.shape_cast %386 : vector<8xf32> to vector<8x1xf32>
    %388 = vector.broadcast %387 : vector<8x1xf32> to vector<8x8xf32>
    %389 = arith.subf %385, %388 : vector<8x8xf32>
    %390 = math.exp %389 : vector<8x8xf32>
    %cst_171 = arith.constant dense<0.000000e+00> : vector<8xf32>
    %391 = vector.multi_reduction <add>, %390, %cst_171 [1] : vector<8x8xf32> to vector<8xf32>
    %392 = vector.shape_cast %391 : vector<8xf32> to vector<8x1xf32>
    %393 = tpu.reciprocal %392 {approx = true} : vector<8x1xf32> -> vector<8x1xf32>
    %394 = vector.broadcast %393 : vector<8x1xf32> to vector<8x8xf32>
    %395 = arith.mulf %390, %394 : vector<8x8xf32>
    %396 = vector.extract_strided_slice %352 {offsets = [0, 8], sizes = [8, 8], strides = [1, 1]} : vector<8x32xf32> to vector<8x8xf32>
    %cst_172 = arith.constant dense<0.000000e+00> : vector<8x8xf32>
    %397 = tpu.matmul %395, %396, %cst_172 {dimension_numbers = #tpu.dot_dimension_numbers<[1], [0], [0], [1], [0, 0, 1, 1], [], []>} : vector<8x8xf32>, vector<8x8xf32>, vector<8x8xf32> -> vector<8x8xf32>
    %398 = vector.extract_strided_slice %354 {offsets = [8, 0], sizes = [8, 32], strides = [1, 1]} : vector<32x32xf32> to vector<8x32xf32>
    %cst_173 = arith.constant dense<0.000000e+00> : vector<8x32xf32>
    %399 = tpu.matmul %397, %398, %cst_173 {dimension_numbers = #tpu.dot_dimension_numbers<[1], [0], [0], [1], [0, 0, 1, 1], [], []>} : vector<8x8xf32>, vector<8x32xf32>, vector<8x32xf32> -> vector<8x32xf32>
    %400 = arith.addf %379, %399 : vector<8x32xf32>
    %401 = vector.extract_strided_slice %350 {offsets = [0, 16], sizes = [8, 8], strides = [1, 1]} : vector<8x32xf32> to vector<8x8xf32>
    %402 = vector.extract_strided_slice %351 {offsets = [0, 16], sizes = [8, 8], strides = [1, 1]} : vector<8x32xf32> to vector<8x8xf32>
    "tpu.trace_start"() <{level = 10 : i32, message = "qd,kd->qk"}> : () -> ()
    %cst_174 = arith.constant dense<0.000000e+00> : vector<8x8xf32>
    %403 = tpu.matmul %401, %402, %cst_174 {dimension_numbers = #tpu.dot_dimension_numbers<[1], [1], [0], [0], [0, 0, 1, 0], [], []>} : vector<8x8xf32>, vector<8x8xf32>, vector<8x8xf32> -> vector<8x8xf32>
    "tpu.trace_stop"() : () -> ()
    %cst_175 = arith.constant 0.353553385 : f32
    %404 = vector.broadcast %cst_175 : f32 to vector<8x8xf32>
    %405 = arith.mulf %403, %404 : vector<8x8xf32>
    %406 = arith.addf %405, %10 : vector<8x8xf32>
    %cst_176 = arith.constant dense<0xFF800000> : vector<8xf32>
    %407 = vector.multi_reduction <maximumf>, %406, %cst_176 [1] : vector<8x8xf32> to vector<8xf32>
    %408 = vector.shape_cast %407 : vector<8xf32> to vector<8x1xf32>
    %409 = vector.broadcast %408 : vector<8x1xf32> to vector<8x8xf32>
    %410 = arith.subf %406, %409 : vector<8x8xf32>
    %411 = math.exp %410 : vector<8x8xf32>
    %cst_177 = arith.constant dense<0.000000e+00> : vector<8xf32>
    %412 = vector.multi_reduction <add>, %411, %cst_177 [1] : vector<8x8xf32> to vector<8xf32>
    %413 = vector.shape_cast %412 : vector<8xf32> to vector<8x1xf32>
    %414 = tpu.reciprocal %413 {approx = true} : vector<8x1xf32> -> vector<8x1xf32>
    %415 = vector.broadcast %414 : vector<8x1xf32> to vector<8x8xf32>
    %416 = arith.mulf %411, %415 : vector<8x8xf32>
    %417 = vector.extract_strided_slice %352 {offsets = [0, 16], sizes = [8, 8], strides = [1, 1]} : vector<8x32xf32> to vector<8x8xf32>
    %cst_178 = arith.constant dense<0.000000e+00> : vector<8x8xf32>
    %418 = tpu.matmul %416, %417, %cst_178 {dimension_numbers = #tpu.dot_dimension_numbers<[1], [0], [0], [1], [0, 0, 1, 1], [], []>} : vector<8x8xf32>, vector<8x8xf32>, vector<8x8xf32> -> vector<8x8xf32>
    %419 = vector.extract_strided_slice %354 {offsets = [16, 0], sizes = [8, 32], strides = [1, 1]} : vector<32x32xf32> to vector<8x32xf32>
    %cst_179 = arith.constant dense<0.000000e+00> : vector<8x32xf32>
    %420 = tpu.matmul %418, %419, %cst_179 {dimension_numbers = #tpu.dot_dimension_numbers<[1], [0], [0], [1], [0, 0, 1, 1], [], []>} : vector<8x8xf32>, vector<8x32xf32>, vector<8x32xf32> -> vector<8x32xf32>
    %421 = arith.addf %400, %420 : vector<8x32xf32>
    %422 = vector.extract_strided_slice %350 {offsets = [0, 24], sizes = [8, 8], strides = [1, 1]} : vector<8x32xf32> to vector<8x8xf32>
    %423 = vector.extract_strided_slice %351 {offsets = [0, 24], sizes = [8, 8], strides = [1, 1]} : vector<8x32xf32> to vector<8x8xf32>
    "tpu.trace_start"() <{level = 10 : i32, message = "qd,kd->qk"}> : () -> ()
    %cst_180 = arith.constant dense<0.000000e+00> : vector<8x8xf32>
    %424 = tpu.matmul %422, %423, %cst_180 {dimension_numbers = #tpu.dot_dimension_numbers<[1], [1], [0], [0], [0, 0, 1, 0], [], []>} : vector<8x8xf32>, vector<8x8xf32>, vector<8x8xf32> -> vector<8x8xf32>
    "tpu.trace_stop"() : () -> ()
    %cst_181 = arith.constant 0.353553385 : f32
    %425 = vector.broadcast %cst_181 : f32 to vector<8x8xf32>
    %426 = arith.mulf %424, %425 : vector<8x8xf32>
    %427 = arith.addf %426, %10 : vector<8x8xf32>
    %cst_182 = arith.constant dense<0xFF800000> : vector<8xf32>
    %428 = vector.multi_reduction <maximumf>, %427, %cst_182 [1] : vector<8x8xf32> to vector<8xf32>
    %429 = vector.shape_cast %428 : vector<8xf32> to vector<8x1xf32>
    %430 = vector.broadcast %429 : vector<8x1xf32> to vector<8x8xf32>
    %431 = arith.subf %427, %430 : vector<8x8xf32>
    %432 = math.exp %431 : vector<8x8xf32>
    %cst_183 = arith.constant dense<0.000000e+00> : vector<8xf32>
    %433 = vector.multi_reduction <add>, %432, %cst_183 [1] : vector<8x8xf32> to vector<8xf32>
    %434 = vector.shape_cast %433 : vector<8xf32> to vector<8x1xf32>
    %435 = tpu.reciprocal %434 {approx = true} : vector<8x1xf32> -> vector<8x1xf32>
    %436 = vector.broadcast %435 : vector<8x1xf32> to vector<8x8xf32>
    %437 = arith.mulf %432, %436 : vector<8x8xf32>
    %438 = vector.extract_strided_slice %352 {offsets = [0, 24], sizes = [8, 8], strides = [1, 1]} : vector<8x32xf32> to vector<8x8xf32>
    %cst_184 = arith.constant dense<0.000000e+00> : vector<8x8xf32>
    %439 = tpu.matmul %437, %438, %cst_184 {dimension_numbers = #tpu.dot_dimension_numbers<[1], [0], [0], [1], [0, 0, 1, 1], [], []>} : vector<8x8xf32>, vector<8x8xf32>, vector<8x8xf32> -> vector<8x8xf32>
    %440 = vector.extract_strided_slice %354 {offsets = [24, 0], sizes = [8, 32], strides = [1, 1]} : vector<32x32xf32> to vector<8x32xf32>
    %cst_185 = arith.constant dense<0.000000e+00> : vector<8x32xf32>
    %441 = tpu.matmul %439, %440, %cst_185 {dimension_numbers = #tpu.dot_dimension_numbers<[1], [0], [0], [1], [0, 0, 1, 1], [], []>} : vector<8x8xf32>, vector<8x32xf32>, vector<8x32xf32> -> vector<8x32xf32>
    %442 = arith.addf %421, %441 : vector<8x32xf32>
    %443 = arith.addf %318, %442 : vector<8x32xf32>
    %cst_186 = arith.constant dense<0.000000e+00> : vector<8xf32>
    %444 = vector.multi_reduction <add>, %443, %cst_186 [1] : vector<8x32xf32> to vector<8xf32>
    %445 = vector.shape_cast %444 : vector<8xf32> to vector<8x1xf32>
    %cst_187 = arith.constant 3.200000e+01 : f32
    %446 = vector.broadcast %cst_187 : f32 to vector<8x1xf32>
    %447 = arith.divf %445, %446 : vector<8x1xf32>
    %448 = vector.broadcast %447 : vector<8x1xf32> to vector<8x32xf32>
    %449 = arith.subf %443, %448 : vector<8x32xf32>
    %450 = arith.mulf %449, %449 : vector<8x32xf32>
    %cst_188 = arith.constant dense<0.000000e+00> : vector<8xf32>
    %451 = vector.multi_reduction <add>, %450, %cst_188 [1] : vector<8x32xf32> to vector<8xf32>
    %452 = vector.shape_cast %451 : vector<8xf32> to vector<8x1xf32>
    %cst_189 = arith.constant 3.200000e+01 : f32
    %453 = vector.broadcast %cst_189 : f32 to vector<8x1xf32>
    %454 = arith.divf %452, %453 : vector<8x1xf32>
    %455 = vector.broadcast %447 : vector<8x1xf32> to vector<8x32xf32>
    %456 = arith.subf %443, %455 : vector<8x32xf32>
    %cst_190 = arith.constant 9.99999974E-6 : f32
    %457 = vector.broadcast %cst_190 : f32 to vector<8x1xf32>
    %458 = arith.addf %454, %457 : vector<8x1xf32>
    %459 = math.rsqrt %458 : vector<8x1xf32>
    %460 = vector.broadcast %459 : vector<8x1xf32> to vector<8x32xf32>
    %461 = arith.mulf %456, %460 : vector<8x32xf32>
    %c0_191 = arith.constant 0 : index
    %c0_192 = arith.constant 0 : index
    %462 = vector.load %arg7[%c0_191, %c0_192] : memref<1x32xf32, #tpu.memory_space<vmem>>, vector<1x32xf32>
    %463 = vector.broadcast %462 : vector<1x32xf32> to vector<8x32xf32>
    %464 = arith.mulf %461, %463 : vector<8x32xf32>
    %c0_193 = arith.constant 0 : index
    %c0_194 = arith.constant 0 : index
    %465 = vector.load %arg8[%c0_193, %c0_194] : memref<1x32xf32, #tpu.memory_space<vmem>>, vector<1x32xf32>
    %466 = vector.broadcast %465 : vector<1x32xf32> to vector<8x32xf32>
    %467 = arith.addf %464, %466 : vector<8x32xf32>
    %c1_195 = arith.constant 1 : index
    %c0_196 = arith.constant 0 : index
    %c0_197 = arith.constant 0 : index
    %468 = vector.load %arg17[%c1_195, %c0_196, %c0_197] : memref<2x32x32xf32, #tpu.memory_space<vmem>>, vector<1x32x32xf32>
    %469 = vector.shape_cast %468 : vector<1x32x32xf32> to vector<32x32xf32>
    %cst_198 = arith.constant dense<0.000000e+00> : vector<8x32xf32>
    %470 = tpu.matmul %467, %469, %cst_198 {dimension_numbers = #tpu.dot_dimension_numbers<[1], [0], [0], [1], [0, 0, 1, 1], [], []>} : vector<8x32xf32>, vector<32x32xf32>, vector<8x32xf32> -> vector<8x32xf32>
    %c1_199 = arith.constant 1 : index
    %c0_200 = arith.constant 0 : index
    %c0_201 = arith.constant 0 : index
    %471 = vector.load %arg18[%c1_199, %c0_200, %c0_201] : memref<2x1x32xf32, #tpu.memory_space<vmem>>, vector<1x1x32xf32>
    %472 = vector.shape_cast %471 : vector<1x1x32xf32> to vector<1x32xf32>
    %473 = vector.broadcast %472 : vector<1x32xf32> to vector<8x32xf32>
    %474 = arith.addf %470, %473 : vector<8x32xf32>
    %c1_202 = arith.constant 1 : index
    %c0_203 = arith.constant 0 : index
    %c0_204 = arith.constant 0 : index
    %475 = vector.load %arg19[%c1_202, %c0_203, %c0_204] : memref<2x32x64xf32, #tpu.memory_space<vmem>>, vector<1x32x64xf32>
    %476 = vector.shape_cast %475 : vector<1x32x64xf32> to vector<32x64xf32>
    %cst_205 = arith.constant dense<0.000000e+00> : vector<16x64xf32>
    %477 = tpu.matmul %3, %476, %cst_205 {dimension_numbers = #tpu.dot_dimension_numbers<[1], [0], [0], [1], [0, 0, 1, 1], [], []>} : vector<16x32xf32>, vector<32x64xf32>, vector<16x64xf32> -> vector<16x64xf32>
    %c1_206 = arith.constant 1 : index
    %c0_207 = arith.constant 0 : index
    %c0_208 = arith.constant 0 : index
    %478 = vector.load %arg20[%c1_206, %c0_207, %c0_208] : memref<2x1x64xf32, #tpu.memory_space<vmem>>, vector<1x1x64xf32>
    %479 = vector.shape_cast %478 : vector<1x1x64xf32> to vector<1x64xf32>
    %480 = vector.broadcast %479 : vector<1x64xf32> to vector<16x64xf32>
    %481 = arith.addf %477, %480 : vector<16x64xf32>
    %482 = vector.extract_strided_slice %481 {offsets = [0, 0], sizes = [16, 32], strides = [1, 1]} : vector<16x64xf32> to vector<16x32xf32>
    %483 = vector.extract_strided_slice %481 {offsets = [0, 32], sizes = [16, 32], strides = [1, 1]} : vector<16x64xf32> to vector<16x32xf32>
    %c1_209 = arith.constant 1 : index
    %c0_210 = arith.constant 0 : index
    %c0_211 = arith.constant 0 : index
    %484 = vector.load %arg21[%c1_209, %c0_210, %c0_211] : memref<2x32x32xf32, #tpu.memory_space<vmem>>, vector<1x32x32xf32>
    %485 = vector.shape_cast %484 : vector<1x32x32xf32> to vector<32x32xf32>
    %c1_212 = arith.constant 1 : index
    %c0_213 = arith.constant 0 : index
    %c0_214 = arith.constant 0 : index
    %486 = vector.load %arg22[%c1_212, %c0_213, %c0_214] : memref<2x1x32xf32, #tpu.memory_space<vmem>>, vector<1x1x32xf32>
    %487 = vector.shape_cast %486 : vector<1x1x32xf32> to vector<1x32xf32>
    %488 = vector.shape_cast %487 : vector<1x32xf32> to vector<1x32xf32>
    %489 = vector.broadcast %488 : vector<1x32xf32> to vector<8x32xf32>
    %490 = vector.extract_strided_slice %474 {offsets = [0, 0], sizes = [8, 8], strides = [1, 1]} : vector<8x32xf32> to vector<8x8xf32>
    %491 = vector.extract_strided_slice %482 {offsets = [0, 0], sizes = [16, 8], strides = [1, 1]} : vector<16x32xf32> to vector<16x8xf32>
    "tpu.trace_start"() <{level = 10 : i32, message = "qd,kd->qk"}> : () -> ()
    %cst_215 = arith.constant dense<0.000000e+00> : vector<8x16xf32>
    %492 = tpu.matmul %490, %491, %cst_215 {dimension_numbers = #tpu.dot_dimension_numbers<[1], [1], [0], [0], [0, 0, 1, 0], [], []>} : vector<8x8xf32>, vector<16x8xf32>, vector<8x16xf32> -> vector<8x16xf32>
    "tpu.trace_stop"() : () -> ()
    %cst_216 = arith.constant 0.353553385 : f32
    %493 = vector.broadcast %cst_216 : f32 to vector<8x16xf32>
    %494 = arith.mulf %492, %493 : vector<8x16xf32>
    %495 = vector.broadcast %17 : vector<1x16xf32> to vector<8x16xf32>
    %496 = arith.addf %494, %495 : vector<8x16xf32>
    %cst_217 = arith.constant dense<0xFF800000> : vector<8xf32>
    %497 = vector.multi_reduction <maximumf>, %496, %cst_217 [1] : vector<8x16xf32> to vector<8xf32>
    %498 = vector.shape_cast %497 : vector<8xf32> to vector<8x1xf32>
    %499 = vector.broadcast %498 : vector<8x1xf32> to vector<8x16xf32>
    %500 = arith.subf %496, %499 : vector<8x16xf32>
    %501 = math.exp %500 : vector<8x16xf32>
    %cst_218 = arith.constant dense<0.000000e+00> : vector<8xf32>
    %502 = vector.multi_reduction <add>, %501, %cst_218 [1] : vector<8x16xf32> to vector<8xf32>
    %503 = vector.shape_cast %502 : vector<8xf32> to vector<8x1xf32>
    %504 = tpu.reciprocal %503 {approx = true} : vector<8x1xf32> -> vector<8x1xf32>
    %505 = vector.broadcast %504 : vector<8x1xf32> to vector<8x16xf32>
    %506 = arith.mulf %501, %505 : vector<8x16xf32>
    %507 = vector.extract_strided_slice %483 {offsets = [0, 0], sizes = [16, 8], strides = [1, 1]} : vector<16x32xf32> to vector<16x8xf32>
    %cst_219 = arith.constant dense<0.000000e+00> : vector<8x8xf32>
    %508 = tpu.matmul %506, %507, %cst_219 {dimension_numbers = #tpu.dot_dimension_numbers<[1], [0], [0], [1], [0, 0, 1, 1], [], []>} : vector<8x16xf32>, vector<16x8xf32>, vector<8x8xf32> -> vector<8x8xf32>
    %509 = vector.extract_strided_slice %485 {offsets = [0, 0], sizes = [8, 32], strides = [1, 1]} : vector<32x32xf32> to vector<8x32xf32>
    %cst_220 = arith.constant dense<0.000000e+00> : vector<8x32xf32>
    %510 = tpu.matmul %508, %509, %cst_220 {dimension_numbers = #tpu.dot_dimension_numbers<[1], [0], [0], [1], [0, 0, 1, 1], [], []>} : vector<8x8xf32>, vector<8x32xf32>, vector<8x32xf32> -> vector<8x32xf32>
    %511 = arith.addf %489, %510 : vector<8x32xf32>
    %512 = vector.extract_strided_slice %474 {offsets = [0, 8], sizes = [8, 8], strides = [1, 1]} : vector<8x32xf32> to vector<8x8xf32>
    %513 = vector.extract_strided_slice %482 {offsets = [0, 8], sizes = [16, 8], strides = [1, 1]} : vector<16x32xf32> to vector<16x8xf32>
    "tpu.trace_start"() <{level = 10 : i32, message = "qd,kd->qk"}> : () -> ()
    %cst_221 = arith.constant dense<0.000000e+00> : vector<8x16xf32>
    %514 = tpu.matmul %512, %513, %cst_221 {dimension_numbers = #tpu.dot_dimension_numbers<[1], [1], [0], [0], [0, 0, 1, 0], [], []>} : vector<8x8xf32>, vector<16x8xf32>, vector<8x16xf32> -> vector<8x16xf32>
    "tpu.trace_stop"() : () -> ()
    %cst_222 = arith.constant 0.353553385 : f32
    %515 = vector.broadcast %cst_222 : f32 to vector<8x16xf32>
    %516 = arith.mulf %514, %515 : vector<8x16xf32>
    %517 = vector.broadcast %17 : vector<1x16xf32> to vector<8x16xf32>
    %518 = arith.addf %516, %517 : vector<8x16xf32>
    %cst_223 = arith.constant dense<0xFF800000> : vector<8xf32>
    %519 = vector.multi_reduction <maximumf>, %518, %cst_223 [1] : vector<8x16xf32> to vector<8xf32>
    %520 = vector.shape_cast %519 : vector<8xf32> to vector<8x1xf32>
    %521 = vector.broadcast %520 : vector<8x1xf32> to vector<8x16xf32>
    %522 = arith.subf %518, %521 : vector<8x16xf32>
    %523 = math.exp %522 : vector<8x16xf32>
    %cst_224 = arith.constant dense<0.000000e+00> : vector<8xf32>
    %524 = vector.multi_reduction <add>, %523, %cst_224 [1] : vector<8x16xf32> to vector<8xf32>
    %525 = vector.shape_cast %524 : vector<8xf32> to vector<8x1xf32>
    %526 = tpu.reciprocal %525 {approx = true} : vector<8x1xf32> -> vector<8x1xf32>
    %527 = vector.broadcast %526 : vector<8x1xf32> to vector<8x16xf32>
    %528 = arith.mulf %523, %527 : vector<8x16xf32>
    %529 = vector.extract_strided_slice %483 {offsets = [0, 8], sizes = [16, 8], strides = [1, 1]} : vector<16x32xf32> to vector<16x8xf32>
    %cst_225 = arith.constant dense<0.000000e+00> : vector<8x8xf32>
    %530 = tpu.matmul %528, %529, %cst_225 {dimension_numbers = #tpu.dot_dimension_numbers<[1], [0], [0], [1], [0, 0, 1, 1], [], []>} : vector<8x16xf32>, vector<16x8xf32>, vector<8x8xf32> -> vector<8x8xf32>
    %531 = vector.extract_strided_slice %485 {offsets = [8, 0], sizes = [8, 32], strides = [1, 1]} : vector<32x32xf32> to vector<8x32xf32>
    %cst_226 = arith.constant dense<0.000000e+00> : vector<8x32xf32>
    %532 = tpu.matmul %530, %531, %cst_226 {dimension_numbers = #tpu.dot_dimension_numbers<[1], [0], [0], [1], [0, 0, 1, 1], [], []>} : vector<8x8xf32>, vector<8x32xf32>, vector<8x32xf32> -> vector<8x32xf32>
    %533 = arith.addf %511, %532 : vector<8x32xf32>
    %534 = vector.extract_strided_slice %474 {offsets = [0, 16], sizes = [8, 8], strides = [1, 1]} : vector<8x32xf32> to vector<8x8xf32>
    %535 = vector.extract_strided_slice %482 {offsets = [0, 16], sizes = [16, 8], strides = [1, 1]} : vector<16x32xf32> to vector<16x8xf32>
    "tpu.trace_start"() <{level = 10 : i32, message = "qd,kd->qk"}> : () -> ()
    %cst_227 = arith.constant dense<0.000000e+00> : vector<8x16xf32>
    %536 = tpu.matmul %534, %535, %cst_227 {dimension_numbers = #tpu.dot_dimension_numbers<[1], [1], [0], [0], [0, 0, 1, 0], [], []>} : vector<8x8xf32>, vector<16x8xf32>, vector<8x16xf32> -> vector<8x16xf32>
    "tpu.trace_stop"() : () -> ()
    %cst_228 = arith.constant 0.353553385 : f32
    %537 = vector.broadcast %cst_228 : f32 to vector<8x16xf32>
    %538 = arith.mulf %536, %537 : vector<8x16xf32>
    %539 = vector.broadcast %17 : vector<1x16xf32> to vector<8x16xf32>
    %540 = arith.addf %538, %539 : vector<8x16xf32>
    %cst_229 = arith.constant dense<0xFF800000> : vector<8xf32>
    %541 = vector.multi_reduction <maximumf>, %540, %cst_229 [1] : vector<8x16xf32> to vector<8xf32>
    %542 = vector.shape_cast %541 : vector<8xf32> to vector<8x1xf32>
    %543 = vector.broadcast %542 : vector<8x1xf32> to vector<8x16xf32>
    %544 = arith.subf %540, %543 : vector<8x16xf32>
    %545 = math.exp %544 : vector<8x16xf32>
    %cst_230 = arith.constant dense<0.000000e+00> : vector<8xf32>
    %546 = vector.multi_reduction <add>, %545, %cst_230 [1] : vector<8x16xf32> to vector<8xf32>
    %547 = vector.shape_cast %546 : vector<8xf32> to vector<8x1xf32>
    %548 = tpu.reciprocal %547 {approx = true} : vector<8x1xf32> -> vector<8x1xf32>
    %549 = vector.broadcast %548 : vector<8x1xf32> to vector<8x16xf32>
    %550 = arith.mulf %545, %549 : vector<8x16xf32>
    %551 = vector.extract_strided_slice %483 {offsets = [0, 16], sizes = [16, 8], strides = [1, 1]} : vector<16x32xf32> to vector<16x8xf32>
    %cst_231 = arith.constant dense<0.000000e+00> : vector<8x8xf32>
    %552 = tpu.matmul %550, %551, %cst_231 {dimension_numbers = #tpu.dot_dimension_numbers<[1], [0], [0], [1], [0, 0, 1, 1], [], []>} : vector<8x16xf32>, vector<16x8xf32>, vector<8x8xf32> -> vector<8x8xf32>
    %553 = vector.extract_strided_slice %485 {offsets = [16, 0], sizes = [8, 32], strides = [1, 1]} : vector<32x32xf32> to vector<8x32xf32>
    %cst_232 = arith.constant dense<0.000000e+00> : vector<8x32xf32>
    %554 = tpu.matmul %552, %553, %cst_232 {dimension_numbers = #tpu.dot_dimension_numbers<[1], [0], [0], [1], [0, 0, 1, 1], [], []>} : vector<8x8xf32>, vector<8x32xf32>, vector<8x32xf32> -> vector<8x32xf32>
    %555 = arith.addf %533, %554 : vector<8x32xf32>
    %556 = vector.extract_strided_slice %474 {offsets = [0, 24], sizes = [8, 8], strides = [1, 1]} : vector<8x32xf32> to vector<8x8xf32>
    %557 = vector.extract_strided_slice %482 {offsets = [0, 24], sizes = [16, 8], strides = [1, 1]} : vector<16x32xf32> to vector<16x8xf32>
    "tpu.trace_start"() <{level = 10 : i32, message = "qd,kd->qk"}> : () -> ()
    %cst_233 = arith.constant dense<0.000000e+00> : vector<8x16xf32>
    %558 = tpu.matmul %556, %557, %cst_233 {dimension_numbers = #tpu.dot_dimension_numbers<[1], [1], [0], [0], [0, 0, 1, 0], [], []>} : vector<8x8xf32>, vector<16x8xf32>, vector<8x16xf32> -> vector<8x16xf32>
    "tpu.trace_stop"() : () -> ()
    %cst_234 = arith.constant 0.353553385 : f32
    %559 = vector.broadcast %cst_234 : f32 to vector<8x16xf32>
    %560 = arith.mulf %558, %559 : vector<8x16xf32>
    %561 = vector.broadcast %17 : vector<1x16xf32> to vector<8x16xf32>
    %562 = arith.addf %560, %561 : vector<8x16xf32>
    %cst_235 = arith.constant dense<0xFF800000> : vector<8xf32>
    %563 = vector.multi_reduction <maximumf>, %562, %cst_235 [1] : vector<8x16xf32> to vector<8xf32>
    %564 = vector.shape_cast %563 : vector<8xf32> to vector<8x1xf32>
    %565 = vector.broadcast %564 : vector<8x1xf32> to vector<8x16xf32>
    %566 = arith.subf %562, %565 : vector<8x16xf32>
    %567 = math.exp %566 : vector<8x16xf32>
    %cst_236 = arith.constant dense<0.000000e+00> : vector<8xf32>
    %568 = vector.multi_reduction <add>, %567, %cst_236 [1] : vector<8x16xf32> to vector<8xf32>
    %569 = vector.shape_cast %568 : vector<8xf32> to vector<8x1xf32>
    %570 = tpu.reciprocal %569 {approx = true} : vector<8x1xf32> -> vector<8x1xf32>
    %571 = vector.broadcast %570 : vector<8x1xf32> to vector<8x16xf32>
    %572 = arith.mulf %567, %571 : vector<8x16xf32>
    %573 = vector.extract_strided_slice %483 {offsets = [0, 24], sizes = [16, 8], strides = [1, 1]} : vector<16x32xf32> to vector<16x8xf32>
    %cst_237 = arith.constant dense<0.000000e+00> : vector<8x8xf32>
    %574 = tpu.matmul %572, %573, %cst_237 {dimension_numbers = #tpu.dot_dimension_numbers<[1], [0], [0], [1], [0, 0, 1, 1], [], []>} : vector<8x16xf32>, vector<16x8xf32>, vector<8x8xf32> -> vector<8x8xf32>
    %575 = vector.extract_strided_slice %485 {offsets = [24, 0], sizes = [8, 32], strides = [1, 1]} : vector<32x32xf32> to vector<8x32xf32>
    %cst_238 = arith.constant dense<0.000000e+00> : vector<8x32xf32>
    %576 = tpu.matmul %574, %575, %cst_238 {dimension_numbers = #tpu.dot_dimension_numbers<[1], [0], [0], [1], [0, 0, 1, 1], [], []>} : vector<8x8xf32>, vector<8x32xf32>, vector<8x32xf32> -> vector<8x32xf32>
    %577 = arith.addf %555, %576 : vector<8x32xf32>
    %578 = arith.addf %443, %577 : vector<8x32xf32>
    %cst_239 = arith.constant dense<0.000000e+00> : vector<8xf32>
    %579 = vector.multi_reduction <add>, %578, %cst_239 [1] : vector<8x32xf32> to vector<8xf32>
    %580 = vector.shape_cast %579 : vector<8xf32> to vector<8x1xf32>
    %cst_240 = arith.constant 3.200000e+01 : f32
    %581 = vector.broadcast %cst_240 : f32 to vector<8x1xf32>
    %582 = arith.divf %580, %581 : vector<8x1xf32>
    %583 = vector.broadcast %582 : vector<8x1xf32> to vector<8x32xf32>
    %584 = arith.subf %578, %583 : vector<8x32xf32>
    %585 = arith.mulf %584, %584 : vector<8x32xf32>
    %cst_241 = arith.constant dense<0.000000e+00> : vector<8xf32>
    %586 = vector.multi_reduction <add>, %585, %cst_241 [1] : vector<8x32xf32> to vector<8xf32>
    %587 = vector.shape_cast %586 : vector<8xf32> to vector<8x1xf32>
    %cst_242 = arith.constant 3.200000e+01 : f32
    %588 = vector.broadcast %cst_242 : f32 to vector<8x1xf32>
    %589 = arith.divf %587, %588 : vector<8x1xf32>
    %590 = vector.broadcast %582 : vector<8x1xf32> to vector<8x32xf32>
    %591 = arith.subf %578, %590 : vector<8x32xf32>
    %cst_243 = arith.constant 9.99999974E-6 : f32
    %592 = vector.broadcast %cst_243 : f32 to vector<8x1xf32>
    %593 = arith.addf %589, %592 : vector<8x1xf32>
    %594 = math.rsqrt %593 : vector<8x1xf32>
    %595 = vector.broadcast %594 : vector<8x1xf32> to vector<8x32xf32>
    %596 = arith.mulf %591, %595 : vector<8x32xf32>
    %c0_244 = arith.constant 0 : index
    %c0_245 = arith.constant 0 : index
    %597 = vector.load %arg9[%c0_244, %c0_245] : memref<1x32xf32, #tpu.memory_space<vmem>>, vector<1x32xf32>
    %598 = vector.broadcast %597 : vector<1x32xf32> to vector<8x32xf32>
    %599 = arith.mulf %596, %598 : vector<8x32xf32>
    %c0_246 = arith.constant 0 : index
    %c0_247 = arith.constant 0 : index
    %600 = vector.load %arg10[%c0_246, %c0_247] : memref<1x32xf32, #tpu.memory_space<vmem>>, vector<1x32xf32>
    %601 = vector.broadcast %600 : vector<1x32xf32> to vector<8x32xf32>
    %602 = arith.addf %599, %601 : vector<8x32xf32>
    %c1_248 = arith.constant 1 : index
    %c0_249 = arith.constant 0 : index
    %c0_250 = arith.constant 0 : index
    %603 = vector.load %arg23[%c1_248, %c0_249, %c0_250] : memref<2x32x64xf32, #tpu.memory_space<vmem>>, vector<1x32x64xf32>
    %604 = vector.shape_cast %603 : vector<1x32x64xf32> to vector<32x64xf32>
    %cst_251 = arith.constant dense<0.000000e+00> : vector<8x64xf32>
    %605 = tpu.matmul %602, %604, %cst_251 {dimension_numbers = #tpu.dot_dimension_numbers<[1], [0], [0], [1], [0, 0, 1, 1], [], []>} : vector<8x32xf32>, vector<32x64xf32>, vector<8x64xf32> -> vector<8x64xf32>
    %c1_252 = arith.constant 1 : index
    %c0_253 = arith.constant 0 : index
    %c0_254 = arith.constant 0 : index
    %606 = vector.load %arg24[%c1_252, %c0_253, %c0_254] : memref<2x1x64xf32, #tpu.memory_space<vmem>>, vector<1x1x64xf32>
    %607 = vector.shape_cast %606 : vector<1x1x64xf32> to vector<1x64xf32>
    %608 = vector.broadcast %607 : vector<1x64xf32> to vector<8x64xf32>
    %609 = arith.addf %605, %608 : vector<8x64xf32>
    %cst_255 = arith.constant 0.000000e+00 : f32
    %610 = vector.broadcast %cst_255 : f32 to vector<8x64xf32>
    %611 = arith.maximumf %609, %610 : vector<8x64xf32>
    %c1_256 = arith.constant 1 : index
    %c0_257 = arith.constant 0 : index
    %c0_258 = arith.constant 0 : index
    %612 = vector.load %arg25[%c1_256, %c0_257, %c0_258] : memref<2x64x32xf32, #tpu.memory_space<vmem>>, vector<1x64x32xf32>
    %613 = vector.shape_cast %612 : vector<1x64x32xf32> to vector<64x32xf32>
    %cst_259 = arith.constant dense<0.000000e+00> : vector<8x32xf32>
    %614 = tpu.matmul %611, %613, %cst_259 {dimension_numbers = #tpu.dot_dimension_numbers<[1], [0], [0], [1], [0, 0, 1, 1], [], []>} : vector<8x64xf32>, vector<64x32xf32>, vector<8x32xf32> -> vector<8x32xf32>
    %615 = arith.addf %578, %614 : vector<8x32xf32>
    %c1_260 = arith.constant 1 : index
    %c0_261 = arith.constant 0 : index
    %c0_262 = arith.constant 0 : index
    %616 = vector.load %arg26[%c1_260, %c0_261, %c0_262] : memref<2x1x32xf32, #tpu.memory_space<vmem>>, vector<1x1x32xf32>
    %617 = vector.shape_cast %616 : vector<1x1x32xf32> to vector<1x32xf32>
    %618 = vector.broadcast %617 : vector<1x32xf32> to vector<8x32xf32>
    %619 = arith.addf %615, %618 : vector<8x32xf32>
    %cst_263 = arith.constant dense<0.000000e+00> : vector<8xf32>
    %620 = vector.multi_reduction <add>, %619, %cst_263 [1] : vector<8x32xf32> to vector<8xf32>
    %621 = vector.shape_cast %620 : vector<8xf32> to vector<8x1xf32>
    %cst_264 = arith.constant 3.200000e+01 : f32
    %622 = vector.broadcast %cst_264 : f32 to vector<8x1xf32>
    %623 = arith.divf %621, %622 : vector<8x1xf32>
    %624 = vector.broadcast %623 : vector<8x1xf32> to vector<8x32xf32>
    %625 = arith.subf %619, %624 : vector<8x32xf32>
    %626 = arith.mulf %625, %625 : vector<8x32xf32>
    %cst_265 = arith.constant dense<0.000000e+00> : vector<8xf32>
    %627 = vector.multi_reduction <add>, %626, %cst_265 [1] : vector<8x32xf32> to vector<8xf32>
    %628 = vector.shape_cast %627 : vector<8xf32> to vector<8x1xf32>
    %cst_266 = arith.constant 3.200000e+01 : f32
    %629 = vector.broadcast %cst_266 : f32 to vector<8x1xf32>
    %630 = arith.divf %628, %629 : vector<8x1xf32>
    %631 = vector.broadcast %623 : vector<8x1xf32> to vector<8x32xf32>
    %632 = arith.subf %619, %631 : vector<8x32xf32>
    %cst_267 = arith.constant 9.99999974E-6 : f32
    %633 = vector.broadcast %cst_267 : f32 to vector<8x1xf32>
    %634 = arith.addf %630, %633 : vector<8x1xf32>
    %635 = math.rsqrt %634 : vector<8x1xf32>
    %636 = vector.broadcast %635 : vector<8x1xf32> to vector<8x32xf32>
    %637 = arith.mulf %632, %636 : vector<8x32xf32>
    %c0_268 = arith.constant 0 : index
    %c0_269 = arith.constant 0 : index
    %638 = vector.load %arg11[%c0_268, %c0_269] : memref<1x32xf32, #tpu.memory_space<vmem>>, vector<1x32xf32>
    %639 = vector.broadcast %638 : vector<1x32xf32> to vector<8x32xf32>
    %640 = arith.mulf %637, %639 : vector<8x32xf32>
    %c0_270 = arith.constant 0 : index
    %c0_271 = arith.constant 0 : index
    %641 = vector.load %arg12[%c0_270, %c0_271] : memref<1x32xf32, #tpu.memory_space<vmem>>, vector<1x32xf32>
    %642 = vector.broadcast %641 : vector<1x32xf32> to vector<8x32xf32>
    %643 = arith.addf %640, %642 : vector<8x32xf32>
    %c0_272 = arith.constant 0 : index
    %c0_273 = arith.constant 0 : index
    %c0_274 = arith.constant 0 : index
    %644 = vector.load %arg27[%c0_272, %c0_273, %c0_274] : memref<1x8x32xf32, #tpu.memory_space<vmem>>, vector<1x8x32xf32>
    %645 = vector.shape_cast %644 : vector<1x8x32xf32> to vector<8x32xf32>
    %646 = vector.shape_cast %643 : vector<8x32xf32> to vector<1x8x32xf32>
    tpu.vector_store %arg27[%c0_272, %c0_273, %c0_274], %646 {strides = array<i32>} : memref<1x8x32xf32, #tpu.memory_space<vmem>>, vector<1x8x32xf32>,
    return
  }
  func.func @transform_0(%arg0: i32) -> (i32, i32, i32) {
    %c0_i32 = arith.constant 0 : i32
    %c0_i32_0 = arith.constant 0 : i32
    %c0_i32_1 = arith.constant 0 : i32
    return %arg0, %c0_i32, %c0_i32_0 : i32, i32, i32
  }
  func.func @transform_1(%arg0: i32) -> (i32, i32, i32) {
    %c0_i32 = arith.constant 0 : i32
    %c0_i32_0 = arith.constant 0 : i32
    %c0_i32_1 = arith.constant 0 : i32
    return %arg0, %c0_i32, %c0_i32_0 : i32, i32, i32
  }
  func.func @transform_2(%arg0: i32) -> (i32, i32, i32, i32) {
    %c0_i32 = arith.constant 0 : i32
    %c0_i32_0 = arith.constant 0 : i32
    %c0_i32_1 = arith.constant 0 : i32
    %c0_i32_2 = arith.constant 0 : i32
    return %arg0, %c0_i32, %c0_i32_0, %c0_i32_1 : i32, i32, i32, i32
  }
  func.func @transform_3(%arg0: i32) -> (i32, i32, i32, i32) {
    %c0_i32 = arith.constant 0 : i32
    %c0_i32_0 = arith.constant 0 : i32
    %c0_i32_1 = arith.constant 0 : i32
    %c0_i32_2 = arith.constant 0 : i32
    return %arg0, %c0_i32, %c0_i32_0, %c0_i32_1 : i32, i32, i32, i32
  }
  func.func @transform_4(%arg0: i32) -> (i32, i32) {
    %c0_i32 = arith.constant 0 : i32
    %c0_i32_0 = arith.constant 0 : i32
    %c0_i32_1 = arith.constant 0 : i32
    return %c0_i32, %c0_i32_0 : i32, i32
  }
  func.func @transform_5(%arg0: i32) -> (i32, i32) {
    %c0_i32 = arith.constant 0 : i32
    %c0_i32_0 = arith.constant 0 : i32
    %c0_i32_1 = arith.constant 0 : i32
    return %c0_i32, %c0_i32_0 : i32, i32
  }
  func.func @transform_6(%arg0: i32) -> (i32, i32) {
    %c0_i32 = arith.constant 0 : i32
    %c0_i32_0 = arith.constant 0 : i32
    %c0_i32_1 = arith.constant 0 : i32
    return %c0_i32, %c0_i32_0 : i32, i32
  }
  func.func @transform_7(%arg0: i32) -> (i32, i32) {
    %c0_i32 = arith.constant 0 : i32
    %c0_i32_0 = arith.constant 0 : i32
    %c0_i32_1 = arith.constant 0 : i32
    return %c0_i32, %c0_i32_0 : i32, i32
  }
  func.func @transform_8(%arg0: i32) -> (i32, i32) {
    %c0_i32 = arith.constant 0 : i32
    %c0_i32_0 = arith.constant 0 : i32
    %c0_i32_1 = arith.constant 0 : i32
    return %c0_i32, %c0_i32_0 : i32, i32
  }
  func.func @transform_9(%arg0: i32) -> (i32, i32) {
    %c0_i32 = arith.constant 0 : i32
    %c0_i32_0 = arith.constant 0 : i32
    %c0_i32_1 = arith.constant 0 : i32
    return %c0_i32, %c0_i32_0 : i32, i32
  }
  func.func @transform_10(%arg0: i32) -> (i32, i32) {
    %c0_i32 = arith.constant 0 : i32
    %c0_i32_0 = arith.constant 0 : i32
    %c0_i32_1 = arith.constant 0 : i32
    return %c0_i32, %c0_i32_0 : i32, i32
  }
  func.func @transform_11(%arg0: i32) -> (i32, i32) {
    %c0_i32 = arith.constant 0 : i32
    %c0_i32_0 = arith.constant 0 : i32
    %c0_i32_1 = arith.constant 0 : i32
    return %c0_i32, %c0_i32_0 : i32, i32
  }
  func.func @transform_12(%arg0: i32) -> (i32, i32, i32) {
    %c0_i32 = arith.constant 0 : i32
    %c0_i32_0 = arith.constant 0 : i32
    %c0_i32_1 = arith.constant 0 : i32
    %c0_i32_2 = arith.constant 0 : i32
    return %c0_i32, %c0_i32_0, %c0_i32_1 : i32, i32, i32
  }
  func.func @transform_13(%arg0: i32) -> (i32, i32, i32) {
    %c0_i32 = arith.constant 0 : i32
    %c0_i32_0 = arith.constant 0 : i32
    %c0_i32_1 = arith.constant 0 : i32
    %c0_i32_2 = arith.constant 0 : i32
    return %c0_i32, %c0_i32_0, %c0_i32_1 : i32, i32, i32
  }
  func.func @transform_14(%arg0: i32) -> (i32, i32, i32) {
    %c0_i32 = arith.constant 0 : i32
    %c0_i32_0 = arith.constant 0 : i32
    %c0_i32_1 = arith.constant 0 : i32
    %c0_i32_2 = arith.constant 0 : i32
    return %c0_i32, %c0_i32_0, %c0_i32_1 : i32, i32, i32
  }
  func.func @transform_15(%arg0: i32) -> (i32, i32, i32) {
    %c0_i32 = arith.constant 0 : i32
    %c0_i32_0 = arith.constant 0 : i32
    %c0_i32_1 = arith.constant 0 : i32
    %c0_i32_2 = arith.constant 0 : i32
    return %c0_i32, %c0_i32_0, %c0_i32_1 : i32, i32, i32
  }
  func.func @transform_16(%arg0: i32) -> (i32, i32, i32) {
    %c0_i32 = arith.constant 0 : i32
    %c0_i32_0 = arith.constant 0 : i32
    %c0_i32_1 = arith.constant 0 : i32
    %c0_i32_2 = arith.constant 0 : i32
    return %c0_i32, %c0_i32_0, %c0_i32_1 : i32, i32, i32
  }
  func.func @transform_17(%arg0: i32) -> (i32, i32, i32) {
    %c0_i32 = arith.constant 0 : i32
    %c0_i32_0 = arith.constant 0 : i32
    %c0_i32_1 = arith.constant 0 : i32
    %c0_i32_2 = arith.constant 0 : i32
    return %c0_i32, %c0_i32_0, %c0_i32_1 : i32, i32, i32
  }
  func.func @transform_18(%arg0: i32) -> (i32, i32, i32) {
    %c0_i32 = arith.constant 0 : i32
    %c0_i32_0 = arith.constant 0 : i32
    %c0_i32_1 = arith.constant 0 : i32
    %c0_i32_2 = arith.constant 0 : i32
    return %c0_i32, %c0_i32_0, %c0_i32_1 : i32, i32, i32
  }
  func.func @transform_19(%arg0: i32) -> (i32, i32, i32) {
    %c0_i32 = arith.constant 0 : i32
    %c0_i32_0 = arith.constant 0 : i32
    %c0_i32_1 = arith.constant 0 : i32
    %c0_i32_2 = arith.constant 0 : i32
    return %c0_i32, %c0_i32_0, %c0_i32_1 : i32, i32, i32
  }
  func.func @transform_20(%arg0: i32) -> (i32, i32, i32) {
    %c0_i32 = arith.constant 0 : i32
    %c0_i32_0 = arith.constant 0 : i32
    %c0_i32_1 = arith.constant 0 : i32
    %c0_i32_2 = arith.constant 0 : i32
    return %c0_i32, %c0_i32_0, %c0_i32_1 : i32, i32, i32
  }
  func.func @transform_21(%arg0: i32) -> (i32, i32, i32) {
    %c0_i32 = arith.constant 0 : i32
    %c0_i32_0 = arith.constant 0 : i32
    %c0_i32_1 = arith.constant 0 : i32
    %c0_i32_2 = arith.constant 0 : i32
    return %c0_i32, %c0_i32_0, %c0_i32_1 : i32, i32, i32
  }
  func.func @transform_22(%arg0: i32) -> (i32, i32, i32) {
    %c0_i32 = arith.constant 0 : i32
    %c0_i32_0 = arith.constant 0 : i32
    %c0_i32_1 = arith.constant 0 : i32
    %c0_i32_2 = arith.constant 0 : i32
    return %c0_i32, %c0_i32_0, %c0_i32_1 : i32, i32, i32
  }
  func.func @transform_23(%arg0: i32) -> (i32, i32, i32) {
    %c0_i32 = arith.constant 0 : i32
    %c0_i32_0 = arith.constant 0 : i32
    %c0_i32_1 = arith.constant 0 : i32
    %c0_i32_2 = arith.constant 0 : i32
    return %c0_i32, %c0_i32_0, %c0_i32_1 : i32, i32, i32
  }
  func.func @transform_24(%arg0: i32) -> (i32, i32, i32) {
    %c0_i32 = arith.constant 0 : i32
    %c0_i32_0 = arith.constant 0 : i32
    %c0_i32_1 = arith.constant 0 : i32
    %c0_i32_2 = arith.constant 0 : i32
    return %c0_i32, %c0_i32_0, %c0_i32_1 : i32, i32, i32
  }
  func.func @transform_25(%arg0: i32) -> (i32, i32, i32) {
    %c0_i32 = arith.constant 0 : i32
    %c0_i32_0 = arith.constant 0 : i32
    %c0_i32_1 = arith.constant 0 : i32
    %c0_i32_2 = arith.constant 0 : i32
    return %c0_i32, %c0_i32_0, %c0_i32_1 : i32, i32, i32
  }
  func.func @transform_26(%arg0: i32) -> (i32, i32, i32) {
    %c0_i32 = arith.constant 0 : i32
    %c0_i32_0 = arith.constant 0 : i32
    %c0_i32_1 = arith.constant 0 : i32
    return %arg0, %c0_i32, %c0_i32_0 : i32, i32, i32
  }
}

</mosaic_0001>

<llo_original>
// kernel: decoder_forward.1
$region0: #{decoder_forward.1}
  #allocation0 [shape = 'u32[]', space=smem, size = 0x4, offset = 0x4, fixed_abs, tag = 'smem constant byte address 0x4 - core index']
  #allocation1 [shape = 'u32[144,128]{1,0:T(1,128)}', space=vmem, size = 0x12000, scoped, tag = 'internal scratch']
  %s0 = inlined_call_operand.vmem [shape: f32[2,8,32], index: 0, kind: input, shape index: {}]
  %s1 = inlined_call_operand.hbm [shape: f32[2,16,32], index: 1, kind: input, shape index: {}]
  %s2 = inlined_call_operand.vmem [shape: f32[2,1,8,8], index: 2, kind: input, shape index: {}]
  %s3 = inlined_call_operand.vmem [shape: f32[2,1,1,16], index: 3, kind: input, shape index: {}]
  %s4 = inlined_call_operand.hbm [shape: f32[1,32], index: 4, kind: input, shape index: {}]
  %s5 = inlined_call_operand.hbm [shape: f32[1,32], index: 5, kind: input, shape index: {}]
  %s6 = inlined_call_operand.hbm [shape: f32[1,32], index: 6, kind: input, shape index: {}]
  %s7 = inlined_call_operand.hbm [shape: f32[1,32], index: 7, kind: input, shape index: {}]
  %s8 = inlined_call_operand.hbm [shape: f32[1,32], index: 8, kind: input, shape index: {}]
  %s9 = inlined_call_operand.hbm [shape: f32[1,32], index: 9, kind: input, shape index: {}]
  %s10 = inlined_call_operand.hbm [shape: f32[1,32], index: 10, kind: input, shape index: {}]
  %s11 = inlined_call_operand.hbm [shape: f32[1,32], index: 11, kind: input, shape index: {}]
  %s12 = inlined_call_operand.vmem [shape: f32[2,32,96], index: 12, kind: input, shape index: {}]
  %s13 = inlined_call_operand.hbm [shape: f32[2,1,96], index: 13, kind: input, shape index: {}]
  %s14 = inlined_call_operand.vmem [shape: f32[2,32,32], index: 14, kind: input, shape index: {}]
  %s15 = inlined_call_operand.hbm [shape: f32[2,1,32], index: 15, kind: input, shape index: {}]
  %s16 = inlined_call_operand.vmem [shape: f32[2,32,32], index: 16, kind: input, shape index: {}]
  %s17 = inlined_call_operand.hbm [shape: f32[2,1,32], index: 17, kind: input, shape index: {}]
  %s18 = inlined_call_operand.vmem [shape: f32[2,32,64], index: 18, kind: input, shape index: {}]
  %s19 = inlined_call_operand.hbm [shape: f32[2,1,64], index: 19, kind: input, shape index: {}]
  %s20 = inlined_call_operand.vmem [shape: f32[2,32,32], index: 20, kind: input, shape index: {}]
  %s21 = inlined_call_operand.hbm [shape: f32[2,1,32], index: 21, kind: input, shape index: {}]
  %s22 = inlined_call_operand.vmem [shape: f32[2,32,64], index: 22, kind: input, shape index: {}]
  %s23 = inlined_call_operand.hbm [shape: f32[2,1,64], index: 23, kind: input, shape index: {}]
  %s24 = inlined_call_operand.vmem [shape: f32[2,64,32], index: 24, kind: input, shape index: {}]
  %s25 = inlined_call_operand.hbm [shape: f32[2,1,32], index: 25, kind: input, shape index: {}]
  %s26 = inlined_call_operand.hbm [shape: f32[2,8,32], index: 26, kind: output, shape index: {}]
  %s27 = sld [smem:[#allocation0]]
  $region201: #{decoder_forward.1} parent=0
    _
  %s29 = ssub.s32 1, %s27
  %s30 = scalar_select 0, %s29, %s27
  $region1: #{decoder_forward.1} parent=0
    #allocation2 [shape = 'u8[16384]{0}', space=vmem, size = 0x4000, scoped, tag = 'input window, operand 1']
    #allocation3 [shape = 's32[2]{0}', space=sflag, size = 0x8, scoped, tag = 'scoped memory for decoder_forward.1']
    #allocation4 [shape = 's32[2]{0}', space=sflag, size = 0x8, scoped, tag = 'scoped memory for decoder_forward.1']
    #allocation5 [shape = 'u8[512]{0}', space=vmem, size = 0x400, scoped, tag = 'input window, operand 4, single buffered']
    #allocation6 [shape = 's32[1]{0}', space=sflag, size = 0x4, scoped, tag = 'scoped memory for decoder_forward.1']
    #allocation7 [shape = 'u8[512]{0}', space=vmem, size = 0x400, scoped, tag = 'input window, operand 5, single buffered']
    #allocation8 [shape = 'u8[512]{0}', space=vmem, size = 0x400, scoped, tag = 'input window, operand 6, single buffered']
    #allocation9 [shape = 's32[1]{0}', space=sflag, size = 0x4, scoped, tag = 'scoped memory for decoder_forward.1']
    #allocation10 [shape = 'u8[512]{0}', space=vmem, size = 0x400, scoped, tag = 'input window, operand 7, single buffered']
    #allocation11 [shape = 'u8[512]{0}', space=vmem, size = 0x400, scoped, tag = 'input window, operand 8, single buffered']
    #allocation12 [shape = 's32[1]{0}', space=sflag, size = 0x4, scoped, tag = 'scoped memory for decoder_forward.1']
    #allocation13 [shape = 'u8[512]{0}', space=vmem, size = 0x400, scoped, tag = 'input window, operand 9, single buffered']
    #allocation14 [shape = 'u8[512]{0}', space=vmem, size = 0x400, scoped, tag = 'input window, operand 10, single buffered']
    #allocation15 [shape = 's32[1]{0}', space=sflag, size = 0x4, scoped, tag = 'scoped memory for decoder_forward.1']
    #allocation16 [shape = 'u8[512]{0}', space=vmem, size = 0x400, scoped, tag = 'input window, operand 11, single buffered']
    #allocation17 [shape = 'u8[1024]{0}', space=vmem, size = 0x400, scoped, tag = 'input window, operand 13, single buffered']
    #allocation18 [shape = 's32[1]{0}', space=sflag, size = 0x4, scoped, tag = 'scoped memory for decoder_forward.1']
    #allocation19 [shape = 'u8[1024]{0}', space=vmem, size = 0x400, scoped, tag = 'input window, operand 15, single buffered']
    #allocation20 [shape = 'u8[1024]{0}', space=vmem, size = 0x400, scoped, tag = 'input window, operand 17, single buffered']
    #allocation21 [shape = 's32[1]{0}', space=sflag, size = 0x4, scoped, tag = 'scoped memory for decoder_forward.1']
    #allocation22 [shape = 'u8[1024]{0}', space=vmem, size = 0x400, scoped, tag = 'input window, operand 19, single buffered']
    #allocation23 [shape = 'u8[1024]{0}', space=vmem, size = 0x400, scoped, tag = 'input window, operand 21, single buffered']
    #allocation24 [shape = 's32[1]{0}', space=sflag, size = 0x4, scoped, tag = 'scoped memory for decoder_forward.1']
    #allocation25 [shape = 'u8[1024]{0}', space=vmem, size = 0x400, scoped, tag = 'input window, operand 23, single buffered']
    #allocation26 [shape = 'u8[1024]{0}', space=vmem, size = 0x400, scoped, tag = 'input window, operand 25, single buffered']
    #allocation27 [shape = 's32[1]{0}', space=sflag, size = 0x4, scoped, tag = 'scoped memory for decoder_forward.1']
    #allocation28 [shape = 'u8[8192]{0}', space=vmem, size = 0x2000, scoped, tag = 'output window, operand 0']
    %31 = vsyncpa [#allocation3], 0
    %s32 = scalar_lea.sflag [#allocation3], 1
    %33 = vsyncpa %s32, 0
    %34 = vsyncpa [#allocation6], 0
    %35 = vsyncpa [#allocation9], 0
    %36 = vsyncpa [#allocation12], 0
    %37 = vsyncpa [#allocation15], 0
    %38 = vsyncpa [#allocation18], 0
    %39 = vsyncpa [#allocation21], 0
    %40 = vsyncpa [#allocation24], 0
    %41 = vsyncpa [#allocation27], 0
    %42 = vsyncpa [#allocation4], 0
    %s43 = scalar_lea.sflag [#allocation4], 1
    %44 = vsyncpa %s43, 0
    loop: start=0, step=1, limit=4
    $region2: #{decoder_forward.1} parent=1 // loop_pre_header
      _
    $region3: #{decoder_forward.1} parent=1 // loop_header
      %s46 = sphi 0, %s50
      %p47 = scmp.ge.s32.totalorder %s46, 4
      %s56 = sphi 0, %s58
      %s59 = sphi 0, %s56
      %s60 = sphi 0, %s59
      %s76 = sphi 0, %s60
      %s82 = sphi 0, %s84
      %s85 = sphi 0, %s82
      %s86 = sphi 0, %s85
      %s102 = sphi 0, %s86
      %s108 = sphi 0, %s110
      %s111 = sphi 0, %s108
      %s112 = sphi 0, %s111
      %s128 = sphi 0, %s112
      %s134 = sphi 0, %s136
      %s137 = sphi 0, %s134
      %s138 = sphi 0, %s137
      %s154 = sphi 0, %s138
      %s158 = sphi 0, %s158
      %s160 = sphi 0, %s158
      %s161 = sphi 0, %s160
      %s175 = sphi 0, %s161
      %s179 = sphi 0, %s179
      %s181 = sphi 0, %s179
      %s182 = sphi 0, %s181
      %s196 = sphi 0, %s182
      %s200 = sphi 0, %s200
      %s202 = sphi 0, %s200
      %s203 = sphi 0, %s202
      %s217 = sphi 0, %s203
      %s221 = sphi 0, %s221
      %s223 = sphi 0, %s221
      %s224 = sphi 0, %s223
      %s238 = sphi 0, %s224
      %s242 = sphi 0, %s242
      %s244 = sphi 0, %s242
      %s245 = sphi 0, %s244
      %s259 = sphi 0, %s245
      %s263 = sphi 0, %s263
      %s265 = sphi 0, %s263
      %s266 = sphi 0, %s265
      %s280 = sphi 0, %s266
      %s284 = sphi 0, %s284
      %s286 = sphi 0, %s284
      %s287 = sphi 0, %s286
      %s301 = sphi 0, %s287
      %s305 = sphi 0, %s305
      %s307 = sphi 0, %s305
      %s308 = sphi 0, %s307
      %s322 = sphi 0, %s308
      %s326 = sphi 0, %s326
      %s328 = sphi 0, %s326
      %s329 = sphi 0, %s328
      %s343 = sphi 0, %s329
      %s347 = sphi 0, %s347
      %s349 = sphi 0, %s347
      %s350 = sphi 0, %s349
      %s364 = sphi 0, %s350
      %s368 = sphi 0, %s368
      %s370 = sphi 0, %s368
      %s371 = sphi 0, %s370
      %s385 = sphi 0, %s371
      %s389 = sphi 0, %s389
      %s391 = sphi 0, %s389
      %s392 = sphi 0, %s391
      %s406 = sphi 0, %s392
      %s410 = sphi 0, %s410
      %s412 = sphi 0, %s410
      %s413 = sphi 0, %s412
      %s427 = sphi 0, %s413
      %s431 = sphi 0, %s431
      %s433 = sphi 0, %s431
      %s434 = sphi 0, %s433
      %s448 = sphi 0, %s434
      %s452 = sphi 0, %s452
      %s454 = sphi 0, %s452
      %s455 = sphi 0, %s454
      %s469 = sphi 0, %s455
      %s473 = sphi 0, %s473
      %s475 = sphi 0, %s473
      %s476 = sphi 0, %s475
      %s490 = sphi 0, %s476
      %s494 = sphi 0, %s494
      %s496 = sphi 0, %s494
      %s497 = sphi 0, %s496
      %s511 = sphi 0, %s497
      %s515 = sphi 0, %s515
      %s517 = sphi 0, %s515
      %s518 = sphi 0, %s517
      %s532 = sphi 0, %s518
      %s536 = sphi 0, %s536
      %s538 = sphi 0, %s536
      %s539 = sphi 0, %s538
      %s553 = sphi 0, %s539
      %s557 = sphi 0, %s557
      %s559 = sphi 0, %s557
      %s560 = sphi 0, %s559
      %s574 = sphi 0, %s560
      %s578 = sphi 0, %s578
      %s580 = sphi 0, %s578
      %s581 = sphi 0, %s580
      %s595 = sphi 0, %s581
      %s599 = sphi 0, %s599
      %s601 = sphi 0, %s599
      %s602 = sphi 0, %s601
      %s616 = sphi 0, %s602
      %s622 = sphi 0, %s624
      %s625 = sphi 0, %s622
      %s626 = sphi 0, %s625
      %s642 = sphi 0, %s626
    $region4: #{decoder_forward.1} parent=1 // loop_header_branch
      %49 = sbr.rel (%p47) target = $region8
    $region5: #{decoder_forward.1} parent=1 // loop_body
      %s51 = ssub.s32 %s46, 1
      %s52 = ssub.s32 %s46, 2
      %s53 = sadd.s32 %s46, 1
      %s54 = ssub.s32 %s46, %s53
      %p55 = scmp.eq.s32.totalorder %s54, 0
      %s57 = sadd.s32 %s56, 1
      %s58 = scalar_select %p55, %s56, %s57
      %p61 = pneg %p55
      %p62 = scmp.eq.s32.totalorder %s46, 1
      %p63 = por %p61, %p62
      %p64 = scmp.ne.s32.totalorder %s56, %s59
      %p65 = scmp.eq.s32.totalorder %s46, 0
      %p66 = por %p64, %p65
      %p67 = scmp.ne.s32.totalorder %s56, %s59
      %p68 = scmp.eq.s32.totalorder %s51, 1
      %p69 = por %p67, %p68
      %p70 = scmp.ne.s32.totalorder %s59, %s60
      %p71 = scmp.eq.s32.totalorder %s51, 0
      %p72 = por %p70, %p71
      %p73 = scmp.ne.s32.totalorder %s59, %s60
      %p74 = scmp.eq.s32.totalorder %s52, 1
      %p75 = por %p73, %p74
      %p77 = scmp.ne.s32.totalorder %s60, %s76
      %p78 = scmp.eq.s32.totalorder %s52, 0
      %p79 = por %p77, %p78
      %s80 = ssub.s32 %s46, %s53
      %p81 = scmp.eq.s32.totalorder %s80, 0
      %s83 = sadd.s32 %s82, 1
      %s84 = scalar_select %p81, %s82, %s83
      %p87 = pneg %p81
      %p88 = scmp.eq.s32.totalorder %s46, 1
      %p89 = por %p87, %p88
      %p90 = scmp.ne.s32.totalorder %s82, %s85
      %p91 = scmp.eq.s32.totalorder %s46, 0
      %p92 = por %p90, %p91
      %p93 = scmp.ne.s32.totalorder %s82, %s85
      %p94 = scmp.eq.s32.totalorder %s51, 1
      %p95 = por %p93, %p94
      %p96 = scmp.ne.s32.totalorder %s85, %s86
      %p97 = scmp.eq.s32.totalorder %s51, 0
      %p98 = por %p96, %p97
      %p99 = scmp.ne.s32.totalorder %s85, %s86
      %p100 = scmp.eq.s32.totalorder %s52, 1
      %p101 = por %p99, %p100
      %p103 = scmp.ne.s32.totalorder %s86, %s102
      %p104 = scmp.eq.s32.totalorder %s52, 0
      %p105 = por %p103, %p104
      %s106 = ssub.s32 %s46, %s53
      %p107 = scmp.eq.s32.totalorder %s106, 0
      %s109 = sadd.s32 %s108, 1
      %s110 = scalar_select %p107, %s108, %s109
      %p113 = pneg %p107
      %p114 = scmp.eq.s32.totalorder %s46, 1
      %p115 = por %p113, %p114
      %p116 = scmp.ne.s32.totalorder %s108, %s111
      %p117 = scmp.eq.s32.totalorder %s46, 0
      %p118 = por %p116, %p117
      %p119 = scmp.ne.s32.totalorder %s108, %s111
      %p120 = scmp.eq.s32.totalorder %s51, 1
      %p121 = por %p119, %p120
      %p122 = scmp.ne.s32.totalorder %s111, %s112
      %p123 = scmp.eq.s32.totalorder %s51, 0
      %p124 = por %p122, %p123
      %p125 = scmp.ne.s32.totalorder %s111, %s112
      %p126 = scmp.eq.s32.totalorder %s52, 1
      %p127 = por %p125, %p126
      %p129 = scmp.ne.s32.totalorder %s112, %s128
      %p130 = scmp.eq.s32.totalorder %s52, 0
      %p131 = por %p129, %p130
      %s132 = ssub.s32 %s46, %s53
      %p133 = scmp.eq.s32.totalorder %s132, 0
      %s135 = sadd.s32 %s134, 1
      %s136 = scalar_select %p133, %s134, %s135
      %p139 = pneg %p133
      %p140 = scmp.eq.s32.totalorder %s46, 1
      %p141 = por %p139, %p140
      %p142 = scmp.ne.s32.totalorder %s134, %s137
      %p143 = scmp.eq.s32.totalorder %s46, 0
      %p144 = por %p142, %p143
      %p145 = scmp.ne.s32.totalorder %s134, %s137
      %p146 = scmp.eq.s32.totalorder %s51, 1
      %p147 = por %p145, %p146
      %p148 = scmp.ne.s32.totalorder %s137, %s138
      %p149 = scmp.eq.s32.totalorder %s51, 0
      %p150 = por %p148, %p149
      %p151 = scmp.ne.s32.totalorder %s137, %s138
      %p152 = scmp.eq.s32.totalorder %s52, 1
      %p153 = por %p151, %p152
      %p155 = scmp.ne.s32.totalorder %s138, %s154
      %p156 = scmp.eq.s32.totalorder %s52, 0
      %p157 = por %p155, %p156
      %s159 = sadd.s32 %s158, 1
      %p162 = scmp.eq.s32.totalorder %s46, 1
      %p163 = scmp.ne.s32.totalorder %s158, %s160
      %p164 = scmp.eq.s32.totalorder %s46, 0
      %p165 = por %p163, %p164
      %p166 = scmp.ne.s32.totalorder %s158, %s160
      %p167 = scmp.eq.s32.totalorder %s51, 1
      %p168 = por %p166, %p167
      %p169 = scmp.ne.s32.totalorder %s160, %s161
      %p170 = scmp.eq.s32.totalorder %s51, 0
      %p171 = por %p169, %p170
      %p172 = scmp.ne.s32.totalorder %s160, %s161
      %p173 = scmp.eq.s32.totalorder %s52, 1
      %p174 = por %p172, %p173
      %p176 = scmp.ne.s32.totalorder %s161, %s175
      %p177 = scmp.eq.s32.totalorder %s52, 0
      %p178 = por %p176, %p177
      %s180 = sadd.s32 %s179, 1
      %p183 = scmp.eq.s32.totalorder %s46, 1
      %p184 = scmp.ne.s32.totalorder %s179, %s181
      %p185 = scmp.eq.s32.totalorder %s46, 0
      %p186 = por %p184, %p185
      %p187 = scmp.ne.s32.totalorder %s179, %s181
      %p188 = scmp.eq.s32.totalorder %s51, 1
      %p189 = por %p187, %p188
      %p190 = scmp.ne.s32.totalorder %s181, %s182
      %p191 = scmp.eq.s32.totalorder %s51, 0
      %p192 = por %p190, %p191
      %p193 = scmp.ne.s32.totalorder %s181, %s182
      %p194 = scmp.eq.s32.totalorder %s52, 1
      %p195 = por %p193, %p194
      %p197 = scmp.ne.s32.totalorder %s182, %s196
      %p198 = scmp.eq.s32.totalorder %s52, 0
      %p199 = por %p197, %p198
      %s201 = sadd.s32 %s200, 1
      %p204 = scmp.eq.s32.totalorder %s46, 1
      %p205 = scmp.ne.s32.totalorder %s200, %s202
      %p206 = scmp.eq.s32.totalorder %s46, 0
      %p207 = por %p205, %p206
      %p208 = scmp.ne.s32.totalorder %s200, %s202
      %p209 = scmp.eq.s32.totalorder %s51, 1
      %p210 = por %p208, %p209
      %p211 = scmp.ne.s32.totalorder %s202, %s203
      %p212 = scmp.eq.s32.totalorder %s51, 0
      %p213 = por %p211, %p212
      %p214 = scmp.ne.s32.totalorder %s202, %s203
      %p215 = scmp.eq.s32.totalorder %s52, 1
      %p216 = por %p214, %p215
      %p218 = scmp.ne.s32.totalorder %s203, %s217
      %p219 = scmp.eq.s32.totalorder %s52, 0
      %p220 = por %p218, %p219
      %s222 = sadd.s32 %s221, 1
      %p225 = scmp.eq.s32.totalorder %s46, 1
      %p226 = scmp.ne.s32.totalorder %s221, %s223
      %p227 = scmp.eq.s32.totalorder %s46, 0
      %p228 = por %p226, %p227
      %p229 = scmp.ne.s32.totalorder %s221, %s223
      %p230 = scmp.eq.s32.totalorder %s51, 1
      %p231 = por %p229, %p230
      %p232 = scmp.ne.s32.totalorder %s223, %s224
      %p233 = scmp.eq.s32.totalorder %s51, 0
      %p234 = por %p232, %p233
      %p235 = scmp.ne.s32.totalorder %s223, %s224
      %p236 = scmp.eq.s32.totalorder %s52, 1
      %p237 = por %p235, %p236
      %p239 = scmp.ne.s32.totalorder %s224, %s238
      %p240 = scmp.eq.s32.totalorder %s52, 0
      %p241 = por %p239, %p240
      %s243 = sadd.s32 %s242, 1
      %p246 = scmp.eq.s32.totalorder %s46, 1
      %p247 = scmp.ne.s32.totalorder %s242, %s244
      %p248 = scmp.eq.s32.totalorder %s46, 0
      %p249 = por %p247, %p248
      %p250 = scmp.ne.s32.totalorder %s242, %s244
      %p251 = scmp.eq.s32.totalorder %s51, 1
      %p252 = por %p250, %p251
      %p253 = scmp.ne.s32.totalorder %s244, %s245
      %p254 = scmp.eq.s32.totalorder %s51, 0
      %p255 = por %p253, %p254
      %p256 = scmp.ne.s32.totalorder %s244, %s245
      %p257 = scmp.eq.s32.totalorder %s52, 1
      %p258 = por %p256, %p257
      %p260 = scmp.ne.s32.totalorder %s245, %s259
      %p261 = scmp.eq.s32.totalorder %s52, 0
      %p262 = por %p260, %p261
      %s264 = sadd.s32 %s263, 1
      %p267 = scmp.eq.s32.totalorder %s46, 1
      %p268 = scmp.ne.s32.totalorder %s263, %s265
      %p269 = scmp.eq.s32.totalorder %s46, 0
      %p270 = por %p268, %p269
      %p271 = scmp.ne.s32.totalorder %s263, %s265
      %p272 = scmp.eq.s32.totalorder %s51, 1
      %p273 = por %p271, %p272
      %p274 = scmp.ne.s32.totalorder %s265, %s266
      %p275 = scmp.eq.s32.totalorder %s51, 0
      %p276 = por %p274, %p275
      %p277 = scmp.ne.s32.totalorder %s265, %s266
      %p278 = scmp.eq.s32.totalorder %s52, 1
      %p279 = por %p277, %p278
      %p281 = scmp.ne.s32.totalorder %s266, %s280
      %p282 = scmp.eq.s32.totalorder %s52, 0
      %p283 = por %p281, %p282
      %s285 = sadd.s32 %s284, 1
      %p288 = scmp.eq.s32.totalorder %s46, 1
      %p289 = scmp.ne.s32.totalorder %s284, %s286
      %p290 = scmp.eq.s32.totalorder %s46, 0
      %p291 = por %p289, %p290
      %p292 = scmp.ne.s32.totalorder %s284, %s286
      %p293 = scmp.eq.s32.totalorder %s51, 1
      %p294 = por %p292, %p293
      %p295 = scmp.ne.s32.totalorder %s286, %s287
      %p296 = scmp.eq.s32.totalorder %s51, 0
      %p297 = por %p295, %p296
      %p298 = scmp.ne.s32.totalorder %s286, %s287
      %p299 = scmp.eq.s32.totalorder %s52, 1
      %p300 = por %p298, %p299
      %p302 = scmp.ne.s32.totalorder %s287, %s301
      %p303 = scmp.eq.s32.totalorder %s52, 0
      %p304 = por %p302, %p303
      %s306 = sadd.s32 %s305, 1
      %p309 = scmp.eq.s32.totalorder %s46, 1
      %p310 = scmp.ne.s32.totalorder %s305, %s307
      %p311 = scmp.eq.s32.totalorder %s46, 0
      %p312 = por %p310, %p311
      %p313 = scmp.ne.s32.totalorder %s305, %s307
      %p314 = scmp.eq.s32.totalorder %s51, 1
      %p315 = por %p313, %p314
      %p316 = scmp.ne.s32.totalorder %s307, %s308
      %p317 = scmp.eq.s32.totalorder %s51, 0
      %p318 = por %p316, %p317
      %p319 = scmp.ne.s32.totalorder %s307, %s308
      %p320 = scmp.eq.s32.totalorder %s52, 1
      %p321 = por %p319, %p320
      %p323 = scmp.ne.s32.totalorder %s308, %s322
      %p324 = scmp.eq.s32.totalorder %s52, 0
      %p325 = por %p323, %p324
      %s327 = sadd.s32 %s326, 1
      %p330 = scmp.eq.s32.totalorder %s46, 1
      %p331 = scmp.ne.s32.totalorder %s326, %s328
      %p332 = scmp.eq.s32.totalorder %s46, 0
      %p333 = por %p331, %p332
      %p334 = scmp.ne.s32.totalorder %s326, %s328
      %p335 = scmp.eq.s32.totalorder %s51, 1
      %p336 = por %p334, %p335
      %p337 = scmp.ne.s32.totalorder %s328, %s329
      %p338 = scmp.eq.s32.totalorder %s51, 0
      %p339 = por %p337, %p338
      %p340 = scmp.ne.s32.totalorder %s328, %s329
      %p341 = scmp.eq.s32.totalorder %s52, 1
      %p342 = por %p340, %p341
      %p344 = scmp.ne.s32.totalorder %s329, %s343
      %p345 = scmp.eq.s32.totalorder %s52, 0
      %p346 = por %p344, %p345
      %s348 = sadd.s32 %s347, 1
      %p351 = scmp.eq.s32.totalorder %s46, 1
      %p352 = scmp.ne.s32.totalorder %s347, %s349
      %p353 = scmp.eq.s32.totalorder %s46, 0
      %p354 = por %p352, %p353
      %p355 = scmp.ne.s32.totalorder %s347, %s349
      %p356 = scmp.eq.s32.totalorder %s51, 1
      %p357 = por %p355, %p356
      %p358 = scmp.ne.s32.totalorder %s349, %s350
      %p359 = scmp.eq.s32.totalorder %s51, 0
      %p360 = por %p358, %p359
      %p361 = scmp.ne.s32.totalorder %s349, %s350
      %p362 = scmp.eq.s32.totalorder %s52, 1
      %p363 = por %p361, %p362
      %p365 = scmp.ne.s32.totalorder %s350, %s364
      %p366 = scmp.eq.s32.totalorder %s52, 0
      %p367 = por %p365, %p366
      %s369 = sadd.s32 %s368, 1
      %p372 = scmp.eq.s32.totalorder %s46, 1
      %p373 = scmp.ne.s32.totalorder %s368, %s370
      %p374 = scmp.eq.s32.totalorder %s46, 0
      %p375 = por %p373, %p374
      %p376 = scmp.ne.s32.totalorder %s368, %s370
      %p377 = scmp.eq.s32.totalorder %s51, 1
      %p378 = por %p376, %p377
      %p379 = scmp.ne.s32.totalorder %s370, %s371
      %p380 = scmp.eq.s32.totalorder %s51, 0
      %p381 = por %p379, %p380
      %p382 = scmp.ne.s32.totalorder %s370, %s371
      %p383 = scmp.eq.s32.totalorder %s52, 1
      %p384 = por %p382, %p383
      %p386 = scmp.ne.s32.totalorder %s371, %s385
      %p387 = scmp.eq.s32.totalorder %s52, 0
      %p388 = por %p386, %p387
      %s390 = sadd.s32 %s389, 1
      %p393 = scmp.eq.s32.totalorder %s46, 1
      %p394 = scmp.ne.s32.totalorder %s389, %s391
      %p395 = scmp.eq.s32.totalorder %s46, 0
      %p396 = por %p394, %p395
      %p397 = scmp.ne.s32.totalorder %s389, %s391
      %p398 = scmp.eq.s32.totalorder %s51, 1
      %p399 = por %p397, %p398
      %p400 = scmp.ne.s32.totalorder %s391, %s392
      %p401 = scmp.eq.s32.totalorder %s51, 0
      %p402 = por %p400, %p401
      %p403 = scmp.ne.s32.totalorder %s391, %s392
      %p404 = scmp.eq.s32.totalorder %s52, 1
      %p405 = por %p403, %p404
      %p407 = scmp.ne.s32.totalorder %s392, %s406
      %p408 = scmp.eq.s32.totalorder %s52, 0
      %p409 = por %p407, %p408
      %s411 = sadd.s32 %s410, 1
      %p414 = scmp.eq.s32.totalorder %s46, 1
      %p415 = scmp.ne.s32.totalorder %s410, %s412
      %p416 = scmp.eq.s32.totalorder %s46, 0
      %p417 = por %p415, %p416
      %p418 = scmp.ne.s32.totalorder %s410, %s412
      %p419 = scmp.eq.s32.totalorder %s51, 1
      %p420 = por %p418, %p419
      %p421 = scmp.ne.s32.totalorder %s412, %s413
      %p422 = scmp.eq.s32.totalorder %s51, 0
      %p423 = por %p421, %p422
      %p424 = scmp.ne.s32.totalorder %s412, %s413
      %p425 = scmp.eq.s32.totalorder %s52, 1
      %p426 = por %p424, %p425
      %p428 = scmp.ne.s32.totalorder %s413, %s427
      %p429 = scmp.eq.s32.totalorder %s52, 0
      %p430 = por %p428, %p429
      %s432 = sadd.s32 %s431, 1
      %p435 = scmp.eq.s32.totalorder %s46, 1
      %p436 = scmp.ne.s32.totalorder %s431, %s433
      %p437 = scmp.eq.s32.totalorder %s46, 0
      %p438 = por %p436, %p437
      %p439 = scmp.ne.s32.totalorder %s431, %s433
      %p440 = scmp.eq.s32.totalorder %s51, 1
      %p441 = por %p439, %p440
      %p442 = scmp.ne.s32.totalorder %s433, %s434
      %p443 = scmp.eq.s32.totalorder %s51, 0
      %p444 = por %p442, %p443
      %p445 = scmp.ne.s32.totalorder %s433, %s434
      %p446 = scmp.eq.s32.totalorder %s52, 1
      %p447 = por %p445, %p446
      %p449 = scmp.ne.s32.totalorder %s434, %s448
      %p450 = scmp.eq.s32.totalorder %s52, 0
      %p451 = por %p449, %p450
      %s453 = sadd.s32 %s452, 1
      %p456 = scmp.eq.s32.totalorder %s46, 1
      %p457 = scmp.ne.s32.totalorder %s452, %s454
      %p458 = scmp.eq.s32.totalorder %s46, 0
      %p459 = por %p457, %p458
      %p460 = scmp.ne.s32.totalorder %s452, %s454
      %p461 = scmp.eq.s32.totalorder %s51, 1
      %p462 = por %p460, %p461
      %p463 = scmp.ne.s32.totalorder %s454, %s455
      %p464 = scmp.eq.s32.totalorder %s51, 0
      %p465 = por %p463, %p464
      %p466 = scmp.ne.s32.totalorder %s454, %s455
      %p467 = scmp.eq.s32.totalorder %s52, 1
      %p468 = por %p466, %p467
      %p470 = scmp.ne.s32.totalorder %s455, %s469
      %p471 = scmp.eq.s32.totalorder %s52, 0
      %p472 = por %p470, %p471
      %s474 = sadd.s32 %s473, 1
      %p477 = scmp.eq.s32.totalorder %s46, 1
      %p478 = scmp.ne.s32.totalorder %s473, %s475
      %p479 = scmp.eq.s32.totalorder %s46, 0
      %p480 = por %p478, %p479
      %p481 = scmp.ne.s32.totalorder %s473, %s475
      %p482 = scmp.eq.s32.totalorder %s51, 1
      %p483 = por %p481, %p482
      %p484 = scmp.ne.s32.totalorder %s475, %s476
      %p485 = scmp.eq.s32.totalorder %s51, 0
      %p486 = por %p484, %p485
      %p487 = scmp.ne.s32.totalorder %s475, %s476
      %p488 = scmp.eq.s32.totalorder %s52, 1
      %p489 = por %p487, %p488
      %p491 = scmp.ne.s32.totalorder %s476, %s490
      %p492 = scmp.eq.s32.totalorder %s52, 0
      %p493 = por %p491, %p492
      %s495 = sadd.s32 %s494, 1
      %p498 = scmp.eq.s32.totalorder %s46, 1
      %p499 = scmp.ne.s32.totalorder %s494, %s496
      %p500 = scmp.eq.s32.totalorder %s46, 0
      %p501 = por %p499, %p500
      %p502 = scmp.ne.s32.totalorder %s494, %s496
      %p503 = scmp.eq.s32.totalorder %s51, 1
      %p504 = por %p502, %p503
      %p505 = scmp.ne.s32.totalorder %s496, %s497
      %p506 = scmp.eq.s32.totalorder %s51, 0
      %p507 = por %p505, %p506
      %p508 = scmp.ne.s32.totalorder %s496, %s497
      %p509 = scmp.eq.s32.totalorder %s52, 1
      %p510 = por %p508, %p509
      %p512 = scmp.ne.s32.totalorder %s497, %s511
      %p513 = scmp.eq.s32.totalorder %s52, 0
      %p514 = por %p512, %p513
      %s516 = sadd.s32 %s515, 1
      %p519 = scmp.eq.s32.totalorder %s46, 1
      %p520 = scmp.ne.s32.totalorder %s515, %s517
      %p521 = scmp.eq.s32.totalorder %s46, 0
      %p522 = por %p520, %p521
      %p523 = scmp.ne.s32.totalorder %s515, %s517
      %p524 = scmp.eq.s32.totalorder %s51, 1
      %p525 = por %p523, %p524
      %p526 = scmp.ne.s32.totalorder %s517, %s518
      %p527 = scmp.eq.s32.totalorder %s51, 0
      %p528 = por %p526, %p527
      %p529 = scmp.ne.s32.totalorder %s517, %s518
      %p530 = scmp.eq.s32.totalorder %s52, 1
      %p531 = por %p529, %p530
      %p533 = scmp.ne.s32.totalorder %s518, %s532
      %p534 = scmp.eq.s32.totalorder %s52, 0
      %p535 = por %p533, %p534
      %s537 = sadd.s32 %s536, 1
      %p540 = scmp.eq.s32.totalorder %s46, 1
      %p541 = scmp.ne.s32.totalorder %s536, %s538
      %p542 = scmp.eq.s32.totalorder %s46, 0
      %p543 = por %p541, %p542
      %p544 = scmp.ne.s32.totalorder %s536, %s538
      %p545 = scmp.eq.s32.totalorder %s51, 1
      %p546 = por %p544, %p545
      %p547 = scmp.ne.s32.totalorder %s538, %s539
      %p548 = scmp.eq.s32.totalorder %s51, 0
      %p549 = por %p547, %p548
      %p550 = scmp.ne.s32.totalorder %s538, %s539
      %p551 = scmp.eq.s32.totalorder %s52, 1
      %p552 = por %p550, %p551
      %p554 = scmp.ne.s32.totalorder %s539, %s553
      %p555 = scmp.eq.s32.totalorder %s52, 0
      %p556 = por %p554, %p555
      %s558 = sadd.s32 %s557, 1
      %p561 = scmp.eq.s32.totalorder %s46, 1
      %p562 = scmp.ne.s32.totalorder %s557, %s559
      %p563 = scmp.eq.s32.totalorder %s46, 0
      %p564 = por %p562, %p563
      %p565 = scmp.ne.s32.totalorder %s557, %s559
      %p566 = scmp.eq.s32.totalorder %s51, 1
      %p567 = por %p565, %p566
      %p568 = scmp.ne.s32.totalorder %s559, %s560
      %p569 = scmp.eq.s32.totalorder %s51, 0
      %p570 = por %p568, %p569
      %p571 = scmp.ne.s32.totalorder %s559, %s560
      %p572 = scmp.eq.s32.totalorder %s52, 1
      %p573 = por %p571, %p572
      %p575 = scmp.ne.s32.totalorder %s560, %s574
      %p576 = scmp.eq.s32.totalorder %s52, 0
      %p577 = por %p575, %p576
      %s579 = sadd.s32 %s578, 1
      %p582 = scmp.eq.s32.totalorder %s46, 1
      %p583 = scmp.ne.s32.totalorder %s578, %s580
      %p584 = scmp.eq.s32.totalorder %s46, 0
      %p585 = por %p583, %p584
      %p586 = scmp.ne.s32.totalorder %s578, %s580
      %p587 = scmp.eq.s32.totalorder %s51, 1
      %p588 = por %p586, %p587
      %p589 = scmp.ne.s32.totalorder %s580, %s581
      %p590 = scmp.eq.s32.totalorder %s51, 0
      %p591 = por %p589, %p590
      %p592 = scmp.ne.s32.totalorder %s580, %s581
      %p593 = scmp.eq.s32.totalorder %s52, 1
      %p594 = por %p592, %p593
      %p596 = scmp.ne.s32.totalorder %s581, %s595
      %p597 = scmp.eq.s32.totalorder %s52, 0
      %p598 = por %p596, %p597
      %s600 = sadd.s32 %s599, 1
      %p603 = scmp.eq.s32.totalorder %s46, 1
      %p604 = scmp.ne.s32.totalorder %s599, %s601
      %p605 = scmp.eq.s32.totalorder %s46, 0
      %p606 = por %p604, %p605
      %p607 = scmp.ne.s32.totalorder %s599, %s601
      %p608 = scmp.eq.s32.totalorder %s51, 1
      %p609 = por %p607, %p608
      %p610 = scmp.ne.s32.totalorder %s601, %s602
      %p611 = scmp.eq.s32.totalorder %s51, 0
      %p612 = por %p610, %p611
      %p613 = scmp.ne.s32.totalorder %s601, %s602
      %p614 = scmp.eq.s32.totalorder %s52, 1
      %p615 = por %p613, %p614
      %p617 = scmp.ne.s32.totalorder %s602, %s616
      %p618 = scmp.eq.s32.totalorder %s52, 0
      %p619 = por %p617, %p618
      %s620 = ssub.s32 %s46, %s53
      %p621 = scmp.eq.s32.totalorder %s620, 0
      %s623 = sadd.s32 %s622, 1
      %s624 = scalar_select %p621, %s622, %s623
      %p627 = pneg %p621
      %p628 = scmp.eq.s32.totalorder %s46, 1
      %p629 = por %p627, %p628
      %p630 = scmp.ne.s32.totalorder %s622, %s625
      %p631 = scmp.eq.s32.totalorder %s46, 0
      %p632 = por %p630, %p631
      %p633 = scmp.ne.s32.totalorder %s622, %s625
      %p634 = scmp.eq.s32.totalorder %s51, 1
      %p635 = por %p633, %p634
      %p636 = scmp.ne.s32.totalorder %s625, %s626
      %p637 = scmp.eq.s32.totalorder %s51, 0
      %p638 = por %p636, %p637
      %p639 = scmp.ne.s32.totalorder %s625, %s626
      %p640 = scmp.eq.s32.totalorder %s52, 1
      %p641 = por %p639, %p640
      %p643 = scmp.ne.s32.totalorder %s626, %s642
      %p644 = scmp.eq.s32.totalorder %s52, 0
      %p645 = por %p643, %p644
      %p646 = scmp.le.s32.totalorder 1, %s46
      %p647 = scmp.lt.s32.totalorder %s46, 3
      %p648 = pnand %p646, %p647
      %p649 = pneg %p648
      // Predicated region
      $region9: #{decoder_forward.1} parent=5 // pred_check
        _
      $region10: #{decoder_forward.1} parent=5 // pred_check_branch
        %651 = sbr.rel (%p648) target = $region12
      $region11: #{decoder_forward.1} parent=5 // pred_region
        %s652 = ssub.s32 %s46, 1
        // Predicated region
        $region13: #{decoder_forward.1} parent=11 // pred_check
          %p653 = pneg %p171
        $region14: #{decoder_forward.1} parent=11 // pred_check_branch
          %655 = sbr.rel (%p653) target = $region16
        $region15: #{decoder_forward.1} parent=11 // pred_region
          %s657 = ssub.s32 16, 16
          %658 = vsyncadd [#allocation6], %s657
          %s660 = sshll.u32 [#allocation5], 4
          %s661 = int_to_ptr.vmem [resolvable:$true] %s660
          %663 = dma.hbm_to_vmem [thread:$0]  %s4, 16, %s661, [#allocation6]
        $region16: #{decoder_forward.1} parent=11 // pred_fallthru
          _
        // Predicated region
        $region17: #{decoder_forward.1} parent=11 // pred_check
          %p664 = pneg %p192
        $region18: #{decoder_forward.1} parent=11 // pred_check_branch
          %666 = sbr.rel (%p664) target = $region20
        $region19: #{decoder_forward.1} parent=11 // pred_region
          %s668 = ssub.s32 16, 16
          %669 = vsyncadd [#allocation6], %s668
          %s671 = sshll.u32 [#allocation7], 4
          %s672 = int_to_ptr.vmem [resolvable:$true] %s671
          %674 = dma.hbm_to_vmem [thread:$0]  %s5, 16, %s672, [#allocation6]
        $region20: #{decoder_forward.1} parent=11 // pred_fallthru
          _
        // Predicated region
        $region21: #{decoder_forward.1} parent=11 // pred_check
          %p675 = pneg %p213
        $region22: #{decoder_forward.1} parent=11 // pred_check_branch
          %677 = sbr.rel (%p675) target = $region24
        $region23: #{decoder_forward.1} parent=11 // pred_region
          %s679 = ssub.s32 16, 16
          %680 = vsyncadd [#allocation9], %s679
          %s682 = sshll.u32 [#allocation8], 4
          %s683 = int_to_ptr.vmem [resolvable:$true] %s682
          %685 = dma.hbm_to_vmem [thread:$0]  %s6, 16, %s683, [#allocation9]
        $region24: #{decoder_forward.1} parent=11 // pred_fallthru
          _
        // Predicated region
        $region25: #{decoder_forward.1} parent=11 // pred_check
          %p686 = pneg %p234
        $region26: #{decoder_forward.1} parent=11 // pred_check_branch
          %688 = sbr.rel (%p686) target = $region28
        $region27: #{decoder_forward.1} parent=11 // pred_region
          %s690 = ssub.s32 16, 16
          %691 = vsyncadd [#allocation9], %s690
          %s693 = sshll.u32 [#allocation10], 4
          %s694 = int_to_ptr.vmem [resolvable:$true] %s693
          %696 = dma.hbm_to_vmem [thread:$0]  %s7, 16, %s694, [#allocation9]
        $region28: #{decoder_forward.1} parent=11 // pred_fallthru
          _
        // Predicated region
        $region29: #{decoder_forward.1} parent=11 // pred_check
          %p697 = pneg %p255
        $region30: #{decoder_forward.1} parent=11 // pred_check_branch
          %699 = sbr.rel (%p697) target = $region32
        $region31: #{decoder_forward.1} parent=11 // pred_region
          %s701 = ssub.s32 16, 16
          %702 = vsyncadd [#allocation12], %s701
          %s704 = sshll.u32 [#allocation11], 4
          %s705 = int_to_ptr.vmem [resolvable:$true] %s704
          %707 = dma.hbm_to_vmem [thread:$0]  %s8, 16, %s705, [#allocation12]
        $region32: #{decoder_forward.1} parent=11 // pred_fallthru
          _
        // Predicated region
        $region33: #{decoder_forward.1} parent=11 // pred_check
          %p708 = pneg %p276
        $region34: #{decoder_forward.1} parent=11 // pred_check_branch
          %710 = sbr.rel (%p708) target = $region36
        $region35: #{decoder_forward.1} parent=11 // pred_region
          %s712 = ssub.s32 16, 16
          %713 = vsyncadd [#allocation12], %s712
          %s715 = sshll.u32 [#allocation13], 4
          %s716 = int_to_ptr.vmem [resolvable:$true] %s715
          %718 = dma.hbm_to_vmem [thread:$0]  %s9, 16, %s716, [#allocation12]
        $region36: #{decoder_forward.1} parent=11 // pred_fallthru
          _
        // Predicated region
        $region37: #{decoder_forward.1} parent=11 // pred_check
          %p719 = pneg %p297
        $region38: #{decoder_forward.1} parent=11 // pred_check_branch
          %721 = sbr.rel (%p719) target = $region40
        $region39: #{decoder_forward.1} parent=11 // pred_region
          %s723 = ssub.s32 16, 16
          %724 = vsyncadd [#allocation15], %s723
          %s726 = sshll.u32 [#allocation14], 4
          %s727 = int_to_ptr.vmem [resolvable:$true] %s726
          %729 = dma.hbm_to_vmem [thread:$0]  %s10, 16, %s727, [#allocation15]
        $region40: #{decoder_forward.1} parent=11 // pred_fallthru
          _
        // Predicated region
        $region41: #{decoder_forward.1} parent=11 // pred_check
          %p730 = pneg %p318
        $region42: #{decoder_forward.1} parent=11 // pred_check_branch
          %732 = sbr.rel (%p730) target = $region44
        $region43: #{decoder_forward.1} parent=11 // pred_region
          %s734 = ssub.s32 16, 16
          %735 = vsyncadd [#allocation15], %s734
          %s737 = sshll.u32 [#allocation16], 4
          %s738 = int_to_ptr.vmem [resolvable:$true] %s737
          %740 = dma.hbm_to_vmem [thread:$0]  %s11, 16, %s738, [#allocation15]
        $region44: #{decoder_forward.1} parent=11 // pred_fallthru
          _
        // Predicated region
        $region45: #{decoder_forward.1} parent=11 // pred_check
          %p741 = pneg %p339
        $region46: #{decoder_forward.1} parent=11 // pred_check_branch
          %743 = sbr.rel (%p741) target = $region48
        $region47: #{decoder_forward.1} parent=11 // pred_region
          _
        $region48: #{decoder_forward.1} parent=11 // pred_fallthru
          _
        // Predicated region
        $region49: #{decoder_forward.1} parent=11 // pred_check
          %p744 = pneg %p360
        $region50: #{decoder_forward.1} parent=11 // pred_check_branch
          %746 = sbr.rel (%p744) target = $region52
        $region51: #{decoder_forward.1} parent=11 // pred_region
          %s748 = ssub.s32 32, 32
          %749 = vsyncadd [#allocation18], %s748
          %s750 = sshll.u32 [#allocation17], 4
          %s751 = int_to_ptr.vmem [resolvable:$true] %s750
          %756 = dma.hbm_to_vmem [thread:$0]  %s13, 32, %s751, [#allocation18], 16, 16, 1
        $region52: #{decoder_forward.1} parent=11 // pred_fallthru
          _
        // Predicated region
        $region53: #{decoder_forward.1} parent=11 // pred_check
          %p757 = pneg %p381
        $region54: #{decoder_forward.1} parent=11 // pred_check_branch
          %759 = sbr.rel (%p757) target = $region56
        $region55: #{decoder_forward.1} parent=11 // pred_region
          _
        $region56: #{decoder_forward.1} parent=11 // pred_fallthru
          _
        // Predicated region
        $region57: #{decoder_forward.1} parent=11 // pred_check
          %p760 = pneg %p402
        $region58: #{decoder_forward.1} parent=11 // pred_check_branch
          %762 = sbr.rel (%p760) target = $region60
        $region59: #{decoder_forward.1} parent=11 // pred_region
          %s764 = ssub.s32 32, 32
          %765 = vsyncadd [#allocation18], %s764
          %s766 = sshll.u32 [#allocation19], 4
          %s767 = int_to_ptr.vmem [resolvable:$true] %s766
          %772 = dma.hbm_to_vmem [thread:$0]  %s15, 32, %s767, [#allocation18], 16, 16, 1
        $region60: #{decoder_forward.1} parent=11 // pred_fallthru
          _
        // Predicated region
        $region61: #{decoder_forward.1} parent=11 // pred_check
          %p773 = pneg %p423
        $region62: #{decoder_forward.1} parent=11 // pred_check_branch
          %775 = sbr.rel (%p773) target = $region64
        $region63: #{decoder_forward.1} parent=11 // pred_region
          _
        $region64: #{decoder_forward.1} parent=11 // pred_fallthru
          _
        // Predicated region
        $region65: #{decoder_forward.1} parent=11 // pred_check
          %p776 = pneg %p444
        $region66: #{decoder_forward.1} parent=11 // pred_check_branch
          %778 = sbr.rel (%p776) target = $region68
        $region67: #{decoder_forward.1} parent=11 // pred_region
          %s780 = ssub.s32 32, 32
          %781 = vsyncadd [#allocation21], %s780
          %s782 = sshll.u32 [#allocation20], 4
          %s783 = int_to_ptr.vmem [resolvable:$true] %s782
          %788 = dma.hbm_to_vmem [thread:$0]  %s17, 32, %s783, [#allocation21], 16, 16, 1
        $region68: #{decoder_forward.1} parent=11 // pred_fallthru
          _
        // Predicated region
        $region69: #{decoder_forward.1} parent=11 // pred_check
          %p789 = pneg %p465
        $region70: #{decoder_forward.1} parent=11 // pred_check_branch
          %791 = sbr.rel (%p789) target = $region72
        $region71: #{decoder_forward.1} parent=11 // pred_region
          _
        $region72: #{decoder_forward.1} parent=11 // pred_fallthru
          _
        // Predicated region
        $region73: #{decoder_forward.1} parent=11 // pred_check
          %p792 = pneg %p486
        $region74: #{decoder_forward.1} parent=11 // pred_check_branch
          %794 = sbr.rel (%p792) target = $region76
        $region75: #{decoder_forward.1} parent=11 // pred_region
          %s796 = ssub.s32 32, 32
          %797 = vsyncadd [#allocation21], %s796
          %s798 = sshll.u32 [#allocation22], 4
          %s799 = int_to_ptr.vmem [resolvable:$true] %s798
          %804 = dma.hbm_to_vmem [thread:$0]  %s19, 32, %s799, [#allocation21], 16, 16, 1
        $region76: #{decoder_forward.1} parent=11 // pred_fallthru
          _
        // Predicated region
        $region77: #{decoder_forward.1} parent=11 // pred_check
          %p805 = pneg %p507
        $region78: #{decoder_forward.1} parent=11 // pred_check_branch
          %807 = sbr.rel (%p805) target = $region80
        $region79: #{decoder_forward.1} parent=11 // pred_region
          _
        $region80: #{decoder_forward.1} parent=11 // pred_fallthru
          _
        // Predicated region
        $region81: #{decoder_forward.1} parent=11 // pred_check
          %p808 = pneg %p528
        $region82: #{decoder_forward.1} parent=11 // pred_check_branch
          %810 = sbr.rel (%p808) target = $region84
        $region83: #{decoder_forward.1} parent=11 // pred_region
          %s812 = ssub.s32 32, 32
          %813 = vsyncadd [#allocation24], %s812
          %s814 = sshll.u32 [#allocation23], 4
          %s815 = int_to_ptr.vmem [resolvable:$true] %s814
          %820 = dma.hbm_to_vmem [thread:$0]  %s21, 32, %s815, [#allocation24], 16, 16, 1
        $region84: #{decoder_forward.1} parent=11 // pred_fallthru
          _
        // Predicated region
        $region85: #{decoder_forward.1} parent=11 // pred_check
          %p821 = pneg %p549
        $region86: #{decoder_forward.1} parent=11 // pred_check_branch
          %823 = sbr.rel (%p821) target = $region88
        $region87: #{decoder_forward.1} parent=11 // pred_region
          _
        $region88: #{decoder_forward.1} parent=11 // pred_fallthru
          _
        // Predicated region
        $region89: #{decoder_forward.1} parent=11 // pred_check
          %p824 = pneg %p570
        $region90: #{decoder_forward.1} parent=11 // pred_check_branch
          %826 = sbr.rel (%p824) target = $region92
        $region91: #{decoder_forward.1} parent=11 // pred_region
          %s828 = ssub.s32 32, 32
          %829 = vsyncadd [#allocation24], %s828
          %s830 = sshll.u32 [#allocation25], 4
          %s831 = int_to_ptr.vmem [resolvable:$true] %s830
          %836 = dma.hbm_to_vmem [thread:$0]  %s23, 32, %s831, [#allocation24], 16, 16, 1
        $region92: #{decoder_forward.1} parent=11 // pred_fallthru
          _
        // Predicated region
        $region93: #{decoder_forward.1} parent=11 // pred_check
          %p837 = pneg %p591
        $region94: #{decoder_forward.1} parent=11 // pred_check_branch
          %839 = sbr.rel (%p837) target = $region96
        $region95: #{decoder_forward.1} parent=11 // pred_region
          _
        $region96: #{decoder_forward.1} parent=11 // pred_fallthru
          _
        // Predicated region
        $region97: #{decoder_forward.1} parent=11 // pred_check
          %p840 = pneg %p612
        $region98: #{decoder_forward.1} parent=11 // pred_check_branch
          %842 = sbr.rel (%p840) target = $region100
        $region99: #{decoder_forward.1} parent=11 // pred_region
          %s844 = ssub.s32 32, 32
          %845 = vsyncadd [#allocation27], %s844
          %s846 = sshll.u32 [#allocation26], 4
          %s847 = int_to_ptr.vmem [resolvable:$true] %s846
          %852 = dma.hbm_to_vmem [thread:$0]  %s25, 32, %s847, [#allocation27], 16, 16, 1
        $region100: #{decoder_forward.1} parent=11 // pred_fallthru
          _
      $region12: #{decoder_forward.1} parent=5 // pred_fallthru
        _
      %p853 = scmp.lt.s32.totalorder %s46, 2
      // Predicated region
      $region101: #{decoder_forward.1} parent=5 // pred_check
        %p854 = pneg %p853
      $region102: #{decoder_forward.1} parent=5 // pred_check_branch
        %856 = sbr.rel (%p854) target = $region104
      $region103: #{decoder_forward.1} parent=5 // pred_region
        // Predicated region
        $region105: #{decoder_forward.1} parent=103 // pred_check
          %p857 = pneg %p66
        $region106: #{decoder_forward.1} parent=103 // pred_check_branch
          %859 = sbr.rel (%p857) target = $region108
        $region107: #{decoder_forward.1} parent=103 // pred_region
          %p860 = scmp.lt.s32.totalorder %s46, 1
          %s861 = scalar_select %p860, %s46, 1
          %s862 = smul.addr %s861, 8
          %s863 = scalar_lea.vmem %s0, %s862
        $region108: #{decoder_forward.1} parent=103 // pred_fallthru
          _
        // Predicated region
        $region109: #{decoder_forward.1} parent=103 // pred_check
          %p864 = pneg %p92
        $region110: #{decoder_forward.1} parent=103 // pred_check_branch
          %866 = sbr.rel (%p864) target = $region112
        $region111: #{decoder_forward.1} parent=103 // pred_region
          %s867 = sand.u32 %s82, 1
          %s868 = scalar_lea.sflag [#allocation3], %s867
          %s869 = sand.u32 %s82, 1
          %s870 = smul.addr %s869, 16
          %s871 = scalar_lea.vmem [#allocation2], %s870
          %s873 = ssub.s32 256, 256
          %874 = vsyncadd %s868, %s873
          %s875 = smul.addr %s46, 2
          %s876 = smul.addr %s875, 128
          %s877 = scalar_lea.hbm %s1, %s876
          %s878 = sshll.u32 %s871, 4
          %s879 = int_to_ptr.vmem [resolvable:$true] %s878
          %884 = dma.hbm_to_vmem [thread:$0]  %s877, 256, %s879, %s868, 128, 128, 8
        $region112: #{decoder_forward.1} parent=103 // pred_fallthru
          _
        // Predicated region
        $region113: #{decoder_forward.1} parent=103 // pred_check
          %p885 = pneg %p118
        $region114: #{decoder_forward.1} parent=103 // pred_check_branch
          %887 = sbr.rel (%p885) target = $region116
        $region115: #{decoder_forward.1} parent=103 // pred_region
          %p888 = scmp.lt.s32.totalorder %s46, 1
          %s889 = scalar_select %p888, %s46, 1
          %s890 = smul.addr %s889, 8
          %s891 = scalar_lea.vmem %s2, %s890
        $region116: #{decoder_forward.1} parent=103 // pred_fallthru
          _
        // Predicated region
        $region117: #{decoder_forward.1} parent=103 // pred_check
          %p892 = pneg %p144
        $region118: #{decoder_forward.1} parent=103 // pred_check_branch
          %894 = sbr.rel (%p892) target = $region120
        $region119: #{decoder_forward.1} parent=103 // pred_region
          %p895 = scmp.lt.s32.totalorder %s46, 1
          %s896 = scalar_select %p895, %s46, 1
          %s897 = scalar_lea.vmem %s3, %s896
        $region120: #{decoder_forward.1} parent=103 // pred_fallthru
          _
      $region104: #{decoder_forward.1} parent=5 // pred_fallthru
        _
      %p898 = scmp.le.s32.totalorder 1, %s46
      %p899 = scmp.lt.s32.totalorder %s46, 3
      %p900 = pnand %p898, %p899
      %p901 = pneg %p900
      // Predicated region
      $region121: #{decoder_forward.1} parent=5 // pred_check
        _
      $region122: #{decoder_forward.1} parent=5 // pred_check_branch
        %903 = sbr.rel (%p900) target = $region124
      $region123: #{decoder_forward.1} parent=5 // pred_region
        %s904 = ssub.s32 %s46, 1
        %s905 = sand.u32 %s85, 1
        %s906 = scalar_lea.sflag [#allocation3], %s905
        %s907 = sand.u32 %s85, 1
        %s908 = smul.addr %s907, 16
        %s909 = scalar_lea.vmem [#allocation2], %s908
        // Predicated region
        $region125: #{decoder_forward.1} parent=123 // pred_check
          %p910 = pneg %p98
        $region126: #{decoder_forward.1} parent=123 // pred_check_branch
          %912 = sbr.rel (%p910) target = $region128
        $region127: #{decoder_forward.1} parent=123 // pred_region
          %913 = dma.done %s906, 256
        $region128: #{decoder_forward.1} parent=123 // pred_fallthru
          _
        // Predicated region
        $region129: #{decoder_forward.1} parent=123 // pred_check
          %p914 = pneg %p171
        $region130: #{decoder_forward.1} parent=123 // pred_check_branch
          %916 = sbr.rel (%p914) target = $region132
        $region131: #{decoder_forward.1} parent=123 // pred_region
          %917 = dma.done [#allocation6], 16
        $region132: #{decoder_forward.1} parent=123 // pred_fallthru
          _
        // Predicated region
        $region133: #{decoder_forward.1} parent=123 // pred_check
          %p918 = pneg %p192
        $region134: #{decoder_forward.1} parent=123 // pred_check_branch
          %920 = sbr.rel (%p918) target = $region136
        $region135: #{decoder_forward.1} parent=123 // pred_region
          %921 = dma.done [#allocation6], 16
        $region136: #{decoder_forward.1} parent=123 // pred_fallthru
          _
        // Predicated region
        $region137: #{decoder_forward.1} parent=123 // pred_check
          %p922 = pneg %p213
        $region138: #{decoder_forward.1} parent=123 // pred_check_branch
          %924 = sbr.rel (%p922) target = $region140
        $region139: #{decoder_forward.1} parent=123 // pred_region
          %925 = dma.done [#allocation9], 16
        $region140: #{decoder_forward.1} parent=123 // pred_fallthru
          _
        // Predicated region
        $region141: #{decoder_forward.1} parent=123 // pred_check
          %p926 = pneg %p234
        $region142: #{decoder_forward.1} parent=123 // pred_check_branch
          %928 = sbr.rel (%p926) target = $region144
        $region143: #{decoder_forward.1} parent=123 // pred_region
          %929 = dma.done [#allocation9], 16
        $region144: #{decoder_forward.1} parent=123 // pred_fallthru
          _
        // Predicated region
        $region145: #{decoder_forward.1} parent=123 // pred_check
          %p930 = pneg %p255
        $region146: #{decoder_forward.1} parent=123 // pred_check_branch
          %932 = sbr.rel (%p930) target = $region148
        $region147: #{decoder_forward.1} parent=123 // pred_region
          %933 = dma.done [#allocation12], 16
        $region148: #{decoder_forward.1} parent=123 // pred_fallthru
          _
        // Predicated region
        $region149: #{decoder_forward.1} parent=123 // pred_check
          %p934 = pneg %p276
        $region150: #{decoder_forward.1} parent=123 // pred_check_branch
          %936 = sbr.rel (%p934) target = $region152
        $region151: #{decoder_forward.1} parent=123 // pred_region
          %937 = dma.done [#allocation12], 16
        $region152: #{decoder_forward.1} parent=123 // pred_fallthru
          _
        // Predicated region
        $region153: #{decoder_forward.1} parent=123 // pred_check
          %p938 = pneg %p297
        $region154: #{decoder_forward.1} parent=123 // pred_check_branch
          %940 = sbr.rel (%p938) target = $region156
        $region155: #{decoder_forward.1} parent=123 // pred_region
          %941 = dma.done [#allocation15], 16
        $region156: #{decoder_forward.1} parent=123 // pred_fallthru
          _
        // Predicated region
        $region157: #{decoder_forward.1} parent=123 // pred_check
          %p942 = pneg %p318
        $region158: #{decoder_forward.1} parent=123 // pred_check_branch
          %944 = sbr.rel (%p942) target = $region160
        $region159: #{decoder_forward.1} parent=123 // pred_region
          %945 = dma.done [#allocation15], 16
        $region160: #{decoder_forward.1} parent=123 // pred_fallthru
          _
        // Predicated region
        $region161: #{decoder_forward.1} parent=123 // pred_check
          %p946 = pneg %p360
        $region162: #{decoder_forward.1} parent=123 // pred_check_branch
          %948 = sbr.rel (%p946) target = $region164
        $region163: #{decoder_forward.1} parent=123 // pred_region
          %949 = dma.done [#allocation18], 32
        $region164: #{decoder_forward.1} parent=123 // pred_fallthru
          _
        // Predicated region
        $region165: #{decoder_forward.1} parent=123 // pred_check
          %p950 = pneg %p402
        $region166: #{decoder_forward.1} parent=123 // pred_check_branch
          %952 = sbr.rel (%p950) target = $region168
        $region167: #{decoder_forward.1} parent=123 // pred_region
          %953 = dma.done [#allocation18], 32
        $region168: #{decoder_forward.1} parent=123 // pred_fallthru
          _
        // Predicated region
        $region169: #{decoder_forward.1} parent=123 // pred_check
          %p954 = pneg %p444
        $region170: #{decoder_forward.1} parent=123 // pred_check_branch
          %956 = sbr.rel (%p954) target = $region172
        $region171: #{decoder_forward.1} parent=123 // pred_region
          %957 = dma.done [#allocation21], 32
        $region172: #{decoder_forward.1} parent=123 // pred_fallthru
          _
        // Predicated region
        $region173: #{decoder_forward.1} parent=123 // pred_check
          %p958 = pneg %p486
        $region174: #{decoder_forward.1} parent=123 // pred_check_branch
          %960 = sbr.rel (%p958) target = $region176
        $region175: #{decoder_forward.1} parent=123 // pred_region
          %961 = dma.done [#allocation21], 32
        $region176: #{decoder_forward.1} parent=123 // pred_fallthru
          _
        // Predicated region
        $region177: #{decoder_forward.1} parent=123 // pred_check
          %p962 = pneg %p528
        $region178: #{decoder_forward.1} parent=123 // pred_check_branch
          %964 = sbr.rel (%p962) target = $region180
        $region179: #{decoder_forward.1} parent=123 // pred_region
          %965 = dma.done [#allocation24], 32
        $region180: #{decoder_forward.1} parent=123 // pred_fallthru
          _
        // Predicated region
        $region181: #{decoder_forward.1} parent=123 // pred_check
          %p966 = pneg %p570
        $region182: #{decoder_forward.1} parent=123 // pred_check_branch
          %968 = sbr.rel (%p966) target = $region184
        $region183: #{decoder_forward.1} parent=123 // pred_region
          %969 = dma.done [#allocation24], 32
        $region184: #{decoder_forward.1} parent=123 // pred_fallthru
          _
        // Predicated region
        $region185: #{decoder_forward.1} parent=123 // pred_check
          %p970 = pneg %p612
        $region186: #{decoder_forward.1} parent=123 // pred_check_branch
          %972 = sbr.rel (%p970) target = $region188
        $region187: #{decoder_forward.1} parent=123 // pred_region
          %973 = dma.done [#allocation27], 32
        $region188: #{decoder_forward.1} parent=123 // pred_fallthru
          _
        %p974 = scmp.lt.s32.totalorder %s51, 1
        %s975 = scalar_select %p974, %s51, 1
        %s976 = smul.addr %s975, 8
        %s977 = scalar_lea.vmem %s0, %s976
        %p978 = pneg %p72
        %p979 = pneg %p69
        %s980 = sand.u32 %s85, 1
        %s981 = scalar_lea.sflag [#allocation3], %s980
        %s982 = sand.u32 %s85, 1
        %s983 = smul.addr %s982, 16
        %s984 = scalar_lea.vmem [#allocation2], %s983
        %p985 = pneg %p98
        %p986 = pneg %p95
        %p987 = scmp.lt.s32.totalorder %s51, 1
        %s988 = scalar_select %p987, %s51, 1
        %s989 = smul.addr %s988, 8
        %s990 = scalar_lea.vmem %s2, %s989
        %p991 = pneg %p124
        %p992 = pneg %p121
        %p993 = scmp.lt.s32.totalorder %s51, 1
        %s994 = scalar_select %p993, %s51, 1
        %s995 = scalar_lea.vmem %s3, %s994
        %p996 = pneg %p150
        %p997 = pneg %p147
        %p998 = pneg %p171
        %p999 = pneg %p168
        %p1000 = pneg %p192
        %p1001 = pneg %p189
        %p1002 = pneg %p213
        %p1003 = pneg %p210
        %p1004 = pneg %p234
        %p1005 = pneg %p231
        %p1006 = pneg %p255
        %p1007 = pneg %p252
        %p1008 = pneg %p276
        %p1009 = pneg %p273
        %p1010 = pneg %p297
        %p1011 = pneg %p294
        %p1012 = pneg %p318
        %p1013 = pneg %p315
        %p1014 = pneg %p339
        %p1015 = pneg %p336
        %p1016 = pneg %p360
        %p1017 = pneg %p357
        %p1018 = pneg %p381
        %p1019 = pneg %p378
        %p1020 = pneg %p402
        %p1021 = pneg %p399
        %p1022 = pneg %p423
        %p1023 = pneg %p420
        %p1024 = pneg %p444
        %p1025 = pneg %p441
        %p1026 = pneg %p465
        %p1027 = pneg %p462
        %p1028 = pneg %p486
        %p1029 = pneg %p483
        %p1030 = pneg %p507
        %p1031 = pneg %p504
        %p1032 = pneg %p528
        %p1033 = pneg %p525
        %p1034 = pneg %p549
        %p1035 = pneg %p546
        %p1036 = pneg %p570
        %p1037 = pneg %p567
        %p1038 = pneg %p591
        %p1039 = pneg %p588
        %p1040 = pneg %p612
        %p1041 = pneg %p609
        %p1042 = pneg %p638
        %p1043 = pneg %p635
        %s1044 = sand.u32 %s625, 1
        %s1045 = scalar_lea.sflag [#allocation4], %s1044
        %s1046 = sand.u32 %s625, 1
        %s1047 = smul.addr %s1046, 8
        %s1048 = scalar_lea.vmem [#allocation28], %s1047
        %p1049 = scmp.lt.s32.totalorder %s51, 1
        %s1050 = scalar_select %p1049, %s51, 1
        %s1051 = smul.addr %s1050, 8
        %s1052 = scalar_lea.vmem %s0, %s1051
        %p1053 = scmp.lt.s32.totalorder %s51, 1
        %s1054 = scalar_select %p1053, %s51, 1
        %s1055 = smul.addr %s1054, 8
        %s1056 = scalar_lea.vmem %s2, %s1055
        %p1057 = scmp.lt.s32.totalorder %s51, 1
        %s1058 = scalar_select %p1057, %s51, 1
        %s1059 = scalar_lea.vmem %s3, %s1058
        %v1060 = vld [vmem:[%s1052] sm:$0xff]
        %v1061 = vld [vmem:[%s909] sm:$0xff]
        %v1062 = vld [vmem:[%s909 + $0x8] sm:$0xff]
        %v1063 = vld [vmem:[%s1056] sm:$0xff]
        %vm1064 = vcmp.eq.f32.partialorder %v1063, 0.0
        %v1065 = vsel %vm1064, -1e+30, 0.0
        %v1066 = vld [vmem:[%s1059] sm:$0x1]
        %vm1067 = vcmp.eq.f32.partialorder %v1066, 0.0
        %v1068 = vsel %vm1067, -1e+30, 0.0
        %vm1069 = vcmask 261120
        %v1070 = vsel %vm1069, %v1060, 0.0
        %1071 = vadd.xlane.f32.xlu0 %v1070
        %v1072 = vpop.xlane.xlu0 %1071
        %v1073 = vrcp.pop 32.0
        %v1074 = vmul.f32 %v1072, %v1073
        %v1075 = vsub.f32 %v1060, %v1074
        %v1076 = vmul.f32 %v1075, %v1075
        %v1077 = vsel %vm1069, %v1076, 0.0
        %1078 = vadd.xlane.f32.xlu0 %v1077
        %v1079 = vpop.xlane.xlu0 %1078
        %v1080 = vmul.f32 %v1079, %v1073
        %v1081 = vadd.f32 %v1080, 1e-05
        %v1082 = vrsqrt.pop %v1081
        %v1083 = vmul.f32 %v1075, %v1082
        %v1084 = vld [vmem:[#allocation5] sm:$0x1]
        %v1086 = vlaneseq
        %v1087 = vshrl.u32 %v1086, 7
        %v1088 = vsub.s32 0, %v1087
        %v1089 = vrot.slane %v1084, %v1088
        %v1091 = vmul.f32 %v1083, %v1089
        %v1092 = vld [vmem:[#allocation7] sm:$0x1]
        %v1094 = vlaneseq
        %v1095 = vshrl.u32 %v1094, 7
        %v1096 = vsub.s32 0, %v1095
        %v1097 = vrot.slane %v1092, %v1096
        %v1099 = vadd.f32 %v1091, %v1097
        %v1100 = vld [vmem:[%s12] sm:$0xff]
        %v1101 = vld [vmem:[%s12 + $0x8] sm:$0xff]
        %v1102 = vld [vmem:[%s12 + $0x10] sm:$0xff]
        %v1103 = vld [vmem:[%s12 + $0x18] sm:$0xff]
        %v1104 = vld [vmem:[#allocation17] sm:$0x1]
        %v1106 = vlaneseq
        %v1107 = vshrl.u32 %v1106, 7
        %v1108 = vsub.s32 0, %v1107
        %v1109 = vrot.slane %v1104, %v1108
        %v1112 = vsel %vm1069, %v1099, 0
        %1114 = vmatprep.subr.mxu0 0.0
        %1115 = vmatpush1.msra.mxu0 0.0
        %1116 = vmatprep.subr.mxu0 0.0
        %1117 = vmatpush1.msra.mxu0 0.0
        %1118 = vmatprep.subr.mxu0 0.0
        %1119 = vmatpush1.msra.mxu0 0.0
        %1120 = vmatprep.subr.mxu0 0.0
        %1121 = vmatpush1.msra.mxu0 0.0
        %1122 = vmatprep.subr.mxu0 0.0
        %1123 = vmatpush1.msra.mxu0 0.0
        %1124 = vmatprep.subr.mxu0 0.0
        %1125 = vmatpush1.msra.mxu0 0.0
        %1126 = vmatprep.subr.mxu0 0.0
        %1127 = vmatpush1.msra.mxu0 0.0
        %1128 = vmatprep.subr.mxu0 0.0
        %1129 = vmatpush1.msra.mxu0 0.0
        %1130 = vmatprep.subr.mxu0 0.0
        %1131 = vmatpush1.msra.mxu0 0.0
        %1132 = vmatprep.subr.mxu0 0.0
        %1133 = vmatpush1.msra.mxu0 0.0
        %1134 = vmatprep.subr.mxu0 0.0
        %1135 = vmatpush1.msra.mxu0 0.0
        %1136 = vmatprep.subr.mxu0 0.0
        %1137 = vmatpush1.msra.mxu0 0.0
        %1138 = vmatprep.subr.mxu0 0.0
        %1139 = vmatpush1.msra.mxu0 %v1103
        %1140 = vmatprep.subr.mxu0 0.0
        %1141 = vmatpush1.msra.mxu0 %v1102
        %1142 = vmatprep.subr.mxu0 0.0
        %1143 = vmatpush1.msra.mxu0 %v1101
        %1144 = vmatprep.subr.mxu0 0.0
        %1145 = vmatpush1.msra.mxu0 %v1100
        %1146 = vmatprep.subr.mxu0 0.0
        %1147 = vmatpush2.msra.mxu0 0.0
        %1148 = vmatprep.subr.mxu0 0.0
        %1149 = vmatpush2.msra.mxu0 0.0
        %1150 = vmatprep.subr.mxu0 0.0
        %1151 = vmatpush2.msra.mxu0 0.0
        %1152 = vmatprep.subr.mxu0 0.0
        %1153 = vmatpush2.msra.mxu0 0.0
        %1154 = vmatprep.subr.mxu0 0.0
        %1155 = vmatpush2.msra.mxu0 0.0
        %1156 = vmatprep.subr.mxu0 0.0
        %1157 = vmatpush2.msra.mxu0 0.0
        %1158 = vmatprep.subr.mxu0 0.0
        %1159 = vmatpush2.msra.mxu0 0.0
        %1160 = vmatprep.subr.mxu0 0.0
        %1161 = vmatpush2.msra.mxu0 0.0
        %1162 = vmatprep.subr.mxu0 0.0
        %1163 = vmatpush2.msra.mxu0 0.0
        %1164 = vmatprep.subr.mxu0 0.0
        %1165 = vmatpush2.msra.mxu0 0.0
        %1166 = vmatprep.subr.mxu0 0.0
        %1167 = vmatpush2.msra.mxu0 0.0
        %1168 = vmatprep.subr.mxu0 0.0
        %1169 = vmatpush2.msra.mxu0 0.0
        %1170 = vmatprep.subr.mxu0 0.0
        %1171 = vmatpush2.msra.mxu0 0.0
        %1172 = vmatprep.subr.mxu0 0.0
        %1173 = vmatpush2.msra.mxu0 0.0
        %1174 = vmatprep.subr.mxu0 0.0
        %1175 = vmatpush2.msra.mxu0 0.0
        %1176 = vmatprep.subr.mxu0 0.0
        %1177 = vmatpush2.msra.mxu0 0.0
        %1178 = vmatprep.mubr.f32.mxu0 0.0
        %1179 = vmatmul.mubr.f32.gmra.mxu0 %v1112
        %v1180 = vpop.f32.mrf.mxu0
        %v1181 = vadd.f32 %v1109, %v1180
        %v1182 = vpop.f32.mrf.mxu0
        %1183 = vdwg.mxu0
        %v1184 = vld [vmem:[%s14] sm:$0xff]
        %v1185 = vld [vmem:[%s14 + $0x8] sm:$0xff]
        %v1186 = vld [vmem:[%s14 + $0x10] sm:$0xff]
        %v1187 = vld [vmem:[%s14 + $0x18] sm:$0xff]
        %v1188 = vld [vmem:[#allocation19] sm:$0x1]
        %v1190 = vlaneseq
        %v1191 = vshrl.u32 %v1190, 7
        %v1192 = vsub.s32 0, %v1191
        %v1193 = vrot.slane %v1188, %v1192
        %1196 = vrot.lane.b32.xlu0 %v1181, 96
        %v1197 = vpop.permute.xlu0 %1196
        %vm1198 = vcmask 64512
        %v1199 = vsel %vm1198, %v1181, 0
        %v1201 = vsel %vm1198, %v1197, 0
        %1203 = vmatprep.subr.mxu0 0.0
        %1204 = vmatpush1.xpose.msra.mxu0 0.0
        %1205 = vmatprep.subr.mxu0 0.0
        %1206 = vmatpush1.xpose.msra.mxu0 0.0
        %1207 = vmatprep.subr.mxu0 0.0
        %1208 = vmatpush1.xpose.msra.mxu0 0.0
        %1209 = vmatprep.subr.mxu0 0.0
        %1210 = vmatpush1.xpose.msra.mxu0 0.0
        %1211 = vmatprep.subr.mxu0 0.0
        %1212 = vmatpush1.xpose.msra.mxu0 0.0
        %1213 = vmatprep.subr.mxu0 0.0
        %1214 = vmatpush1.xpose.msra.mxu0 0.0
        %1215 = vmatprep.subr.mxu0 0.0
        %1216 = vmatpush1.xpose.msra.mxu0 0.0
        %1217 = vmatprep.subr.mxu0 0.0
        %1218 = vmatpush1.xpose.msra.mxu0 0.0
        %1219 = vmatprep.subr.mxu0 0.0
        %1220 = vmatpush1.xpose.msra.mxu0 0.0
        %1221 = vmatprep.subr.mxu0 0.0
        %1222 = vmatpush1.xpose.msra.mxu0 0.0
        %1223 = vmatprep.subr.mxu0 0.0
        %1224 = vmatpush1.xpose.msra.mxu0 0.0
        %1225 = vmatprep.subr.mxu0 0.0
        %1226 = vmatpush1.xpose.msra.mxu0 0.0
        %1227 = vmatprep.subr.mxu0 0.0
        %1228 = vmatpush1.xpose.msra.mxu0 0.0
        %1229 = vmatprep.subr.mxu0 0.0
        %1230 = vmatpush1.xpose.msra.mxu0 0.0
        %1231 = vmatprep.subr.mxu0 0.0
        %1232 = vmatpush1.xpose.msra.mxu0 0.0
        %1233 = vmatprep.subr.mxu0 0.0
        %1234 = vmatpush1.xpose.msra.mxu0 %v1201
        %1235 = vmatprep.subr.mxu0 0.0
        %1236 = vmatpush2.xpose.msra.mxu0 0.0
        %1237 = vmatprep.subr.mxu0 0.0
        %1238 = vmatpush2.xpose.msra.mxu0 0.0
        %1239 = vmatprep.subr.mxu0 0.0
        %1240 = vmatpush2.xpose.msra.mxu0 0.0
        %1241 = vmatprep.subr.mxu0 0.0
        %1242 = vmatpush2.xpose.msra.mxu0 0.0
        %1243 = vmatprep.subr.mxu0 0.0
        %1244 = vmatpush2.xpose.msra.mxu0 0.0
        %1245 = vmatprep.subr.mxu0 0.0
        %1246 = vmatpush2.xpose.msra.mxu0 0.0
        %1247 = vmatprep.subr.mxu0 0.0
        %1248 = vmatpush2.xpose.msra.mxu0 0.0
        %1249 = vmatprep.subr.mxu0 0.0
        %1250 = vmatpush2.xpose.msra.mxu0 0.0
        %1251 = vmatprep.subr.mxu0 0.0
        %1252 = vmatpush2.xpose.msra.mxu0 0.0
        %1253 = vmatprep.subr.mxu0 0.0
        %1254 = vmatpush2.xpose.msra.mxu0 0.0
        %1255 = vmatprep.subr.mxu0 0.0
        %1256 = vmatpush2.xpose.msra.mxu0 0.0
        %1257 = vmatprep.subr.mxu0 0.0
        %1258 = vmatpush2.xpose.msra.mxu0 0.0
        %1259 = vmatprep.subr.mxu0 0.0
        %1260 = vmatpush2.xpose.msra.mxu0 0.0
        %1261 = vmatprep.subr.mxu0 0.0
        %1262 = vmatpush2.xpose.msra.mxu0 0.0
        %1263 = vmatprep.subr.mxu0 0.0
        %1264 = vmatpush2.xpose.msra.mxu0 0.0
        %1265 = vmatprep.subr.mxu0 0.0
        %1266 = vmatpush2.xpose.msra.mxu0 0.0
        %1267 = vmatprep.mubr.f32.mxu0 0.0
        %1268 = vmatmul.mubr.f32.gmra.mxu0 %v1199
        %v1269 = vpop.f32.mrf.mxu0
        %v1270 = vadd.f32 0.0, %v1269
        %v1271 = vpop.f32.mrf.mxu0
        %1272 = vdwg.mxu0
        %v1273 = vmul.f32 %v1270, 0.35355338
        %v1274 = vadd.f32 %v1273, %v1065
        %v1275 = vsel %vm1198, %v1274, -inf
        %1276 = vmax.xlane.f32.xlu0 %v1275
        %v1277 = vpop.xlane.xlu0 %1276
        %v1278 = vsub.f32 %v1274, %v1277
        %v1279 = vmul.f32 %v1278, 1.442695
        %v1280 = vpow.pop %v1279
        %v1281 = vsel %vm1198, %v1280, 0.0
        %1282 = vadd.xlane.f32.xlu0 %v1281
        %v1283 = vpop.xlane.xlu0 %1282
        %v1284 = vrcp.pop %v1283
        %v1285 = vmul.f32 %v1280, %v1284
        %1286 = vrot.lane.b32.xlu0 %v1181, 64
        %v1287 = vpop.permute.xlu0 %1286
        %v1290 = vsel %vm1198, %v1285, 0
        %1292 = vmatprep.subr.mxu0 0.0
        %1293 = vmatpush1.msra.mxu0 0.0
        %1294 = vmatprep.subr.mxu0 0.0
        %1295 = vmatpush1.msra.mxu0 0.0
        %1296 = vmatprep.subr.mxu0 0.0
        %1297 = vmatpush1.msra.mxu0 0.0
        %1298 = vmatprep.subr.mxu0 0.0
        %1299 = vmatpush1.msra.mxu0 0.0
        %1300 = vmatprep.subr.mxu0 0.0
        %1301 = vmatpush1.msra.mxu0 0.0
        %1302 = vmatprep.subr.mxu0 0.0
        %1303 = vmatpush1.msra.mxu0 0.0
        %1304 = vmatprep.subr.mxu0 0.0
        %1305 = vmatpush1.msra.mxu0 0.0
        %1306 = vmatprep.subr.mxu0 0.0
        %1307 = vmatpush1.msra.mxu0 0.0
        %1308 = vmatprep.subr.mxu0 0.0
        %1309 = vmatpush1.msra.mxu0 0.0
        %1310 = vmatprep.subr.mxu0 0.0
        %1311 = vmatpush1.msra.mxu0 0.0
        %1312 = vmatprep.subr.mxu0 0.0
        %1313 = vmatpush1.msra.mxu0 0.0
        %1314 = vmatprep.subr.mxu0 0.0
        %1315 = vmatpush1.msra.mxu0 0.0
        %1316 = vmatprep.subr.mxu0 0.0
        %1317 = vmatpush1.msra.mxu0 0.0
        %1318 = vmatprep.subr.mxu0 0.0
        %1319 = vmatpush1.msra.mxu0 0.0
        %1320 = vmatprep.subr.mxu0 0.0
        %1321 = vmatpush1.msra.mxu0 0.0
        %1322 = vmatprep.subr.mxu0 0.0
        %1323 = vmatpush1.msra.mxu0 %v1287
        %1324 = vmatprep.subr.mxu0 0.0
        %1325 = vmatpush2.msra.mxu0 0.0
        %1326 = vmatprep.subr.mxu0 0.0
        %1327 = vmatpush2.msra.mxu0 0.0
        %1328 = vmatprep.subr.mxu0 0.0
        %1329 = vmatpush2.msra.mxu0 0.0
        %1330 = vmatprep.subr.mxu0 0.0
        %1331 = vmatpush2.msra.mxu0 0.0
        %1332 = vmatprep.subr.mxu0 0.0
        %1333 = vmatpush2.msra.mxu0 0.0
        %1334 = vmatprep.subr.mxu0 0.0
        %1335 = vmatpush2.msra.mxu0 0.0
        %1336 = vmatprep.subr.mxu0 0.0
        %1337 = vmatpush2.msra.mxu0 0.0
        %1338 = vmatprep.subr.mxu0 0.0
        %1339 = vmatpush2.msra.mxu0 0.0
        %1340 = vmatprep.subr.mxu0 0.0
        %1341 = vmatpush2.msra.mxu0 0.0
        %1342 = vmatprep.subr.mxu0 0.0
        %1343 = vmatpush2.msra.mxu0 0.0
        %1344 = vmatprep.subr.mxu0 0.0
        %1345 = vmatpush2.msra.mxu0 0.0
        %1346 = vmatprep.subr.mxu0 0.0
        %1347 = vmatpush2.msra.mxu0 0.0
        %1348 = vmatprep.subr.mxu0 0.0
        %1349 = vmatpush2.msra.mxu0 0.0
        %1350 = vmatprep.subr.mxu0 0.0
        %1351 = vmatpush2.msra.mxu0 0.0
        %1352 = vmatprep.subr.mxu0 0.0
        %1353 = vmatpush2.msra.mxu0 0.0
        %1354 = vmatprep.subr.mxu0 0.0
        %1355 = vmatpush2.msra.mxu0 0.0
        %1356 = vmatprep.mubr.f32.mxu0 0.0
        %1357 = vmatmul.mubr.f32.gmra.mxu0 %v1290
        %v1358 = vpop.f32.mrf.mxu0
        %v1359 = vadd.f32 0.0, %v1358
        %v1360 = vpop.f32.mrf.mxu0
        %1361 = vdwg.mxu0
        %v1363 = vsel %vm1198, %v1359, 0
        %1365 = vmatprep.subr.mxu0 0.0
        %1366 = vmatpush1.msra.mxu0 0.0
        %1367 = vmatprep.subr.mxu0 0.0
        %1368 = vmatpush1.msra.mxu0 0.0
        %1369 = vmatprep.subr.mxu0 0.0
        %1370 = vmatpush1.msra.mxu0 0.0
        %1371 = vmatprep.subr.mxu0 0.0
        %1372 = vmatpush1.msra.mxu0 0.0
        %1373 = vmatprep.subr.mxu0 0.0
        %1374 = vmatpush1.msra.mxu0 0.0
        %1375 = vmatprep.subr.mxu0 0.0
        %1376 = vmatpush1.msra.mxu0 0.0
        %1377 = vmatprep.subr.mxu0 0.0
        %1378 = vmatpush1.msra.mxu0 0.0
        %1379 = vmatprep.subr.mxu0 0.0
        %1380 = vmatpush1.msra.mxu0 0.0
        %1381 = vmatprep.subr.mxu0 0.0
        %1382 = vmatpush1.msra.mxu0 0.0
        %1383 = vmatprep.subr.mxu0 0.0
        %1384 = vmatpush1.msra.mxu0 0.0
        %1385 = vmatprep.subr.mxu0 0.0
        %1386 = vmatpush1.msra.mxu0 0.0
        %1387 = vmatprep.subr.mxu0 0.0
        %1388 = vmatpush1.msra.mxu0 0.0
        %1389 = vmatprep.subr.mxu0 0.0
        %1390 = vmatpush1.msra.mxu0 0.0
        %1391 = vmatprep.subr.mxu0 0.0
        %1392 = vmatpush1.msra.mxu0 0.0
        %1393 = vmatprep.subr.mxu0 0.0
        %1394 = vmatpush1.msra.mxu0 0.0
        %1395 = vmatprep.subr.mxu0 0.0
        %1396 = vmatpush1.msra.mxu0 %v1184
        %1397 = vmatprep.subr.mxu0 0.0
        %1398 = vmatpush2.msra.mxu0 0.0
        %1399 = vmatprep.subr.mxu0 0.0
        %1400 = vmatpush2.msra.mxu0 0.0
        %1401 = vmatprep.subr.mxu0 0.0
        %1402 = vmatpush2.msra.mxu0 0.0
        %1403 = vmatprep.subr.mxu0 0.0
        %1404 = vmatpush2.msra.mxu0 0.0
        %1405 = vmatprep.subr.mxu0 0.0
        %1406 = vmatpush2.msra.mxu0 0.0
        %1407 = vmatprep.subr.mxu0 0.0
        %1408 = vmatpush2.msra.mxu0 0.0
        %1409 = vmatprep.subr.mxu0 0.0
        %1410 = vmatpush2.msra.mxu0 0.0
        %1411 = vmatprep.subr.mxu0 0.0
        %1412 = vmatpush2.msra.mxu0 0.0
        %1413 = vmatprep.subr.mxu0 0.0
        %1414 = vmatpush2.msra.mxu0 0.0
        %1415 = vmatprep.subr.mxu0 0.0
        %1416 = vmatpush2.msra.mxu0 0.0
        %1417 = vmatprep.subr.mxu0 0.0
        %1418 = vmatpush2.msra.mxu0 0.0
        %1419 = vmatprep.subr.mxu0 0.0
        %1420 = vmatpush2.msra.mxu0 0.0
        %1421 = vmatprep.subr.mxu0 0.0
        %1422 = vmatpush2.msra.mxu0 0.0
        %1423 = vmatprep.subr.mxu0 0.0
        %1424 = vmatpush2.msra.mxu0 0.0
        %1425 = vmatprep.subr.mxu0 0.0
        %1426 = vmatpush2.msra.mxu0 0.0
        %1427 = vmatprep.subr.mxu0 0.0
        %1428 = vmatpush2.msra.mxu0 0.0
        %1429 = vmatprep.mubr.f32.mxu0 0.0
        %1430 = vmatmul.mubr.f32.gmra.mxu0 %v1363
        %v1431 = vpop.f32.mrf.mxu0
        %v1432 = vadd.f32 0.0, %v1431
        %v1433 = vpop.f32.mrf.mxu0
        %1434 = vdwg.mxu0
        %v1435 = vadd.f32 %v1193, %v1432
        %1436 = vrot.lane.b32.xlu0 %v1181, 120
        %v1437 = vpop.permute.xlu0 %1436
        %1438 = vrot.lane.b32.xlu0 %v1181, 88
        %v1439 = vpop.permute.xlu0 %1438
        %v1440 = vsel %vm1198, %v1437, 0
        %v1442 = vsel %vm1198, %v1439, 0
        %1444 = vmatprep.subr.mxu0 0.0
        %1445 = vmatpush1.xpose.msra.mxu0 0.0
        %1446 = vmatprep.subr.mxu0 0.0
        %1447 = vmatpush1.xpose.msra.mxu0 0.0
        %1448 = vmatprep.subr.mxu0 0.0
        %1449 = vmatpush1.xpose.msra.mxu0 0.0
        %1450 = vmatprep.subr.mxu0 0.0
        %1451 = vmatpush1.xpose.msra.mxu0 0.0
        %1452 = vmatprep.subr.mxu0 0.0
        %1453 = vmatpush1.xpose.msra.mxu0 0.0
        %1454 = vmatprep.subr.mxu0 0.0
        %1455 = vmatpush1.xpose.msra.mxu0 0.0
        %1456 = vmatprep.subr.mxu0 0.0
        %1457 = vmatpush1.xpose.msra.mxu0 0.0
        %1458 = vmatprep.subr.mxu0 0.0
        %1459 = vmatpush1.xpose.msra.mxu0 0.0
        %1460 = vmatprep.subr.mxu0 0.0
        %1461 = vmatpush1.xpose.msra.mxu0 0.0
        %1462 = vmatprep.subr.mxu0 0.0
        %1463 = vmatpush1.xpose.msra.mxu0 0.0
        %1464 = vmatprep.subr.mxu0 0.0
        %1465 = vmatpush1.xpose.msra.mxu0 0.0
        %1466 = vmatprep.subr.mxu0 0.0
        %1467 = vmatpush1.xpose.msra.mxu0 0.0
        %1468 = vmatprep.subr.mxu0 0.0
        %1469 = vmatpush1.xpose.msra.mxu0 0.0
        %1470 = vmatprep.subr.mxu0 0.0
        %1471 = vmatpush1.xpose.msra.mxu0 0.0
        %1472 = vmatprep.subr.mxu0 0.0
        %1473 = vmatpush1.xpose.msra.mxu0 0.0
        %1474 = vmatprep.subr.mxu0 0.0
        %1475 = vmatpush1.xpose.msra.mxu0 %v1442
        %1476 = vmatprep.subr.mxu0 0.0
        %1477 = vmatpush2.xpose.msra.mxu0 0.0
        %1478 = vmatprep.subr.mxu0 0.0
        %1479 = vmatpush2.xpose.msra.mxu0 0.0
        %1480 = vmatprep.subr.mxu0 0.0
        %1481 = vmatpush2.xpose.msra.mxu0 0.0
        %1482 = vmatprep.subr.mxu0 0.0
        %1483 = vmatpush2.xpose.msra.mxu0 0.0
        %1484 = vmatprep.subr.mxu0 0.0
        %1485 = vmatpush2.xpose.msra.mxu0 0.0
        %1486 = vmatprep.subr.mxu0 0.0
        %1487 = vmatpush2.xpose.msra.mxu0 0.0
        %1488 = vmatprep.subr.mxu0 0.0
        %1489 = vmatpush2.xpose.msra.mxu0 0.0
        %1490 = vmatprep.subr.mxu0 0.0
        %1491 = vmatpush2.xpose.msra.mxu0 0.0
        %1492 = vmatprep.subr.mxu0 0.0
        %1493 = vmatpush2.xpose.msra.mxu0 0.0
        %1494 = vmatprep.subr.mxu0 0.0
        %1495 = vmatpush2.xpose.msra.mxu0 0.0
        %1496 = vmatprep.subr.mxu0 0.0
        %1497 = vmatpush2.xpose.msra.mxu0 0.0
        %1498 = vmatprep.subr.mxu0 0.0
        %1499 = vmatpush2.xpose.msra.mxu0 0.0
        %1500 = vmatprep.subr.mxu0 0.0
        %1501 = vmatpush2.xpose.msra.mxu0 0.0
        %1502 = vmatprep.subr.mxu0 0.0
        %1503 = vmatpush2.xpose.msra.mxu0 0.0
        %1504 = vmatprep.subr.mxu0 0.0
        %1505 = vmatpush2.xpose.msra.mxu0 0.0
        %1506 = vmatprep.subr.mxu0 0.0
        %1507 = vmatpush2.xpose.msra.mxu0 0.0
        %1508 = vmatprep.mubr.f32.mxu0 0.0
        %1509 = vmatmul.mubr.f32.gmra.mxu0 %v1440
        %v1510 = vpop.f32.mrf.mxu0
        %v1511 = vadd.f32 0.0, %v1510
        %v1512 = vpop.f32.mrf.mxu0
        %1513 = vdwg.mxu0
        %v1514 = vmul.f32 %v1511, 0.35355338
        %v1515 = vadd.f32 %v1514, %v1065
        %v1516 = vsel %vm1198, %v1515, -inf
        %1517 = vmax.xlane.f32.xlu0 %v1516
        %v1518 = vpop.xlane.xlu0 %1517
        %v1519 = vsub.f32 %v1515, %v1518
        %v1520 = vmul.f32 %v1519, 1.442695
        %v1521 = vpow.pop %v1520
        %v1522 = vsel %vm1198, %v1521, 0.0
        %1523 = vadd.xlane.f32.xlu0 %v1522
        %v1524 = vpop.xlane.xlu0 %1523
        %v1525 = vrcp.pop %v1524
        %v1526 = vmul.f32 %v1521, %v1525
        %1527 = vrot.lane.b32.xlu0 %v1181, 56
        %v1528 = vpop.permute.xlu0 %1527
        %v1531 = vsel %vm1198, %v1526, 0
        %1533 = vmatprep.subr.mxu0 0.0
        %1534 = vmatpush1.msra.mxu0 0.0
        %1535 = vmatprep.subr.mxu0 0.0
        %1536 = vmatpush1.msra.mxu0 0.0
        %1537 = vmatprep.subr.mxu0 0.0
        %1538 = vmatpush1.msra.mxu0 0.0
        %1539 = vmatprep.subr.mxu0 0.0
        %1540 = vmatpush1.msra.mxu0 0.0
        %1541 = vmatprep.subr.mxu0 0.0
        %1542 = vmatpush1.msra.mxu0 0.0
        %1543 = vmatprep.subr.mxu0 0.0
        %1544 = vmatpush1.msra.mxu0 0.0
        %1545 = vmatprep.subr.mxu0 0.0
        %1546 = vmatpush1.msra.mxu0 0.0
        %1547 = vmatprep.subr.mxu0 0.0
        %1548 = vmatpush1.msra.mxu0 0.0
        %1549 = vmatprep.subr.mxu0 0.0
        %1550 = vmatpush1.msra.mxu0 0.0
        %1551 = vmatprep.subr.mxu0 0.0
        %1552 = vmatpush1.msra.mxu0 0.0
        %1553 = vmatprep.subr.mxu0 0.0
        %1554 = vmatpush1.msra.mxu0 0.0
        %1555 = vmatprep.subr.mxu0 0.0
        %1556 = vmatpush1.msra.mxu0 0.0
        %1557 = vmatprep.subr.mxu0 0.0
        %1558 = vmatpush1.msra.mxu0 0.0
        %1559 = vmatprep.subr.mxu0 0.0
        %1560 = vmatpush1.msra.mxu0 0.0
        %1561 = vmatprep.subr.mxu0 0.0
        %1562 = vmatpush1.msra.mxu0 0.0
        %1563 = vmatprep.subr.mxu0 0.0
        %1564 = vmatpush1.msra.mxu0 %v1528
        %1565 = vmatprep.subr.mxu0 0.0
        %1566 = vmatpush2.msra.mxu0 0.0
        %1567 = vmatprep.subr.mxu0 0.0
        %1568 = vmatpush2.msra.mxu0 0.0
        %1569 = vmatprep.subr.mxu0 0.0
        %1570 = vmatpush2.msra.mxu0 0.0
        %1571 = vmatprep.subr.mxu0 0.0
        %1572 = vmatpush2.msra.mxu0 0.0
        %1573 = vmatprep.subr.mxu0 0.0
        %1574 = vmatpush2.msra.mxu0 0.0
        %1575 = vmatprep.subr.mxu0 0.0
        %1576 = vmatpush2.msra.mxu0 0.0
        %1577 = vmatprep.subr.mxu0 0.0
        %1578 = vmatpush2.msra.mxu0 0.0
        %1579 = vmatprep.subr.mxu0 0.0
        %1580 = vmatpush2.msra.mxu0 0.0
        %1581 = vmatprep.subr.mxu0 0.0
        %1582 = vmatpush2.msra.mxu0 0.0
        %1583 = vmatprep.subr.mxu0 0.0
        %1584 = vmatpush2.msra.mxu0 0.0
        %1585 = vmatprep.subr.mxu0 0.0
        %1586 = vmatpush2.msra.mxu0 0.0
        %1587 = vmatprep.subr.mxu0 0.0
        %1588 = vmatpush2.msra.mxu0 0.0
        %1589 = vmatprep.subr.mxu0 0.0
        %1590 = vmatpush2.msra.mxu0 0.0
        %1591 = vmatprep.subr.mxu0 0.0
        %1592 = vmatpush2.msra.mxu0 0.0
        %1593 = vmatprep.subr.mxu0 0.0
        %1594 = vmatpush2.msra.mxu0 0.0
        %1595 = vmatprep.subr.mxu0 0.0
        %1596 = vmatpush2.msra.mxu0 0.0
        %1597 = vmatprep.mubr.f32.mxu0 0.0
        %1598 = vmatmul.mubr.f32.gmra.mxu0 %v1531
        %v1599 = vpop.f32.mrf.mxu0
        %v1600 = vadd.f32 0.0, %v1599
        %v1601 = vpop.f32.mrf.mxu0
        %1602 = vdwg.mxu0
        %v1604 = vsel %vm1198, %v1600, 0
        %1606 = vmatprep.subr.mxu0 0.0
        %1607 = vmatpush1.msra.mxu0 0.0
        %1608 = vmatprep.subr.mxu0 0.0
        %1609 = vmatpush1.msra.mxu0 0.0
        %1610 = vmatprep.subr.mxu0 0.0
        %1611 = vmatpush1.msra.mxu0 0.0
        %1612 = vmatprep.subr.mxu0 0.0
        %1613 = vmatpush1.msra.mxu0 0.0
        %1614 = vmatprep.subr.mxu0 0.0
        %1615 = vmatpush1.msra.mxu0 0.0
        %1616 = vmatprep.subr.mxu0 0.0
        %1617 = vmatpush1.msra.mxu0 0.0
        %1618 = vmatprep.subr.mxu0 0.0
        %1619 = vmatpush1.msra.mxu0 0.0
        %1620 = vmatprep.subr.mxu0 0.0
        %1621 = vmatpush1.msra.mxu0 0.0
        %1622 = vmatprep.subr.mxu0 0.0
        %1623 = vmatpush1.msra.mxu0 0.0
        %1624 = vmatprep.subr.mxu0 0.0
        %1625 = vmatpush1.msra.mxu0 0.0
        %1626 = vmatprep.subr.mxu0 0.0
        %1627 = vmatpush1.msra.mxu0 0.0
        %1628 = vmatprep.subr.mxu0 0.0
        %1629 = vmatpush1.msra.mxu0 0.0
        %1630 = vmatprep.subr.mxu0 0.0
        %1631 = vmatpush1.msra.mxu0 0.0
        %1632 = vmatprep.subr.mxu0 0.0
        %1633 = vmatpush1.msra.mxu0 0.0
        %1634 = vmatprep.subr.mxu0 0.0
        %1635 = vmatpush1.msra.mxu0 0.0
        %1636 = vmatprep.subr.mxu0 0.0
        %1637 = vmatpush1.msra.mxu0 %v1185
        %1638 = vmatprep.subr.mxu0 0.0
        %1639 = vmatpush2.msra.mxu0 0.0
        %1640 = vmatprep.subr.mxu0 0.0
        %1641 = vmatpush2.msra.mxu0 0.0
        %1642 = vmatprep.subr.mxu0 0.0
        %1643 = vmatpush2.msra.mxu0 0.0
        %1644 = vmatprep.subr.mxu0 0.0
        %1645 = vmatpush2.msra.mxu0 0.0
        %1646 = vmatprep.subr.mxu0 0.0
        %1647 = vmatpush2.msra.mxu0 0.0
        %1648 = vmatprep.subr.mxu0 0.0
        %1649 = vmatpush2.msra.mxu0 0.0
        %1650 = vmatprep.subr.mxu0 0.0
        %1651 = vmatpush2.msra.mxu0 0.0
        %1652 = vmatprep.subr.mxu0 0.0
        %1653 = vmatpush2.msra.mxu0 0.0
        %1654 = vmatprep.subr.mxu0 0.0
        %1655 = vmatpush2.msra.mxu0 0.0
        %1656 = vmatprep.subr.mxu0 0.0
        %1657 = vmatpush2.msra.mxu0 0.0
        %1658 = vmatprep.subr.mxu0 0.0
        %1659 = vmatpush2.msra.mxu0 0.0
        %1660 = vmatprep.subr.mxu0 0.0
        %1661 = vmatpush2.msra.mxu0 0.0
        %1662 = vmatprep.subr.mxu0 0.0
        %1663 = vmatpush2.msra.mxu0 0.0
        %1664 = vmatprep.subr.mxu0 0.0
        %1665 = vmatpush2.msra.mxu0 0.0
        %1666 = vmatprep.subr.mxu0 0.0
        %1667 = vmatpush2.msra.mxu0 0.0
        %1668 = vmatprep.subr.mxu0 0.0
        %1669 = vmatpush2.msra.mxu0 0.0
        %1670 = vmatprep.mubr.f32.mxu0 0.0
        %1671 = vmatmul.mubr.f32.gmra.mxu0 %v1604
        %v1672 = vpop.f32.mrf.mxu0
        %v1673 = vadd.f32 0.0, %v1672
        %v1674 = vpop.f32.mrf.mxu0
        %1675 = vdwg.mxu0
        %v1676 = vadd.f32 %v1435, %v1673
        %1677 = vrot.lane.b32.xlu0 %v1181, 112
        %v1678 = vpop.permute.xlu0 %1677
        %1679 = vrot.lane.b32.xlu0 %v1181, 80
        %v1680 = vpop.permute.xlu0 %1679
        %v1681 = vsel %vm1198, %v1678, 0
        %v1683 = vsel %vm1198, %v1680, 0
        %1685 = vmatprep.subr.mxu0 0.0
        %1686 = vmatpush1.xpose.msra.mxu0 0.0
        %1687 = vmatprep.subr.mxu0 0.0
        %1688 = vmatpush1.xpose.msra.mxu0 0.0
        %1689 = vmatprep.subr.mxu0 0.0
        %1690 = vmatpush1.xpose.msra.mxu0 0.0
        %1691 = vmatprep.subr.mxu0 0.0
        %1692 = vmatpush1.xpose.msra.mxu0 0.0
        %1693 = vmatprep.subr.mxu0 0.0
        %1694 = vmatpush1.xpose.msra.mxu0 0.0
        %1695 = vmatprep.subr.mxu0 0.0
        %1696 = vmatpush1.xpose.msra.mxu0 0.0
        %1697 = vmatprep.subr.mxu0 0.0
        %1698 = vmatpush1.xpose.msra.mxu0 0.0
        %1699 = vmatprep.subr.mxu0 0.0
        %1700 = vmatpush1.xpose.msra.mxu0 0.0
        %1701 = vmatprep.subr.mxu0 0.0
        %1702 = vmatpush1.xpose.msra.mxu0 0.0
        %1703 = vmatprep.subr.mxu0 0.0
        %1704 = vmatpush1.xpose.msra.mxu0 0.0
        %1705 = vmatprep.subr.mxu0 0.0
        %1706 = vmatpush1.xpose.msra.mxu0 0.0
        %1707 = vmatprep.subr.mxu0 0.0
        %1708 = vmatpush1.xpose.msra.mxu0 0.0
        %1709 = vmatprep.subr.mxu0 0.0
        %1710 = vmatpush1.xpose.msra.mxu0 0.0
        %1711 = vmatprep.subr.mxu0 0.0
        %1712 = vmatpush1.xpose.msra.mxu0 0.0
        %1713 = vmatprep.subr.mxu0 0.0
        %1714 = vmatpush1.xpose.msra.mxu0 0.0
        %1715 = vmatprep.subr.mxu0 0.0
        %1716 = vmatpush1.xpose.msra.mxu0 %v1683
        %1717 = vmatprep.subr.mxu0 0.0
        %1718 = vmatpush2.xpose.msra.mxu0 0.0
        %1719 = vmatprep.subr.mxu0 0.0
        %1720 = vmatpush2.xpose.msra.mxu0 0.0
        %1721 = vmatprep.subr.mxu0 0.0
        %1722 = vmatpush2.xpose.msra.mxu0 0.0
        %1723 = vmatprep.subr.mxu0 0.0
        %1724 = vmatpush2.xpose.msra.mxu0 0.0
        %1725 = vmatprep.subr.mxu0 0.0
        %1726 = vmatpush2.xpose.msra.mxu0 0.0
        %1727 = vmatprep.subr.mxu0 0.0
        %1728 = vmatpush2.xpose.msra.mxu0 0.0
        %1729 = vmatprep.subr.mxu0 0.0
        %1730 = vmatpush2.xpose.msra.mxu0 0.0
        %1731 = vmatprep.subr.mxu0 0.0
        %1732 = vmatpush2.xpose.msra.mxu0 0.0
        %1733 = vmatprep.subr.mxu0 0.0
        %1734 = vmatpush2.xpose.msra.mxu0 0.0
        %1735 = vmatprep.subr.mxu0 0.0
        %1736 = vmatpush2.xpose.msra.mxu0 0.0
        %1737 = vmatprep.subr.mxu0 0.0
        %1738 = vmatpush2.xpose.msra.mxu0 0.0
        %1739 = vmatprep.subr.mxu0 0.0
        %1740 = vmatpush2.xpose.msra.mxu0 0.0
        %1741 = vmatprep.subr.mxu0 0.0
        %1742 = vmatpush2.xpose.msra.mxu0 0.0
        %1743 = vmatprep.subr.mxu0 0.0
        %1744 = vmatpush2.xpose.msra.mxu0 0.0
        %1745 = vmatprep.subr.mxu0 0.0
        %1746 = vmatpush2.xpose.msra.mxu0 0.0
        %1747 = vmatprep.subr.mxu0 0.0
        %1748 = vmatpush2.xpose.msra.mxu0 0.0
        %1749 = vmatprep.mubr.f32.mxu0 0.0
        %1750 = vmatmul.mubr.f32.gmra.mxu0 %v1681
        %v1751 = vpop.f32.mrf.mxu0
        %v1752 = vadd.f32 0.0, %v1751
        %v1753 = vpop.f32.mrf.mxu0
        %1754 = vdwg.mxu0
        %v1755 = vmul.f32 %v1752, 0.35355338
        %v1756 = vadd.f32 %v1755, %v1065
        %v1757 = vsel %vm1198, %v1756, -inf
        %1758 = vmax.xlane.f32.xlu0 %v1757
        %v1759 = vpop.xlane.xlu0 %1758
        %v1760 = vsub.f32 %v1756, %v1759
        %v1761 = vmul.f32 %v1760, 1.442695
        %v1762 = vpow.pop %v1761
        %v1763 = vsel %vm1198, %v1762, 0.0
        %1764 = vadd.xlane.f32.xlu0 %v1763
        %v1765 = vpop.xlane.xlu0 %1764
        %v1766 = vrcp.pop %v1765
        %v1767 = vmul.f32 %v1762, %v1766
        %1768 = vrot.lane.b32.xlu0 %v1181, 48
        %v1769 = vpop.permute.xlu0 %1768
        %v1772 = vsel %vm1198, %v1767, 0
        %1774 = vmatprep.subr.mxu0 0.0
        %1775 = vmatpush1.msra.mxu0 0.0
        %1776 = vmatprep.subr.mxu0 0.0
        %1777 = vmatpush1.msra.mxu0 0.0
        %1778 = vmatprep.subr.mxu0 0.0
        %1779 = vmatpush1.msra.mxu0 0.0
        %1780 = vmatprep.subr.mxu0 0.0
        %1781 = vmatpush1.msra.mxu0 0.0
        %1782 = vmatprep.subr.mxu0 0.0
        %1783 = vmatpush1.msra.mxu0 0.0
        %1784 = vmatprep.subr.mxu0 0.0
        %1785 = vmatpush1.msra.mxu0 0.0
        %1786 = vmatprep.subr.mxu0 0.0
        %1787 = vmatpush1.msra.mxu0 0.0
        %1788 = vmatprep.subr.mxu0 0.0
        %1789 = vmatpush1.msra.mxu0 0.0
        %1790 = vmatprep.subr.mxu0 0.0
        %1791 = vmatpush1.msra.mxu0 0.0
        %1792 = vmatprep.subr.mxu0 0.0
        %1793 = vmatpush1.msra.mxu0 0.0
        %1794 = vmatprep.subr.mxu0 0.0
        %1795 = vmatpush1.msra.mxu0 0.0
        %1796 = vmatprep.subr.mxu0 0.0
        %1797 = vmatpush1.msra.mxu0 0.0
        %1798 = vmatprep.subr.mxu0 0.0
        %1799 = vmatpush1.msra.mxu0 0.0
        %1800 = vmatprep.subr.mxu0 0.0
        %1801 = vmatpush1.msra.mxu0 0.0
        %1802 = vmatprep.subr.mxu0 0.0
        %1803 = vmatpush1.msra.mxu0 0.0
        %1804 = vmatprep.subr.mxu0 0.0
        %1805 = vmatpush1.msra.mxu0 %v1769
        %1806 = vmatprep.subr.mxu0 0.0
        %1807 = vmatpush2.msra.mxu0 0.0
        %1808 = vmatprep.subr.mxu0 0.0
        %1809 = vmatpush2.msra.mxu0 0.0
        %1810 = vmatprep.subr.mxu0 0.0
        %1811 = vmatpush2.msra.mxu0 0.0
        %1812 = vmatprep.subr.mxu0 0.0
        %1813 = vmatpush2.msra.mxu0 0.0
        %1814 = vmatprep.subr.mxu0 0.0
        %1815 = vmatpush2.msra.mxu0 0.0
        %1816 = vmatprep.subr.mxu0 0.0
        %1817 = vmatpush2.msra.mxu0 0.0
        %1818 = vmatprep.subr.mxu0 0.0
        %1819 = vmatpush2.msra.mxu0 0.0
        %1820 = vmatprep.subr.mxu0 0.0
        %1821 = vmatpush2.msra.mxu0 0.0
        %1822 = vmatprep.subr.mxu0 0.0
        %1823 = vmatpush2.msra.mxu0 0.0
        %1824 = vmatprep.subr.mxu0 0.0
        %1825 = vmatpush2.msra.mxu0 0.0
        %1826 = vmatprep.subr.mxu0 0.0
        %1827 = vmatpush2.msra.mxu0 0.0
        %1828 = vmatprep.subr.mxu0 0.0
        %1829 = vmatpush2.msra.mxu0 0.0
        %1830 = vmatprep.subr.mxu0 0.0
        %1831 = vmatpush2.msra.mxu0 0.0
        %1832 = vmatprep.subr.mxu0 0.0
        %1833 = vmatpush2.msra.mxu0 0.0
        %1834 = vmatprep.subr.mxu0 0.0
        %1835 = vmatpush2.msra.mxu0 0.0
        %1836 = vmatprep.subr.mxu0 0.0
        %1837 = vmatpush2.msra.mxu0 0.0
        %1838 = vmatprep.mubr.f32.mxu0 0.0
        %1839 = vmatmul.mubr.f32.gmra.mxu0 %v1772
        %v1840 = vpop.f32.mrf.mxu0
        %v1841 = vadd.f32 0.0, %v1840
        %v1842 = vpop.f32.mrf.mxu0
        %1843 = vdwg.mxu0
        %v1845 = vsel %vm1198, %v1841, 0
        %1847 = vmatprep.subr.mxu0 0.0
        %1848 = vmatpush1.msra.mxu0 0.0
        %1849 = vmatprep.subr.mxu0 0.0
        %1850 = vmatpush1.msra.mxu0 0.0
        %1851 = vmatprep.subr.mxu0 0.0
        %1852 = vmatpush1.msra.mxu0 0.0
        %1853 = vmatprep.subr.mxu0 0.0
        %1854 = vmatpush1.msra.mxu0 0.0
        %1855 = vmatprep.subr.mxu0 0.0
        %1856 = vmatpush1.msra.mxu0 0.0
        %1857 = vmatprep.subr.mxu0 0.0
        %1858 = vmatpush1.msra.mxu0 0.0
        %1859 = vmatprep.subr.mxu0 0.0
        %1860 = vmatpush1.msra.mxu0 0.0
        %1861 = vmatprep.subr.mxu0 0.0
        %1862 = vmatpush1.msra.mxu0 0.0
        %1863 = vmatprep.subr.mxu0 0.0
        %1864 = vmatpush1.msra.mxu0 0.0
        %1865 = vmatprep.subr.mxu0 0.0
        %1866 = vmatpush1.msra.mxu0 0.0
        %1867 = vmatprep.subr.mxu0 0.0
        %1868 = vmatpush1.msra.mxu0 0.0
        %1869 = vmatprep.subr.mxu0 0.0
        %1870 = vmatpush1.msra.mxu0 0.0
        %1871 = vmatprep.subr.mxu0 0.0
        %1872 = vmatpush1.msra.mxu0 0.0
        %1873 = vmatprep.subr.mxu0 0.0
        %1874 = vmatpush1.msra.mxu0 0.0
        %1875 = vmatprep.subr.mxu0 0.0
        %1876 = vmatpush1.msra.mxu0 0.0
        %1877 = vmatprep.subr.mxu0 0.0
        %1878 = vmatpush1.msra.mxu0 %v1186
        %1879 = vmatprep.subr.mxu0 0.0
        %1880 = vmatpush2.msra.mxu0 0.0
        %1881 = vmatprep.subr.mxu0 0.0
        %1882 = vmatpush2.msra.mxu0 0.0
        %1883 = vmatprep.subr.mxu0 0.0
        %1884 = vmatpush2.msra.mxu0 0.0
        %1885 = vmatprep.subr.mxu0 0.0
        %1886 = vmatpush2.msra.mxu0 0.0
        %1887 = vmatprep.subr.mxu0 0.0
        %1888 = vmatpush2.msra.mxu0 0.0
        %1889 = vmatprep.subr.mxu0 0.0
        %1890 = vmatpush2.msra.mxu0 0.0
        %1891 = vmatprep.subr.mxu0 0.0
        %1892 = vmatpush2.msra.mxu0 0.0
        %1893 = vmatprep.subr.mxu0 0.0
        %1894 = vmatpush2.msra.mxu0 0.0
        %1895 = vmatprep.subr.mxu0 0.0
        %1896 = vmatpush2.msra.mxu0 0.0
        %1897 = vmatprep.subr.mxu0 0.0
        %1898 = vmatpush2.msra.mxu0 0.0
        %1899 = vmatprep.subr.mxu0 0.0
        %1900 = vmatpush2.msra.mxu0 0.0
        %1901 = vmatprep.subr.mxu0 0.0
        %1902 = vmatpush2.msra.mxu0 0.0
        %1903 = vmatprep.subr.mxu0 0.0
        %1904 = vmatpush2.msra.mxu0 0.0
        %1905 = vmatprep.subr.mxu0 0.0
        %1906 = vmatpush2.msra.mxu0 0.0
        %1907 = vmatprep.subr.mxu0 0.0
        %1908 = vmatpush2.msra.mxu0 0.0
        %1909 = vmatprep.subr.mxu0 0.0
        %1910 = vmatpush2.msra.mxu0 0.0
        %1911 = vmatprep.mubr.f32.mxu0 0.0
        %1912 = vmatmul.mubr.f32.gmra.mxu0 %v1845
        %v1913 = vpop.f32.mrf.mxu0
        %v1914 = vadd.f32 0.0, %v1913
        %v1915 = vpop.f32.mrf.mxu0
        %1916 = vdwg.mxu0
        %v1917 = vadd.f32 %v1676, %v1914
        %1918 = vrot.lane.b32.xlu0 %v1181, 104
        %v1919 = vpop.permute.xlu0 %1918
        %1920 = vrot.lane.b32.xlu0 %v1181, 72
        %v1921 = vpop.permute.xlu0 %1920
        %v1922 = vsel %vm1198, %v1919, 0
        %v1924 = vsel %vm1198, %v1921, 0
        %1926 = vmatprep.subr.mxu0 0.0
        %1927 = vmatpush1.xpose.msra.mxu0 0.0
        %1928 = vmatprep.subr.mxu0 0.0
        %1929 = vmatpush1.xpose.msra.mxu0 0.0
        %1930 = vmatprep.subr.mxu0 0.0
        %1931 = vmatpush1.xpose.msra.mxu0 0.0
        %1932 = vmatprep.subr.mxu0 0.0
        %1933 = vmatpush1.xpose.msra.mxu0 0.0
        %1934 = vmatprep.subr.mxu0 0.0
        %1935 = vmatpush1.xpose.msra.mxu0 0.0
        %1936 = vmatprep.subr.mxu0 0.0
        %1937 = vmatpush1.xpose.msra.mxu0 0.0
        %1938 = vmatprep.subr.mxu0 0.0
        %1939 = vmatpush1.xpose.msra.mxu0 0.0
        %1940 = vmatprep.subr.mxu0 0.0
        %1941 = vmatpush1.xpose.msra.mxu0 0.0
        %1942 = vmatprep.subr.mxu0 0.0
        %1943 = vmatpush1.xpose.msra.mxu0 0.0
        %1944 = vmatprep.subr.mxu0 0.0
        %1945 = vmatpush1.xpose.msra.mxu0 0.0
        %1946 = vmatprep.subr.mxu0 0.0
        %1947 = vmatpush1.xpose.msra.mxu0 0.0
        %1948 = vmatprep.subr.mxu0 0.0
        %1949 = vmatpush1.xpose.msra.mxu0 0.0
        %1950 = vmatprep.subr.mxu0 0.0
        %1951 = vmatpush1.xpose.msra.mxu0 0.0
        %1952 = vmatprep.subr.mxu0 0.0
        %1953 = vmatpush1.xpose.msra.mxu0 0.0
        %1954 = vmatprep.subr.mxu0 0.0
        %1955 = vmatpush1.xpose.msra.mxu0 0.0
        %1956 = vmatprep.subr.mxu0 0.0
        %1957 = vmatpush1.xpose.msra.mxu0 %v1924
        %1958 = vmatprep.subr.mxu0 0.0
        %1959 = vmatpush2.xpose.msra.mxu0 0.0
        %1960 = vmatprep.subr.mxu0 0.0
        %1961 = vmatpush2.xpose.msra.mxu0 0.0
        %1962 = vmatprep.subr.mxu0 0.0
        %1963 = vmatpush2.xpose.msra.mxu0 0.0
        %1964 = vmatprep.subr.mxu0 0.0
        %1965 = vmatpush2.xpose.msra.mxu0 0.0
        %1966 = vmatprep.subr.mxu0 0.0
        %1967 = vmatpush2.xpose.msra.mxu0 0.0
        %1968 = vmatprep.subr.mxu0 0.0
        %1969 = vmatpush2.xpose.msra.mxu0 0.0
        %1970 = vmatprep.subr.mxu0 0.0
        %1971 = vmatpush2.xpose.msra.mxu0 0.0
        %1972 = vmatprep.subr.mxu0 0.0
        %1973 = vmatpush2.xpose.msra.mxu0 0.0
        %1974 = vmatprep.subr.mxu0 0.0
        %1975 = vmatpush2.xpose.msra.mxu0 0.0
        %1976 = vmatprep.subr.mxu0 0.0
        %1977 = vmatpush2.xpose.msra.mxu0 0.0
        %1978 = vmatprep.subr.mxu0 0.0
        %1979 = vmatpush2.xpose.msra.mxu0 0.0
        %1980 = vmatprep.subr.mxu0 0.0
        %1981 = vmatpush2.xpose.msra.mxu0 0.0
        %1982 = vmatprep.subr.mxu0 0.0
        %1983 = vmatpush2.xpose.msra.mxu0 0.0
        %1984 = vmatprep.subr.mxu0 0.0
        %1985 = vmatpush2.xpose.msra.mxu0 0.0
        %1986 = vmatprep.subr.mxu0 0.0
        %1987 = vmatpush2.xpose.msra.mxu0 0.0
        %1988 = vmatprep.subr.mxu0 0.0
        %1989 = vmatpush2.xpose.msra.mxu0 0.0
        %1990 = vmatprep.mubr.f32.mxu0 0.0
        %1991 = vmatmul.mubr.f32.gmra.mxu0 %v1922
        %v1992 = vpop.f32.mrf.mxu0
        %v1993 = vadd.f32 0.0, %v1992
        %v1994 = vpop.f32.mrf.mxu0
        %1995 = vdwg.mxu0
        %v1996 = vmul.f32 %v1993, 0.35355338
        %v1997 = vadd.f32 %v1996, %v1065
        %v1998 = vsel %vm1198, %v1997, -inf
        %1999 = vmax.xlane.f32.xlu0 %v1998
        %v2000 = vpop.xlane.xlu0 %1999
        %v2001 = vsub.f32 %v1997, %v2000
        %v2002 = vmul.f32 %v2001, 1.442695
        %v2003 = vpow.pop %v2002
        %v2004 = vsel %vm1198, %v2003, 0.0
        %2005 = vadd.xlane.f32.xlu0 %v2004
        %v2006 = vpop.xlane.xlu0 %2005
        %v2007 = vrcp.pop %v2006
        %v2008 = vmul.f32 %v2003, %v2007
        %2009 = vrot.lane.b32.xlu0 %v1181, 40
        %v2010 = vpop.permute.xlu0 %2009
        %v2013 = vsel %vm1198, %v2008, 0
        %2015 = vmatprep.subr.mxu0 0.0
        %2016 = vmatpush1.msra.mxu0 0.0
        %2017 = vmatprep.subr.mxu0 0.0
        %2018 = vmatpush1.msra.mxu0 0.0
        %2019 = vmatprep.subr.mxu0 0.0
        %2020 = vmatpush1.msra.mxu0 0.0
        %2021 = vmatprep.subr.mxu0 0.0
        %2022 = vmatpush1.msra.mxu0 0.0
        %2023 = vmatprep.subr.mxu0 0.0
        %2024 = vmatpush1.msra.mxu0 0.0
        %2025 = vmatprep.subr.mxu0 0.0
        %2026 = vmatpush1.msra.mxu0 0.0
        %2027 = vmatprep.subr.mxu0 0.0
        %2028 = vmatpush1.msra.mxu0 0.0
        %2029 = vmatprep.subr.mxu0 0.0
        %2030 = vmatpush1.msra.mxu0 0.0
        %2031 = vmatprep.subr.mxu0 0.0
        %2032 = vmatpush1.msra.mxu0 0.0
        %2033 = vmatprep.subr.mxu0 0.0
        %2034 = vmatpush1.msra.mxu0 0.0
        %2035 = vmatprep.subr.mxu0 0.0
        %2036 = vmatpush1.msra.mxu0 0.0
        %2037 = vmatprep.subr.mxu0 0.0
        %2038 = vmatpush1.msra.mxu0 0.0
        %2039 = vmatprep.subr.mxu0 0.0
        %2040 = vmatpush1.msra.mxu0 0.0
        %2041 = vmatprep.subr.mxu0 0.0
        %2042 = vmatpush1.msra.mxu0 0.0
        %2043 = vmatprep.subr.mxu0 0.0
        %2044 = vmatpush1.msra.mxu0 0.0
        %2045 = vmatprep.subr.mxu0 0.0
        %2046 = vmatpush1.msra.mxu0 %v2010
        %2047 = vmatprep.subr.mxu0 0.0
        %2048 = vmatpush2.msra.mxu0 0.0
        %2049 = vmatprep.subr.mxu0 0.0
        %2050 = vmatpush2.msra.mxu0 0.0
        %2051 = vmatprep.subr.mxu0 0.0
        %2052 = vmatpush2.msra.mxu0 0.0
        %2053 = vmatprep.subr.mxu0 0.0
        %2054 = vmatpush2.msra.mxu0 0.0
        %2055 = vmatprep.subr.mxu0 0.0
        %2056 = vmatpush2.msra.mxu0 0.0
        %2057 = vmatprep.subr.mxu0 0.0
        %2058 = vmatpush2.msra.mxu0 0.0
        %2059 = vmatprep.subr.mxu0 0.0
        %2060 = vmatpush2.msra.mxu0 0.0
        %2061 = vmatprep.subr.mxu0 0.0
        %2062 = vmatpush2.msra.mxu0 0.0
        %2063 = vmatprep.subr.mxu0 0.0
        %2064 = vmatpush2.msra.mxu0 0.0
        %2065 = vmatprep.subr.mxu0 0.0
        %2066 = vmatpush2.msra.mxu0 0.0
        %2067 = vmatprep.subr.mxu0 0.0
        %2068 = vmatpush2.msra.mxu0 0.0
        %2069 = vmatprep.subr.mxu0 0.0
        %2070 = vmatpush2.msra.mxu0 0.0
        %2071 = vmatprep.subr.mxu0 0.0
        %2072 = vmatpush2.msra.mxu0 0.0
        %2073 = vmatprep.subr.mxu0 0.0
        %2074 = vmatpush2.msra.mxu0 0.0
        %2075 = vmatprep.subr.mxu0 0.0
        %2076 = vmatpush2.msra.mxu0 0.0
        %2077 = vmatprep.subr.mxu0 0.0
        %2078 = vmatpush2.msra.mxu0 0.0
        %2079 = vmatprep.mubr.f32.mxu0 0.0
        %2080 = vmatmul.mubr.f32.gmra.mxu0 %v2013
        %v2081 = vpop.f32.mrf.mxu0
        %v2082 = vadd.f32 0.0, %v2081
        %v2083 = vpop.f32.mrf.mxu0
        %2084 = vdwg.mxu0
        %v2086 = vsel %vm1198, %v2082, 0
        %2088 = vmatprep.subr.mxu0 0.0
        %2089 = vmatpush1.msra.mxu0 0.0
        %2090 = vmatprep.subr.mxu0 0.0
        %2091 = vmatpush1.msra.mxu0 0.0
        %2092 = vmatprep.subr.mxu0 0.0
        %2093 = vmatpush1.msra.mxu0 0.0
        %2094 = vmatprep.subr.mxu0 0.0
        %2095 = vmatpush1.msra.mxu0 0.0
        %2096 = vmatprep.subr.mxu0 0.0
        %2097 = vmatpush1.msra.mxu0 0.0
        %2098 = vmatprep.subr.mxu0 0.0
        %2099 = vmatpush1.msra.mxu0 0.0
        %2100 = vmatprep.subr.mxu0 0.0
        %2101 = vmatpush1.msra.mxu0 0.0
        %2102 = vmatprep.subr.mxu0 0.0
        %2103 = vmatpush1.msra.mxu0 0.0
        %2104 = vmatprep.subr.mxu0 0.0
        %2105 = vmatpush1.msra.mxu0 0.0
        %2106 = vmatprep.subr.mxu0 0.0
        %2107 = vmatpush1.msra.mxu0 0.0
        %2108 = vmatprep.subr.mxu0 0.0
        %2109 = vmatpush1.msra.mxu0 0.0
        %2110 = vmatprep.subr.mxu0 0.0
        %2111 = vmatpush1.msra.mxu0 0.0
        %2112 = vmatprep.subr.mxu0 0.0
        %2113 = vmatpush1.msra.mxu0 0.0
        %2114 = vmatprep.subr.mxu0 0.0
        %2115 = vmatpush1.msra.mxu0 0.0
        %2116 = vmatprep.subr.mxu0 0.0
        %2117 = vmatpush1.msra.mxu0 0.0
        %2118 = vmatprep.subr.mxu0 0.0
        %2119 = vmatpush1.msra.mxu0 %v1187
        %2120 = vmatprep.subr.mxu0 0.0
        %2121 = vmatpush2.msra.mxu0 0.0
        %2122 = vmatprep.subr.mxu0 0.0
        %2123 = vmatpush2.msra.mxu0 0.0
        %2124 = vmatprep.subr.mxu0 0.0
        %2125 = vmatpush2.msra.mxu0 0.0
        %2126 = vmatprep.subr.mxu0 0.0
        %2127 = vmatpush2.msra.mxu0 0.0
        %2128 = vmatprep.subr.mxu0 0.0
        %2129 = vmatpush2.msra.mxu0 0.0
        %2130 = vmatprep.subr.mxu0 0.0
        %2131 = vmatpush2.msra.mxu0 0.0
        %2132 = vmatprep.subr.mxu0 0.0
        %2133 = vmatpush2.msra.mxu0 0.0
        %2134 = vmatprep.subr.mxu0 0.0
        %2135 = vmatpush2.msra.mxu0 0.0
        %2136 = vmatprep.subr.mxu0 0.0
        %2137 = vmatpush2.msra.mxu0 0.0
        %2138 = vmatprep.subr.mxu0 0.0
        %2139 = vmatpush2.msra.mxu0 0.0
        %2140 = vmatprep.subr.mxu0 0.0
        %2141 = vmatpush2.msra.mxu0 0.0
        %2142 = vmatprep.subr.mxu0 0.0
        %2143 = vmatpush2.msra.mxu0 0.0
        %2144 = vmatprep.subr.mxu0 0.0
        %2145 = vmatpush2.msra.mxu0 0.0
        %2146 = vmatprep.subr.mxu0 0.0
        %2147 = vmatpush2.msra.mxu0 0.0
        %2148 = vmatprep.subr.mxu0 0.0
        %2149 = vmatpush2.msra.mxu0 0.0
        %2150 = vmatprep.subr.mxu0 0.0
        %2151 = vmatpush2.msra.mxu0 0.0
        %2152 = vmatprep.mubr.f32.mxu0 0.0
        %2153 = vmatmul.mubr.f32.gmra.mxu0 %v2086
        %v2154 = vpop.f32.mrf.mxu0
        %v2155 = vadd.f32 0.0, %v2154
        %v2156 = vpop.f32.mrf.mxu0
        %2157 = vdwg.mxu0
        %v2158 = vadd.f32 %v1917, %v2155
        %v2159 = vadd.f32 %v1060, %v2158
        %v2160 = vsel %vm1069, %v2159, 0.0
        %2161 = vadd.xlane.f32.xlu0 %v2160
        %v2162 = vpop.xlane.xlu0 %2161
        %v2163 = vmul.f32 %v2162, %v1073
        %v2164 = vsub.f32 %v2159, %v2163
        %v2165 = vmul.f32 %v2164, %v2164
        %v2166 = vsel %vm1069, %v2165, 0.0
        %2167 = vadd.xlane.f32.xlu0 %v2166
        %v2168 = vpop.xlane.xlu0 %2167
        %v2169 = vmul.f32 %v2168, %v1073
        %v2170 = vadd.f32 %v2169, 1e-05
        %v2171 = vrsqrt.pop %v2170
        %v2172 = vmul.f32 %v2164, %v2171
        %v2173 = vld [vmem:[#allocation8] sm:$0x1]
        %v2175 = vlaneseq
        %v2176 = vshrl.u32 %v2175, 7
        %v2177 = vsub.s32 0, %v2176
        %v2178 = vrot.slane %v2173, %v2177
        %v2180 = vmul.f32 %v2172, %v2178
        %v2181 = vld [vmem:[#allocation10] sm:$0x1]
        %v2183 = vlaneseq
        %v2184 = vshrl.u32 %v2183, 7
        %v2185 = vsub.s32 0, %v2184
        %v2186 = vrot.slane %v2181, %v2185
        %v2188 = vadd.f32 %v2180, %v2186
        %v2189 = vld [vmem:[%s16] sm:$0xff]
        %v2190 = vld [vmem:[%s16 + $0x8] sm:$0xff]
        %v2191 = vld [vmem:[%s16 + $0x10] sm:$0xff]
        %v2192 = vld [vmem:[%s16 + $0x18] sm:$0xff]
        %v2193 = vld [vmem:[#allocation20] sm:$0x1]
        %v2195 = vlaneseq
        %v2196 = vshrl.u32 %v2195, 7
        %v2197 = vsub.s32 0, %v2196
        %v2198 = vrot.slane %v2193, %v2197
        %v2201 = vsel %vm1069, %v2188, 0
        %2203 = vmatprep.subr.mxu0 0.0
        %2204 = vmatpush1.msra.mxu0 0.0
        %2205 = vmatprep.subr.mxu0 0.0
        %2206 = vmatpush1.msra.mxu0 0.0
        %2207 = vmatprep.subr.mxu0 0.0
        %2208 = vmatpush1.msra.mxu0 0.0
        %2209 = vmatprep.subr.mxu0 0.0
        %2210 = vmatpush1.msra.mxu0 0.0
        %2211 = vmatprep.subr.mxu0 0.0
        %2212 = vmatpush1.msra.mxu0 0.0
        %2213 = vmatprep.subr.mxu0 0.0
        %2214 = vmatpush1.msra.mxu0 0.0
        %2215 = vmatprep.subr.mxu0 0.0
        %2216 = vmatpush1.msra.mxu0 0.0
        %2217 = vmatprep.subr.mxu0 0.0
        %2218 = vmatpush1.msra.mxu0 0.0
        %2219 = vmatprep.subr.mxu0 0.0
        %2220 = vmatpush1.msra.mxu0 0.0
        %2221 = vmatprep.subr.mxu0 0.0
        %2222 = vmatpush1.msra.mxu0 0.0
        %2223 = vmatprep.subr.mxu0 0.0
        %2224 = vmatpush1.msra.mxu0 0.0
        %2225 = vmatprep.subr.mxu0 0.0
        %2226 = vmatpush1.msra.mxu0 0.0
        %2227 = vmatprep.subr.mxu0 0.0
        %2228 = vmatpush1.msra.mxu0 %v2192
        %2229 = vmatprep.subr.mxu0 0.0
        %2230 = vmatpush1.msra.mxu0 %v2191
        %2231 = vmatprep.subr.mxu0 0.0
        %2232 = vmatpush1.msra.mxu0 %v2190
        %2233 = vmatprep.subr.mxu0 0.0
        %2234 = vmatpush1.msra.mxu0 %v2189
        %2235 = vmatprep.subr.mxu0 0.0
        %2236 = vmatpush2.msra.mxu0 0.0
        %2237 = vmatprep.subr.mxu0 0.0
        %2238 = vmatpush2.msra.mxu0 0.0
        %2239 = vmatprep.subr.mxu0 0.0
        %2240 = vmatpush2.msra.mxu0 0.0
        %2241 = vmatprep.subr.mxu0 0.0
        %2242 = vmatpush2.msra.mxu0 0.0
        %2243 = vmatprep.subr.mxu0 0.0
        %2244 = vmatpush2.msra.mxu0 0.0
        %2245 = vmatprep.subr.mxu0 0.0
        %2246 = vmatpush2.msra.mxu0 0.0
        %2247 = vmatprep.subr.mxu0 0.0
        %2248 = vmatpush2.msra.mxu0 0.0
        %2249 = vmatprep.subr.mxu0 0.0
        %2250 = vmatpush2.msra.mxu0 0.0
        %2251 = vmatprep.subr.mxu0 0.0
        %2252 = vmatpush2.msra.mxu0 0.0
        %2253 = vmatprep.subr.mxu0 0.0
        %2254 = vmatpush2.msra.mxu0 0.0
        %2255 = vmatprep.subr.mxu0 0.0
        %2256 = vmatpush2.msra.mxu0 0.0
        %2257 = vmatprep.subr.mxu0 0.0
        %2258 = vmatpush2.msra.mxu0 0.0
        %2259 = vmatprep.subr.mxu0 0.0
        %2260 = vmatpush2.msra.mxu0 0.0
        %2261 = vmatprep.subr.mxu0 0.0
        %2262 = vmatpush2.msra.mxu0 0.0
        %2263 = vmatprep.subr.mxu0 0.0
        %2264 = vmatpush2.msra.mxu0 0.0
        %2265 = vmatprep.subr.mxu0 0.0
        %2266 = vmatpush2.msra.mxu0 0.0
        %2267 = vmatprep.mubr.f32.mxu0 0.0
        %2268 = vmatmul.mubr.f32.gmra.mxu0 %v2201
        %v2269 = vpop.f32.mrf.mxu0
        %v2270 = vadd.f32 %v2198, %v2269
        %v2271 = vpop.f32.mrf.mxu0
        %2272 = vdwg.mxu0
        %v2273 = vld [vmem:[%s18] sm:$0xff]
        %v2274 = vld [vmem:[%s18 + $0x8] sm:$0xff]
        %v2275 = vld [vmem:[%s18 + $0x10] sm:$0xff]
        %v2276 = vld [vmem:[%s18 + $0x18] sm:$0xff]
        %v2277 = vld [vmem:[#allocation22] sm:$0x1]
        %v2279 = vlaneseq
        %v2280 = vshrl.u32 %v2279, 7
        %v2281 = vsub.s32 0, %v2280
        %v2282 = vrot.slane %v2277, %v2281
        %v2285 = vsel %vm1069, %v1061, 0
        %v2288 = vsel %vm1069, %v1062, 0
        %2290 = vmatprep.subr.mxu0 0.0
        %2291 = vmatpush1.msra.mxu0 0.0
        %2292 = vmatprep.subr.mxu0 0.0
        %2293 = vmatpush1.msra.mxu0 0.0
        %2294 = vmatprep.subr.mxu0 0.0
        %2295 = vmatpush1.msra.mxu0 0.0
        %2296 = vmatprep.subr.mxu0 0.0
        %2297 = vmatpush1.msra.mxu0 0.0
        %2298 = vmatprep.subr.mxu0 0.0
        %2299 = vmatpush1.msra.mxu0 0.0
        %2300 = vmatprep.subr.mxu0 0.0
        %2301 = vmatpush1.msra.mxu0 0.0
        %2302 = vmatprep.subr.mxu0 0.0
        %2303 = vmatpush1.msra.mxu0 0.0
        %2304 = vmatprep.subr.mxu0 0.0
        %2305 = vmatpush1.msra.mxu0 0.0
        %2306 = vmatprep.subr.mxu0 0.0
        %2307 = vmatpush1.msra.mxu0 0.0
        %2308 = vmatprep.subr.mxu0 0.0
        %2309 = vmatpush1.msra.mxu0 0.0
        %2310 = vmatprep.subr.mxu0 0.0
        %2311 = vmatpush1.msra.mxu0 0.0
        %2312 = vmatprep.subr.mxu0 0.0
        %2313 = vmatpush1.msra.mxu0 0.0
        %2314 = vmatprep.subr.mxu0 0.0
        %2315 = vmatpush1.msra.mxu0 %v2276
        %2316 = vmatprep.subr.mxu0 0.0
        %2317 = vmatpush1.msra.mxu0 %v2275
        %2318 = vmatprep.subr.mxu0 0.0
        %2319 = vmatpush1.msra.mxu0 %v2274
        %2320 = vmatprep.subr.mxu0 0.0
        %2321 = vmatpush1.msra.mxu0 %v2273
        %2322 = vmatprep.subr.mxu0 0.0
        %2323 = vmatpush2.msra.mxu0 0.0
        %2324 = vmatprep.subr.mxu0 0.0
        %2325 = vmatpush2.msra.mxu0 0.0
        %2326 = vmatprep.subr.mxu0 0.0
        %2327 = vmatpush2.msra.mxu0 0.0
        %2328 = vmatprep.subr.mxu0 0.0
        %2329 = vmatpush2.msra.mxu0 0.0
        %2330 = vmatprep.subr.mxu0 0.0
        %2331 = vmatpush2.msra.mxu0 0.0
        %2332 = vmatprep.subr.mxu0 0.0
        %2333 = vmatpush2.msra.mxu0 0.0
        %2334 = vmatprep.subr.mxu0 0.0
        %2335 = vmatpush2.msra.mxu0 0.0
        %2336 = vmatprep.subr.mxu0 0.0
        %2337 = vmatpush2.msra.mxu0 0.0
        %2338 = vmatprep.subr.mxu0 0.0
        %2339 = vmatpush2.msra.mxu0 0.0
        %2340 = vmatprep.subr.mxu0 0.0
        %2341 = vmatpush2.msra.mxu0 0.0
        %2342 = vmatprep.subr.mxu0 0.0
        %2343 = vmatpush2.msra.mxu0 0.0
        %2344 = vmatprep.subr.mxu0 0.0
        %2345 = vmatpush2.msra.mxu0 0.0
        %2346 = vmatprep.subr.mxu0 0.0
        %2347 = vmatpush2.msra.mxu0 0.0
        %2348 = vmatprep.subr.mxu0 0.0
        %2349 = vmatpush2.msra.mxu0 0.0
        %2350 = vmatprep.subr.mxu0 0.0
        %2351 = vmatpush2.msra.mxu0 0.0
        %2352 = vmatprep.subr.mxu0 0.0
        %2353 = vmatpush2.msra.mxu0 0.0
        %2354 = vmatprep.mubr.f32.mxu0 0.0
        %2355 = vmatmul.mubr.f32.gmra.mxu0 %v2285
        %v2356 = vpop.f32.mrf.mxu0
        %v2357 = vadd.f32 %v2282, %v2356
        %v2358 = vpop.f32.mrf.mxu0
        %2359 = vmatprep.mubr.f32.mxu0 0.0
        %2360 = vmatmul.mubr.f32.gmra.mxu0 %v2288
        %v2361 = vpop.f32.mrf.mxu0
        %v2362 = vadd.f32 %v2282, %v2361
        %v2363 = vpop.f32.mrf.mxu0
        %2364 = vdwg.mxu0
        %v2365 = vld [vmem:[%s20] sm:$0xff]
        %v2366 = vld [vmem:[%s20 + $0x8] sm:$0xff]
        %v2367 = vld [vmem:[%s20 + $0x10] sm:$0xff]
        %v2368 = vld [vmem:[%s20 + $0x18] sm:$0xff]
        %v2369 = vld [vmem:[#allocation23] sm:$0x1]
        %v2371 = vlaneseq
        %v2372 = vshrl.u32 %v2371, 7
        %v2373 = vsub.s32 0, %v2372
        %v2374 = vrot.slane %v2369, %v2373
        %v2377 = vsel %vm1198, %v2270, 0
        %v2380 = vsel %vm1198, %v2357, 0
        %v2383 = vsel %vm1198, %v2362, 0
        %2385 = vmatprep.subr.mxu0 0.0
        %2386 = vmatpush1.xpose.msra.mxu0 0.0
        %2387 = vmatprep.subr.mxu0 0.0
        %2388 = vmatpush1.xpose.msra.mxu0 0.0
        %2389 = vmatprep.subr.mxu0 0.0
        %2390 = vmatpush1.xpose.msra.mxu0 0.0
        %2391 = vmatprep.subr.mxu0 0.0
        %2392 = vmatpush1.xpose.msra.mxu0 0.0
        %2393 = vmatprep.subr.mxu0 0.0
        %2394 = vmatpush1.xpose.msra.mxu0 0.0
        %2395 = vmatprep.subr.mxu0 0.0
        %2396 = vmatpush1.xpose.msra.mxu0 0.0
        %2397 = vmatprep.subr.mxu0 0.0
        %2398 = vmatpush1.xpose.msra.mxu0 0.0
        %2399 = vmatprep.subr.mxu0 0.0
        %2400 = vmatpush1.xpose.msra.mxu0 0.0
        %2401 = vmatprep.subr.mxu0 0.0
        %2402 = vmatpush1.xpose.msra.mxu0 0.0
        %2403 = vmatprep.subr.mxu0 0.0
        %2404 = vmatpush1.xpose.msra.mxu0 0.0
        %2405 = vmatprep.subr.mxu0 0.0
        %2406 = vmatpush1.xpose.msra.mxu0 0.0
        %2407 = vmatprep.subr.mxu0 0.0
        %2408 = vmatpush1.xpose.msra.mxu0 0.0
        %2409 = vmatprep.subr.mxu0 0.0
        %2410 = vmatpush1.xpose.msra.mxu0 0.0
        %2411 = vmatprep.subr.mxu0 0.0
        %2412 = vmatpush1.xpose.msra.mxu0 0.0
        %2413 = vmatprep.subr.mxu0 0.0
        %2414 = vmatpush1.xpose.msra.mxu0 %v2383
        %2415 = vmatprep.subr.mxu0 0.0
        %2416 = vmatpush1.xpose.msra.mxu0 %v2380
        %2417 = vmatprep.subr.mxu0 0.0
        %2418 = vmatpush2.xpose.msra.mxu0 0.0
        %2419 = vmatprep.subr.mxu0 0.0
        %2420 = vmatpush2.xpose.msra.mxu0 0.0
        %2421 = vmatprep.subr.mxu0 0.0
        %2422 = vmatpush2.xpose.msra.mxu0 0.0
        %2423 = vmatprep.subr.mxu0 0.0
        %2424 = vmatpush2.xpose.msra.mxu0 0.0
        %2425 = vmatprep.subr.mxu0 0.0
        %2426 = vmatpush2.xpose.msra.mxu0 0.0
        %2427 = vmatprep.subr.mxu0 0.0
        %2428 = vmatpush2.xpose.msra.mxu0 0.0
        %2429 = vmatprep.subr.mxu0 0.0
        %2430 = vmatpush2.xpose.msra.mxu0 0.0
        %2431 = vmatprep.subr.mxu0 0.0
        %2432 = vmatpush2.xpose.msra.mxu0 0.0
        %2433 = vmatprep.subr.mxu0 0.0
        %2434 = vmatpush2.xpose.msra.mxu0 0.0
        %2435 = vmatprep.subr.mxu0 0.0
        %2436 = vmatpush2.xpose.msra.mxu0 0.0
        %2437 = vmatprep.subr.mxu0 0.0
        %2438 = vmatpush2.xpose.msra.mxu0 0.0
        %2439 = vmatprep.subr.mxu0 0.0
        %2440 = vmatpush2.xpose.msra.mxu0 0.0
        %2441 = vmatprep.subr.mxu0 0.0
        %2442 = vmatpush2.xpose.msra.mxu0 0.0
        %2443 = vmatprep.subr.mxu0 0.0
        %2444 = vmatpush2.xpose.msra.mxu0 0.0
        %2445 = vmatprep.subr.mxu0 0.0
        %2446 = vmatpush2.xpose.msra.mxu0 0.0
        %2447 = vmatprep.subr.mxu0 0.0
        %2448 = vmatpush2.xpose.msra.mxu0 0.0
        %2449 = vmatprep.mubr.f32.mxu0 0.0
        %2450 = vmatmul.mubr.f32.gmra.mxu0 %v2377
        %v2451 = vpop.f32.mrf.mxu0
        %v2452 = vadd.f32 0.0, %v2451
        %v2453 = vpop.f32.mrf.mxu0
        %2454 = vdwg.mxu0
        %v2455 = vmul.f32 %v2452, 0.35355338
        %v2457 = vlaneseq
        %v2458 = vshrl.u32 %v2457, 7
        %v2459 = vsub.s32 0, %v2458
        %v2460 = vrot.slane %v1068, %v2459
        %v2462 = vadd.f32 %v2455, %v2460
        %vm2463 = vcmask 130048
        %v2464 = vsel %vm2463, %v2462, -inf
        %2465 = vmax.xlane.f32.xlu0 %v2464
        %v2466 = vpop.xlane.xlu0 %2465
        %v2467 = vsub.f32 %v2462, %v2466
        %v2468 = vmul.f32 %v2467, 1.442695
        %v2469 = vpow.pop %v2468
        %v2470 = vsel %vm2463, %v2469, 0.0
        %2471 = vadd.xlane.f32.xlu0 %v2470
        %v2472 = vpop.xlane.xlu0 %2471
        %v2473 = vrcp.pop %v2472
        %v2474 = vmul.f32 %v2469, %v2473
        %2475 = vrot.lane.b32.xlu0 %v2357, 96
        %v2476 = vpop.permute.xlu0 %2475
        %2477 = vrot.lane.b32.xlu0 %v2362, 96
        %v2478 = vpop.permute.xlu0 %2477
        %v2482 = vsel %vm2463, %v2474, 0
        %2484 = vmatprep.subr.mxu0 0.0
        %2485 = vmatpush1.msra.mxu0 0.0
        %2486 = vmatprep.subr.mxu0 0.0
        %2487 = vmatpush1.msra.mxu0 0.0
        %2488 = vmatprep.subr.mxu0 0.0
        %2489 = vmatpush1.msra.mxu0 0.0
        %2490 = vmatprep.subr.mxu0 0.0
        %2491 = vmatpush1.msra.mxu0 0.0
        %2492 = vmatprep.subr.mxu0 0.0
        %2493 = vmatpush1.msra.mxu0 0.0
        %2494 = vmatprep.subr.mxu0 0.0
        %2495 = vmatpush1.msra.mxu0 0.0
        %2496 = vmatprep.subr.mxu0 0.0
        %2497 = vmatpush1.msra.mxu0 0.0
        %2498 = vmatprep.subr.mxu0 0.0
        %2499 = vmatpush1.msra.mxu0 0.0
        %2500 = vmatprep.subr.mxu0 0.0
        %2501 = vmatpush1.msra.mxu0 0.0
        %2502 = vmatprep.subr.mxu0 0.0
        %2503 = vmatpush1.msra.mxu0 0.0
        %2504 = vmatprep.subr.mxu0 0.0
        %2505 = vmatpush1.msra.mxu0 0.0
        %2506 = vmatprep.subr.mxu0 0.0
        %2507 = vmatpush1.msra.mxu0 0.0
        %2508 = vmatprep.subr.mxu0 0.0
        %2509 = vmatpush1.msra.mxu0 0.0
        %2510 = vmatprep.subr.mxu0 0.0
        %2511 = vmatpush1.msra.mxu0 0.0
        %2512 = vmatprep.subr.mxu0 0.0
        %2513 = vmatpush1.msra.mxu0 %v2478
        %2514 = vmatprep.subr.mxu0 0.0
        %2515 = vmatpush1.msra.mxu0 %v2476
        %2516 = vmatprep.subr.mxu0 0.0
        %2517 = vmatpush2.msra.mxu0 0.0
        %2518 = vmatprep.subr.mxu0 0.0
        %2519 = vmatpush2.msra.mxu0 0.0
        %2520 = vmatprep.subr.mxu0 0.0
        %2521 = vmatpush2.msra.mxu0 0.0
        %2522 = vmatprep.subr.mxu0 0.0
        %2523 = vmatpush2.msra.mxu0 0.0
        %2524 = vmatprep.subr.mxu0 0.0
        %2525 = vmatpush2.msra.mxu0 0.0
        %2526 = vmatprep.subr.mxu0 0.0
        %2527 = vmatpush2.msra.mxu0 0.0
        %2528 = vmatprep.subr.mxu0 0.0
        %2529 = vmatpush2.msra.mxu0 0.0
        %2530 = vmatprep.subr.mxu0 0.0
        %2531 = vmatpush2.msra.mxu0 0.0
        %2532 = vmatprep.subr.mxu0 0.0
        %2533 = vmatpush2.msra.mxu0 0.0
        %2534 = vmatprep.subr.mxu0 0.0
        %2535 = vmatpush2.msra.mxu0 0.0
        %2536 = vmatprep.subr.mxu0 0.0
        %2537 = vmatpush2.msra.mxu0 0.0
        %2538 = vmatprep.subr.mxu0 0.0
        %2539 = vmatpush2.msra.mxu0 0.0
        %2540 = vmatprep.subr.mxu0 0.0
        %2541 = vmatpush2.msra.mxu0 0.0
        %2542 = vmatprep.subr.mxu0 0.0
        %2543 = vmatpush2.msra.mxu0 0.0
        %2544 = vmatprep.subr.mxu0 0.0
        %2545 = vmatpush2.msra.mxu0 0.0
        %2546 = vmatprep.subr.mxu0 0.0
        %2547 = vmatpush2.msra.mxu0 0.0
        %2548 = vmatprep.mubr.f32.mxu0 0.0
        %2549 = vmatmul.mubr.f32.gmra.mxu0 %v2482
        %v2550 = vpop.f32.mrf.mxu0
        %v2551 = vadd.f32 0.0, %v2550
        %v2552 = vpop.f32.mrf.mxu0
        %2553 = vdwg.mxu0
        %v2555 = vsel %vm1198, %v2551, 0
        %2557 = vmatprep.subr.mxu0 0.0
        %2558 = vmatpush1.msra.mxu0 0.0
        %2559 = vmatprep.subr.mxu0 0.0
        %2560 = vmatpush1.msra.mxu0 0.0
        %2561 = vmatprep.subr.mxu0 0.0
        %2562 = vmatpush1.msra.mxu0 0.0
        %2563 = vmatprep.subr.mxu0 0.0
        %2564 = vmatpush1.msra.mxu0 0.0
        %2565 = vmatprep.subr.mxu0 0.0
        %2566 = vmatpush1.msra.mxu0 0.0
        %2567 = vmatprep.subr.mxu0 0.0
        %2568 = vmatpush1.msra.mxu0 0.0
        %2569 = vmatprep.subr.mxu0 0.0
        %2570 = vmatpush1.msra.mxu0 0.0
        %2571 = vmatprep.subr.mxu0 0.0
        %2572 = vmatpush1.msra.mxu0 0.0
        %2573 = vmatprep.subr.mxu0 0.0
        %2574 = vmatpush1.msra.mxu0 0.0
        %2575 = vmatprep.subr.mxu0 0.0
        %2576 = vmatpush1.msra.mxu0 0.0
        %2577 = vmatprep.subr.mxu0 0.0
        %2578 = vmatpush1.msra.mxu0 0.0
        %2579 = vmatprep.subr.mxu0 0.0
        %2580 = vmatpush1.msra.mxu0 0.0
        %2581 = vmatprep.subr.mxu0 0.0
        %2582 = vmatpush1.msra.mxu0 0.0
        %2583 = vmatprep.subr.mxu0 0.0
        %2584 = vmatpush1.msra.mxu0 0.0
        %2585 = vmatprep.subr.mxu0 0.0
        %2586 = vmatpush1.msra.mxu0 0.0
        %2587 = vmatprep.subr.mxu0 0.0
        %2588 = vmatpush1.msra.mxu0 %v2365
        %2589 = vmatprep.subr.mxu0 0.0
        %2590 = vmatpush2.msra.mxu0 0.0
        %2591 = vmatprep.subr.mxu0 0.0
        %2592 = vmatpush2.msra.mxu0 0.0
        %2593 = vmatprep.subr.mxu0 0.0
        %2594 = vmatpush2.msra.mxu0 0.0
        %2595 = vmatprep.subr.mxu0 0.0
        %2596 = vmatpush2.msra.mxu0 0.0
        %2597 = vmatprep.subr.mxu0 0.0
        %2598 = vmatpush2.msra.mxu0 0.0
        %2599 = vmatprep.subr.mxu0 0.0
        %2600 = vmatpush2.msra.mxu0 0.0
        %2601 = vmatprep.subr.mxu0 0.0
        %2602 = vmatpush2.msra.mxu0 0.0
        %2603 = vmatprep.subr.mxu0 0.0
        %2604 = vmatpush2.msra.mxu0 0.0
        %2605 = vmatprep.subr.mxu0 0.0
        %2606 = vmatpush2.msra.mxu0 0.0
        %2607 = vmatprep.subr.mxu0 0.0
        %2608 = vmatpush2.msra.mxu0 0.0
        %2609 = vmatprep.subr.mxu0 0.0
        %2610 = vmatpush2.msra.mxu0 0.0
        %2611 = vmatprep.subr.mxu0 0.0
        %2612 = vmatpush2.msra.mxu0 0.0
        %2613 = vmatprep.subr.mxu0 0.0
        %2614 = vmatpush2.msra.mxu0 0.0
        %2615 = vmatprep.subr.mxu0 0.0
        %2616 = vmatpush2.msra.mxu0 0.0
        %2617 = vmatprep.subr.mxu0 0.0
        %2618 = vmatpush2.msra.mxu0 0.0
        %2619 = vmatprep.subr.mxu0 0.0
        %2620 = vmatpush2.msra.mxu0 0.0
        %2621 = vmatprep.mubr.f32.mxu0 0.0
        %2622 = vmatmul.mubr.f32.gmra.mxu0 %v2555
        %v2623 = vpop.f32.mrf.mxu0
        %v2624 = vadd.f32 0.0, %v2623
        %v2625 = vpop.f32.mrf.mxu0
        %2626 = vdwg.mxu0
        %v2627 = vadd.f32 %v2374, %v2624
        %2628 = vrot.lane.b32.xlu0 %v2270, 120
        %v2629 = vpop.permute.xlu0 %2628
        %2630 = vrot.lane.b32.xlu0 %v2357, 120
        %v2631 = vpop.permute.xlu0 %2630
        %2632 = vrot.lane.b32.xlu0 %v2362, 120
        %v2633 = vpop.permute.xlu0 %2632
        %v2634 = vsel %vm1198, %v2629, 0
        %v2636 = vsel %vm1198, %v2631, 0
        %v2638 = vsel %vm1198, %v2633, 0
        %2640 = vmatprep.subr.mxu0 0.0
        %2641 = vmatpush1.xpose.msra.mxu0 0.0
        %2642 = vmatprep.subr.mxu0 0.0
        %2643 = vmatpush1.xpose.msra.mxu0 0.0
        %2644 = vmatprep.subr.mxu0 0.0
        %2645 = vmatpush1.xpose.msra.mxu0 0.0
        %2646 = vmatprep.subr.mxu0 0.0
        %2647 = vmatpush1.xpose.msra.mxu0 0.0
        %2648 = vmatprep.subr.mxu0 0.0
        %2649 = vmatpush1.xpose.msra.mxu0 0.0
        %2650 = vmatprep.subr.mxu0 0.0
        %2651 = vmatpush1.xpose.msra.mxu0 0.0
        %2652 = vmatprep.subr.mxu0 0.0
        %2653 = vmatpush1.xpose.msra.mxu0 0.0
        %2654 = vmatprep.subr.mxu0 0.0
        %2655 = vmatpush1.xpose.msra.mxu0 0.0
        %2656 = vmatprep.subr.mxu0 0.0
        %2657 = vmatpush1.xpose.msra.mxu0 0.0
        %2658 = vmatprep.subr.mxu0 0.0
        %2659 = vmatpush1.xpose.msra.mxu0 0.0
        %2660 = vmatprep.subr.mxu0 0.0
        %2661 = vmatpush1.xpose.msra.mxu0 0.0
        %2662 = vmatprep.subr.mxu0 0.0
        %2663 = vmatpush1.xpose.msra.mxu0 0.0
        %2664 = vmatprep.subr.mxu0 0.0
        %2665 = vmatpush1.xpose.msra.mxu0 0.0
        %2666 = vmatprep.subr.mxu0 0.0
        %2667 = vmatpush1.xpose.msra.mxu0 0.0
        %2668 = vmatprep.subr.mxu0 0.0
        %2669 = vmatpush1.xpose.msra.mxu0 %v2638
        %2670 = vmatprep.subr.mxu0 0.0
        %2671 = vmatpush1.xpose.msra.mxu0 %v2636
        %2672 = vmatprep.subr.mxu0 0.0
        %2673 = vmatpush2.xpose.msra.mxu0 0.0
        %2674 = vmatprep.subr.mxu0 0.0
        %2675 = vmatpush2.xpose.msra.mxu0 0.0
        %2676 = vmatprep.subr.mxu0 0.0
        %2677 = vmatpush2.xpose.msra.mxu0 0.0
        %2678 = vmatprep.subr.mxu0 0.0
        %2679 = vmatpush2.xpose.msra.mxu0 0.0
        %2680 = vmatprep.subr.mxu0 0.0
        %2681 = vmatpush2.xpose.msra.mxu0 0.0
        %2682 = vmatprep.subr.mxu0 0.0
        %2683 = vmatpush2.xpose.msra.mxu0 0.0
        %2684 = vmatprep.subr.mxu0 0.0
        %2685 = vmatpush2.xpose.msra.mxu0 0.0
        %2686 = vmatprep.subr.mxu0 0.0
        %2687 = vmatpush2.xpose.msra.mxu0 0.0
        %2688 = vmatprep.subr.mxu0 0.0
        %2689 = vmatpush2.xpose.msra.mxu0 0.0
        %2690 = vmatprep.subr.mxu0 0.0
        %2691 = vmatpush2.xpose.msra.mxu0 0.0
        %2692 = vmatprep.subr.mxu0 0.0
        %2693 = vmatpush2.xpose.msra.mxu0 0.0
        %2694 = vmatprep.subr.mxu0 0.0
        %2695 = vmatpush2.xpose.msra.mxu0 0.0
        %2696 = vmatprep.subr.mxu0 0.0
        %2697 = vmatpush2.xpose.msra.mxu0 0.0
        %2698 = vmatprep.subr.mxu0 0.0
        %2699 = vmatpush2.xpose.msra.mxu0 0.0
        %2700 = vmatprep.subr.mxu0 0.0
        %2701 = vmatpush2.xpose.msra.mxu0 0.0
        %2702 = vmatprep.subr.mxu0 0.0
        %2703 = vmatpush2.xpose.msra.mxu0 0.0
        %2704 = vmatprep.mubr.f32.mxu0 0.0
        %2705 = vmatmul.mubr.f32.gmra.mxu0 %v2634
        %v2706 = vpop.f32.mrf.mxu0
        %v2707 = vadd.f32 0.0, %v2706
        %v2708 = vpop.f32.mrf.mxu0
        %2709 = vdwg.mxu0
        %v2710 = vmul.f32 %v2707, 0.35355338
        %v2711 = vadd.f32 %v2710, %v2460
        %v2712 = vsel %vm2463, %v2711, -inf
        %2713 = vmax.xlane.f32.xlu0 %v2712
        %v2714 = vpop.xlane.xlu0 %2713
        %v2715 = vsub.f32 %v2711, %v2714
        %v2716 = vmul.f32 %v2715, 1.442695
        %v2717 = vpow.pop %v2716
        %v2718 = vsel %vm2463, %v2717, 0.0
        %2719 = vadd.xlane.f32.xlu0 %v2718
        %v2720 = vpop.xlane.xlu0 %2719
        %v2721 = vrcp.pop %v2720
        %v2722 = vmul.f32 %v2717, %v2721
        %2723 = vrot.lane.b32.xlu0 %v2357, 88
        %v2724 = vpop.permute.xlu0 %2723
        %2725 = vrot.lane.b32.xlu0 %v2362, 88
        %v2726 = vpop.permute.xlu0 %2725
        %v2730 = vsel %vm2463, %v2722, 0
        %2732 = vmatprep.subr.mxu0 0.0
        %2733 = vmatpush1.msra.mxu0 0.0
        %2734 = vmatprep.subr.mxu0 0.0
        %2735 = vmatpush1.msra.mxu0 0.0
        %2736 = vmatprep.subr.mxu0 0.0
        %2737 = vmatpush1.msra.mxu0 0.0
        %2738 = vmatprep.subr.mxu0 0.0
        %2739 = vmatpush1.msra.mxu0 0.0
        %2740 = vmatprep.subr.mxu0 0.0
        %2741 = vmatpush1.msra.mxu0 0.0
        %2742 = vmatprep.subr.mxu0 0.0
        %2743 = vmatpush1.msra.mxu0 0.0
        %2744 = vmatprep.subr.mxu0 0.0
        %2745 = vmatpush1.msra.mxu0 0.0
        %2746 = vmatprep.subr.mxu0 0.0
        %2747 = vmatpush1.msra.mxu0 0.0
        %2748 = vmatprep.subr.mxu0 0.0
        %2749 = vmatpush1.msra.mxu0 0.0
        %2750 = vmatprep.subr.mxu0 0.0
        %2751 = vmatpush1.msra.mxu0 0.0
        %2752 = vmatprep.subr.mxu0 0.0
        %2753 = vmatpush1.msra.mxu0 0.0
        %2754 = vmatprep.subr.mxu0 0.0
        %2755 = vmatpush1.msra.mxu0 0.0
        %2756 = vmatprep.subr.mxu0 0.0
        %2757 = vmatpush1.msra.mxu0 0.0
        %2758 = vmatprep.subr.mxu0 0.0
        %2759 = vmatpush1.msra.mxu0 0.0
        %2760 = vmatprep.subr.mxu0 0.0
        %2761 = vmatpush1.msra.mxu0 %v2726
        %2762 = vmatprep.subr.mxu0 0.0
        %2763 = vmatpush1.msra.mxu0 %v2724
        %2764 = vmatprep.subr.mxu0 0.0
        %2765 = vmatpush2.msra.mxu0 0.0
        %2766 = vmatprep.subr.mxu0 0.0
        %2767 = vmatpush2.msra.mxu0 0.0
        %2768 = vmatprep.subr.mxu0 0.0
        %2769 = vmatpush2.msra.mxu0 0.0
        %2770 = vmatprep.subr.mxu0 0.0
        %2771 = vmatpush2.msra.mxu0 0.0
        %2772 = vmatprep.subr.mxu0 0.0
        %2773 = vmatpush2.msra.mxu0 0.0
        %2774 = vmatprep.subr.mxu0 0.0
        %2775 = vmatpush2.msra.mxu0 0.0
        %2776 = vmatprep.subr.mxu0 0.0
        %2777 = vmatpush2.msra.mxu0 0.0
        %2778 = vmatprep.subr.mxu0 0.0
        %2779 = vmatpush2.msra.mxu0 0.0
        %2780 = vmatprep.subr.mxu0 0.0
        %2781 = vmatpush2.msra.mxu0 0.0
        %2782 = vmatprep.subr.mxu0 0.0
        %2783 = vmatpush2.msra.mxu0 0.0
        %2784 = vmatprep.subr.mxu0 0.0
        %2785 = vmatpush2.msra.mxu0 0.0
        %2786 = vmatprep.subr.mxu0 0.0
        %2787 = vmatpush2.msra.mxu0 0.0
        %2788 = vmatprep.subr.mxu0 0.0
        %2789 = vmatpush2.msra.mxu0 0.0
        %2790 = vmatprep.subr.mxu0 0.0
        %2791 = vmatpush2.msra.mxu0 0.0
        %2792 = vmatprep.subr.mxu0 0.0
        %2793 = vmatpush2.msra.mxu0 0.0
        %2794 = vmatprep.subr.mxu0 0.0
        %2795 = vmatpush2.msra.mxu0 0.0
        %2796 = vmatprep.mubr.f32.mxu0 0.0
        %2797 = vmatmul.mubr.f32.gmra.mxu0 %v2730
        %v2798 = vpop.f32.mrf.mxu0
        %v2799 = vadd.f32 0.0, %v2798
        %v2800 = vpop.f32.mrf.mxu0
        %2801 = vdwg.mxu0
        %v2803 = vsel %vm1198, %v2799, 0
        %2805 = vmatprep.subr.mxu0 0.0
        %2806 = vmatpush1.msra.mxu0 0.0
        %2807 = vmatprep.subr.mxu0 0.0
        %2808 = vmatpush1.msra.mxu0 0.0
        %2809 = vmatprep.subr.mxu0 0.0
        %2810 = vmatpush1.msra.mxu0 0.0
        %2811 = vmatprep.subr.mxu0 0.0
        %2812 = vmatpush1.msra.mxu0 0.0
        %2813 = vmatprep.subr.mxu0 0.0
        %2814 = vmatpush1.msra.mxu0 0.0
        %2815 = vmatprep.subr.mxu0 0.0
        %2816 = vmatpush1.msra.mxu0 0.0
        %2817 = vmatprep.subr.mxu0 0.0
        %2818 = vmatpush1.msra.mxu0 0.0
        %2819 = vmatprep.subr.mxu0 0.0
        %2820 = vmatpush1.msra.mxu0 0.0
        %2821 = vmatprep.subr.mxu0 0.0
        %2822 = vmatpush1.msra.mxu0 0.0
        %2823 = vmatprep.subr.mxu0 0.0
        %2824 = vmatpush1.msra.mxu0 0.0
        %2825 = vmatprep.subr.mxu0 0.0
        %2826 = vmatpush1.msra.mxu0 0.0
        %2827 = vmatprep.subr.mxu0 0.0
        %2828 = vmatpush1.msra.mxu0 0.0
        %2829 = vmatprep.subr.mxu0 0.0
        %2830 = vmatpush1.msra.mxu0 0.0
        %2831 = vmatprep.subr.mxu0 0.0
        %2832 = vmatpush1.msra.mxu0 0.0
        %2833 = vmatprep.subr.mxu0 0.0
        %2834 = vmatpush1.msra.mxu0 0.0
        %2835 = vmatprep.subr.mxu0 0.0
        %2836 = vmatpush1.msra.mxu0 %v2366
        %2837 = vmatprep.subr.mxu0 0.0
        %2838 = vmatpush2.msra.mxu0 0.0
        %2839 = vmatprep.subr.mxu0 0.0
        %2840 = vmatpush2.msra.mxu0 0.0
        %2841 = vmatprep.subr.mxu0 0.0
        %2842 = vmatpush2.msra.mxu0 0.0
        %2843 = vmatprep.subr.mxu0 0.0
        %2844 = vmatpush2.msra.mxu0 0.0
        %2845 = vmatprep.subr.mxu0 0.0
        %2846 = vmatpush2.msra.mxu0 0.0
        %2847 = vmatprep.subr.mxu0 0.0
        %2848 = vmatpush2.msra.mxu0 0.0
        %2849 = vmatprep.subr.mxu0 0.0
        %2850 = vmatpush2.msra.mxu0 0.0
        %2851 = vmatprep.subr.mxu0 0.0
        %2852 = vmatpush2.msra.mxu0 0.0
        %2853 = vmatprep.subr.mxu0 0.0
        %2854 = vmatpush2.msra.mxu0 0.0
        %2855 = vmatprep.subr.mxu0 0.0
        %2856 = vmatpush2.msra.mxu0 0.0
        %2857 = vmatprep.subr.mxu0 0.0
        %2858 = vmatpush2.msra.mxu0 0.0
        %2859 = vmatprep.subr.mxu0 0.0
        %2860 = vmatpush2.msra.mxu0 0.0
        %2861 = vmatprep.subr.mxu0 0.0
        %2862 = vmatpush2.msra.mxu0 0.0
        %2863 = vmatprep.subr.mxu0 0.0
        %2864 = vmatpush2.msra.mxu0 0.0
        %2865 = vmatprep.subr.mxu0 0.0
        %2866 = vmatpush2.msra.mxu0 0.0
        %2867 = vmatprep.subr.mxu0 0.0
        %2868 = vmatpush2.msra.mxu0 0.0
        %2869 = vmatprep.mubr.f32.mxu0 0.0
        %2870 = vmatmul.mubr.f32.gmra.mxu0 %v2803
        %v2871 = vpop.f32.mrf.mxu0
        %v2872 = vadd.f32 0.0, %v2871
        %v2873 = vpop.f32.mrf.mxu0
        %2874 = vdwg.mxu0
        %v2875 = vadd.f32 %v2627, %v2872
        %2876 = vrot.lane.b32.xlu0 %v2270, 112
        %v2877 = vpop.permute.xlu0 %2876
        %2878 = vrot.lane.b32.xlu0 %v2357, 112
        %v2879 = vpop.permute.xlu0 %2878
        %2880 = vrot.lane.b32.xlu0 %v2362, 112
        %v2881 = vpop.permute.xlu0 %2880
        %v2882 = vsel %vm1198, %v2877, 0
        %v2884 = vsel %vm1198, %v2879, 0
        %v2886 = vsel %vm1198, %v2881, 0
        %2888 = vmatprep.subr.mxu0 0.0
        %2889 = vmatpush1.xpose.msra.mxu0 0.0
        %2890 = vmatprep.subr.mxu0 0.0
        %2891 = vmatpush1.xpose.msra.mxu0 0.0
        %2892 = vmatprep.subr.mxu0 0.0
        %2893 = vmatpush1.xpose.msra.mxu0 0.0
        %2894 = vmatprep.subr.mxu0 0.0
        %2895 = vmatpush1.xpose.msra.mxu0 0.0
        %2896 = vmatprep.subr.mxu0 0.0
        %2897 = vmatpush1.xpose.msra.mxu0 0.0
        %2898 = vmatprep.subr.mxu0 0.0
        %2899 = vmatpush1.xpose.msra.mxu0 0.0
        %2900 = vmatprep.subr.mxu0 0.0
        %2901 = vmatpush1.xpose.msra.mxu0 0.0
        %2902 = vmatprep.subr.mxu0 0.0
        %2903 = vmatpush1.xpose.msra.mxu0 0.0
        %2904 = vmatprep.subr.mxu0 0.0
        %2905 = vmatpush1.xpose.msra.mxu0 0.0
        %2906 = vmatprep.subr.mxu0 0.0
        %2907 = vmatpush1.xpose.msra.mxu0 0.0
        %2908 = vmatprep.subr.mxu0 0.0
        %2909 = vmatpush1.xpose.msra.mxu0 0.0
        %2910 = vmatprep.subr.mxu0 0.0
        %2911 = vmatpush1.xpose.msra.mxu0 0.0
        %2912 = vmatprep.subr.mxu0 0.0
        %2913 = vmatpush1.xpose.msra.mxu0 0.0
        %2914 = vmatprep.subr.mxu0 0.0
        %2915 = vmatpush1.xpose.msra.mxu0 0.0
        %2916 = vmatprep.subr.mxu0 0.0
        %2917 = vmatpush1.xpose.msra.mxu0 %v2886
        %2918 = vmatprep.subr.mxu0 0.0
        %2919 = vmatpush1.xpose.msra.mxu0 %v2884
        %2920 = vmatprep.subr.mxu0 0.0
        %2921 = vmatpush2.xpose.msra.mxu0 0.0
        %2922 = vmatprep.subr.mxu0 0.0
        %2923 = vmatpush2.xpose.msra.mxu0 0.0
        %2924 = vmatprep.subr.mxu0 0.0
        %2925 = vmatpush2.xpose.msra.mxu0 0.0
        %2926 = vmatprep.subr.mxu0 0.0
        %2927 = vmatpush2.xpose.msra.mxu0 0.0
        %2928 = vmatprep.subr.mxu0 0.0
        %2929 = vmatpush2.xpose.msra.mxu0 0.0
        %2930 = vmatprep.subr.mxu0 0.0
        %2931 = vmatpush2.xpose.msra.mxu0 0.0
        %2932 = vmatprep.subr.mxu0 0.0
        %2933 = vmatpush2.xpose.msra.mxu0 0.0
        %2934 = vmatprep.subr.mxu0 0.0
        %2935 = vmatpush2.xpose.msra.mxu0 0.0
        %2936 = vmatprep.subr.mxu0 0.0
        %2937 = vmatpush2.xpose.msra.mxu0 0.0
        %2938 = vmatprep.subr.mxu0 0.0
        %2939 = vmatpush2.xpose.msra.mxu0 0.0
        %2940 = vmatprep.subr.mxu0 0.0
        %2941 = vmatpush2.xpose.msra.mxu0 0.0
        %2942 = vmatprep.subr.mxu0 0.0
        %2943 = vmatpush2.xpose.msra.mxu0 0.0
        %2944 = vmatprep.subr.mxu0 0.0
        %2945 = vmatpush2.xpose.msra.mxu0 0.0
        %2946 = vmatprep.subr.mxu0 0.0
        %2947 = vmatpush2.xpose.msra.mxu0 0.0
        %2948 = vmatprep.subr.mxu0 0.0
        %2949 = vmatpush2.xpose.msra.mxu0 0.0
        %2950 = vmatprep.subr.mxu0 0.0
        %2951 = vmatpush2.xpose.msra.mxu0 0.0
        %2952 = vmatprep.mubr.f32.mxu0 0.0
        %2953 = vmatmul.mubr.f32.gmra.mxu0 %v2882
        %v2954 = vpop.f32.mrf.mxu0
        %v2955 = vadd.f32 0.0, %v2954
        %v2956 = vpop.f32.mrf.mxu0
        %2957 = vdwg.mxu0
        %v2958 = vmul.f32 %v2955, 0.35355338
        %v2959 = vadd.f32 %v2958, %v2460
        %v2960 = vsel %vm2463, %v2959, -inf
        %2961 = vmax.xlane.f32.xlu0 %v2960
        %v2962 = vpop.xlane.xlu0 %2961
        %v2963 = vsub.f32 %v2959, %v2962
        %v2964 = vmul.f32 %v2963, 1.442695
        %v2965 = vpow.pop %v2964
        %v2966 = vsel %vm2463, %v2965, 0.0
        %2967 = vadd.xlane.f32.xlu0 %v2966
        %v2968 = vpop.xlane.xlu0 %2967
        %v2969 = vrcp.pop %v2968
        %v2970 = vmul.f32 %v2965, %v2969
        %2971 = vrot.lane.b32.xlu0 %v2357, 80
        %v2972 = vpop.permute.xlu0 %2971
        %2973 = vrot.lane.b32.xlu0 %v2362, 80
        %v2974 = vpop.permute.xlu0 %2973
        %v2978 = vsel %vm2463, %v2970, 0
        %2980 = vmatprep.subr.mxu0 0.0
        %2981 = vmatpush1.msra.mxu0 0.0
        %2982 = vmatprep.subr.mxu0 0.0
        %2983 = vmatpush1.msra.mxu0 0.0
        %2984 = vmatprep.subr.mxu0 0.0
        %2985 = vmatpush1.msra.mxu0 0.0
        %2986 = vmatprep.subr.mxu0 0.0
        %2987 = vmatpush1.msra.mxu0 0.0
        %2988 = vmatprep.subr.mxu0 0.0
        %2989 = vmatpush1.msra.mxu0 0.0
        %2990 = vmatprep.subr.mxu0 0.0
        %2991 = vmatpush1.msra.mxu0 0.0
        %2992 = vmatprep.subr.mxu0 0.0
        %2993 = vmatpush1.msra.mxu0 0.0
        %2994 = vmatprep.subr.mxu0 0.0
        %2995 = vmatpush1.msra.mxu0 0.0
        %2996 = vmatprep.subr.mxu0 0.0
        %2997 = vmatpush1.msra.mxu0 0.0
        %2998 = vmatprep.subr.mxu0 0.0
        %2999 = vmatpush1.msra.mxu0 0.0
        %3000 = vmatprep.subr.mxu0 0.0
        %3001 = vmatpush1.msra.mxu0 0.0
        %3002 = vmatprep.subr.mxu0 0.0
        %3003 = vmatpush1.msra.mxu0 0.0
        %3004 = vmatprep.subr.mxu0 0.0
        %3005 = vmatpush1.msra.mxu0 0.0
        %3006 = vmatprep.subr.mxu0 0.0
        %3007 = vmatpush1.msra.mxu0 0.0
        %3008 = vmatprep.subr.mxu0 0.0
        %3009 = vmatpush1.msra.mxu0 %v2974
        %3010 = vmatprep.subr.mxu0 0.0
        %3011 = vmatpush1.msra.mxu0 %v2972
        %3012 = vmatprep.subr.mxu0 0.0
        %3013 = vmatpush2.msra.mxu0 0.0
        %3014 = vmatprep.subr.mxu0 0.0
        %3015 = vmatpush2.msra.mxu0 0.0
        %3016 = vmatprep.subr.mxu0 0.0
        %3017 = vmatpush2.msra.mxu0 0.0
        %3018 = vmatprep.subr.mxu0 0.0
        %3019 = vmatpush2.msra.mxu0 0.0
        %3020 = vmatprep.subr.mxu0 0.0
        %3021 = vmatpush2.msra.mxu0 0.0
        %3022 = vmatprep.subr.mxu0 0.0
        %3023 = vmatpush2.msra.mxu0 0.0
        %3024 = vmatprep.subr.mxu0 0.0
        %3025 = vmatpush2.msra.mxu0 0.0
        %3026 = vmatprep.subr.mxu0 0.0
        %3027 = vmatpush2.msra.mxu0 0.0
        %3028 = vmatprep.subr.mxu0 0.0
        %3029 = vmatpush2.msra.mxu0 0.0
        %3030 = vmatprep.subr.mxu0 0.0
        %3031 = vmatpush2.msra.mxu0 0.0
        %3032 = vmatprep.subr.mxu0 0.0
        %3033 = vmatpush2.msra.mxu0 0.0
        %3034 = vmatprep.subr.mxu0 0.0
        %3035 = vmatpush2.msra.mxu0 0.0
        %3036 = vmatprep.subr.mxu0 0.0
        %3037 = vmatpush2.msra.mxu0 0.0
        %3038 = vmatprep.subr.mxu0 0.0
        %3039 = vmatpush2.msra.mxu0 0.0
        %3040 = vmatprep.subr.mxu0 0.0
        %3041 = vmatpush2.msra.mxu0 0.0
        %3042 = vmatprep.subr.mxu0 0.0
        %3043 = vmatpush2.msra.mxu0 0.0
        %3044 = vmatprep.mubr.f32.mxu0 0.0
        %3045 = vmatmul.mubr.f32.gmra.mxu0 %v2978
        %v3046 = vpop.f32.mrf.mxu0
        %v3047 = vadd.f32 0.0, %v3046
        %v3048 = vpop.f32.mrf.mxu0
        %3049 = vdwg.mxu0
        %v3051 = vsel %vm1198, %v3047, 0
        %3053 = vmatprep.subr.mxu0 0.0
        %3054 = vmatpush1.msra.mxu0 0.0
        %3055 = vmatprep.subr.mxu0 0.0
        %3056 = vmatpush1.msra.mxu0 0.0
        %3057 = vmatprep.subr.mxu0 0.0
        %3058 = vmatpush1.msra.mxu0 0.0
        %3059 = vmatprep.subr.mxu0 0.0
        %3060 = vmatpush1.msra.mxu0 0.0
        %3061 = vmatprep.subr.mxu0 0.0
        %3062 = vmatpush1.msra.mxu0 0.0
        %3063 = vmatprep.subr.mxu0 0.0
        %3064 = vmatpush1.msra.mxu0 0.0
        %3065 = vmatprep.subr.mxu0 0.0
        %3066 = vmatpush1.msra.mxu0 0.0
        %3067 = vmatprep.subr.mxu0 0.0
        %3068 = vmatpush1.msra.mxu0 0.0
        %3069 = vmatprep.subr.mxu0 0.0
        %3070 = vmatpush1.msra.mxu0 0.0
        %3071 = vmatprep.subr.mxu0 0.0
        %3072 = vmatpush1.msra.mxu0 0.0
        %3073 = vmatprep.subr.mxu0 0.0
        %3074 = vmatpush1.msra.mxu0 0.0
        %3075 = vmatprep.subr.mxu0 0.0
        %3076 = vmatpush1.msra.mxu0 0.0
        %3077 = vmatprep.subr.mxu0 0.0
        %3078 = vmatpush1.msra.mxu0 0.0
        %3079 = vmatprep.subr.mxu0 0.0
        %3080 = vmatpush1.msra.mxu0 0.0
        %3081 = vmatprep.subr.mxu0 0.0
        %3082 = vmatpush1.msra.mxu0 0.0
        %3083 = vmatprep.subr.mxu0 0.0
        %3084 = vmatpush1.msra.mxu0 %v2367
        %3085 = vmatprep.subr.mxu0 0.0
        %3086 = vmatpush2.msra.mxu0 0.0
        %3087 = vmatprep.subr.mxu0 0.0
        %3088 = vmatpush2.msra.mxu0 0.0
        %3089 = vmatprep.subr.mxu0 0.0
        %3090 = vmatpush2.msra.mxu0 0.0
        %3091 = vmatprep.subr.mxu0 0.0
        %3092 = vmatpush2.msra.mxu0 0.0
        %3093 = vmatprep.subr.mxu0 0.0
        %3094 = vmatpush2.msra.mxu0 0.0
        %3095 = vmatprep.subr.mxu0 0.0
        %3096 = vmatpush2.msra.mxu0 0.0
        %3097 = vmatprep.subr.mxu0 0.0
        %3098 = vmatpush2.msra.mxu0 0.0
        %3099 = vmatprep.subr.mxu0 0.0
        %3100 = vmatpush2.msra.mxu0 0.0
        %3101 = vmatprep.subr.mxu0 0.0
        %3102 = vmatpush2.msra.mxu0 0.0
        %3103 = vmatprep.subr.mxu0 0.0
        %3104 = vmatpush2.msra.mxu0 0.0
        %3105 = vmatprep.subr.mxu0 0.0
        %3106 = vmatpush2.msra.mxu0 0.0
        %3107 = vmatprep.subr.mxu0 0.0
        %3108 = vmatpush2.msra.mxu0 0.0
        %3109 = vmatprep.subr.mxu0 0.0
        %3110 = vmatpush2.msra.mxu0 0.0
        %3111 = vmatprep.subr.mxu0 0.0
        %3112 = vmatpush2.msra.mxu0 0.0
        %3113 = vmatprep.subr.mxu0 0.0
        %3114 = vmatpush2.msra.mxu0 0.0
        %3115 = vmatprep.subr.mxu0 0.0
        %3116 = vmatpush2.msra.mxu0 0.0
        %3117 = vmatprep.mubr.f32.mxu0 0.0
        %3118 = vmatmul.mubr.f32.gmra.mxu0 %v3051
        %v3119 = vpop.f32.mrf.mxu0
        %v3120 = vadd.f32 0.0, %v3119
        %v3121 = vpop.f32.mrf.mxu0
        %3122 = vdwg.mxu0
        %v3123 = vadd.f32 %v2875, %v3120
        %3124 = vrot.lane.b32.xlu0 %v2270, 104
        %v3125 = vpop.permute.xlu0 %3124
        %3126 = vrot.lane.b32.xlu0 %v2357, 104
        %v3127 = vpop.permute.xlu0 %3126
        %3128 = vrot.lane.b32.xlu0 %v2362, 104
        %v3129 = vpop.permute.xlu0 %3128
        %v3130 = vsel %vm1198, %v3125, 0
        %v3132 = vsel %vm1198, %v3127, 0
        %v3134 = vsel %vm1198, %v3129, 0
        %3136 = vmatprep.subr.mxu0 0.0
        %3137 = vmatpush1.xpose.msra.mxu0 0.0
        %3138 = vmatprep.subr.mxu0 0.0
        %3139 = vmatpush1.xpose.msra.mxu0 0.0
        %3140 = vmatprep.subr.mxu0 0.0
        %3141 = vmatpush1.xpose.msra.mxu0 0.0
        %3142 = vmatprep.subr.mxu0 0.0
        %3143 = vmatpush1.xpose.msra.mxu0 0.0
        %3144 = vmatprep.subr.mxu0 0.0
        %3145 = vmatpush1.xpose.msra.mxu0 0.0
        %3146 = vmatprep.subr.mxu0 0.0
        %3147 = vmatpush1.xpose.msra.mxu0 0.0
        %3148 = vmatprep.subr.mxu0 0.0
        %3149 = vmatpush1.xpose.msra.mxu0 0.0
        %3150 = vmatprep.subr.mxu0 0.0
        %3151 = vmatpush1.xpose.msra.mxu0 0.0
        %3152 = vmatprep.subr.mxu0 0.0
        %3153 = vmatpush1.xpose.msra.mxu0 0.0
        %3154 = vmatprep.subr.mxu0 0.0
        %3155 = vmatpush1.xpose.msra.mxu0 0.0
        %3156 = vmatprep.subr.mxu0 0.0
        %3157 = vmatpush1.xpose.msra.mxu0 0.0
        %3158 = vmatprep.subr.mxu0 0.0
        %3159 = vmatpush1.xpose.msra.mxu0 0.0
        %3160 = vmatprep.subr.mxu0 0.0
        %3161 = vmatpush1.xpose.msra.mxu0 0.0
        %3162 = vmatprep.subr.mxu0 0.0
        %3163 = vmatpush1.xpose.msra.mxu0 0.0
        %3164 = vmatprep.subr.mxu0 0.0
        %3165 = vmatpush1.xpose.msra.mxu0 %v3134
        %3166 = vmatprep.subr.mxu0 0.0
        %3167 = vmatpush1.xpose.msra.mxu0 %v3132
        %3168 = vmatprep.subr.mxu0 0.0
        %3169 = vmatpush2.xpose.msra.mxu0 0.0
        %3170 = vmatprep.subr.mxu0 0.0
        %3171 = vmatpush2.xpose.msra.mxu0 0.0
        %3172 = vmatprep.subr.mxu0 0.0
        %3173 = vmatpush2.xpose.msra.mxu0 0.0
        %3174 = vmatprep.subr.mxu0 0.0
        %3175 = vmatpush2.xpose.msra.mxu0 0.0
        %3176 = vmatprep.subr.mxu0 0.0
        %3177 = vmatpush2.xpose.msra.mxu0 0.0
        %3178 = vmatprep.subr.mxu0 0.0
        %3179 = vmatpush2.xpose.msra.mxu0 0.0
        %3180 = vmatprep.subr.mxu0 0.0
        %3181 = vmatpush2.xpose.msra.mxu0 0.0
        %3182 = vmatprep.subr.mxu0 0.0
        %3183 = vmatpush2.xpose.msra.mxu0 0.0
        %3184 = vmatprep.subr.mxu0 0.0
        %3185 = vmatpush2.xpose.msra.mxu0 0.0
        %3186 = vmatprep.subr.mxu0 0.0
        %3187 = vmatpush2.xpose.msra.mxu0 0.0
        %3188 = vmatprep.subr.mxu0 0.0
        %3189 = vmatpush2.xpose.msra.mxu0 0.0
        %3190 = vmatprep.subr.mxu0 0.0
        %3191 = vmatpush2.xpose.msra.mxu0 0.0
        %3192 = vmatprep.subr.mxu0 0.0
        %3193 = vmatpush2.xpose.msra.mxu0 0.0
        %3194 = vmatprep.subr.mxu0 0.0
        %3195 = vmatpush2.xpose.msra.mxu0 0.0
        %3196 = vmatprep.subr.mxu0 0.0
        %3197 = vmatpush2.xpose.msra.mxu0 0.0
        %3198 = vmatprep.subr.mxu0 0.0
        %3199 = vmatpush2.xpose.msra.mxu0 0.0
        %3200 = vmatprep.mubr.f32.mxu0 0.0
        %3201 = vmatmul.mubr.f32.gmra.mxu0 %v3130
        %v3202 = vpop.f32.mrf.mxu0
        %v3203 = vadd.f32 0.0, %v3202
        %v3204 = vpop.f32.mrf.mxu0
        %3205 = vdwg.mxu0
        %v3206 = vmul.f32 %v3203, 0.35355338
        %v3207 = vadd.f32 %v3206, %v2460
        %v3208 = vsel %vm2463, %v3207, -inf
        %3209 = vmax.xlane.f32.xlu0 %v3208
        %v3210 = vpop.xlane.xlu0 %3209
        %v3211 = vsub.f32 %v3207, %v3210
        %v3212 = vmul.f32 %v3211, 1.442695
        %v3213 = vpow.pop %v3212
        %v3214 = vsel %vm2463, %v3213, 0.0
        %3215 = vadd.xlane.f32.xlu0 %v3214
        %v3216 = vpop.xlane.xlu0 %3215
        %v3217 = vrcp.pop %v3216
        %v3218 = vmul.f32 %v3213, %v3217
        %3219 = vrot.lane.b32.xlu0 %v2357, 72
        %v3220 = vpop.permute.xlu0 %3219
        %3221 = vrot.lane.b32.xlu0 %v2362, 72
        %v3222 = vpop.permute.xlu0 %3221
        %v3226 = vsel %vm2463, %v3218, 0
        %3228 = vmatprep.subr.mxu0 0.0
        %3229 = vmatpush1.msra.mxu0 0.0
        %3230 = vmatprep.subr.mxu0 0.0
        %3231 = vmatpush1.msra.mxu0 0.0
        %3232 = vmatprep.subr.mxu0 0.0
        %3233 = vmatpush1.msra.mxu0 0.0
        %3234 = vmatprep.subr.mxu0 0.0
        %3235 = vmatpush1.msra.mxu0 0.0
        %3236 = vmatprep.subr.mxu0 0.0
        %3237 = vmatpush1.msra.mxu0 0.0
        %3238 = vmatprep.subr.mxu0 0.0
        %3239 = vmatpush1.msra.mxu0 0.0
        %3240 = vmatprep.subr.mxu0 0.0
        %3241 = vmatpush1.msra.mxu0 0.0
        %3242 = vmatprep.subr.mxu0 0.0
        %3243 = vmatpush1.msra.mxu0 0.0
        %3244 = vmatprep.subr.mxu0 0.0
        %3245 = vmatpush1.msra.mxu0 0.0
        %3246 = vmatprep.subr.mxu0 0.0
        %3247 = vmatpush1.msra.mxu0 0.0
        %3248 = vmatprep.subr.mxu0 0.0
        %3249 = vmatpush1.msra.mxu0 0.0
        %3250 = vmatprep.subr.mxu0 0.0
        %3251 = vmatpush1.msra.mxu0 0.0
        %3252 = vmatprep.subr.mxu0 0.0
        %3253 = vmatpush1.msra.mxu0 0.0
        %3254 = vmatprep.subr.mxu0 0.0
        %3255 = vmatpush1.msra.mxu0 0.0
        %3256 = vmatprep.subr.mxu0 0.0
        %3257 = vmatpush1.msra.mxu0 %v3222
        %3258 = vmatprep.subr.mxu0 0.0
        %3259 = vmatpush1.msra.mxu0 %v3220
        %3260 = vmatprep.subr.mxu0 0.0
        %3261 = vmatpush2.msra.mxu0 0.0
        %3262 = vmatprep.subr.mxu0 0.0
        %3263 = vmatpush2.msra.mxu0 0.0
        %3264 = vmatprep.subr.mxu0 0.0
        %3265 = vmatpush2.msra.mxu0 0.0
        %3266 = vmatprep.subr.mxu0 0.0
        %3267 = vmatpush2.msra.mxu0 0.0
        %3268 = vmatprep.subr.mxu0 0.0
        %3269 = vmatpush2.msra.mxu0 0.0
        %3270 = vmatprep.subr.mxu0 0.0
        %3271 = vmatpush2.msra.mxu0 0.0
        %3272 = vmatprep.subr.mxu0 0.0
        %3273 = vmatpush2.msra.mxu0 0.0
        %3274 = vmatprep.subr.mxu0 0.0
        %3275 = vmatpush2.msra.mxu0 0.0
        %3276 = vmatprep.subr.mxu0 0.0
        %3277 = vmatpush2.msra.mxu0 0.0
        %3278 = vmatprep.subr.mxu0 0.0
        %3279 = vmatpush2.msra.mxu0 0.0
        %3280 = vmatprep.subr.mxu0 0.0
        %3281 = vmatpush2.msra.mxu0 0.0
        %3282 = vmatprep.subr.mxu0 0.0
        %3283 = vmatpush2.msra.mxu0 0.0
        %3284 = vmatprep.subr.mxu0 0.0
        %3285 = vmatpush2.msra.mxu0 0.0
        %3286 = vmatprep.subr.mxu0 0.0
        %3287 = vmatpush2.msra.mxu0 0.0
        %3288 = vmatprep.subr.mxu0 0.0
        %3289 = vmatpush2.msra.mxu0 0.0
        %3290 = vmatprep.subr.mxu0 0.0
        %3291 = vmatpush2.msra.mxu0 0.0
        %3292 = vmatprep.mubr.f32.mxu0 0.0
        %3293 = vmatmul.mubr.f32.gmra.mxu0 %v3226
        %v3294 = vpop.f32.mrf.mxu0
        %v3295 = vadd.f32 0.0, %v3294
        %v3296 = vpop.f32.mrf.mxu0
        %3297 = vdwg.mxu0
        %v3299 = vsel %vm1198, %v3295, 0
        %3301 = vmatprep.subr.mxu0 0.0
        %3302 = vmatpush1.msra.mxu0 0.0
        %3303 = vmatprep.subr.mxu0 0.0
        %3304 = vmatpush1.msra.mxu0 0.0
        %3305 = vmatprep.subr.mxu0 0.0
        %3306 = vmatpush1.msra.mxu0 0.0
        %3307 = vmatprep.subr.mxu0 0.0
        %3308 = vmatpush1.msra.mxu0 0.0
        %3309 = vmatprep.subr.mxu0 0.0
        %3310 = vmatpush1.msra.mxu0 0.0
        %3311 = vmatprep.subr.mxu0 0.0
        %3312 = vmatpush1.msra.mxu0 0.0
        %3313 = vmatprep.subr.mxu0 0.0
        %3314 = vmatpush1.msra.mxu0 0.0
        %3315 = vmatprep.subr.mxu0 0.0
        %3316 = vmatpush1.msra.mxu0 0.0
        %3317 = vmatprep.subr.mxu0 0.0
        %3318 = vmatpush1.msra.mxu0 0.0
        %3319 = vmatprep.subr.mxu0 0.0
        %3320 = vmatpush1.msra.mxu0 0.0
        %3321 = vmatprep.subr.mxu0 0.0
        %3322 = vmatpush1.msra.mxu0 0.0
        %3323 = vmatprep.subr.mxu0 0.0
        %3324 = vmatpush1.msra.mxu0 0.0
        %3325 = vmatprep.subr.mxu0 0.0
        %3326 = vmatpush1.msra.mxu0 0.0
        %3327 = vmatprep.subr.mxu0 0.0
        %3328 = vmatpush1.msra.mxu0 0.0
        %3329 = vmatprep.subr.mxu0 0.0
        %3330 = vmatpush1.msra.mxu0 0.0
        %3331 = vmatprep.subr.mxu0 0.0
        %3332 = vmatpush1.msra.mxu0 %v2368
        %3333 = vmatprep.subr.mxu0 0.0
        %3334 = vmatpush2.msra.mxu0 0.0
        %3335 = vmatprep.subr.mxu0 0.0
        %3336 = vmatpush2.msra.mxu0 0.0
        %3337 = vmatprep.subr.mxu0 0.0
        %3338 = vmatpush2.msra.mxu0 0.0
        %3339 = vmatprep.subr.mxu0 0.0
        %3340 = vmatpush2.msra.mxu0 0.0
        %3341 = vmatprep.subr.mxu0 0.0
        %3342 = vmatpush2.msra.mxu0 0.0
        %3343 = vmatprep.subr.mxu0 0.0
        %3344 = vmatpush2.msra.mxu0 0.0
        %3345 = vmatprep.subr.mxu0 0.0
        %3346 = vmatpush2.msra.mxu0 0.0
        %3347 = vmatprep.subr.mxu0 0.0
        %3348 = vmatpush2.msra.mxu0 0.0
        %3349 = vmatprep.subr.mxu0 0.0
        %3350 = vmatpush2.msra.mxu0 0.0
        %3351 = vmatprep.subr.mxu0 0.0
        %3352 = vmatpush2.msra.mxu0 0.0
        %3353 = vmatprep.subr.mxu0 0.0
        %3354 = vmatpush2.msra.mxu0 0.0
        %3355 = vmatprep.subr.mxu0 0.0
        %3356 = vmatpush2.msra.mxu0 0.0
        %3357 = vmatprep.subr.mxu0 0.0
        %3358 = vmatpush2.msra.mxu0 0.0
        %3359 = vmatprep.subr.mxu0 0.0
        %3360 = vmatpush2.msra.mxu0 0.0
        %3361 = vmatprep.subr.mxu0 0.0
        %3362 = vmatpush2.msra.mxu0 0.0
        %3363 = vmatprep.subr.mxu0 0.0
        %3364 = vmatpush2.msra.mxu0 0.0
        %3365 = vmatprep.mubr.f32.mxu0 0.0
        %3366 = vmatmul.mubr.f32.gmra.mxu0 %v3299
        %v3367 = vpop.f32.mrf.mxu0
        %v3368 = vadd.f32 0.0, %v3367
        %v3369 = vpop.f32.mrf.mxu0
        %3370 = vdwg.mxu0
        %v3371 = vadd.f32 %v3123, %v3368
        %v3372 = vadd.f32 %v2159, %v3371
        %v3373 = vsel %vm1069, %v3372, 0.0
        %3374 = vadd.xlane.f32.xlu0 %v3373
        %v3375 = vpop.xlane.xlu0 %3374
        %v3376 = vmul.f32 %v3375, %v1073
        %v3377 = vsub.f32 %v3372, %v3376
        %v3378 = vmul.f32 %v3377, %v3377
        %v3379 = vsel %vm1069, %v3378, 0.0
        %3380 = vadd.xlane.f32.xlu0 %v3379
        %v3381 = vpop.xlane.xlu0 %3380
        %v3382 = vmul.f32 %v3381, %v1073
        %v3383 = vadd.f32 %v3382, 1e-05
        %v3384 = vrsqrt.pop %v3383
        %v3385 = vmul.f32 %v3377, %v3384
        %v3386 = vld [vmem:[#allocation11] sm:$0x1]
        %v3388 = vlaneseq
        %v3389 = vshrl.u32 %v3388, 7
        %v3390 = vsub.s32 0, %v3389
        %v3391 = vrot.slane %v3386, %v3390
        %v3393 = vmul.f32 %v3385, %v3391
        %v3394 = vld [vmem:[#allocation13] sm:$0x1]
        %v3396 = vlaneseq
        %v3397 = vshrl.u32 %v3396, 7
        %v3398 = vsub.s32 0, %v3397
        %v3399 = vrot.slane %v3394, %v3398
        %v3401 = vadd.f32 %v3393, %v3399
        %v3402 = vld [vmem:[%s22] sm:$0xff]
        %v3403 = vld [vmem:[%s22 + $0x8] sm:$0xff]
        %v3404 = vld [vmem:[%s22 + $0x10] sm:$0xff]
        %v3405 = vld [vmem:[%s22 + $0x18] sm:$0xff]
        %v3406 = vld [vmem:[#allocation25] sm:$0x1]
        %v3408 = vlaneseq
        %v3409 = vshrl.u32 %v3408, 7
        %v3410 = vsub.s32 0, %v3409
        %v3411 = vrot.slane %v3406, %v3410
        %v3414 = vsel %vm1069, %v3401, 0
        %3416 = vmatprep.subr.mxu0 0.0
        %3417 = vmatpush1.msra.mxu0 0.0
        %3418 = vmatprep.subr.mxu0 0.0
        %3419 = vmatpush1.msra.mxu0 0.0
        %3420 = vmatprep.subr.mxu0 0.0
        %3421 = vmatpush1.msra.mxu0 0.0
        %3422 = vmatprep.subr.mxu0 0.0
        %3423 = vmatpush1.msra.mxu0 0.0
        %3424 = vmatprep.subr.mxu0 0.0
        %3425 = vmatpush1.msra.mxu0 0.0
        %3426 = vmatprep.subr.mxu0 0.0
        %3427 = vmatpush1.msra.mxu0 0.0
        %3428 = vmatprep.subr.mxu0 0.0
        %3429 = vmatpush1.msra.mxu0 0.0
        %3430 = vmatprep.subr.mxu0 0.0
        %3431 = vmatpush1.msra.mxu0 0.0
        %3432 = vmatprep.subr.mxu0 0.0
        %3433 = vmatpush1.msra.mxu0 0.0
        %3434 = vmatprep.subr.mxu0 0.0
        %3435 = vmatpush1.msra.mxu0 0.0
        %3436 = vmatprep.subr.mxu0 0.0
        %3437 = vmatpush1.msra.mxu0 0.0
        %3438 = vmatprep.subr.mxu0 0.0
        %3439 = vmatpush1.msra.mxu0 0.0
        %3440 = vmatprep.subr.mxu0 0.0
        %3441 = vmatpush1.msra.mxu0 %v3405
        %3442 = vmatprep.subr.mxu0 0.0
        %3443 = vmatpush1.msra.mxu0 %v3404
        %3444 = vmatprep.subr.mxu0 0.0
        %3445 = vmatpush1.msra.mxu0 %v3403
        %3446 = vmatprep.subr.mxu0 0.0
        %3447 = vmatpush1.msra.mxu0 %v3402
        %3448 = vmatprep.subr.mxu0 0.0
        %3449 = vmatpush2.msra.mxu0 0.0
        %3450 = vmatprep.subr.mxu0 0.0
        %3451 = vmatpush2.msra.mxu0 0.0
        %3452 = vmatprep.subr.mxu0 0.0
        %3453 = vmatpush2.msra.mxu0 0.0
        %3454 = vmatprep.subr.mxu0 0.0
        %3455 = vmatpush2.msra.mxu0 0.0
        %3456 = vmatprep.subr.mxu0 0.0
        %3457 = vmatpush2.msra.mxu0 0.0
        %3458 = vmatprep.subr.mxu0 0.0
        %3459 = vmatpush2.msra.mxu0 0.0
        %3460 = vmatprep.subr.mxu0 0.0
        %3461 = vmatpush2.msra.mxu0 0.0
        %3462 = vmatprep.subr.mxu0 0.0
        %3463 = vmatpush2.msra.mxu0 0.0
        %3464 = vmatprep.subr.mxu0 0.0
        %3465 = vmatpush2.msra.mxu0 0.0
        %3466 = vmatprep.subr.mxu0 0.0
        %3467 = vmatpush2.msra.mxu0 0.0
        %3468 = vmatprep.subr.mxu0 0.0
        %3469 = vmatpush2.msra.mxu0 0.0
        %3470 = vmatprep.subr.mxu0 0.0
        %3471 = vmatpush2.msra.mxu0 0.0
        %3472 = vmatprep.subr.mxu0 0.0
        %3473 = vmatpush2.msra.mxu0 0.0
        %3474 = vmatprep.subr.mxu0 0.0
        %3475 = vmatpush2.msra.mxu0 0.0
        %3476 = vmatprep.subr.mxu0 0.0
        %3477 = vmatpush2.msra.mxu0 0.0
        %3478 = vmatprep.subr.mxu0 0.0
        %3479 = vmatpush2.msra.mxu0 0.0
        %3480 = vmatprep.mubr.f32.mxu0 0.0
        %3481 = vmatmul.mubr.f32.gmra.mxu0 %v3414
        %v3482 = vpop.f32.mrf.mxu0
        %v3483 = vadd.f32 %v3411, %v3482
        %v3484 = vpop.f32.mrf.mxu0
        %3485 = vdwg.mxu0
        %v3486 = vmax.f32 %v3483, 0.0
        %v3487 = vld [vmem:[%s24] sm:$0xff]
        %v3488 = vld [vmem:[%s24 + $0x8] sm:$0xff]
        %v3489 = vld [vmem:[%s24 + $0x10] sm:$0xff]
        %v3490 = vld [vmem:[%s24 + $0x18] sm:$0xff]
        %v3491 = vld [vmem:[%s24 + $0x20] sm:$0xff]
        %v3492 = vld [vmem:[%s24 + $0x28] sm:$0xff]
        %v3493 = vld [vmem:[%s24 + $0x30] sm:$0xff]
        %v3494 = vld [vmem:[%s24 + $0x38] sm:$0xff]
        %vm3495 = vcmask 523264
        %v3497 = vsel %vm3495, %v3486, 0
        %3499 = vmatprep.subr.mxu0 0.0
        %3500 = vmatpush1.msra.mxu0 0.0
        %3501 = vmatprep.subr.mxu0 0.0
        %3502 = vmatpush1.msra.mxu0 0.0
        %3503 = vmatprep.subr.mxu0 0.0
        %3504 = vmatpush1.msra.mxu0 0.0
        %3505 = vmatprep.subr.mxu0 0.0
        %3506 = vmatpush1.msra.mxu0 0.0
        %3507 = vmatprep.subr.mxu0 0.0
        %3508 = vmatpush1.msra.mxu0 0.0
        %3509 = vmatprep.subr.mxu0 0.0
        %3510 = vmatpush1.msra.mxu0 0.0
        %3511 = vmatprep.subr.mxu0 0.0
        %3512 = vmatpush1.msra.mxu0 0.0
        %3513 = vmatprep.subr.mxu0 0.0
        %3514 = vmatpush1.msra.mxu0 0.0
        %3515 = vmatprep.subr.mxu0 0.0
        %3516 = vmatpush1.msra.mxu0 %v3494
        %3517 = vmatprep.subr.mxu0 0.0
        %3518 = vmatpush1.msra.mxu0 %v3493
        %3519 = vmatprep.subr.mxu0 0.0
        %3520 = vmatpush1.msra.mxu0 %v3492
        %3521 = vmatprep.subr.mxu0 0.0
        %3522 = vmatpush1.msra.mxu0 %v3491
        %3523 = vmatprep.subr.mxu0 0.0
        %3524 = vmatpush1.msra.mxu0 %v3490
        %3525 = vmatprep.subr.mxu0 0.0
        %3526 = vmatpush1.msra.mxu0 %v3489
        %3527 = vmatprep.subr.mxu0 0.0
        %3528 = vmatpush1.msra.mxu0 %v3488
        %3529 = vmatprep.subr.mxu0 0.0
        %3530 = vmatpush1.msra.mxu0 %v3487
        %3531 = vmatprep.subr.mxu0 0.0
        %3532 = vmatpush2.msra.mxu0 0.0
        %3533 = vmatprep.subr.mxu0 0.0
        %3534 = vmatpush2.msra.mxu0 0.0
        %3535 = vmatprep.subr.mxu0 0.0
        %3536 = vmatpush2.msra.mxu0 0.0
        %3537 = vmatprep.subr.mxu0 0.0
        %3538 = vmatpush2.msra.mxu0 0.0
        %3539 = vmatprep.subr.mxu0 0.0
        %3540 = vmatpush2.msra.mxu0 0.0
        %3541 = vmatprep.subr.mxu0 0.0
        %3542 = vmatpush2.msra.mxu0 0.0
        %3543 = vmatprep.subr.mxu0 0.0
        %3544 = vmatpush2.msra.mxu0 0.0
        %3545 = vmatprep.subr.mxu0 0.0
        %3546 = vmatpush2.msra.mxu0 0.0
        %3547 = vmatprep.subr.mxu0 0.0
        %3548 = vmatpush2.msra.mxu0 0.0
        %3549 = vmatprep.subr.mxu0 0.0
        %3550 = vmatpush2.msra.mxu0 0.0
        %3551 = vmatprep.subr.mxu0 0.0
        %3552 = vmatpush2.msra.mxu0 0.0
        %3553 = vmatprep.subr.mxu0 0.0
        %3554 = vmatpush2.msra.mxu0 0.0
        %3555 = vmatprep.subr.mxu0 0.0
        %3556 = vmatpush2.msra.mxu0 0.0
        %3557 = vmatprep.subr.mxu0 0.0
        %3558 = vmatpush2.msra.mxu0 0.0
        %3559 = vmatprep.subr.mxu0 0.0
        %3560 = vmatpush2.msra.mxu0 0.0
        %3561 = vmatprep.subr.mxu0 0.0
        %3562 = vmatpush2.msra.mxu0 0.0
        %3563 = vmatprep.mubr.f32.mxu0 0.0
        %3564 = vmatmul.mubr.f32.gmra.mxu0 %v3497
        %v3565 = vpop.f32.mrf.mxu0
        %v3566 = vadd.f32 0.0, %v3565
        %v3567 = vpop.f32.mrf.mxu0
        %3568 = vdwg.mxu0
        %v3569 = vadd.f32 %v3372, %v3566
        %v3570 = vld [vmem:[#allocation26] sm:$0x1]
        %v3572 = vlaneseq
        %v3573 = vshrl.u32 %v3572, 7
        %v3574 = vsub.s32 0, %v3573
        %v3575 = vrot.slane %v3570, %v3574
        %v3577 = vadd.f32 %v3569, %v3575
        %v3578 = vsel %vm1069, %v3577, 0.0
        %3579 = vadd.xlane.f32.xlu0 %v3578
        %v3580 = vpop.xlane.xlu0 %3579
        %v3581 = vmul.f32 %v3580, %v1073
        %v3582 = vsub.f32 %v3577, %v3581
        %v3583 = vmul.f32 %v3582, %v3582
        %v3584 = vsel %vm1069, %v3583, 0.0
        %3585 = vadd.xlane.f32.xlu0 %v3584
        %v3586 = vpop.xlane.xlu0 %3585
        %v3587 = vmul.f32 %v3586, %v1073
        %v3588 = vadd.f32 %v3587, 1e-05
        %v3589 = vrsqrt.pop %v3588
        %v3590 = vmul.f32 %v3582, %v3589
        %v3591 = vld [vmem:[#allocation5] sm:$0x1]
        %v3593 = vlaneseq
        %v3594 = vshrl.u32 %v3593, 7
        %v3595 = vsub.s32 0, %v3594
        %v3596 = vrot.slane %v3591, %v3595
        %v3598 = vmul.f32 %v3590, %v3596
        %v3599 = vld [vmem:[#allocation7] sm:$0x1]
        %v3601 = vlaneseq
        %v3602 = vshrl.u32 %v3601, 7
        %v3603 = vsub.s32 0, %v3602
        %v3604 = vrot.slane %v3599, %v3603
        %v3606 = vadd.f32 %v3598, %v3604
        %s3607 = scalar_lea.vmem %s12, 32
        %v3608 = vld [vmem:[%s3607] sm:$0xff]
        %v3609 = vld [vmem:[%s3607 + $0x8] sm:$0xff]
        %v3610 = vld [vmem:[%s3607 + $0x10] sm:$0xff]
        %v3611 = vld [vmem:[%s3607 + $0x18] sm:$0xff]
        %s3612 = scalar_lea.vmem [#allocation17], 1
        %v3613 = vld [vmem:[%s3612] sm:$0x1]
        %v3615 = vlaneseq
        %v3616 = vshrl.u32 %v3615, 7
        %v3617 = vsub.s32 0, %v3616
        %v3618 = vrot.slane %v3613, %v3617
        %v3621 = vsel %vm1069, %v3606, 0
        %3623 = vmatprep.subr.mxu0 0.0
        %3624 = vmatpush1.msra.mxu0 0.0
        %3625 = vmatprep.subr.mxu0 0.0
        %3626 = vmatpush1.msra.mxu0 0.0
        %3627 = vmatprep.subr.mxu0 0.0
        %3628 = vmatpush1.msra.mxu0 0.0
        %3629 = vmatprep.subr.mxu0 0.0
        %3630 = vmatpush1.msra.mxu0 0.0
        %3631 = vmatprep.subr.mxu0 0.0
        %3632 = vmatpush1.msra.mxu0 0.0
        %3633 = vmatprep.subr.mxu0 0.0
        %3634 = vmatpush1.msra.mxu0 0.0
        %3635 = vmatprep.subr.mxu0 0.0
        %3636 = vmatpush1.msra.mxu0 0.0
        %3637 = vmatprep.subr.mxu0 0.0
        %3638 = vmatpush1.msra.mxu0 0.0
        %3639 = vmatprep.subr.mxu0 0.0
        %3640 = vmatpush1.msra.mxu0 0.0
        %3641 = vmatprep.subr.mxu0 0.0
        %3642 = vmatpush1.msra.mxu0 0.0
        %3643 = vmatprep.subr.mxu0 0.0
        %3644 = vmatpush1.msra.mxu0 0.0
        %3645 = vmatprep.subr.mxu0 0.0
        %3646 = vmatpush1.msra.mxu0 0.0
        %3647 = vmatprep.subr.mxu0 0.0
        %3648 = vmatpush1.msra.mxu0 %v3611
        %3649 = vmatprep.subr.mxu0 0.0
        %3650 = vmatpush1.msra.mxu0 %v3610
        %3651 = vmatprep.subr.mxu0 0.0
        %3652 = vmatpush1.msra.mxu0 %v3609
        %3653 = vmatprep.subr.mxu0 0.0
        %3654 = vmatpush1.msra.mxu0 %v3608
        %3655 = vmatprep.subr.mxu0 0.0
        %3656 = vmatpush2.msra.mxu0 0.0
        %3657 = vmatprep.subr.mxu0 0.0
        %3658 = vmatpush2.msra.mxu0 0.0
        %3659 = vmatprep.subr.mxu0 0.0
        %3660 = vmatpush2.msra.mxu0 0.0
        %3661 = vmatprep.subr.mxu0 0.0
        %3662 = vmatpush2.msra.mxu0 0.0
        %3663 = vmatprep.subr.mxu0 0.0
        %3664 = vmatpush2.msra.mxu0 0.0
        %3665 = vmatprep.subr.mxu0 0.0
        %3666 = vmatpush2.msra.mxu0 0.0
        %3667 = vmatprep.subr.mxu0 0.0
        %3668 = vmatpush2.msra.mxu0 0.0
        %3669 = vmatprep.subr.mxu0 0.0
        %3670 = vmatpush2.msra.mxu0 0.0
        %3671 = vmatprep.subr.mxu0 0.0
        %3672 = vmatpush2.msra.mxu0 0.0
        %3673 = vmatprep.subr.mxu0 0.0
        %3674 = vmatpush2.msra.mxu0 0.0
        %3675 = vmatprep.subr.mxu0 0.0
        %3676 = vmatpush2.msra.mxu0 0.0
        %3677 = vmatprep.subr.mxu0 0.0
        %3678 = vmatpush2.msra.mxu0 0.0
        %3679 = vmatprep.subr.mxu0 0.0
        %3680 = vmatpush2.msra.mxu0 0.0
        %3681 = vmatprep.subr.mxu0 0.0
        %3682 = vmatpush2.msra.mxu0 0.0
        %3683 = vmatprep.subr.mxu0 0.0
        %3684 = vmatpush2.msra.mxu0 0.0
        %3685 = vmatprep.subr.mxu0 0.0
        %3686 = vmatpush2.msra.mxu0 0.0
        %3687 = vmatprep.mubr.f32.mxu0 0.0
        %3688 = vmatmul.mubr.f32.gmra.mxu0 %v3621
        %v3689 = vpop.f32.mrf.mxu0
        %v3690 = vadd.f32 %v3618, %v3689
        %v3691 = vpop.f32.mrf.mxu0
        %3692 = vdwg.mxu0
        %s3693 = scalar_lea.vmem %s14, 32
        %v3694 = vld [vmem:[%s3693] sm:$0xff]
        %v3695 = vld [vmem:[%s3693 + $0x8] sm:$0xff]
        %v3696 = vld [vmem:[%s3693 + $0x10] sm:$0xff]
        %v3697 = vld [vmem:[%s3693 + $0x18] sm:$0xff]
        %s3698 = scalar_lea.vmem [#allocation19], 1
        %v3699 = vld [vmem:[%s3698] sm:$0x1]
        %v3701 = vlaneseq
        %v3702 = vshrl.u32 %v3701, 7
        %v3703 = vsub.s32 0, %v3702
        %v3704 = vrot.slane %v3699, %v3703
        %3707 = vrot.lane.b32.xlu0 %v3690, 96
        %v3708 = vpop.permute.xlu0 %3707
        %v3709 = vsel %vm1198, %v3690, 0
        %v3711 = vsel %vm1198, %v3708, 0
        %3713 = vmatprep.subr.mxu0 0.0
        %3714 = vmatpush1.xpose.msra.mxu0 0.0
        %3715 = vmatprep.subr.mxu0 0.0
        %3716 = vmatpush1.xpose.msra.mxu0 0.0
        %3717 = vmatprep.subr.mxu0 0.0
        %3718 = vmatpush1.xpose.msra.mxu0 0.0
        %3719 = vmatprep.subr.mxu0 0.0
        %3720 = vmatpush1.xpose.msra.mxu0 0.0
        %3721 = vmatprep.subr.mxu0 0.0
        %3722 = vmatpush1.xpose.msra.mxu0 0.0
        %3723 = vmatprep.subr.mxu0 0.0
        %3724 = vmatpush1.xpose.msra.mxu0 0.0
        %3725 = vmatprep.subr.mxu0 0.0
        %3726 = vmatpush1.xpose.msra.mxu0 0.0
        %3727 = vmatprep.subr.mxu0 0.0
        %3728 = vmatpush1.xpose.msra.mxu0 0.0
        %3729 = vmatprep.subr.mxu0 0.0
        %3730 = vmatpush1.xpose.msra.mxu0 0.0
        %3731 = vmatprep.subr.mxu0 0.0
        %3732 = vmatpush1.xpose.msra.mxu0 0.0
        %3733 = vmatprep.subr.mxu0 0.0
        %3734 = vmatpush1.xpose.msra.mxu0 0.0
        %3735 = vmatprep.subr.mxu0 0.0
        %3736 = vmatpush1.xpose.msra.mxu0 0.0
        %3737 = vmatprep.subr.mxu0 0.0
        %3738 = vmatpush1.xpose.msra.mxu0 0.0
        %3739 = vmatprep.subr.mxu0 0.0
        %3740 = vmatpush1.xpose.msra.mxu0 0.0
        %3741 = vmatprep.subr.mxu0 0.0
        %3742 = vmatpush1.xpose.msra.mxu0 0.0
        %3743 = vmatprep.subr.mxu0 0.0
        %3744 = vmatpush1.xpose.msra.mxu0 %v3711
        %3745 = vmatprep.subr.mxu0 0.0
        %3746 = vmatpush2.xpose.msra.mxu0 0.0
        %3747 = vmatprep.subr.mxu0 0.0
        %3748 = vmatpush2.xpose.msra.mxu0 0.0
        %3749 = vmatprep.subr.mxu0 0.0
        %3750 = vmatpush2.xpose.msra.mxu0 0.0
        %3751 = vmatprep.subr.mxu0 0.0
        %3752 = vmatpush2.xpose.msra.mxu0 0.0
        %3753 = vmatprep.subr.mxu0 0.0
        %3754 = vmatpush2.xpose.msra.mxu0 0.0
        %3755 = vmatprep.subr.mxu0 0.0
        %3756 = vmatpush2.xpose.msra.mxu0 0.0
        %3757 = vmatprep.subr.mxu0 0.0
        %3758 = vmatpush2.xpose.msra.mxu0 0.0
        %3759 = vmatprep.subr.mxu0 0.0
        %3760 = vmatpush2.xpose.msra.mxu0 0.0
        %3761 = vmatprep.subr.mxu0 0.0
        %3762 = vmatpush2.xpose.msra.mxu0 0.0
        %3763 = vmatprep.subr.mxu0 0.0
        %3764 = vmatpush2.xpose.msra.mxu0 0.0
        %3765 = vmatprep.subr.mxu0 0.0
        %3766 = vmatpush2.xpose.msra.mxu0 0.0
        %3767 = vmatprep.subr.mxu0 0.0
        %3768 = vmatpush2.xpose.msra.mxu0 0.0
        %3769 = vmatprep.subr.mxu0 0.0
        %3770 = vmatpush2.xpose.msra.mxu0 0.0
        %3771 = vmatprep.subr.mxu0 0.0
        %3772 = vmatpush2.xpose.msra.mxu0 0.0
        %3773 = vmatprep.subr.mxu0 0.0
        %3774 = vmatpush2.xpose.msra.mxu0 0.0
        %3775 = vmatprep.subr.mxu0 0.0
        %3776 = vmatpush2.xpose.msra.mxu0 0.0
        %3777 = vmatprep.mubr.f32.mxu0 0.0
        %3778 = vmatmul.mubr.f32.gmra.mxu0 %v3709
        %v3779 = vpop.f32.mrf.mxu0
        %v3780 = vadd.f32 0.0, %v3779
        %v3781 = vpop.f32.mrf.mxu0
        %3782 = vdwg.mxu0
        %v3783 = vmul.f32 %v3780, 0.35355338
        %v3784 = vadd.f32 %v3783, %v1065
        %v3785 = vsel %vm1198, %v3784, -inf
        %3786 = vmax.xlane.f32.xlu0 %v3785
        %v3787 = vpop.xlane.xlu0 %3786
        %v3788 = vsub.f32 %v3784, %v3787
        %v3789 = vmul.f32 %v3788, 1.442695
        %v3790 = vpow.pop %v3789
        %v3791 = vsel %vm1198, %v3790, 0.0
        %3792 = vadd.xlane.f32.xlu0 %v3791
        %v3793 = vpop.xlane.xlu0 %3792
        %v3794 = vrcp.pop %v3793
        %v3795 = vmul.f32 %v3790, %v3794
        %3796 = vrot.lane.b32.xlu0 %v3690, 64
        %v3797 = vpop.permute.xlu0 %3796
        %v3800 = vsel %vm1198, %v3795, 0
        %3802 = vmatprep.subr.mxu0 0.0
        %3803 = vmatpush1.msra.mxu0 0.0
        %3804 = vmatprep.subr.mxu0 0.0
        %3805 = vmatpush1.msra.mxu0 0.0
        %3806 = vmatprep.subr.mxu0 0.0
        %3807 = vmatpush1.msra.mxu0 0.0
        %3808 = vmatprep.subr.mxu0 0.0
        %3809 = vmatpush1.msra.mxu0 0.0
        %3810 = vmatprep.subr.mxu0 0.0
        %3811 = vmatpush1.msra.mxu0 0.0
        %3812 = vmatprep.subr.mxu0 0.0
        %3813 = vmatpush1.msra.mxu0 0.0
        %3814 = vmatprep.subr.mxu0 0.0
        %3815 = vmatpush1.msra.mxu0 0.0
        %3816 = vmatprep.subr.mxu0 0.0
        %3817 = vmatpush1.msra.mxu0 0.0
        %3818 = vmatprep.subr.mxu0 0.0
        %3819 = vmatpush1.msra.mxu0 0.0
        %3820 = vmatprep.subr.mxu0 0.0
        %3821 = vmatpush1.msra.mxu0 0.0
        %3822 = vmatprep.subr.mxu0 0.0
        %3823 = vmatpush1.msra.mxu0 0.0
        %3824 = vmatprep.subr.mxu0 0.0
        %3825 = vmatpush1.msra.mxu0 0.0
        %3826 = vmatprep.subr.mxu0 0.0
        %3827 = vmatpush1.msra.mxu0 0.0
        %3828 = vmatprep.subr.mxu0 0.0
        %3829 = vmatpush1.msra.mxu0 0.0
        %3830 = vmatprep.subr.mxu0 0.0
        %3831 = vmatpush1.msra.mxu0 0.0
        %3832 = vmatprep.subr.mxu0 0.0
        %3833 = vmatpush1.msra.mxu0 %v3797
        %3834 = vmatprep.subr.mxu0 0.0
        %3835 = vmatpush2.msra.mxu0 0.0
        %3836 = vmatprep.subr.mxu0 0.0
        %3837 = vmatpush2.msra.mxu0 0.0
        %3838 = vmatprep.subr.mxu0 0.0
        %3839 = vmatpush2.msra.mxu0 0.0
        %3840 = vmatprep.subr.mxu0 0.0
        %3841 = vmatpush2.msra.mxu0 0.0
        %3842 = vmatprep.subr.mxu0 0.0
        %3843 = vmatpush2.msra.mxu0 0.0
        %3844 = vmatprep.subr.mxu0 0.0
        %3845 = vmatpush2.msra.mxu0 0.0
        %3846 = vmatprep.subr.mxu0 0.0
        %3847 = vmatpush2.msra.mxu0 0.0
        %3848 = vmatprep.subr.mxu0 0.0
        %3849 = vmatpush2.msra.mxu0 0.0
        %3850 = vmatprep.subr.mxu0 0.0
        %3851 = vmatpush2.msra.mxu0 0.0
        %3852 = vmatprep.subr.mxu0 0.0
        %3853 = vmatpush2.msra.mxu0 0.0
        %3854 = vmatprep.subr.mxu0 0.0
        %3855 = vmatpush2.msra.mxu0 0.0
        %3856 = vmatprep.subr.mxu0 0.0
        %3857 = vmatpush2.msra.mxu0 0.0
        %3858 = vmatprep.subr.mxu0 0.0
        %3859 = vmatpush2.msra.mxu0 0.0
        %3860 = vmatprep.subr.mxu0 0.0
        %3861 = vmatpush2.msra.mxu0 0.0
        %3862 = vmatprep.subr.mxu0 0.0
        %3863 = vmatpush2.msra.mxu0 0.0
        %3864 = vmatprep.subr.mxu0 0.0
        %3865 = vmatpush2.msra.mxu0 0.0
        %3866 = vmatprep.mubr.f32.mxu0 0.0
        %3867 = vmatmul.mubr.f32.gmra.mxu0 %v3800
        %v3868 = vpop.f32.mrf.mxu0
        %v3869 = vadd.f32 0.0, %v3868
        %v3870 = vpop.f32.mrf.mxu0
        %3871 = vdwg.mxu0
        %v3873 = vsel %vm1198, %v3869, 0
        %3875 = vmatprep.subr.mxu0 0.0
        %3876 = vmatpush1.msra.mxu0 0.0
        %3877 = vmatprep.subr.mxu0 0.0
        %3878 = vmatpush1.msra.mxu0 0.0
        %3879 = vmatprep.subr.mxu0 0.0
        %3880 = vmatpush1.msra.mxu0 0.0
        %3881 = vmatprep.subr.mxu0 0.0
        %3882 = vmatpush1.msra.mxu0 0.0
        %3883 = vmatprep.subr.mxu0 0.0
        %3884 = vmatpush1.msra.mxu0 0.0
        %3885 = vmatprep.subr.mxu0 0.0
        %3886 = vmatpush1.msra.mxu0 0.0
        %3887 = vmatprep.subr.mxu0 0.0
        %3888 = vmatpush1.msra.mxu0 0.0
        %3889 = vmatprep.subr.mxu0 0.0
        %3890 = vmatpush1.msra.mxu0 0.0
        %3891 = vmatprep.subr.mxu0 0.0
        %3892 = vmatpush1.msra.mxu0 0.0
        %3893 = vmatprep.subr.mxu0 0.0
        %3894 = vmatpush1.msra.mxu0 0.0
        %3895 = vmatprep.subr.mxu0 0.0
        %3896 = vmatpush1.msra.mxu0 0.0
        %3897 = vmatprep.subr.mxu0 0.0
        %3898 = vmatpush1.msra.mxu0 0.0
        %3899 = vmatprep.subr.mxu0 0.0
        %3900 = vmatpush1.msra.mxu0 0.0
        %3901 = vmatprep.subr.mxu0 0.0
        %3902 = vmatpush1.msra.mxu0 0.0
        %3903 = vmatprep.subr.mxu0 0.0
        %3904 = vmatpush1.msra.mxu0 0.0
        %3905 = vmatprep.subr.mxu0 0.0
        %3906 = vmatpush1.msra.mxu0 %v3694
        %3907 = vmatprep.subr.mxu0 0.0
        %3908 = vmatpush2.msra.mxu0 0.0
        %3909 = vmatprep.subr.mxu0 0.0
        %3910 = vmatpush2.msra.mxu0 0.0
        %3911 = vmatprep.subr.mxu0 0.0
        %3912 = vmatpush2.msra.mxu0 0.0
        %3913 = vmatprep.subr.mxu0 0.0
        %3914 = vmatpush2.msra.mxu0 0.0
        %3915 = vmatprep.subr.mxu0 0.0
        %3916 = vmatpush2.msra.mxu0 0.0
        %3917 = vmatprep.subr.mxu0 0.0
        %3918 = vmatpush2.msra.mxu0 0.0
        %3919 = vmatprep.subr.mxu0 0.0
        %3920 = vmatpush2.msra.mxu0 0.0
        %3921 = vmatprep.subr.mxu0 0.0
        %3922 = vmatpush2.msra.mxu0 0.0
        %3923 = vmatprep.subr.mxu0 0.0
        %3924 = vmatpush2.msra.mxu0 0.0
        %3925 = vmatprep.subr.mxu0 0.0
        %3926 = vmatpush2.msra.mxu0 0.0
        %3927 = vmatprep.subr.mxu0 0.0
        %3928 = vmatpush2.msra.mxu0 0.0
        %3929 = vmatprep.subr.mxu0 0.0
        %3930 = vmatpush2.msra.mxu0 0.0
        %3931 = vmatprep.subr.mxu0 0.0
        %3932 = vmatpush2.msra.mxu0 0.0
        %3933 = vmatprep.subr.mxu0 0.0
        %3934 = vmatpush2.msra.mxu0 0.0
        %3935 = vmatprep.subr.mxu0 0.0
        %3936 = vmatpush2.msra.mxu0 0.0
        %3937 = vmatprep.subr.mxu0 0.0
        %3938 = vmatpush2.msra.mxu0 0.0
        %3939 = vmatprep.mubr.f32.mxu0 0.0
        %3940 = vmatmul.mubr.f32.gmra.mxu0 %v3873
        %v3941 = vpop.f32.mrf.mxu0
        %v3942 = vadd.f32 0.0, %v3941
        %v3943 = vpop.f32.mrf.mxu0
        %3944 = vdwg.mxu0
        %v3945 = vadd.f32 %v3704, %v3942
        %3946 = vrot.lane.b32.xlu0 %v3690, 120
        %v3947 = vpop.permute.xlu0 %3946
        %3948 = vrot.lane.b32.xlu0 %v3690, 88
        %v3949 = vpop.permute.xlu0 %3948
        %v3950 = vsel %vm1198, %v3947, 0
        %v3952 = vsel %vm1198, %v3949, 0
        %3954 = vmatprep.subr.mxu0 0.0
        %3955 = vmatpush1.xpose.msra.mxu0 0.0
        %3956 = vmatprep.subr.mxu0 0.0
        %3957 = vmatpush1.xpose.msra.mxu0 0.0
        %3958 = vmatprep.subr.mxu0 0.0
        %3959 = vmatpush1.xpose.msra.mxu0 0.0
        %3960 = vmatprep.subr.mxu0 0.0
        %3961 = vmatpush1.xpose.msra.mxu0 0.0
        %3962 = vmatprep.subr.mxu0 0.0
        %3963 = vmatpush1.xpose.msra.mxu0 0.0
        %3964 = vmatprep.subr.mxu0 0.0
        %3965 = vmatpush1.xpose.msra.mxu0 0.0
        %3966 = vmatprep.subr.mxu0 0.0
        %3967 = vmatpush1.xpose.msra.mxu0 0.0
        %3968 = vmatprep.subr.mxu0 0.0
        %3969 = vmatpush1.xpose.msra.mxu0 0.0
        %3970 = vmatprep.subr.mxu0 0.0
        %3971 = vmatpush1.xpose.msra.mxu0 0.0
        %3972 = vmatprep.subr.mxu0 0.0
        %3973 = vmatpush1.xpose.msra.mxu0 0.0
        %3974 = vmatprep.subr.mxu0 0.0
        %3975 = vmatpush1.xpose.msra.mxu0 0.0
        %3976 = vmatprep.subr.mxu0 0.0
        %3977 = vmatpush1.xpose.msra.mxu0 0.0
        %3978 = vmatprep.subr.mxu0 0.0
        %3979 = vmatpush1.xpose.msra.mxu0 0.0
        %3980 = vmatprep.subr.mxu0 0.0
        %3981 = vmatpush1.xpose.msra.mxu0 0.0
        %3982 = vmatprep.subr.mxu0 0.0
        %3983 = vmatpush1.xpose.msra.mxu0 0.0
        %3984 = vmatprep.subr.mxu0 0.0
        %3985 = vmatpush1.xpose.msra.mxu0 %v3952
        %3986 = vmatprep.subr.mxu0 0.0
        %3987 = vmatpush2.xpose.msra.mxu0 0.0
        %3988 = vmatprep.subr.mxu0 0.0
        %3989 = vmatpush2.xpose.msra.mxu0 0.0
        %3990 = vmatprep.subr.mxu0 0.0
        %3991 = vmatpush2.xpose.msra.mxu0 0.0
        %3992 = vmatprep.subr.mxu0 0.0
        %3993 = vmatpush2.xpose.msra.mxu0 0.0
        %3994 = vmatprep.subr.mxu0 0.0
        %3995 = vmatpush2.xpose.msra.mxu0 0.0
        %3996 = vmatprep.subr.mxu0 0.0
        %3997 = vmatpush2.xpose.msra.mxu0 0.0
        %3998 = vmatprep.subr.mxu0 0.0
        %3999 = vmatpush2.xpose.msra.mxu0 0.0
        %4000 = vmatprep.subr.mxu0 0.0
        %4001 = vmatpush2.xpose.msra.mxu0 0.0
        %4002 = vmatprep.subr.mxu0 0.0
        %4003 = vmatpush2.xpose.msra.mxu0 0.0
        %4004 = vmatprep.subr.mxu0 0.0
        %4005 = vmatpush2.xpose.msra.mxu0 0.0
        %4006 = vmatprep.subr.mxu0 0.0
        %4007 = vmatpush2.xpose.msra.mxu0 0.0
        %4008 = vmatprep.subr.mxu0 0.0
        %4009 = vmatpush2.xpose.msra.mxu0 0.0
        %4010 = vmatprep.subr.mxu0 0.0
        %4011 = vmatpush2.xpose.msra.mxu0 0.0
        %4012 = vmatprep.subr.mxu0 0.0
        %4013 = vmatpush2.xpose.msra.mxu0 0.0
        %4014 = vmatprep.subr.mxu0 0.0
        %4015 = vmatpush2.xpose.msra.mxu0 0.0
        %4016 = vmatprep.subr.mxu0 0.0
        %4017 = vmatpush2.xpose.msra.mxu0 0.0
        %4018 = vmatprep.mubr.f32.mxu0 0.0
        %4019 = vmatmul.mubr.f32.gmra.mxu0 %v3950
        %v4020 = vpop.f32.mrf.mxu0
        %v4021 = vadd.f32 0.0, %v4020
        %v4022 = vpop.f32.mrf.mxu0
        %4023 = vdwg.mxu0
        %v4024 = vmul.f32 %v4021, 0.35355338
        %v4025 = vadd.f32 %v4024, %v1065
        %v4026 = vsel %vm1198, %v4025, -inf
        %4027 = vmax.xlane.f32.xlu0 %v4026
        %v4028 = vpop.xlane.xlu0 %4027
        %v4029 = vsub.f32 %v4025, %v4028
        %v4030 = vmul.f32 %v4029, 1.442695
        %v4031 = vpow.pop %v4030
        %v4032 = vsel %vm1198, %v4031, 0.0
        %4033 = vadd.xlane.f32.xlu0 %v4032
        %v4034 = vpop.xlane.xlu0 %4033
        %v4035 = vrcp.pop %v4034
        %v4036 = vmul.f32 %v4031, %v4035
        %4037 = vrot.lane.b32.xlu0 %v3690, 56
        %v4038 = vpop.permute.xlu0 %4037
        %v4041 = vsel %vm1198, %v4036, 0
        %4043 = vmatprep.subr.mxu0 0.0
        %4044 = vmatpush1.msra.mxu0 0.0
        %4045 = vmatprep.subr.mxu0 0.0
        %4046 = vmatpush1.msra.mxu0 0.0
        %4047 = vmatprep.subr.mxu0 0.0
        %4048 = vmatpush1.msra.mxu0 0.0
        %4049 = vmatprep.subr.mxu0 0.0
        %4050 = vmatpush1.msra.mxu0 0.0
        %4051 = vmatprep.subr.mxu0 0.0
        %4052 = vmatpush1.msra.mxu0 0.0
        %4053 = vmatprep.subr.mxu0 0.0
        %4054 = vmatpush1.msra.mxu0 0.0
        %4055 = vmatprep.subr.mxu0 0.0
        %4056 = vmatpush1.msra.mxu0 0.0
        %4057 = vmatprep.subr.mxu0 0.0
        %4058 = vmatpush1.msra.mxu0 0.0
        %4059 = vmatprep.subr.mxu0 0.0
        %4060 = vmatpush1.msra.mxu0 0.0
        %4061 = vmatprep.subr.mxu0 0.0
        %4062 = vmatpush1.msra.mxu0 0.0
        %4063 = vmatprep.subr.mxu0 0.0
        %4064 = vmatpush1.msra.mxu0 0.0
        %4065 = vmatprep.subr.mxu0 0.0
        %4066 = vmatpush1.msra.mxu0 0.0
        %4067 = vmatprep.subr.mxu0 0.0
        %4068 = vmatpush1.msra.mxu0 0.0
        %4069 = vmatprep.subr.mxu0 0.0
        %4070 = vmatpush1.msra.mxu0 0.0
        %4071 = vmatprep.subr.mxu0 0.0
        %4072 = vmatpush1.msra.mxu0 0.0
        %4073 = vmatprep.subr.mxu0 0.0
        %4074 = vmatpush1.msra.mxu0 %v4038
        %4075 = vmatprep.subr.mxu0 0.0
        %4076 = vmatpush2.msra.mxu0 0.0
        %4077 = vmatprep.subr.mxu0 0.0
        %4078 = vmatpush2.msra.mxu0 0.0
        %4079 = vmatprep.subr.mxu0 0.0
        %4080 = vmatpush2.msra.mxu0 0.0
        %4081 = vmatprep.subr.mxu0 0.0
        %4082 = vmatpush2.msra.mxu0 0.0
        %4083 = vmatprep.subr.mxu0 0.0
        %4084 = vmatpush2.msra.mxu0 0.0
        %4085 = vmatprep.subr.mxu0 0.0
        %4086 = vmatpush2.msra.mxu0 0.0
        %4087 = vmatprep.subr.mxu0 0.0
        %4088 = vmatpush2.msra.mxu0 0.0
        %4089 = vmatprep.subr.mxu0 0.0
        %4090 = vmatpush2.msra.mxu0 0.0
        %4091 = vmatprep.subr.mxu0 0.0
        %4092 = vmatpush2.msra.mxu0 0.0
        %4093 = vmatprep.subr.mxu0 0.0
        %4094 = vmatpush2.msra.mxu0 0.0
        %4095 = vmatprep.subr.mxu0 0.0
        %4096 = vmatpush2.msra.mxu0 0.0
        %4097 = vmatprep.subr.mxu0 0.0
        %4098 = vmatpush2.msra.mxu0 0.0
        %4099 = vmatprep.subr.mxu0 0.0
        %4100 = vmatpush2.msra.mxu0 0.0
        %4101 = vmatprep.subr.mxu0 0.0
        %4102 = vmatpush2.msra.mxu0 0.0
        %4103 = vmatprep.subr.mxu0 0.0
        %4104 = vmatpush2.msra.mxu0 0.0
        %4105 = vmatprep.subr.mxu0 0.0
        %4106 = vmatpush2.msra.mxu0 0.0
        %4107 = vmatprep.mubr.f32.mxu0 0.0
        %4108 = vmatmul.mubr.f32.gmra.mxu0 %v4041
        %v4109 = vpop.f32.mrf.mxu0
        %v4110 = vadd.f32 0.0, %v4109
        %v4111 = vpop.f32.mrf.mxu0
        %4112 = vdwg.mxu0
        %v4114 = vsel %vm1198, %v4110, 0
        %4116 = vmatprep.subr.mxu0 0.0
        %4117 = vmatpush1.msra.mxu0 0.0
        %4118 = vmatprep.subr.mxu0 0.0
        %4119 = vmatpush1.msra.mxu0 0.0
        %4120 = vmatprep.subr.mxu0 0.0
        %4121 = vmatpush1.msra.mxu0 0.0
        %4122 = vmatprep.subr.mxu0 0.0
        %4123 = vmatpush1.msra.mxu0 0.0
        %4124 = vmatprep.subr.mxu0 0.0
        %4125 = vmatpush1.msra.mxu0 0.0
        %4126 = vmatprep.subr.mxu0 0.0
        %4127 = vmatpush1.msra.mxu0 0.0
        %4128 = vmatprep.subr.mxu0 0.0
        %4129 = vmatpush1.msra.mxu0 0.0
        %4130 = vmatprep.subr.mxu0 0.0
        %4131 = vmatpush1.msra.mxu0 0.0
        %4132 = vmatprep.subr.mxu0 0.0
        %4133 = vmatpush1.msra.mxu0 0.0
        %4134 = vmatprep.subr.mxu0 0.0
        %4135 = vmatpush1.msra.mxu0 0.0
        %4136 = vmatprep.subr.mxu0 0.0
        %4137 = vmatpush1.msra.mxu0 0.0
        %4138 = vmatprep.subr.mxu0 0.0
        %4139 = vmatpush1.msra.mxu0 0.0
        %4140 = vmatprep.subr.mxu0 0.0
        %4141 = vmatpush1.msra.mxu0 0.0
        %4142 = vmatprep.subr.mxu0 0.0
        %4143 = vmatpush1.msra.mxu0 0.0
        %4144 = vmatprep.subr.mxu0 0.0
        %4145 = vmatpush1.msra.mxu0 0.0
        %4146 = vmatprep.subr.mxu0 0.0
        %4147 = vmatpush1.msra.mxu0 %v3695
        %4148 = vmatprep.subr.mxu0 0.0
        %4149 = vmatpush2.msra.mxu0 0.0
        %4150 = vmatprep.subr.mxu0 0.0
        %4151 = vmatpush2.msra.mxu0 0.0
        %4152 = vmatprep.subr.mxu0 0.0
        %4153 = vmatpush2.msra.mxu0 0.0
        %4154 = vmatprep.subr.mxu0 0.0
        %4155 = vmatpush2.msra.mxu0 0.0
        %4156 = vmatprep.subr.mxu0 0.0
        %4157 = vmatpush2.msra.mxu0 0.0
        %4158 = vmatprep.subr.mxu0 0.0
        %4159 = vmatpush2.msra.mxu0 0.0
        %4160 = vmatprep.subr.mxu0 0.0
        %4161 = vmatpush2.msra.mxu0 0.0
        %4162 = vmatprep.subr.mxu0 0.0
        %4163 = vmatpush2.msra.mxu0 0.0
        %4164 = vmatprep.subr.mxu0 0.0
        %4165 = vmatpush2.msra.mxu0 0.0
        %4166 = vmatprep.subr.mxu0 0.0
        %4167 = vmatpush2.msra.mxu0 0.0
        %4168 = vmatprep.subr.mxu0 0.0
        %4169 = vmatpush2.msra.mxu0 0.0
        %4170 = vmatprep.subr.mxu0 0.0
        %4171 = vmatpush2.msra.mxu0 0.0
        %4172 = vmatprep.subr.mxu0 0.0
        %4173 = vmatpush2.msra.mxu0 0.0
        %4174 = vmatprep.subr.mxu0 0.0
        %4175 = vmatpush2.msra.mxu0 0.0
        %4176 = vmatprep.subr.mxu0 0.0
        %4177 = vmatpush2.msra.mxu0 0.0
        %4178 = vmatprep.subr.mxu0 0.0
        %4179 = vmatpush2.msra.mxu0 0.0
        %4180 = vmatprep.mubr.f32.mxu0 0.0
        %4181 = vmatmul.mubr.f32.gmra.mxu0 %v4114
        %v4182 = vpop.f32.mrf.mxu0
        %v4183 = vadd.f32 0.0, %v4182
        %v4184 = vpop.f32.mrf.mxu0
        %4185 = vdwg.mxu0
        %v4186 = vadd.f32 %v3945, %v4183
        %4187 = vrot.lane.b32.xlu0 %v3690, 112
        %v4188 = vpop.permute.xlu0 %4187
        %4189 = vrot.lane.b32.xlu0 %v3690, 80
        %v4190 = vpop.permute.xlu0 %4189
        %v4191 = vsel %vm1198, %v4188, 0
        %v4193 = vsel %vm1198, %v4190, 0
        %4195 = vmatprep.subr.mxu0 0.0
        %4196 = vmatpush1.xpose.msra.mxu0 0.0
        %4197 = vmatprep.subr.mxu0 0.0
        %4198 = vmatpush1.xpose.msra.mxu0 0.0
        %4199 = vmatprep.subr.mxu0 0.0
        %4200 = vmatpush1.xpose.msra.mxu0 0.0
        %4201 = vmatprep.subr.mxu0 0.0
        %4202 = vmatpush1.xpose.msra.mxu0 0.0
        %4203 = vmatprep.subr.mxu0 0.0
        %4204 = vmatpush1.xpose.msra.mxu0 0.0
        %4205 = vmatprep.subr.mxu0 0.0
        %4206 = vmatpush1.xpose.msra.mxu0 0.0
        %4207 = vmatprep.subr.mxu0 0.0
        %4208 = vmatpush1.xpose.msra.mxu0 0.0
        %4209 = vmatprep.subr.mxu0 0.0
        %4210 = vmatpush1.xpose.msra.mxu0 0.0
        %4211 = vmatprep.subr.mxu0 0.0
        %4212 = vmatpush1.xpose.msra.mxu0 0.0
        %4213 = vmatprep.subr.mxu0 0.0
        %4214 = vmatpush1.xpose.msra.mxu0 0.0
        %4215 = vmatprep.subr.mxu0 0.0
        %4216 = vmatpush1.xpose.msra.mxu0 0.0
        %4217 = vmatprep.subr.mxu0 0.0
        %4218 = vmatpush1.xpose.msra.mxu0 0.0
        %4219 = vmatprep.subr.mxu0 0.0
        %4220 = vmatpush1.xpose.msra.mxu0 0.0
        %4221 = vmatprep.subr.mxu0 0.0
        %4222 = vmatpush1.xpose.msra.mxu0 0.0
        %4223 = vmatprep.subr.mxu0 0.0
        %4224 = vmatpush1.xpose.msra.mxu0 0.0
        %4225 = vmatprep.subr.mxu0 0.0
        %4226 = vmatpush1.xpose.msra.mxu0 %v4193
        %4227 = vmatprep.subr.mxu0 0.0
        %4228 = vmatpush2.xpose.msra.mxu0 0.0
        %4229 = vmatprep.subr.mxu0 0.0
        %4230 = vmatpush2.xpose.msra.mxu0 0.0
        %4231 = vmatprep.subr.mxu0 0.0
        %4232 = vmatpush2.xpose.msra.mxu0 0.0
        %4233 = vmatprep.subr.mxu0 0.0
        %4234 = vmatpush2.xpose.msra.mxu0 0.0
        %4235 = vmatprep.subr.mxu0 0.0
        %4236 = vmatpush2.xpose.msra.mxu0 0.0
        %4237 = vmatprep.subr.mxu0 0.0
        %4238 = vmatpush2.xpose.msra.mxu0 0.0
        %4239 = vmatprep.subr.mxu0 0.0
        %4240 = vmatpush2.xpose.msra.mxu0 0.0
        %4241 = vmatprep.subr.mxu0 0.0
        %4242 = vmatpush2.xpose.msra.mxu0 0.0
        %4243 = vmatprep.subr.mxu0 0.0
        %4244 = vmatpush2.xpose.msra.mxu0 0.0
        %4245 = vmatprep.subr.mxu0 0.0
        %4246 = vmatpush2.xpose.msra.mxu0 0.0
        %4247 = vmatprep.subr.mxu0 0.0
        %4248 = vmatpush2.xpose.msra.mxu0 0.0
        %4249 = vmatprep.subr.mxu0 0.0
        %4250 = vmatpush2.xpose.msra.mxu0 0.0
        %4251 = vmatprep.subr.mxu0 0.0
        %4252 = vmatpush2.xpose.msra.mxu0 0.0
        %4253 = vmatprep.subr.mxu0 0.0
        %4254 = vmatpush2.xpose.msra.mxu0 0.0
        %4255 = vmatprep.subr.mxu0 0.0
        %4256 = vmatpush2.xpose.msra.mxu0 0.0
        %4257 = vmatprep.subr.mxu0 0.0
        %4258 = vmatpush2.xpose.msra.mxu0 0.0
        %4259 = vmatprep.mubr.f32.mxu0 0.0
        %4260 = vmatmul.mubr.f32.gmra.mxu0 %v4191
        %v4261 = vpop.f32.mrf.mxu0
        %v4262 = vadd.f32 0.0, %v4261
        %v4263 = vpop.f32.mrf.mxu0
        %4264 = vdwg.mxu0
        %v4265 = vmul.f32 %v4262, 0.35355338
        %v4266 = vadd.f32 %v4265, %v1065
        %v4267 = vsel %vm1198, %v4266, -inf
        %4268 = vmax.xlane.f32.xlu0 %v4267
        %v4269 = vpop.xlane.xlu0 %4268
        %v4270 = vsub.f32 %v4266, %v4269
        %v4271 = vmul.f32 %v4270, 1.442695
        %v4272 = vpow.pop %v4271
        %v4273 = vsel %vm1198, %v4272, 0.0
        %4274 = vadd.xlane.f32.xlu0 %v4273
        %v4275 = vpop.xlane.xlu0 %4274
        %v4276 = vrcp.pop %v4275
        %v4277 = vmul.f32 %v4272, %v4276
        %4278 = vrot.lane.b32.xlu0 %v3690, 48
        %v4279 = vpop.permute.xlu0 %4278
        %v4282 = vsel %vm1198, %v4277, 0
        %4284 = vmatprep.subr.mxu0 0.0
        %4285 = vmatpush1.msra.mxu0 0.0
        %4286 = vmatprep.subr.mxu0 0.0
        %4287 = vmatpush1.msra.mxu0 0.0
        %4288 = vmatprep.subr.mxu0 0.0
        %4289 = vmatpush1.msra.mxu0 0.0
        %4290 = vmatprep.subr.mxu0 0.0
        %4291 = vmatpush1.msra.mxu0 0.0
        %4292 = vmatprep.subr.mxu0 0.0
        %4293 = vmatpush1.msra.mxu0 0.0
        %4294 = vmatprep.subr.mxu0 0.0
        %4295 = vmatpush1.msra.mxu0 0.0
        %4296 = vmatprep.subr.mxu0 0.0
        %4297 = vmatpush1.msra.mxu0 0.0
        %4298 = vmatprep.subr.mxu0 0.0
        %4299 = vmatpush1.msra.mxu0 0.0
        %4300 = vmatprep.subr.mxu0 0.0
        %4301 = vmatpush1.msra.mxu0 0.0
        %4302 = vmatprep.subr.mxu0 0.0
        %4303 = vmatpush1.msra.mxu0 0.0
        %4304 = vmatprep.subr.mxu0 0.0
        %4305 = vmatpush1.msra.mxu0 0.0
        %4306 = vmatprep.subr.mxu0 0.0
        %4307 = vmatpush1.msra.mxu0 0.0
        %4308 = vmatprep.subr.mxu0 0.0
        %4309 = vmatpush1.msra.mxu0 0.0
        %4310 = vmatprep.subr.mxu0 0.0
        %4311 = vmatpush1.msra.mxu0 0.0
        %4312 = vmatprep.subr.mxu0 0.0
        %4313 = vmatpush1.msra.mxu0 0.0
        %4314 = vmatprep.subr.mxu0 0.0
        %4315 = vmatpush1.msra.mxu0 %v4279
        %4316 = vmatprep.subr.mxu0 0.0
        %4317 = vmatpush2.msra.mxu0 0.0
        %4318 = vmatprep.subr.mxu0 0.0
        %4319 = vmatpush2.msra.mxu0 0.0
        %4320 = vmatprep.subr.mxu0 0.0
        %4321 = vmatpush2.msra.mxu0 0.0
        %4322 = vmatprep.subr.mxu0 0.0
        %4323 = vmatpush2.msra.mxu0 0.0
        %4324 = vmatprep.subr.mxu0 0.0
        %4325 = vmatpush2.msra.mxu0 0.0
        %4326 = vmatprep.subr.mxu0 0.0
        %4327 = vmatpush2.msra.mxu0 0.0
        %4328 = vmatprep.subr.mxu0 0.0
        %4329 = vmatpush2.msra.mxu0 0.0
        %4330 = vmatprep.subr.mxu0 0.0
        %4331 = vmatpush2.msra.mxu0 0.0
        %4332 = vmatprep.subr.mxu0 0.0
        %4333 = vmatpush2.msra.mxu0 0.0
        %4334 = vmatprep.subr.mxu0 0.0
        %4335 = vmatpush2.msra.mxu0 0.0
        %4336 = vmatprep.subr.mxu0 0.0
        %4337 = vmatpush2.msra.mxu0 0.0
        %4338 = vmatprep.subr.mxu0 0.0
        %4339 = vmatpush2.msra.mxu0 0.0
        %4340 = vmatprep.subr.mxu0 0.0
        %4341 = vmatpush2.msra.mxu0 0.0
        %4342 = vmatprep.subr.mxu0 0.0
        %4343 = vmatpush2.msra.mxu0 0.0
        %4344 = vmatprep.subr.mxu0 0.0
        %4345 = vmatpush2.msra.mxu0 0.0
        %4346 = vmatprep.subr.mxu0 0.0
        %4347 = vmatpush2.msra.mxu0 0.0
        %4348 = vmatprep.mubr.f32.mxu0 0.0
        %4349 = vmatmul.mubr.f32.gmra.mxu0 %v4282
        %v4350 = vpop.f32.mrf.mxu0
        %v4351 = vadd.f32 0.0, %v4350
        %v4352 = vpop.f32.mrf.mxu0
        %4353 = vdwg.mxu0
        %v4355 = vsel %vm1198, %v4351, 0
        %4357 = vmatprep.subr.mxu0 0.0
        %4358 = vmatpush1.msra.mxu0 0.0
        %4359 = vmatprep.subr.mxu0 0.0
        %4360 = vmatpush1.msra.mxu0 0.0
        %4361 = vmatprep.subr.mxu0 0.0
        %4362 = vmatpush1.msra.mxu0 0.0
        %4363 = vmatprep.subr.mxu0 0.0
        %4364 = vmatpush1.msra.mxu0 0.0
        %4365 = vmatprep.subr.mxu0 0.0
        %4366 = vmatpush1.msra.mxu0 0.0
        %4367 = vmatprep.subr.mxu0 0.0
        %4368 = vmatpush1.msra.mxu0 0.0
        %4369 = vmatprep.subr.mxu0 0.0
        %4370 = vmatpush1.msra.mxu0 0.0
        %4371 = vmatprep.subr.mxu0 0.0
        %4372 = vmatpush1.msra.mxu0 0.0
        %4373 = vmatprep.subr.mxu0 0.0
        %4374 = vmatpush1.msra.mxu0 0.0
        %4375 = vmatprep.subr.mxu0 0.0
        %4376 = vmatpush1.msra.mxu0 0.0
        %4377 = vmatprep.subr.mxu0 0.0
        %4378 = vmatpush1.msra.mxu0 0.0
        %4379 = vmatprep.subr.mxu0 0.0
        %4380 = vmatpush1.msra.mxu0 0.0
        %4381 = vmatprep.subr.mxu0 0.0
        %4382 = vmatpush1.msra.mxu0 0.0
        %4383 = vmatprep.subr.mxu0 0.0
        %4384 = vmatpush1.msra.mxu0 0.0
        %4385 = vmatprep.subr.mxu0 0.0
        %4386 = vmatpush1.msra.mxu0 0.0
        %4387 = vmatprep.subr.mxu0 0.0
        %4388 = vmatpush1.msra.mxu0 %v3696
        %4389 = vmatprep.subr.mxu0 0.0
        %4390 = vmatpush2.msra.mxu0 0.0
        %4391 = vmatprep.subr.mxu0 0.0
        %4392 = vmatpush2.msra.mxu0 0.0
        %4393 = vmatprep.subr.mxu0 0.0
        %4394 = vmatpush2.msra.mxu0 0.0
        %4395 = vmatprep.subr.mxu0 0.0
        %4396 = vmatpush2.msra.mxu0 0.0
        %4397 = vmatprep.subr.mxu0 0.0
        %4398 = vmatpush2.msra.mxu0 0.0
        %4399 = vmatprep.subr.mxu0 0.0
        %4400 = vmatpush2.msra.mxu0 0.0
        %4401 = vmatprep.subr.mxu0 0.0
        %4402 = vmatpush2.msra.mxu0 0.0
        %4403 = vmatprep.subr.mxu0 0.0
        %4404 = vmatpush2.msra.mxu0 0.0
        %4405 = vmatprep.subr.mxu0 0.0
        %4406 = vmatpush2.msra.mxu0 0.0
        %4407 = vmatprep.subr.mxu0 0.0
        %4408 = vmatpush2.msra.mxu0 0.0
        %4409 = vmatprep.subr.mxu0 0.0
        %4410 = vmatpush2.msra.mxu0 0.0
        %4411 = vmatprep.subr.mxu0 0.0
        %4412 = vmatpush2.msra.mxu0 0.0
        %4413 = vmatprep.subr.mxu0 0.0
        %4414 = vmatpush2.msra.mxu0 0.0
        %4415 = vmatprep.subr.mxu0 0.0
        %4416 = vmatpush2.msra.mxu0 0.0
        %4417 = vmatprep.subr.mxu0 0.0
        %4418 = vmatpush2.msra.mxu0 0.0
        %4419 = vmatprep.subr.mxu0 0.0
        %4420 = vmatpush2.msra.mxu0 0.0
        %4421 = vmatprep.mubr.f32.mxu0 0.0
        %4422 = vmatmul.mubr.f32.gmra.mxu0 %v4355
        %v4423 = vpop.f32.mrf.mxu0
        %v4424 = vadd.f32 0.0, %v4423
        %v4425 = vpop.f32.mrf.mxu0
        %4426 = vdwg.mxu0
        %v4427 = vadd.f32 %v4186, %v4424
        %4428 = vrot.lane.b32.xlu0 %v3690, 104
        %v4429 = vpop.permute.xlu0 %4428
        %4430 = vrot.lane.b32.xlu0 %v3690, 72
        %v4431 = vpop.permute.xlu0 %4430
        %v4432 = vsel %vm1198, %v4429, 0
        %v4434 = vsel %vm1198, %v4431, 0
        %4436 = vmatprep.subr.mxu0 0.0
        %4437 = vmatpush1.xpose.msra.mxu0 0.0
        %4438 = vmatprep.subr.mxu0 0.0
        %4439 = vmatpush1.xpose.msra.mxu0 0.0
        %4440 = vmatprep.subr.mxu0 0.0
        %4441 = vmatpush1.xpose.msra.mxu0 0.0
        %4442 = vmatprep.subr.mxu0 0.0
        %4443 = vmatpush1.xpose.msra.mxu0 0.0
        %4444 = vmatprep.subr.mxu0 0.0
        %4445 = vmatpush1.xpose.msra.mxu0 0.0
        %4446 = vmatprep.subr.mxu0 0.0
        %4447 = vmatpush1.xpose.msra.mxu0 0.0
        %4448 = vmatprep.subr.mxu0 0.0
        %4449 = vmatpush1.xpose.msra.mxu0 0.0
        %4450 = vmatprep.subr.mxu0 0.0
        %4451 = vmatpush1.xpose.msra.mxu0 0.0
        %4452 = vmatprep.subr.mxu0 0.0
        %4453 = vmatpush1.xpose.msra.mxu0 0.0
        %4454 = vmatprep.subr.mxu0 0.0
        %4455 = vmatpush1.xpose.msra.mxu0 0.0
        %4456 = vmatprep.subr.mxu0 0.0
        %4457 = vmatpush1.xpose.msra.mxu0 0.0
        %4458 = vmatprep.subr.mxu0 0.0
        %4459 = vmatpush1.xpose.msra.mxu0 0.0
        %4460 = vmatprep.subr.mxu0 0.0
        %4461 = vmatpush1.xpose.msra.mxu0 0.0
        %4462 = vmatprep.subr.mxu0 0.0
        %4463 = vmatpush1.xpose.msra.mxu0 0.0
        %4464 = vmatprep.subr.mxu0 0.0
        %4465 = vmatpush1.xpose.msra.mxu0 0.0
        %4466 = vmatprep.subr.mxu0 0.0
        %4467 = vmatpush1.xpose.msra.mxu0 %v4434
        %4468 = vmatprep.subr.mxu0 0.0
        %4469 = vmatpush2.xpose.msra.mxu0 0.0
        %4470 = vmatprep.subr.mxu0 0.0
        %4471 = vmatpush2.xpose.msra.mxu0 0.0
        %4472 = vmatprep.subr.mxu0 0.0
        %4473 = vmatpush2.xpose.msra.mxu0 0.0
        %4474 = vmatprep.subr.mxu0 0.0
        %4475 = vmatpush2.xpose.msra.mxu0 0.0
        %4476 = vmatprep.subr.mxu0 0.0
        %4477 = vmatpush2.xpose.msra.mxu0 0.0
        %4478 = vmatprep.subr.mxu0 0.0
        %4479 = vmatpush2.xpose.msra.mxu0 0.0
        %4480 = vmatprep.subr.mxu0 0.0
        %4481 = vmatpush2.xpose.msra.mxu0 0.0
        %4482 = vmatprep.subr.mxu0 0.0
        %4483 = vmatpush2.xpose.msra.mxu0 0.0
        %4484 = vmatprep.subr.mxu0 0.0
        %4485 = vmatpush2.xpose.msra.mxu0 0.0
        %4486 = vmatprep.subr.mxu0 0.0
        %4487 = vmatpush2.xpose.msra.mxu0 0.0
        %4488 = vmatprep.subr.mxu0 0.0
        %4489 = vmatpush2.xpose.msra.mxu0 0.0
        %4490 = vmatprep.subr.mxu0 0.0
        %4491 = vmatpush2.xpose.msra.mxu0 0.0
        %4492 = vmatprep.subr.mxu0 0.0
        %4493 = vmatpush2.xpose.msra.mxu0 0.0
        %4494 = vmatprep.subr.mxu0 0.0
        %4495 = vmatpush2.xpose.msra.mxu0 0.0
        %4496 = vmatprep.subr.mxu0 0.0
        %4497 = vmatpush2.xpose.msra.mxu0 0.0
        %4498 = vmatprep.subr.mxu0 0.0
        %4499 = vmatpush2.xpose.msra.mxu0 0.0
        %4500 = vmatprep.mubr.f32.mxu0 0.0
        %4501 = vmatmul.mubr.f32.gmra.mxu0 %v4432
        %v4502 = vpop.f32.mrf.mxu0
        %v4503 = vadd.f32 0.0, %v4502
        %v4504 = vpop.f32.mrf.mxu0
        %4505 = vdwg.mxu0
        %v4506 = vmul.f32 %v4503, 0.35355338
        %v4507 = vadd.f32 %v4506, %v1065
        %v4508 = vsel %vm1198, %v4507, -inf
        %4509 = vmax.xlane.f32.xlu0 %v4508
        %v4510 = vpop.xlane.xlu0 %4509
        %v4511 = vsub.f32 %v4507, %v4510
        %v4512 = vmul.f32 %v4511, 1.442695
        %v4513 = vpow.pop %v4512
        %v4514 = vsel %vm1198, %v4513, 0.0
        %4515 = vadd.xlane.f32.xlu0 %v4514
        %v4516 = vpop.xlane.xlu0 %4515
        %v4517 = vrcp.pop %v4516
        %v4518 = vmul.f32 %v4513, %v4517
        %4519 = vrot.lane.b32.xlu0 %v3690, 40
        %v4520 = vpop.permute.xlu0 %4519
        %v4523 = vsel %vm1198, %v4518, 0
        %4525 = vmatprep.subr.mxu0 0.0
        %4526 = vmatpush1.msra.mxu0 0.0
        %4527 = vmatprep.subr.mxu0 0.0
        %4528 = vmatpush1.msra.mxu0 0.0
        %4529 = vmatprep.subr.mxu0 0.0
        %4530 = vmatpush1.msra.mxu0 0.0
        %4531 = vmatprep.subr.mxu0 0.0
        %4532 = vmatpush1.msra.mxu0 0.0
        %4533 = vmatprep.subr.mxu0 0.0
        %4534 = vmatpush1.msra.mxu0 0.0
        %4535 = vmatprep.subr.mxu0 0.0
        %4536 = vmatpush1.msra.mxu0 0.0
        %4537 = vmatprep.subr.mxu0 0.0
        %4538 = vmatpush1.msra.mxu0 0.0
        %4539 = vmatprep.subr.mxu0 0.0
        %4540 = vmatpush1.msra.mxu0 0.0
        %4541 = vmatprep.subr.mxu0 0.0
        %4542 = vmatpush1.msra.mxu0 0.0
        %4543 = vmatprep.subr.mxu0 0.0
        %4544 = vmatpush1.msra.mxu0 0.0
        %4545 = vmatprep.subr.mxu0 0.0
        %4546 = vmatpush1.msra.mxu0 0.0
        %4547 = vmatprep.subr.mxu0 0.0
        %4548 = vmatpush1.msra.mxu0 0.0
        %4549 = vmatprep.subr.mxu0 0.0
        %4550 = vmatpush1.msra.mxu0 0.0
        %4551 = vmatprep.subr.mxu0 0.0
        %4552 = vmatpush1.msra.mxu0 0.0
        %4553 = vmatprep.subr.mxu0 0.0
        %4554 = vmatpush1.msra.mxu0 0.0
        %4555 = vmatprep.subr.mxu0 0.0
        %4556 = vmatpush1.msra.mxu0 %v4520
        %4557 = vmatprep.subr.mxu0 0.0
        %4558 = vmatpush2.msra.mxu0 0.0
        %4559 = vmatprep.subr.mxu0 0.0
        %4560 = vmatpush2.msra.mxu0 0.0
        %4561 = vmatprep.subr.mxu0 0.0
        %4562 = vmatpush2.msra.mxu0 0.0
        %4563 = vmatprep.subr.mxu0 0.0
        %4564 = vmatpush2.msra.mxu0 0.0
        %4565 = vmatprep.subr.mxu0 0.0
        %4566 = vmatpush2.msra.mxu0 0.0
        %4567 = vmatprep.subr.mxu0 0.0
        %4568 = vmatpush2.msra.mxu0 0.0
        %4569 = vmatprep.subr.mxu0 0.0
        %4570 = vmatpush2.msra.mxu0 0.0
        %4571 = vmatprep.subr.mxu0 0.0
        %4572 = vmatpush2.msra.mxu0 0.0
        %4573 = vmatprep.subr.mxu0 0.0
        %4574 = vmatpush2.msra.mxu0 0.0
        %4575 = vmatprep.subr.mxu0 0.0
        %4576 = vmatpush2.msra.mxu0 0.0
        %4577 = vmatprep.subr.mxu0 0.0
        %4578 = vmatpush2.msra.mxu0 0.0
        %4579 = vmatprep.subr.mxu0 0.0
        %4580 = vmatpush2.msra.mxu0 0.0
        %4581 = vmatprep.subr.mxu0 0.0
        %4582 = vmatpush2.msra.mxu0 0.0
        %4583 = vmatprep.subr.mxu0 0.0
        %4584 = vmatpush2.msra.mxu0 0.0
        %4585 = vmatprep.subr.mxu0 0.0
        %4586 = vmatpush2.msra.mxu0 0.0
        %4587 = vmatprep.subr.mxu0 0.0
        %4588 = vmatpush2.msra.mxu0 0.0
        %4589 = vmatprep.mubr.f32.mxu0 0.0
        %4590 = vmatmul.mubr.f32.gmra.mxu0 %v4523
        %v4591 = vpop.f32.mrf.mxu0
        %v4592 = vadd.f32 0.0, %v4591
        %v4593 = vpop.f32.mrf.mxu0
        %4594 = vdwg.mxu0
        %v4596 = vsel %vm1198, %v4592, 0
        %4598 = vmatprep.subr.mxu0 0.0
        %4599 = vmatpush1.msra.mxu0 0.0
        %4600 = vmatprep.subr.mxu0 0.0
        %4601 = vmatpush1.msra.mxu0 0.0
        %4602 = vmatprep.subr.mxu0 0.0
        %4603 = vmatpush1.msra.mxu0 0.0
        %4604 = vmatprep.subr.mxu0 0.0
        %4605 = vmatpush1.msra.mxu0 0.0
        %4606 = vmatprep.subr.mxu0 0.0
        %4607 = vmatpush1.msra.mxu0 0.0
        %4608 = vmatprep.subr.mxu0 0.0
        %4609 = vmatpush1.msra.mxu0 0.0
        %4610 = vmatprep.subr.mxu0 0.0
        %4611 = vmatpush1.msra.mxu0 0.0
        %4612 = vmatprep.subr.mxu0 0.0
        %4613 = vmatpush1.msra.mxu0 0.0
        %4614 = vmatprep.subr.mxu0 0.0
        %4615 = vmatpush1.msra.mxu0 0.0
        %4616 = vmatprep.subr.mxu0 0.0
        %4617 = vmatpush1.msra.mxu0 0.0
        %4618 = vmatprep.subr.mxu0 0.0
        %4619 = vmatpush1.msra.mxu0 0.0
        %4620 = vmatprep.subr.mxu0 0.0
        %4621 = vmatpush1.msra.mxu0 0.0
        %4622 = vmatprep.subr.mxu0 0.0
        %4623 = vmatpush1.msra.mxu0 0.0
        %4624 = vmatprep.subr.mxu0 0.0
        %4625 = vmatpush1.msra.mxu0 0.0
        %4626 = vmatprep.subr.mxu0 0.0
        %4627 = vmatpush1.msra.mxu0 0.0
        %4628 = vmatprep.subr.mxu0 0.0
        %4629 = vmatpush1.msra.mxu0 %v3697
        %4630 = vmatprep.subr.mxu0 0.0
        %4631 = vmatpush2.msra.mxu0 0.0
        %4632 = vmatprep.subr.mxu0 0.0
        %4633 = vmatpush2.msra.mxu0 0.0
        %4634 = vmatprep.subr.mxu0 0.0
        %4635 = vmatpush2.msra.mxu0 0.0
        %4636 = vmatprep.subr.mxu0 0.0
        %4637 = vmatpush2.msra.mxu0 0.0
        %4638 = vmatprep.subr.mxu0 0.0
        %4639 = vmatpush2.msra.mxu0 0.0
        %4640 = vmatprep.subr.mxu0 0.0
        %4641 = vmatpush2.msra.mxu0 0.0
        %4642 = vmatprep.subr.mxu0 0.0
        %4643 = vmatpush2.msra.mxu0 0.0
        %4644 = vmatprep.subr.mxu0 0.0
        %4645 = vmatpush2.msra.mxu0 0.0
        %4646 = vmatprep.subr.mxu0 0.0
        %4647 = vmatpush2.msra.mxu0 0.0
        %4648 = vmatprep.subr.mxu0 0.0
        %4649 = vmatpush2.msra.mxu0 0.0
        %4650 = vmatprep.subr.mxu0 0.0
        %4651 = vmatpush2.msra.mxu0 0.0
        %4652 = vmatprep.subr.mxu0 0.0
        %4653 = vmatpush2.msra.mxu0 0.0
        %4654 = vmatprep.subr.mxu0 0.0
        %4655 = vmatpush2.msra.mxu0 0.0
        %4656 = vmatprep.subr.mxu0 0.0
        %4657 = vmatpush2.msra.mxu0 0.0
        %4658 = vmatprep.subr.mxu0 0.0
        %4659 = vmatpush2.msra.mxu0 0.0
        %4660 = vmatprep.subr.mxu0 0.0
        %4661 = vmatpush2.msra.mxu0 0.0
        %4662 = vmatprep.mubr.f32.mxu0 0.0
        %4663 = vmatmul.mubr.f32.gmra.mxu0 %v4596
        %v4664 = vpop.f32.mrf.mxu0
        %v4665 = vadd.f32 0.0, %v4664
        %v4666 = vpop.f32.mrf.mxu0
        %4667 = vdwg.mxu0
        %v4668 = vadd.f32 %v4427, %v4665
        %v4669 = vadd.f32 %v3577, %v4668
        %v4670 = vsel %vm1069, %v4669, 0.0
        %4671 = vadd.xlane.f32.xlu0 %v4670
        %v4672 = vpop.xlane.xlu0 %4671
        %v4673 = vmul.f32 %v4672, %v1073
        %v4674 = vsub.f32 %v4669, %v4673
        %v4675 = vmul.f32 %v4674, %v4674
        %v4676 = vsel %vm1069, %v4675, 0.0
        %4677 = vadd.xlane.f32.xlu0 %v4676
        %v4678 = vpop.xlane.xlu0 %4677
        %v4679 = vmul.f32 %v4678, %v1073
        %v4680 = vadd.f32 %v4679, 1e-05
        %v4681 = vrsqrt.pop %v4680
        %v4682 = vmul.f32 %v4674, %v4681
        %v4683 = vld [vmem:[#allocation8] sm:$0x1]
        %v4685 = vlaneseq
        %v4686 = vshrl.u32 %v4685, 7
        %v4687 = vsub.s32 0, %v4686
        %v4688 = vrot.slane %v4683, %v4687
        %v4690 = vmul.f32 %v4682, %v4688
        %v4691 = vld [vmem:[#allocation10] sm:$0x1]
        %v4693 = vlaneseq
        %v4694 = vshrl.u32 %v4693, 7
        %v4695 = vsub.s32 0, %v4694
        %v4696 = vrot.slane %v4691, %v4695
        %v4698 = vadd.f32 %v4690, %v4696
        %s4699 = scalar_lea.vmem %s16, 32
        %v4700 = vld [vmem:[%s4699] sm:$0xff]
        %v4701 = vld [vmem:[%s4699 + $0x8] sm:$0xff]
        %v4702 = vld [vmem:[%s4699 + $0x10] sm:$0xff]
        %v4703 = vld [vmem:[%s4699 + $0x18] sm:$0xff]
        %s4704 = scalar_lea.vmem [#allocation20], 1
        %v4705 = vld [vmem:[%s4704] sm:$0x1]
        %v4707 = vlaneseq
        %v4708 = vshrl.u32 %v4707, 7
        %v4709 = vsub.s32 0, %v4708
        %v4710 = vrot.slane %v4705, %v4709
        %v4713 = vsel %vm1069, %v4698, 0
        %4715 = vmatprep.subr.mxu0 0.0
        %4716 = vmatpush1.msra.mxu0 0.0
        %4717 = vmatprep.subr.mxu0 0.0
        %4718 = vmatpush1.msra.mxu0 0.0
        %4719 = vmatprep.subr.mxu0 0.0
        %4720 = vmatpush1.msra.mxu0 0.0
        %4721 = vmatprep.subr.mxu0 0.0
        %4722 = vmatpush1.msra.mxu0 0.0
        %4723 = vmatprep.subr.mxu0 0.0
        %4724 = vmatpush1.msra.mxu0 0.0
        %4725 = vmatprep.subr.mxu0 0.0
        %4726 = vmatpush1.msra.mxu0 0.0
        %4727 = vmatprep.subr.mxu0 0.0
        %4728 = vmatpush1.msra.mxu0 0.0
        %4729 = vmatprep.subr.mxu0 0.0
        %4730 = vmatpush1.msra.mxu0 0.0
        %4731 = vmatprep.subr.mxu0 0.0
        %4732 = vmatpush1.msra.mxu0 0.0
        %4733 = vmatprep.subr.mxu0 0.0
        %4734 = vmatpush1.msra.mxu0 0.0
        %4735 = vmatprep.subr.mxu0 0.0
        %4736 = vmatpush1.msra.mxu0 0.0
        %4737 = vmatprep.subr.mxu0 0.0
        %4738 = vmatpush1.msra.mxu0 0.0
        %4739 = vmatprep.subr.mxu0 0.0
        %4740 = vmatpush1.msra.mxu0 %v4703
        %4741 = vmatprep.subr.mxu0 0.0
        %4742 = vmatpush1.msra.mxu0 %v4702
        %4743 = vmatprep.subr.mxu0 0.0
        %4744 = vmatpush1.msra.mxu0 %v4701
        %4745 = vmatprep.subr.mxu0 0.0
        %4746 = vmatpush1.msra.mxu0 %v4700
        %4747 = vmatprep.subr.mxu0 0.0
        %4748 = vmatpush2.msra.mxu0 0.0
        %4749 = vmatprep.subr.mxu0 0.0
        %4750 = vmatpush2.msra.mxu0 0.0
        %4751 = vmatprep.subr.mxu0 0.0
        %4752 = vmatpush2.msra.mxu0 0.0
        %4753 = vmatprep.subr.mxu0 0.0
        %4754 = vmatpush2.msra.mxu0 0.0
        %4755 = vmatprep.subr.mxu0 0.0
        %4756 = vmatpush2.msra.mxu0 0.0
        %4757 = vmatprep.subr.mxu0 0.0
        %4758 = vmatpush2.msra.mxu0 0.0
        %4759 = vmatprep.subr.mxu0 0.0
        %4760 = vmatpush2.msra.mxu0 0.0
        %4761 = vmatprep.subr.mxu0 0.0
        %4762 = vmatpush2.msra.mxu0 0.0
        %4763 = vmatprep.subr.mxu0 0.0
        %4764 = vmatpush2.msra.mxu0 0.0
        %4765 = vmatprep.subr.mxu0 0.0
        %4766 = vmatpush2.msra.mxu0 0.0
        %4767 = vmatprep.subr.mxu0 0.0
        %4768 = vmatpush2.msra.mxu0 0.0
        %4769 = vmatprep.subr.mxu0 0.0
        %4770 = vmatpush2.msra.mxu0 0.0
        %4771 = vmatprep.subr.mxu0 0.0
        %4772 = vmatpush2.msra.mxu0 0.0
        %4773 = vmatprep.subr.mxu0 0.0
        %4774 = vmatpush2.msra.mxu0 0.0
        %4775 = vmatprep.subr.mxu0 0.0
        %4776 = vmatpush2.msra.mxu0 0.0
        %4777 = vmatprep.subr.mxu0 0.0
        %4778 = vmatpush2.msra.mxu0 0.0
        %4779 = vmatprep.mubr.f32.mxu0 0.0
        %4780 = vmatmul.mubr.f32.gmra.mxu0 %v4713
        %v4781 = vpop.f32.mrf.mxu0
        %v4782 = vadd.f32 %v4710, %v4781
        %v4783 = vpop.f32.mrf.mxu0
        %4784 = vdwg.mxu0
        %s4785 = scalar_lea.vmem %s18, 32
        %v4786 = vld [vmem:[%s4785] sm:$0xff]
        %v4787 = vld [vmem:[%s4785 + $0x8] sm:$0xff]
        %v4788 = vld [vmem:[%s4785 + $0x10] sm:$0xff]
        %v4789 = vld [vmem:[%s4785 + $0x18] sm:$0xff]
        %s4790 = scalar_lea.vmem [#allocation22], 1
        %v4791 = vld [vmem:[%s4790] sm:$0x1]
        %v4793 = vlaneseq
        %v4794 = vshrl.u32 %v4793, 7
        %v4795 = vsub.s32 0, %v4794
        %v4796 = vrot.slane %v4791, %v4795
        %4798 = vmatprep.subr.mxu0 0.0
        %4799 = vmatpush1.msra.mxu0 0.0
        %4800 = vmatprep.subr.mxu0 0.0
        %4801 = vmatpush1.msra.mxu0 0.0
        %4802 = vmatprep.subr.mxu0 0.0
        %4803 = vmatpush1.msra.mxu0 0.0
        %4804 = vmatprep.subr.mxu0 0.0
        %4805 = vmatpush1.msra.mxu0 0.0
        %4806 = vmatprep.subr.mxu0 0.0
        %4807 = vmatpush1.msra.mxu0 0.0
        %4808 = vmatprep.subr.mxu0 0.0
        %4809 = vmatpush1.msra.mxu0 0.0
        %4810 = vmatprep.subr.mxu0 0.0
        %4811 = vmatpush1.msra.mxu0 0.0
        %4812 = vmatprep.subr.mxu0 0.0
        %4813 = vmatpush1.msra.mxu0 0.0
        %4814 = vmatprep.subr.mxu0 0.0
        %4815 = vmatpush1.msra.mxu0 0.0
        %4816 = vmatprep.subr.mxu0 0.0
        %4817 = vmatpush1.msra.mxu0 0.0
        %4818 = vmatprep.subr.mxu0 0.0
        %4819 = vmatpush1.msra.mxu0 0.0
        %4820 = vmatprep.subr.mxu0 0.0
        %4821 = vmatpush1.msra.mxu0 0.0
        %4822 = vmatprep.subr.mxu0 0.0
        %4823 = vmatpush1.msra.mxu0 %v4789
        %4824 = vmatprep.subr.mxu0 0.0
        %4825 = vmatpush1.msra.mxu0 %v4788
        %4826 = vmatprep.subr.mxu0 0.0
        %4827 = vmatpush1.msra.mxu0 %v4787
        %4828 = vmatprep.subr.mxu0 0.0
        %4829 = vmatpush1.msra.mxu0 %v4786
        %4830 = vmatprep.subr.mxu0 0.0
        %4831 = vmatpush2.msra.mxu0 0.0
        %4832 = vmatprep.subr.mxu0 0.0
        %4833 = vmatpush2.msra.mxu0 0.0
        %4834 = vmatprep.subr.mxu0 0.0
        %4835 = vmatpush2.msra.mxu0 0.0
        %4836 = vmatprep.subr.mxu0 0.0
        %4837 = vmatpush2.msra.mxu0 0.0
        %4838 = vmatprep.subr.mxu0 0.0
        %4839 = vmatpush2.msra.mxu0 0.0
        %4840 = vmatprep.subr.mxu0 0.0
        %4841 = vmatpush2.msra.mxu0 0.0
        %4842 = vmatprep.subr.mxu0 0.0
        %4843 = vmatpush2.msra.mxu0 0.0
        %4844 = vmatprep.subr.mxu0 0.0
        %4845 = vmatpush2.msra.mxu0 0.0
        %4846 = vmatprep.subr.mxu0 0.0
        %4847 = vmatpush2.msra.mxu0 0.0
        %4848 = vmatprep.subr.mxu0 0.0
        %4849 = vmatpush2.msra.mxu0 0.0
        %4850 = vmatprep.subr.mxu0 0.0
        %4851 = vmatpush2.msra.mxu0 0.0
        %4852 = vmatprep.subr.mxu0 0.0
        %4853 = vmatpush2.msra.mxu0 0.0
        %4854 = vmatprep.subr.mxu0 0.0
        %4855 = vmatpush2.msra.mxu0 0.0
        %4856 = vmatprep.subr.mxu0 0.0
        %4857 = vmatpush2.msra.mxu0 0.0
        %4858 = vmatprep.subr.mxu0 0.0
        %4859 = vmatpush2.msra.mxu0 0.0
        %4860 = vmatprep.subr.mxu0 0.0
        %4861 = vmatpush2.msra.mxu0 0.0
        %4862 = vmatprep.mubr.f32.mxu0 0.0
        %4863 = vmatmul.mubr.f32.gmra.mxu0 %v2285
        %v4864 = vpop.f32.mrf.mxu0
        %v4865 = vadd.f32 %v4796, %v4864
        %v4866 = vpop.f32.mrf.mxu0
        %4867 = vmatprep.mubr.f32.mxu0 0.0
        %4868 = vmatmul.mubr.f32.gmra.mxu0 %v2288
        %v4869 = vpop.f32.mrf.mxu0
        %v4870 = vadd.f32 %v4796, %v4869
        %v4871 = vpop.f32.mrf.mxu0
        %4872 = vdwg.mxu0
        %s4873 = scalar_lea.vmem %s20, 32
        %v4874 = vld [vmem:[%s4873] sm:$0xff]
        %v4875 = vld [vmem:[%s4873 + $0x8] sm:$0xff]
        %v4876 = vld [vmem:[%s4873 + $0x10] sm:$0xff]
        %v4877 = vld [vmem:[%s4873 + $0x18] sm:$0xff]
        %s4878 = scalar_lea.vmem [#allocation23], 1
        %v4879 = vld [vmem:[%s4878] sm:$0x1]
        %v4881 = vlaneseq
        %v4882 = vshrl.u32 %v4881, 7
        %v4883 = vsub.s32 0, %v4882
        %v4884 = vrot.slane %v4879, %v4883
        %v4887 = vsel %vm1198, %v4782, 0
        %v4890 = vsel %vm1198, %v4865, 0
        %v4893 = vsel %vm1198, %v4870, 0
        %4895 = vmatprep.subr.mxu0 0.0
        %4896 = vmatpush1.xpose.msra.mxu0 0.0
        %4897 = vmatprep.subr.mxu0 0.0
        %4898 = vmatpush1.xpose.msra.mxu0 0.0
        %4899 = vmatprep.subr.mxu0 0.0
        %4900 = vmatpush1.xpose.msra.mxu0 0.0
        %4901 = vmatprep.subr.mxu0 0.0
        %4902 = vmatpush1.xpose.msra.mxu0 0.0
        %4903 = vmatprep.subr.mxu0 0.0
        %4904 = vmatpush1.xpose.msra.mxu0 0.0
        %4905 = vmatprep.subr.mxu0 0.0
        %4906 = vmatpush1.xpose.msra.mxu0 0.0
        %4907 = vmatprep.subr.mxu0 0.0
        %4908 = vmatpush1.xpose.msra.mxu0 0.0
        %4909 = vmatprep.subr.mxu0 0.0
        %4910 = vmatpush1.xpose.msra.mxu0 0.0
        %4911 = vmatprep.subr.mxu0 0.0
        %4912 = vmatpush1.xpose.msra.mxu0 0.0
        %4913 = vmatprep.subr.mxu0 0.0
        %4914 = vmatpush1.xpose.msra.mxu0 0.0
        %4915 = vmatprep.subr.mxu0 0.0
        %4916 = vmatpush1.xpose.msra.mxu0 0.0
        %4917 = vmatprep.subr.mxu0 0.0
        %4918 = vmatpush1.xpose.msra.mxu0 0.0
        %4919 = vmatprep.subr.mxu0 0.0
        %4920 = vmatpush1.xpose.msra.mxu0 0.0
        %4921 = vmatprep.subr.mxu0 0.0
        %4922 = vmatpush1.xpose.msra.mxu0 0.0
        %4923 = vmatprep.subr.mxu0 0.0
        %4924 = vmatpush1.xpose.msra.mxu0 %v4893
        %4925 = vmatprep.subr.mxu0 0.0
        %4926 = vmatpush1.xpose.msra.mxu0 %v4890
        %4927 = vmatprep.subr.mxu0 0.0
        %4928 = vmatpush2.xpose.msra.mxu0 0.0
        %4929 = vmatprep.subr.mxu0 0.0
        %4930 = vmatpush2.xpose.msra.mxu0 0.0
        %4931 = vmatprep.subr.mxu0 0.0
        %4932 = vmatpush2.xpose.msra.mxu0 0.0
        %4933 = vmatprep.subr.mxu0 0.0
        %4934 = vmatpush2.xpose.msra.mxu0 0.0
        %4935 = vmatprep.subr.mxu0 0.0
        %4936 = vmatpush2.xpose.msra.mxu0 0.0
        %4937 = vmatprep.subr.mxu0 0.0
        %4938 = vmatpush2.xpose.msra.mxu0 0.0
        %4939 = vmatprep.subr.mxu0 0.0
        %4940 = vmatpush2.xpose.msra.mxu0 0.0
        %4941 = vmatprep.subr.mxu0 0.0
        %4942 = vmatpush2.xpose.msra.mxu0 0.0
        %4943 = vmatprep.subr.mxu0 0.0
        %4944 = vmatpush2.xpose.msra.mxu0 0.0
        %4945 = vmatprep.subr.mxu0 0.0
        %4946 = vmatpush2.xpose.msra.mxu0 0.0
        %4947 = vmatprep.subr.mxu0 0.0
        %4948 = vmatpush2.xpose.msra.mxu0 0.0
        %4949 = vmatprep.subr.mxu0 0.0
        %4950 = vmatpush2.xpose.msra.mxu0 0.0
        %4951 = vmatprep.subr.mxu0 0.0
        %4952 = vmatpush2.xpose.msra.mxu0 0.0
        %4953 = vmatprep.subr.mxu0 0.0
        %4954 = vmatpush2.xpose.msra.mxu0 0.0
        %4955 = vmatprep.subr.mxu0 0.0
        %4956 = vmatpush2.xpose.msra.mxu0 0.0
        %4957 = vmatprep.subr.mxu0 0.0
        %4958 = vmatpush2.xpose.msra.mxu0 0.0
        %4959 = vmatprep.mubr.f32.mxu0 0.0
        %4960 = vmatmul.mubr.f32.gmra.mxu0 %v4887
        %v4961 = vpop.f32.mrf.mxu0
        %v4962 = vadd.f32 0.0, %v4961
        %v4963 = vpop.f32.mrf.mxu0
        %4964 = vdwg.mxu0
        %v4965 = vmul.f32 %v4962, 0.35355338
        %v4966 = vadd.f32 %v4965, %v2460
        %v4967 = vsel %vm2463, %v4966, -inf
        %4968 = vmax.xlane.f32.xlu0 %v4967
        %v4969 = vpop.xlane.xlu0 %4968
        %v4970 = vsub.f32 %v4966, %v4969
        %v4971 = vmul.f32 %v4970, 1.442695
        %v4972 = vpow.pop %v4971
        %v4973 = vsel %vm2463, %v4972, 0.0
        %4974 = vadd.xlane.f32.xlu0 %v4973
        %v4975 = vpop.xlane.xlu0 %4974
        %v4976 = vrcp.pop %v4975
        %v4977 = vmul.f32 %v4972, %v4976
        %4978 = vrot.lane.b32.xlu0 %v4865, 96
        %v4979 = vpop.permute.xlu0 %4978
        %4980 = vrot.lane.b32.xlu0 %v4870, 96
        %v4981 = vpop.permute.xlu0 %4980
        %v4985 = vsel %vm2463, %v4977, 0
        %4987 = vmatprep.subr.mxu0 0.0
        %4988 = vmatpush1.msra.mxu0 0.0
        %4989 = vmatprep.subr.mxu0 0.0
        %4990 = vmatpush1.msra.mxu0 0.0
        %4991 = vmatprep.subr.mxu0 0.0
        %4992 = vmatpush1.msra.mxu0 0.0
        %4993 = vmatprep.subr.mxu0 0.0
        %4994 = vmatpush1.msra.mxu0 0.0
        %4995 = vmatprep.subr.mxu0 0.0
        %4996 = vmatpush1.msra.mxu0 0.0
        %4997 = vmatprep.subr.mxu0 0.0
        %4998 = vmatpush1.msra.mxu0 0.0
        %4999 = vmatprep.subr.mxu0 0.0
        %5000 = vmatpush1.msra.mxu0 0.0
        %5001 = vmatprep.subr.mxu0 0.0
        %5002 = vmatpush1.msra.mxu0 0.0
        %5003 = vmatprep.subr.mxu0 0.0
        %5004 = vmatpush1.msra.mxu0 0.0
        %5005 = vmatprep.subr.mxu0 0.0
        %5006 = vmatpush1.msra.mxu0 0.0
        %5007 = vmatprep.subr.mxu0 0.0
        %5008 = vmatpush1.msra.mxu0 0.0
        %5009 = vmatprep.subr.mxu0 0.0
        %5010 = vmatpush1.msra.mxu0 0.0
        %5011 = vmatprep.subr.mxu0 0.0
        %5012 = vmatpush1.msra.mxu0 0.0
        %5013 = vmatprep.subr.mxu0 0.0
        %5014 = vmatpush1.msra.mxu0 0.0
        %5015 = vmatprep.subr.mxu0 0.0
        %5016 = vmatpush1.msra.mxu0 %v4981
        %5017 = vmatprep.subr.mxu0 0.0
        %5018 = vmatpush1.msra.mxu0 %v4979
        %5019 = vmatprep.subr.mxu0 0.0
        %5020 = vmatpush2.msra.mxu0 0.0
        %5021 = vmatprep.subr.mxu0 0.0
        %5022 = vmatpush2.msra.mxu0 0.0
        %5023 = vmatprep.subr.mxu0 0.0
        %5024 = vmatpush2.msra.mxu0 0.0
        %5025 = vmatprep.subr.mxu0 0.0
        %5026 = vmatpush2.msra.mxu0 0.0
        %5027 = vmatprep.subr.mxu0 0.0
        %5028 = vmatpush2.msra.mxu0 0.0
        %5029 = vmatprep.subr.mxu0 0.0
        %5030 = vmatpush2.msra.mxu0 0.0
        %5031 = vmatprep.subr.mxu0 0.0
        %5032 = vmatpush2.msra.mxu0 0.0
        %5033 = vmatprep.subr.mxu0 0.0
        %5034 = vmatpush2.msra.mxu0 0.0
        %5035 = vmatprep.subr.mxu0 0.0
        %5036 = vmatpush2.msra.mxu0 0.0
        %5037 = vmatprep.subr.mxu0 0.0
        %5038 = vmatpush2.msra.mxu0 0.0
        %5039 = vmatprep.subr.mxu0 0.0
        %5040 = vmatpush2.msra.mxu0 0.0
        %5041 = vmatprep.subr.mxu0 0.0
        %5042 = vmatpush2.msra.mxu0 0.0
        %5043 = vmatprep.subr.mxu0 0.0
        %5044 = vmatpush2.msra.mxu0 0.0
        %5045 = vmatprep.subr.mxu0 0.0
        %5046 = vmatpush2.msra.mxu0 0.0
        %5047 = vmatprep.subr.mxu0 0.0
        %5048 = vmatpush2.msra.mxu0 0.0
        %5049 = vmatprep.subr.mxu0 0.0
        %5050 = vmatpush2.msra.mxu0 0.0
        %5051 = vmatprep.mubr.f32.mxu0 0.0
        %5052 = vmatmul.mubr.f32.gmra.mxu0 %v4985
        %v5053 = vpop.f32.mrf.mxu0
        %v5054 = vadd.f32 0.0, %v5053
        %v5055 = vpop.f32.mrf.mxu0
        %5056 = vdwg.mxu0
        %v5058 = vsel %vm1198, %v5054, 0
        %5060 = vmatprep.subr.mxu0 0.0
        %5061 = vmatpush1.msra.mxu0 0.0
        %5062 = vmatprep.subr.mxu0 0.0
        %5063 = vmatpush1.msra.mxu0 0.0
        %5064 = vmatprep.subr.mxu0 0.0
        %5065 = vmatpush1.msra.mxu0 0.0
        %5066 = vmatprep.subr.mxu0 0.0
        %5067 = vmatpush1.msra.mxu0 0.0
        %5068 = vmatprep.subr.mxu0 0.0
        %5069 = vmatpush1.msra.mxu0 0.0
        %5070 = vmatprep.subr.mxu0 0.0
        %5071 = vmatpush1.msra.mxu0 0.0
        %5072 = vmatprep.subr.mxu0 0.0
        %5073 = vmatpush1.msra.mxu0 0.0
        %5074 = vmatprep.subr.mxu0 0.0
        %5075 = vmatpush1.msra.mxu0 0.0
        %5076 = vmatprep.subr.mxu0 0.0
        %5077 = vmatpush1.msra.mxu0 0.0
        %5078 = vmatprep.subr.mxu0 0.0
        %5079 = vmatpush1.msra.mxu0 0.0
        %5080 = vmatprep.subr.mxu0 0.0
        %5081 = vmatpush1.msra.mxu0 0.0
        %5082 = vmatprep.subr.mxu0 0.0
        %5083 = vmatpush1.msra.mxu0 0.0
        %5084 = vmatprep.subr.mxu0 0.0
        %5085 = vmatpush1.msra.mxu0 0.0
        %5086 = vmatprep.subr.mxu0 0.0
        %5087 = vmatpush1.msra.mxu0 0.0
        %5088 = vmatprep.subr.mxu0 0.0
        %5089 = vmatpush1.msra.mxu0 0.0
        %5090 = vmatprep.subr.mxu0 0.0
        %5091 = vmatpush1.msra.mxu0 %v4874
        %5092 = vmatprep.subr.mxu0 0.0
        %5093 = vmatpush2.msra.mxu0 0.0
        %5094 = vmatprep.subr.mxu0 0.0
        %5095 = vmatpush2.msra.mxu0 0.0
        %5096 = vmatprep.subr.mxu0 0.0
        %5097 = vmatpush2.msra.mxu0 0.0
        %5098 = vmatprep.subr.mxu0 0.0
        %5099 = vmatpush2.msra.mxu0 0.0
        %5100 = vmatprep.subr.mxu0 0.0
        %5101 = vmatpush2.msra.mxu0 0.0
        %5102 = vmatprep.subr.mxu0 0.0
        %5103 = vmatpush2.msra.mxu0 0.0
        %5104 = vmatprep.subr.mxu0 0.0
        %5105 = vmatpush2.msra.mxu0 0.0
        %5106 = vmatprep.subr.mxu0 0.0
        %5107 = vmatpush2.msra.mxu0 0.0
        %5108 = vmatprep.subr.mxu0 0.0
        %5109 = vmatpush2.msra.mxu0 0.0
        %5110 = vmatprep.subr.mxu0 0.0
        %5111 = vmatpush2.msra.mxu0 0.0
        %5112 = vmatprep.subr.mxu0 0.0
        %5113 = vmatpush2.msra.mxu0 0.0
        %5114 = vmatprep.subr.mxu0 0.0
        %5115 = vmatpush2.msra.mxu0 0.0
        %5116 = vmatprep.subr.mxu0 0.0
        %5117 = vmatpush2.msra.mxu0 0.0
        %5118 = vmatprep.subr.mxu0 0.0
        %5119 = vmatpush2.msra.mxu0 0.0
        %5120 = vmatprep.subr.mxu0 0.0
        %5121 = vmatpush2.msra.mxu0 0.0
        %5122 = vmatprep.subr.mxu0 0.0
        %5123 = vmatpush2.msra.mxu0 0.0
        %5124 = vmatprep.mubr.f32.mxu0 0.0
        %5125 = vmatmul.mubr.f32.gmra.mxu0 %v5058
        %v5126 = vpop.f32.mrf.mxu0
        %v5127 = vadd.f32 0.0, %v5126
        %v5128 = vpop.f32.mrf.mxu0
        %5129 = vdwg.mxu0
        %v5130 = vadd.f32 %v4884, %v5127
        %5131 = vrot.lane.b32.xlu0 %v4782, 120
        %v5132 = vpop.permute.xlu0 %5131
        %5133 = vrot.lane.b32.xlu0 %v4865, 120
        %v5134 = vpop.permute.xlu0 %5133
        %5135 = vrot.lane.b32.xlu0 %v4870, 120
        %v5136 = vpop.permute.xlu0 %5135
        %v5137 = vsel %vm1198, %v5132, 0
        %v5139 = vsel %vm1198, %v5134, 0
        %v5141 = vsel %vm1198, %v5136, 0
        %5143 = vmatprep.subr.mxu0 0.0
        %5144 = vmatpush1.xpose.msra.mxu0 0.0
        %5145 = vmatprep.subr.mxu0 0.0
        %5146 = vmatpush1.xpose.msra.mxu0 0.0
        %5147 = vmatprep.subr.mxu0 0.0
        %5148 = vmatpush1.xpose.msra.mxu0 0.0
        %5149 = vmatprep.subr.mxu0 0.0
        %5150 = vmatpush1.xpose.msra.mxu0 0.0
        %5151 = vmatprep.subr.mxu0 0.0
        %5152 = vmatpush1.xpose.msra.mxu0 0.0
        %5153 = vmatprep.subr.mxu0 0.0
        %5154 = vmatpush1.xpose.msra.mxu0 0.0
        %5155 = vmatprep.subr.mxu0 0.0
        %5156 = vmatpush1.xpose.msra.mxu0 0.0
        %5157 = vmatprep.subr.mxu0 0.0
        %5158 = vmatpush1.xpose.msra.mxu0 0.0
        %5159 = vmatprep.subr.mxu0 0.0
        %5160 = vmatpush1.xpose.msra.mxu0 0.0
        %5161 = vmatprep.subr.mxu0 0.0
        %5162 = vmatpush1.xpose.msra.mxu0 0.0
        %5163 = vmatprep.subr.mxu0 0.0
        %5164 = vmatpush1.xpose.msra.mxu0 0.0
        %5165 = vmatprep.subr.mxu0 0.0
        %5166 = vmatpush1.xpose.msra.mxu0 0.0
        %5167 = vmatprep.subr.mxu0 0.0
        %5168 = vmatpush1.xpose.msra.mxu0 0.0
        %5169 = vmatprep.subr.mxu0 0.0
        %5170 = vmatpush1.xpose.msra.mxu0 0.0
        %5171 = vmatprep.subr.mxu0 0.0
        %5172 = vmatpush1.xpose.msra.mxu0 %v5141
        %5173 = vmatprep.subr.mxu0 0.0
        %5174 = vmatpush1.xpose.msra.mxu0 %v5139
        %5175 = vmatprep.subr.mxu0 0.0
        %5176 = vmatpush2.xpose.msra.mxu0 0.0
        %5177 = vmatprep.subr.mxu0 0.0
        %5178 = vmatpush2.xpose.msra.mxu0 0.0
        %5179 = vmatprep.subr.mxu0 0.0
        %5180 = vmatpush2.xpose.msra.mxu0 0.0
        %5181 = vmatprep.subr.mxu0 0.0
        %5182 = vmatpush2.xpose.msra.mxu0 0.0
        %5183 = vmatprep.subr.mxu0 0.0
        %5184 = vmatpush2.xpose.msra.mxu0 0.0
        %5185 = vmatprep.subr.mxu0 0.0
        %5186 = vmatpush2.xpose.msra.mxu0 0.0
        %5187 = vmatprep.subr.mxu0 0.0
        %5188 = vmatpush2.xpose.msra.mxu0 0.0
        %5189 = vmatprep.subr.mxu0 0.0
        %5190 = vmatpush2.xpose.msra.mxu0 0.0
        %5191 = vmatprep.subr.mxu0 0.0
        %5192 = vmatpush2.xpose.msra.mxu0 0.0
        %5193 = vmatprep.subr.mxu0 0.0
        %5194 = vmatpush2.xpose.msra.mxu0 0.0
        %5195 = vmatprep.subr.mxu0 0.0
        %5196 = vmatpush2.xpose.msra.mxu0 0.0
        %5197 = vmatprep.subr.mxu0 0.0
        %5198 = vmatpush2.xpose.msra.mxu0 0.0
        %5199 = vmatprep.subr.mxu0 0.0
        %5200 = vmatpush2.xpose.msra.mxu0 0.0
        %5201 = vmatprep.subr.mxu0 0.0
        %5202 = vmatpush2.xpose.msra.mxu0 0.0
        %5203 = vmatprep.subr.mxu0 0.0
        %5204 = vmatpush2.xpose.msra.mxu0 0.0
        %5205 = vmatprep.subr.mxu0 0.0
        %5206 = vmatpush2.xpose.msra.mxu0 0.0
        %5207 = vmatprep.mubr.f32.mxu0 0.0
        %5208 = vmatmul.mubr.f32.gmra.mxu0 %v5137
        %v5209 = vpop.f32.mrf.mxu0
        %v5210 = vadd.f32 0.0, %v5209
        %v5211 = vpop.f32.mrf.mxu0
        %5212 = vdwg.mxu0
        %v5213 = vmul.f32 %v5210, 0.35355338
        %v5214 = vadd.f32 %v5213, %v2460
        %v5215 = vsel %vm2463, %v5214, -inf
        %5216 = vmax.xlane.f32.xlu0 %v5215
        %v5217 = vpop.xlane.xlu0 %5216
        %v5218 = vsub.f32 %v5214, %v5217
        %v5219 = vmul.f32 %v5218, 1.442695
        %v5220 = vpow.pop %v5219
        %v5221 = vsel %vm2463, %v5220, 0.0
        %5222 = vadd.xlane.f32.xlu0 %v5221
        %v5223 = vpop.xlane.xlu0 %5222
        %v5224 = vrcp.pop %v5223
        %v5225 = vmul.f32 %v5220, %v5224
        %5226 = vrot.lane.b32.xlu0 %v4865, 88
        %v5227 = vpop.permute.xlu0 %5226
        %5228 = vrot.lane.b32.xlu0 %v4870, 88
        %v5229 = vpop.permute.xlu0 %5228
        %v5233 = vsel %vm2463, %v5225, 0
        %5235 = vmatprep.subr.mxu0 0.0
        %5236 = vmatpush1.msra.mxu0 0.0
        %5237 = vmatprep.subr.mxu0 0.0
        %5238 = vmatpush1.msra.mxu0 0.0
        %5239 = vmatprep.subr.mxu0 0.0
        %5240 = vmatpush1.msra.mxu0 0.0
        %5241 = vmatprep.subr.mxu0 0.0
        %5242 = vmatpush1.msra.mxu0 0.0
        %5243 = vmatprep.subr.mxu0 0.0
        %5244 = vmatpush1.msra.mxu0 0.0
        %5245 = vmatprep.subr.mxu0 0.0
        %5246 = vmatpush1.msra.mxu0 0.0
        %5247 = vmatprep.subr.mxu0 0.0
        %5248 = vmatpush1.msra.mxu0 0.0
        %5249 = vmatprep.subr.mxu0 0.0
        %5250 = vmatpush1.msra.mxu0 0.0
        %5251 = vmatprep.subr.mxu0 0.0
        %5252 = vmatpush1.msra.mxu0 0.0
        %5253 = vmatprep.subr.mxu0 0.0
        %5254 = vmatpush1.msra.mxu0 0.0
        %5255 = vmatprep.subr.mxu0 0.0
        %5256 = vmatpush1.msra.mxu0 0.0
        %5257 = vmatprep.subr.mxu0 0.0
        %5258 = vmatpush1.msra.mxu0 0.0
        %5259 = vmatprep.subr.mxu0 0.0
        %5260 = vmatpush1.msra.mxu0 0.0
        %5261 = vmatprep.subr.mxu0 0.0
        %5262 = vmatpush1.msra.mxu0 0.0
        %5263 = vmatprep.subr.mxu0 0.0
        %5264 = vmatpush1.msra.mxu0 %v5229
        %5265 = vmatprep.subr.mxu0 0.0
        %5266 = vmatpush1.msra.mxu0 %v5227
        %5267 = vmatprep.subr.mxu0 0.0
        %5268 = vmatpush2.msra.mxu0 0.0
        %5269 = vmatprep.subr.mxu0 0.0
        %5270 = vmatpush2.msra.mxu0 0.0
        %5271 = vmatprep.subr.mxu0 0.0
        %5272 = vmatpush2.msra.mxu0 0.0
        %5273 = vmatprep.subr.mxu0 0.0
        %5274 = vmatpush2.msra.mxu0 0.0
        %5275 = vmatprep.subr.mxu0 0.0
        %5276 = vmatpush2.msra.mxu0 0.0
        %5277 = vmatprep.subr.mxu0 0.0
        %5278 = vmatpush2.msra.mxu0 0.0
        %5279 = vmatprep.subr.mxu0 0.0
        %5280 = vmatpush2.msra.mxu0 0.0
        %5281 = vmatprep.subr.mxu0 0.0
        %5282 = vmatpush2.msra.mxu0 0.0
        %5283 = vmatprep.subr.mxu0 0.0
        %5284 = vmatpush2.msra.mxu0 0.0
        %5285 = vmatprep.subr.mxu0 0.0
        %5286 = vmatpush2.msra.mxu0 0.0
        %5287 = vmatprep.subr.mxu0 0.0
        %5288 = vmatpush2.msra.mxu0 0.0
        %5289 = vmatprep.subr.mxu0 0.0
        %5290 = vmatpush2.msra.mxu0 0.0
        %5291 = vmatprep.subr.mxu0 0.0
        %5292 = vmatpush2.msra.mxu0 0.0
        %5293 = vmatprep.subr.mxu0 0.0
        %5294 = vmatpush2.msra.mxu0 0.0
        %5295 = vmatprep.subr.mxu0 0.0
        %5296 = vmatpush2.msra.mxu0 0.0
        %5297 = vmatprep.subr.mxu0 0.0
        %5298 = vmatpush2.msra.mxu0 0.0
        %5299 = vmatprep.mubr.f32.mxu0 0.0
        %5300 = vmatmul.mubr.f32.gmra.mxu0 %v5233
        %v5301 = vpop.f32.mrf.mxu0
        %v5302 = vadd.f32 0.0, %v5301
        %v5303 = vpop.f32.mrf.mxu0
        %5304 = vdwg.mxu0
        %v5306 = vsel %vm1198, %v5302, 0
        %5308 = vmatprep.subr.mxu0 0.0
        %5309 = vmatpush1.msra.mxu0 0.0
        %5310 = vmatprep.subr.mxu0 0.0
        %5311 = vmatpush1.msra.mxu0 0.0
        %5312 = vmatprep.subr.mxu0 0.0
        %5313 = vmatpush1.msra.mxu0 0.0
        %5314 = vmatprep.subr.mxu0 0.0
        %5315 = vmatpush1.msra.mxu0 0.0
        %5316 = vmatprep.subr.mxu0 0.0
        %5317 = vmatpush1.msra.mxu0 0.0
        %5318 = vmatprep.subr.mxu0 0.0
        %5319 = vmatpush1.msra.mxu0 0.0
        %5320 = vmatprep.subr.mxu0 0.0
        %5321 = vmatpush1.msra.mxu0 0.0
        %5322 = vmatprep.subr.mxu0 0.0
        %5323 = vmatpush1.msra.mxu0 0.0
        %5324 = vmatprep.subr.mxu0 0.0
        %5325 = vmatpush1.msra.mxu0 0.0
        %5326 = vmatprep.subr.mxu0 0.0
        %5327 = vmatpush1.msra.mxu0 0.0
        %5328 = vmatprep.subr.mxu0 0.0
        %5329 = vmatpush1.msra.mxu0 0.0
        %5330 = vmatprep.subr.mxu0 0.0
        %5331 = vmatpush1.msra.mxu0 0.0
        %5332 = vmatprep.subr.mxu0 0.0
        %5333 = vmatpush1.msra.mxu0 0.0
        %5334 = vmatprep.subr.mxu0 0.0
        %5335 = vmatpush1.msra.mxu0 0.0
        %5336 = vmatprep.subr.mxu0 0.0
        %5337 = vmatpush1.msra.mxu0 0.0
        %5338 = vmatprep.subr.mxu0 0.0
        %5339 = vmatpush1.msra.mxu0 %v4875
        %5340 = vmatprep.subr.mxu0 0.0
        %5341 = vmatpush2.msra.mxu0 0.0
        %5342 = vmatprep.subr.mxu0 0.0
        %5343 = vmatpush2.msra.mxu0 0.0
        %5344 = vmatprep.subr.mxu0 0.0
        %5345 = vmatpush2.msra.mxu0 0.0
        %5346 = vmatprep.subr.mxu0 0.0
        %5347 = vmatpush2.msra.mxu0 0.0
        %5348 = vmatprep.subr.mxu0 0.0
        %5349 = vmatpush2.msra.mxu0 0.0
        %5350 = vmatprep.subr.mxu0 0.0
        %5351 = vmatpush2.msra.mxu0 0.0
        %5352 = vmatprep.subr.mxu0 0.0
        %5353 = vmatpush2.msra.mxu0 0.0
        %5354 = vmatprep.subr.mxu0 0.0
        %5355 = vmatpush2.msra.mxu0 0.0
        %5356 = vmatprep.subr.mxu0 0.0
        %5357 = vmatpush2.msra.mxu0 0.0
        %5358 = vmatprep.subr.mxu0 0.0
        %5359 = vmatpush2.msra.mxu0 0.0
        %5360 = vmatprep.subr.mxu0 0.0
        %5361 = vmatpush2.msra.mxu0 0.0
        %5362 = vmatprep.subr.mxu0 0.0
        %5363 = vmatpush2.msra.mxu0 0.0
        %5364 = vmatprep.subr.mxu0 0.0
        %5365 = vmatpush2.msra.mxu0 0.0
        %5366 = vmatprep.subr.mxu0 0.0
        %5367 = vmatpush2.msra.mxu0 0.0
        %5368 = vmatprep.subr.mxu0 0.0
        %5369 = vmatpush2.msra.mxu0 0.0
        %5370 = vmatprep.subr.mxu0 0.0
        %5371 = vmatpush2.msra.mxu0 0.0
        %5372 = vmatprep.mubr.f32.mxu0 0.0
        %5373 = vmatmul.mubr.f32.gmra.mxu0 %v5306
        %v5374 = vpop.f32.mrf.mxu0
        %v5375 = vadd.f32 0.0, %v5374
        %v5376 = vpop.f32.mrf.mxu0
        %5377 = vdwg.mxu0
        %v5378 = vadd.f32 %v5130, %v5375
        %5379 = vrot.lane.b32.xlu0 %v4782, 112
        %v5380 = vpop.permute.xlu0 %5379
        %5381 = vrot.lane.b32.xlu0 %v4865, 112
        %v5382 = vpop.permute.xlu0 %5381
        %5383 = vrot.lane.b32.xlu0 %v4870, 112
        %v5384 = vpop.permute.xlu0 %5383
        %v5385 = vsel %vm1198, %v5380, 0
        %v5387 = vsel %vm1198, %v5382, 0
        %v5389 = vsel %vm1198, %v5384, 0
        %5391 = vmatprep.subr.mxu0 0.0
        %5392 = vmatpush1.xpose.msra.mxu0 0.0
        %5393 = vmatprep.subr.mxu0 0.0
        %5394 = vmatpush1.xpose.msra.mxu0 0.0
        %5395 = vmatprep.subr.mxu0 0.0
        %5396 = vmatpush1.xpose.msra.mxu0 0.0
        %5397 = vmatprep.subr.mxu0 0.0
        %5398 = vmatpush1.xpose.msra.mxu0 0.0
        %5399 = vmatprep.subr.mxu0 0.0
        %5400 = vmatpush1.xpose.msra.mxu0 0.0
        %5401 = vmatprep.subr.mxu0 0.0
        %5402 = vmatpush1.xpose.msra.mxu0 0.0
        %5403 = vmatprep.subr.mxu0 0.0
        %5404 = vmatpush1.xpose.msra.mxu0 0.0
        %5405 = vmatprep.subr.mxu0 0.0
        %5406 = vmatpush1.xpose.msra.mxu0 0.0
        %5407 = vmatprep.subr.mxu0 0.0
        %5408 = vmatpush1.xpose.msra.mxu0 0.0
        %5409 = vmatprep.subr.mxu0 0.0
        %5410 = vmatpush1.xpose.msra.mxu0 0.0
        %5411 = vmatprep.subr.mxu0 0.0
        %5412 = vmatpush1.xpose.msra.mxu0 0.0
        %5413 = vmatprep.subr.mxu0 0.0
        %5414 = vmatpush1.xpose.msra.mxu0 0.0
        %5415 = vmatprep.subr.mxu0 0.0
        %5416 = vmatpush1.xpose.msra.mxu0 0.0
        %5417 = vmatprep.subr.mxu0 0.0
        %5418 = vmatpush1.xpose.msra.mxu0 0.0
        %5419 = vmatprep.subr.mxu0 0.0
        %5420 = vmatpush1.xpose.msra.mxu0 %v5389
        %5421 = vmatprep.subr.mxu0 0.0
        %5422 = vmatpush1.xpose.msra.mxu0 %v5387
        %5423 = vmatprep.subr.mxu0 0.0
        %5424 = vmatpush2.xpose.msra.mxu0 0.0
        %5425 = vmatprep.subr.mxu0 0.0
        %5426 = vmatpush2.xpose.msra.mxu0 0.0
        %5427 = vmatprep.subr.mxu0 0.0
        %5428 = vmatpush2.xpose.msra.mxu0 0.0
        %5429 = vmatprep.subr.mxu0 0.0
        %5430 = vmatpush2.xpose.msra.mxu0 0.0
        %5431 = vmatprep.subr.mxu0 0.0
        %5432 = vmatpush2.xpose.msra.mxu0 0.0
        %5433 = vmatprep.subr.mxu0 0.0
        %5434 = vmatpush2.xpose.msra.mxu0 0.0
        %5435 = vmatprep.subr.mxu0 0.0
        %5436 = vmatpush2.xpose.msra.mxu0 0.0
        %5437 = vmatprep.subr.mxu0 0.0
        %5438 = vmatpush2.xpose.msra.mxu0 0.0
        %5439 = vmatprep.subr.mxu0 0.0
        %5440 = vmatpush2.xpose.msra.mxu0 0.0
        %5441 = vmatprep.subr.mxu0 0.0
        %5442 = vmatpush2.xpose.msra.mxu0 0.0
        %5443 = vmatprep.subr.mxu0 0.0
        %5444 = vmatpush2.xpose.msra.mxu0 0.0
        %5445 = vmatprep.subr.mxu0 0.0
        %5446 = vmatpush2.xpose.msra.mxu0 0.0
        %5447 = vmatprep.subr.mxu0 0.0
        %5448 = vmatpush2.xpose.msra.mxu0 0.0
        %5449 = vmatprep.subr.mxu0 0.0
        %5450 = vmatpush2.xpose.msra.mxu0 0.0
        %5451 = vmatprep.subr.mxu0 0.0
        %5452 = vmatpush2.xpose.msra.mxu0 0.0
        %5453 = vmatprep.subr.mxu0 0.0
        %5454 = vmatpush2.xpose.msra.mxu0 0.0
        %5455 = vmatprep.mubr.f32.mxu0 0.0
        %5456 = vmatmul.mubr.f32.gmra.mxu0 %v5385
        %v5457 = vpop.f32.mrf.mxu0
        %v5458 = vadd.f32 0.0, %v5457
        %v5459 = vpop.f32.mrf.mxu0
        %5460 = vdwg.mxu0
        %v5461 = vmul.f32 %v5458, 0.35355338
        %v5462 = vadd.f32 %v5461, %v2460
        %v5463 = vsel %vm2463, %v5462, -inf
        %5464 = vmax.xlane.f32.xlu0 %v5463
        %v5465 = vpop.xlane.xlu0 %5464
        %v5466 = vsub.f32 %v5462, %v5465
        %v5467 = vmul.f32 %v5466, 1.442695
        %v5468 = vpow.pop %v5467
        %v5469 = vsel %vm2463, %v5468, 0.0
        %5470 = vadd.xlane.f32.xlu0 %v5469
        %v5471 = vpop.xlane.xlu0 %5470
        %v5472 = vrcp.pop %v5471
        %v5473 = vmul.f32 %v5468, %v5472
        %5474 = vrot.lane.b32.xlu0 %v4865, 80
        %v5475 = vpop.permute.xlu0 %5474
        %5476 = vrot.lane.b32.xlu0 %v4870, 80
        %v5477 = vpop.permute.xlu0 %5476
        %v5481 = vsel %vm2463, %v5473, 0
        %5483 = vmatprep.subr.mxu0 0.0
        %5484 = vmatpush1.msra.mxu0 0.0
        %5485 = vmatprep.subr.mxu0 0.0
        %5486 = vmatpush1.msra.mxu0 0.0
        %5487 = vmatprep.subr.mxu0 0.0
        %5488 = vmatpush1.msra.mxu0 0.0
        %5489 = vmatprep.subr.mxu0 0.0
        %5490 = vmatpush1.msra.mxu0 0.0
        %5491 = vmatprep.subr.mxu0 0.0
        %5492 = vmatpush1.msra.mxu0 0.0
        %5493 = vmatprep.subr.mxu0 0.0
        %5494 = vmatpush1.msra.mxu0 0.0
        %5495 = vmatprep.subr.mxu0 0.0
        %5496 = vmatpush1.msra.mxu0 0.0
        %5497 = vmatprep.subr.mxu0 0.0
        %5498 = vmatpush1.msra.mxu0 0.0
        %5499 = vmatprep.subr.mxu0 0.0
        %5500 = vmatpush1.msra.mxu0 0.0
        %5501 = vmatprep.subr.mxu0 0.0
        %5502 = vmatpush1.msra.mxu0 0.0
        %5503 = vmatprep.subr.mxu0 0.0
        %5504 = vmatpush1.msra.mxu0 0.0
        %5505 = vmatprep.subr.mxu0 0.0
        %5506 = vmatpush1.msra.mxu0 0.0
        %5507 = vmatprep.subr.mxu0 0.0
        %5508 = vmatpush1.msra.mxu0 0.0
        %5509 = vmatprep.subr.mxu0 0.0
        %5510 = vmatpush1.msra.mxu0 0.0
        %5511 = vmatprep.subr.mxu0 0.0
        %5512 = vmatpush1.msra.mxu0 %v5477
        %5513 = vmatprep.subr.mxu0 0.0
        %5514 = vmatpush1.msra.mxu0 %v5475
        %5515 = vmatprep.subr.mxu0 0.0
        %5516 = vmatpush2.msra.mxu0 0.0
        %5517 = vmatprep.subr.mxu0 0.0
        %5518 = vmatpush2.msra.mxu0 0.0
        %5519 = vmatprep.subr.mxu0 0.0
        %5520 = vmatpush2.msra.mxu0 0.0
        %5521 = vmatprep.subr.mxu0 0.0
        %5522 = vmatpush2.msra.mxu0 0.0
        %5523 = vmatprep.subr.mxu0 0.0
        %5524 = vmatpush2.msra.mxu0 0.0
        %5525 = vmatprep.subr.mxu0 0.0
        %5526 = vmatpush2.msra.mxu0 0.0
        %5527 = vmatprep.subr.mxu0 0.0
        %5528 = vmatpush2.msra.mxu0 0.0
        %5529 = vmatprep.subr.mxu0 0.0
        %5530 = vmatpush2.msra.mxu0 0.0
        %5531 = vmatprep.subr.mxu0 0.0
        %5532 = vmatpush2.msra.mxu0 0.0
        %5533 = vmatprep.subr.mxu0 0.0
        %5534 = vmatpush2.msra.mxu0 0.0
        %5535 = vmatprep.subr.mxu0 0.0
        %5536 = vmatpush2.msra.mxu0 0.0
        %5537 = vmatprep.subr.mxu0 0.0
        %5538 = vmatpush2.msra.mxu0 0.0
        %5539 = vmatprep.subr.mxu0 0.0
        %5540 = vmatpush2.msra.mxu0 0.0
        %5541 = vmatprep.subr.mxu0 0.0
        %5542 = vmatpush2.msra.mxu0 0.0
        %5543 = vmatprep.subr.mxu0 0.0
        %5544 = vmatpush2.msra.mxu0 0.0
        %5545 = vmatprep.subr.mxu0 0.0
        %5546 = vmatpush2.msra.mxu0 0.0
        %5547 = vmatprep.mubr.f32.mxu0 0.0
        %5548 = vmatmul.mubr.f32.gmra.mxu0 %v5481
        %v5549 = vpop.f32.mrf.mxu0
        %v5550 = vadd.f32 0.0, %v5549
        %v5551 = vpop.f32.mrf.mxu0
        %5552 = vdwg.mxu0
        %v5554 = vsel %vm1198, %v5550, 0
        %5556 = vmatprep.subr.mxu0 0.0
        %5557 = vmatpush1.msra.mxu0 0.0
        %5558 = vmatprep.subr.mxu0 0.0
        %5559 = vmatpush1.msra.mxu0 0.0
        %5560 = vmatprep.subr.mxu0 0.0
        %5561 = vmatpush1.msra.mxu0 0.0
        %5562 = vmatprep.subr.mxu0 0.0
        %5563 = vmatpush1.msra.mxu0 0.0
        %5564 = vmatprep.subr.mxu0 0.0
        %5565 = vmatpush1.msra.mxu0 0.0
        %5566 = vmatprep.subr.mxu0 0.0
        %5567 = vmatpush1.msra.mxu0 0.0
        %5568 = vmatprep.subr.mxu0 0.0
        %5569 = vmatpush1.msra.mxu0 0.0
        %5570 = vmatprep.subr.mxu0 0.0
        %5571 = vmatpush1.msra.mxu0 0.0
        %5572 = vmatprep.subr.mxu0 0.0
        %5573 = vmatpush1.msra.mxu0 0.0
        %5574 = vmatprep.subr.mxu0 0.0
        %5575 = vmatpush1.msra.mxu0 0.0
        %5576 = vmatprep.subr.mxu0 0.0
        %5577 = vmatpush1.msra.mxu0 0.0
        %5578 = vmatprep.subr.mxu0 0.0
        %5579 = vmatpush1.msra.mxu0 0.0
        %5580 = vmatprep.subr.mxu0 0.0
        %5581 = vmatpush1.msra.mxu0 0.0
        %5582 = vmatprep.subr.mxu0 0.0
        %5583 = vmatpush1.msra.mxu0 0.0
        %5584 = vmatprep.subr.mxu0 0.0
        %5585 = vmatpush1.msra.mxu0 0.0
        %5586 = vmatprep.subr.mxu0 0.0
        %5587 = vmatpush1.msra.mxu0 %v4876
        %5588 = vmatprep.subr.mxu0 0.0
        %5589 = vmatpush2.msra.mxu0 0.0
        %5590 = vmatprep.subr.mxu0 0.0
        %5591 = vmatpush2.msra.mxu0 0.0
        %5592 = vmatprep.subr.mxu0 0.0
        %5593 = vmatpush2.msra.mxu0 0.0
        %5594 = vmatprep.subr.mxu0 0.0
        %5595 = vmatpush2.msra.mxu0 0.0
        %5596 = vmatprep.subr.mxu0 0.0
        %5597 = vmatpush2.msra.mxu0 0.0
        %5598 = vmatprep.subr.mxu0 0.0
        %5599 = vmatpush2.msra.mxu0 0.0
        %5600 = vmatprep.subr.mxu0 0.0
        %5601 = vmatpush2.msra.mxu0 0.0
        %5602 = vmatprep.subr.mxu0 0.0
        %5603 = vmatpush2.msra.mxu0 0.0
        %5604 = vmatprep.subr.mxu0 0.0
        %5605 = vmatpush2.msra.mxu0 0.0
        %5606 = vmatprep.subr.mxu0 0.0
        %5607 = vmatpush2.msra.mxu0 0.0
        %5608 = vmatprep.subr.mxu0 0.0
        %5609 = vmatpush2.msra.mxu0 0.0
        %5610 = vmatprep.subr.mxu0 0.0
        %5611 = vmatpush2.msra.mxu0 0.0
        %5612 = vmatprep.subr.mxu0 0.0
        %5613 = vmatpush2.msra.mxu0 0.0
        %5614 = vmatprep.subr.mxu0 0.0
        %5615 = vmatpush2.msra.mxu0 0.0
        %5616 = vmatprep.subr.mxu0 0.0
        %5617 = vmatpush2.msra.mxu0 0.0
        %5618 = vmatprep.subr.mxu0 0.0
        %5619 = vmatpush2.msra.mxu0 0.0
        %5620 = vmatprep.mubr.f32.mxu0 0.0
        %5621 = vmatmul.mubr.f32.gmra.mxu0 %v5554
        %v5622 = vpop.f32.mrf.mxu0
        %v5623 = vadd.f32 0.0, %v5622
        %v5624 = vpop.f32.mrf.mxu0
        %5625 = vdwg.mxu0
        %v5626 = vadd.f32 %v5378, %v5623
        %5627 = vrot.lane.b32.xlu0 %v4782, 104
        %v5628 = vpop.permute.xlu0 %5627
        %5629 = vrot.lane.b32.xlu0 %v4865, 104
        %v5630 = vpop.permute.xlu0 %5629
        %5631 = vrot.lane.b32.xlu0 %v4870, 104
        %v5632 = vpop.permute.xlu0 %5631
        %v5633 = vsel %vm1198, %v5628, 0
        %v5635 = vsel %vm1198, %v5630, 0
        %v5637 = vsel %vm1198, %v5632, 0
        %5639 = vmatprep.subr.mxu0 0.0
        %5640 = vmatpush1.xpose.msra.mxu0 0.0
        %5641 = vmatprep.subr.mxu0 0.0
        %5642 = vmatpush1.xpose.msra.mxu0 0.0
        %5643 = vmatprep.subr.mxu0 0.0
        %5644 = vmatpush1.xpose.msra.mxu0 0.0
        %5645 = vmatprep.subr.mxu0 0.0
        %5646 = vmatpush1.xpose.msra.mxu0 0.0
        %5647 = vmatprep.subr.mxu0 0.0
        %5648 = vmatpush1.xpose.msra.mxu0 0.0
        %5649 = vmatprep.subr.mxu0 0.0
        %5650 = vmatpush1.xpose.msra.mxu0 0.0
        %5651 = vmatprep.subr.mxu0 0.0
        %5652 = vmatpush1.xpose.msra.mxu0 0.0
        %5653 = vmatprep.subr.mxu0 0.0
        %5654 = vmatpush1.xpose.msra.mxu0 0.0
        %5655 = vmatprep.subr.mxu0 0.0
        %5656 = vmatpush1.xpose.msra.mxu0 0.0
        %5657 = vmatprep.subr.mxu0 0.0
        %5658 = vmatpush1.xpose.msra.mxu0 0.0
        %5659 = vmatprep.subr.mxu0 0.0
        %5660 = vmatpush1.xpose.msra.mxu0 0.0
        %5661 = vmatprep.subr.mxu0 0.0
        %5662 = vmatpush1.xpose.msra.mxu0 0.0
        %5663 = vmatprep.subr.mxu0 0.0
        %5664 = vmatpush1.xpose.msra.mxu0 0.0
        %5665 = vmatprep.subr.mxu0 0.0
        %5666 = vmatpush1.xpose.msra.mxu0 0.0
        %5667 = vmatprep.subr.mxu0 0.0
        %5668 = vmatpush1.xpose.msra.mxu0 %v5637
        %5669 = vmatprep.subr.mxu0 0.0
        %5670 = vmatpush1.xpose.msra.mxu0 %v5635
        %5671 = vmatprep.subr.mxu0 0.0
        %5672 = vmatpush2.xpose.msra.mxu0 0.0
        %5673 = vmatprep.subr.mxu0 0.0
        %5674 = vmatpush2.xpose.msra.mxu0 0.0
        %5675 = vmatprep.subr.mxu0 0.0
        %5676 = vmatpush2.xpose.msra.mxu0 0.0
        %5677 = vmatprep.subr.mxu0 0.0
        %5678 = vmatpush2.xpose.msra.mxu0 0.0
        %5679 = vmatprep.subr.mxu0 0.0
        %5680 = vmatpush2.xpose.msra.mxu0 0.0
        %5681 = vmatprep.subr.mxu0 0.0
        %5682 = vmatpush2.xpose.msra.mxu0 0.0
        %5683 = vmatprep.subr.mxu0 0.0
        %5684 = vmatpush2.xpose.msra.mxu0 0.0
        %5685 = vmatprep.subr.mxu0 0.0
        %5686 = vmatpush2.xpose.msra.mxu0 0.0
        %5687 = vmatprep.subr.mxu0 0.0
        %5688 = vmatpush2.xpose.msra.mxu0 0.0
        %5689 = vmatprep.subr.mxu0 0.0
        %5690 = vmatpush2.xpose.msra.mxu0 0.0
        %5691 = vmatprep.subr.mxu0 0.0
        %5692 = vmatpush2.xpose.msra.mxu0 0.0
        %5693 = vmatprep.subr.mxu0 0.0
        %5694 = vmatpush2.xpose.msra.mxu0 0.0
        %5695 = vmatprep.subr.mxu0 0.0
        %5696 = vmatpush2.xpose.msra.mxu0 0.0
        %5697 = vmatprep.subr.mxu0 0.0
        %5698 = vmatpush2.xpose.msra.mxu0 0.0
        %5699 = vmatprep.subr.mxu0 0.0
        %5700 = vmatpush2.xpose.msra.mxu0 0.0
        %5701 = vmatprep.subr.mxu0 0.0
        %5702 = vmatpush2.xpose.msra.mxu0 0.0
        %5703 = vmatprep.mubr.f32.mxu0 0.0
        %5704 = vmatmul.mubr.f32.gmra.mxu0 %v5633
        %v5705 = vpop.f32.mrf.mxu0
        %v5706 = vadd.f32 0.0, %v5705
        %v5707 = vpop.f32.mrf.mxu0
        %5708 = vdwg.mxu0
        %v5709 = vmul.f32 %v5706, 0.35355338
        %v5710 = vadd.f32 %v5709, %v2460
        %v5711 = vsel %vm2463, %v5710, -inf
        %5712 = vmax.xlane.f32.xlu0 %v5711
        %v5713 = vpop.xlane.xlu0 %5712
        %v5714 = vsub.f32 %v5710, %v5713
        %v5715 = vmul.f32 %v5714, 1.442695
        %v5716 = vpow.pop %v5715
        %v5717 = vsel %vm2463, %v5716, 0.0
        %5718 = vadd.xlane.f32.xlu0 %v5717
        %v5719 = vpop.xlane.xlu0 %5718
        %v5720 = vrcp.pop %v5719
        %v5721 = vmul.f32 %v5716, %v5720
        %5722 = vrot.lane.b32.xlu0 %v4865, 72
        %v5723 = vpop.permute.xlu0 %5722
        %5724 = vrot.lane.b32.xlu0 %v4870, 72
        %v5725 = vpop.permute.xlu0 %5724
        %v5729 = vsel %vm2463, %v5721, 0
        %5731 = vmatprep.subr.mxu0 0.0
        %5732 = vmatpush1.msra.mxu0 0.0
        %5733 = vmatprep.subr.mxu0 0.0
        %5734 = vmatpush1.msra.mxu0 0.0
        %5735 = vmatprep.subr.mxu0 0.0
        %5736 = vmatpush1.msra.mxu0 0.0
        %5737 = vmatprep.subr.mxu0 0.0
        %5738 = vmatpush1.msra.mxu0 0.0
        %5739 = vmatprep.subr.mxu0 0.0
        %5740 = vmatpush1.msra.mxu0 0.0
        %5741 = vmatprep.subr.mxu0 0.0
        %5742 = vmatpush1.msra.mxu0 0.0
        %5743 = vmatprep.subr.mxu0 0.0
        %5744 = vmatpush1.msra.mxu0 0.0
        %5745 = vmatprep.subr.mxu0 0.0
        %5746 = vmatpush1.msra.mxu0 0.0
        %5747 = vmatprep.subr.mxu0 0.0
        %5748 = vmatpush1.msra.mxu0 0.0
        %5749 = vmatprep.subr.mxu0 0.0
        %5750 = vmatpush1.msra.mxu0 0.0
        %5751 = vmatprep.subr.mxu0 0.0
        %5752 = vmatpush1.msra.mxu0 0.0
        %5753 = vmatprep.subr.mxu0 0.0
        %5754 = vmatpush1.msra.mxu0 0.0
        %5755 = vmatprep.subr.mxu0 0.0
        %5756 = vmatpush1.msra.mxu0 0.0
        %5757 = vmatprep.subr.mxu0 0.0
        %5758 = vmatpush1.msra.mxu0 0.0
        %5759 = vmatprep.subr.mxu0 0.0
        %5760 = vmatpush1.msra.mxu0 %v5725
        %5761 = vmatprep.subr.mxu0 0.0
        %5762 = vmatpush1.msra.mxu0 %v5723
        %5763 = vmatprep.subr.mxu0 0.0
        %5764 = vmatpush2.msra.mxu0 0.0
        %5765 = vmatprep.subr.mxu0 0.0
        %5766 = vmatpush2.msra.mxu0 0.0
        %5767 = vmatprep.subr.mxu0 0.0
        %5768 = vmatpush2.msra.mxu0 0.0
        %5769 = vmatprep.subr.mxu0 0.0
        %5770 = vmatpush2.msra.mxu0 0.0
        %5771 = vmatprep.subr.mxu0 0.0
        %5772 = vmatpush2.msra.mxu0 0.0
        %5773 = vmatprep.subr.mxu0 0.0
        %5774 = vmatpush2.msra.mxu0 0.0
        %5775 = vmatprep.subr.mxu0 0.0
        %5776 = vmatpush2.msra.mxu0 0.0
        %5777 = vmatprep.subr.mxu0 0.0
        %5778 = vmatpush2.msra.mxu0 0.0
        %5779 = vmatprep.subr.mxu0 0.0
        %5780 = vmatpush2.msra.mxu0 0.0
        %5781 = vmatprep.subr.mxu0 0.0
        %5782 = vmatpush2.msra.mxu0 0.0
        %5783 = vmatprep.subr.mxu0 0.0
        %5784 = vmatpush2.msra.mxu0 0.0
        %5785 = vmatprep.subr.mxu0 0.0
        %5786 = vmatpush2.msra.mxu0 0.0
        %5787 = vmatprep.subr.mxu0 0.0
        %5788 = vmatpush2.msra.mxu0 0.0
        %5789 = vmatprep.subr.mxu0 0.0
        %5790 = vmatpush2.msra.mxu0 0.0
        %5791 = vmatprep.subr.mxu0 0.0
        %5792 = vmatpush2.msra.mxu0 0.0
        %5793 = vmatprep.subr.mxu0 0.0
        %5794 = vmatpush2.msra.mxu0 0.0
        %5795 = vmatprep.mubr.f32.mxu0 0.0
        %5796 = vmatmul.mubr.f32.gmra.mxu0 %v5729
        %v5797 = vpop.f32.mrf.mxu0
        %v5798 = vadd.f32 0.0, %v5797
        %v5799 = vpop.f32.mrf.mxu0
        %5800 = vdwg.mxu0
        %v5802 = vsel %vm1198, %v5798, 0
        %5804 = vmatprep.subr.mxu0 0.0
        %5805 = vmatpush1.msra.mxu0 0.0
        %5806 = vmatprep.subr.mxu0 0.0
        %5807 = vmatpush1.msra.mxu0 0.0
        %5808 = vmatprep.subr.mxu0 0.0
        %5809 = vmatpush1.msra.mxu0 0.0
        %5810 = vmatprep.subr.mxu0 0.0
        %5811 = vmatpush1.msra.mxu0 0.0
        %5812 = vmatprep.subr.mxu0 0.0
        %5813 = vmatpush1.msra.mxu0 0.0
        %5814 = vmatprep.subr.mxu0 0.0
        %5815 = vmatpush1.msra.mxu0 0.0
        %5816 = vmatprep.subr.mxu0 0.0
        %5817 = vmatpush1.msra.mxu0 0.0
        %5818 = vmatprep.subr.mxu0 0.0
        %5819 = vmatpush1.msra.mxu0 0.0
        %5820 = vmatprep.subr.mxu0 0.0
        %5821 = vmatpush1.msra.mxu0 0.0
        %5822 = vmatprep.subr.mxu0 0.0
        %5823 = vmatpush1.msra.mxu0 0.0
        %5824 = vmatprep.subr.mxu0 0.0
        %5825 = vmatpush1.msra.mxu0 0.0
        %5826 = vmatprep.subr.mxu0 0.0
        %5827 = vmatpush1.msra.mxu0 0.0
        %5828 = vmatprep.subr.mxu0 0.0
        %5829 = vmatpush1.msra.mxu0 0.0
        %5830 = vmatprep.subr.mxu0 0.0
        %5831 = vmatpush1.msra.mxu0 0.0
        %5832 = vmatprep.subr.mxu0 0.0
        %5833 = vmatpush1.msra.mxu0 0.0
        %5834 = vmatprep.subr.mxu0 0.0
        %5835 = vmatpush1.msra.mxu0 %v4877
        %5836 = vmatprep.subr.mxu0 0.0
        %5837 = vmatpush2.msra.mxu0 0.0
        %5838 = vmatprep.subr.mxu0 0.0
        %5839 = vmatpush2.msra.mxu0 0.0
        %5840 = vmatprep.subr.mxu0 0.0
        %5841 = vmatpush2.msra.mxu0 0.0
        %5842 = vmatprep.subr.mxu0 0.0
        %5843 = vmatpush2.msra.mxu0 0.0
        %5844 = vmatprep.subr.mxu0 0.0
        %5845 = vmatpush2.msra.mxu0 0.0
        %5846 = vmatprep.subr.mxu0 0.0
        %5847 = vmatpush2.msra.mxu0 0.0
        %5848 = vmatprep.subr.mxu0 0.0
        %5849 = vmatpush2.msra.mxu0 0.0
        %5850 = vmatprep.subr.mxu0 0.0
        %5851 = vmatpush2.msra.mxu0 0.0
        %5852 = vmatprep.subr.mxu0 0.0
        %5853 = vmatpush2.msra.mxu0 0.0
        %5854 = vmatprep.subr.mxu0 0.0
        %5855 = vmatpush2.msra.mxu0 0.0
        %5856 = vmatprep.subr.mxu0 0.0
        %5857 = vmatpush2.msra.mxu0 0.0
        %5858 = vmatprep.subr.mxu0 0.0
        %5859 = vmatpush2.msra.mxu0 0.0
        %5860 = vmatprep.subr.mxu0 0.0
        %5861 = vmatpush2.msra.mxu0 0.0
        %5862 = vmatprep.subr.mxu0 0.0
        %5863 = vmatpush2.msra.mxu0 0.0
        %5864 = vmatprep.subr.mxu0 0.0
        %5865 = vmatpush2.msra.mxu0 0.0
        %5866 = vmatprep.subr.mxu0 0.0
        %5867 = vmatpush2.msra.mxu0 0.0
        %5868 = vmatprep.mubr.f32.mxu0 0.0
        %5869 = vmatmul.mubr.f32.gmra.mxu0 %v5802
        %v5870 = vpop.f32.mrf.mxu0
        %v5871 = vadd.f32 0.0, %v5870
        %v5872 = vpop.f32.mrf.mxu0
        %5873 = vdwg.mxu0
        %v5874 = vadd.f32 %v5626, %v5871
        %v5875 = vadd.f32 %v4669, %v5874
        %v5876 = vsel %vm1069, %v5875, 0.0
        %5877 = vadd.xlane.f32.xlu0 %v5876
        %v5878 = vpop.xlane.xlu0 %5877
        %v5879 = vmul.f32 %v5878, %v1073
        %v5880 = vsub.f32 %v5875, %v5879
        %v5881 = vmul.f32 %v5880, %v5880
        %v5882 = vsel %vm1069, %v5881, 0.0
        %5883 = vadd.xlane.f32.xlu0 %v5882
        %v5884 = vpop.xlane.xlu0 %5883
        %v5885 = vmul.f32 %v5884, %v1073
        %v5886 = vadd.f32 %v5885, 1e-05
        %v5887 = vrsqrt.pop %v5886
        %v5888 = vmul.f32 %v5880, %v5887
        %v5889 = vld [vmem:[#allocation11] sm:$0x1]
        %v5891 = vlaneseq
        %v5892 = vshrl.u32 %v5891, 7
        %v5893 = vsub.s32 0, %v5892
        %v5894 = vrot.slane %v5889, %v5893
        %v5896 = vmul.f32 %v5888, %v5894
        %v5897 = vld [vmem:[#allocation13] sm:$0x1]
        %v5899 = vlaneseq
        %v5900 = vshrl.u32 %v5899, 7
        %v5901 = vsub.s32 0, %v5900
        %v5902 = vrot.slane %v5897, %v5901
        %v5904 = vadd.f32 %v5896, %v5902
        %s5905 = scalar_lea.vmem %s22, 32
        %v5906 = vld [vmem:[%s5905] sm:$0xff]
        %v5907 = vld [vmem:[%s5905 + $0x8] sm:$0xff]
        %v5908 = vld [vmem:[%s5905 + $0x10] sm:$0xff]
        %v5909 = vld [vmem:[%s5905 + $0x18] sm:$0xff]
        %s5910 = scalar_lea.vmem [#allocation25], 1
        %v5911 = vld [vmem:[%s5910] sm:$0x1]
        %v5913 = vlaneseq
        %v5914 = vshrl.u32 %v5913, 7
        %v5915 = vsub.s32 0, %v5914
        %v5916 = vrot.slane %v5911, %v5915
        %v5919 = vsel %vm1069, %v5904, 0
        %5921 = vmatprep.subr.mxu0 0.0
        %5922 = vmatpush1.msra.mxu0 0.0
        %5923 = vmatprep.subr.mxu0 0.0
        %5924 = vmatpush1.msra.mxu0 0.0
        %5925 = vmatprep.subr.mxu0 0.0
        %5926 = vmatpush1.msra.mxu0 0.0
        %5927 = vmatprep.subr.mxu0 0.0
        %5928 = vmatpush1.msra.mxu0 0.0
        %5929 = vmatprep.subr.mxu0 0.0
        %5930 = vmatpush1.msra.mxu0 0.0
        %5931 = vmatprep.subr.mxu0 0.0
        %5932 = vmatpush1.msra.mxu0 0.0
        %5933 = vmatprep.subr.mxu0 0.0
        %5934 = vmatpush1.msra.mxu0 0.0
        %5935 = vmatprep.subr.mxu0 0.0
        %5936 = vmatpush1.msra.mxu0 0.0
        %5937 = vmatprep.subr.mxu0 0.0
        %5938 = vmatpush1.msra.mxu0 0.0
        %5939 = vmatprep.subr.mxu0 0.0
        %5940 = vmatpush1.msra.mxu0 0.0
        %5941 = vmatprep.subr.mxu0 0.0
        %5942 = vmatpush1.msra.mxu0 0.0
        %5943 = vmatprep.subr.mxu0 0.0
        %5944 = vmatpush1.msra.mxu0 0.0
        %5945 = vmatprep.subr.mxu0 0.0
        %5946 = vmatpush1.msra.mxu0 %v5909
        %5947 = vmatprep.subr.mxu0 0.0
        %5948 = vmatpush1.msra.mxu0 %v5908
        %5949 = vmatprep.subr.mxu0 0.0
        %5950 = vmatpush1.msra.mxu0 %v5907
        %5951 = vmatprep.subr.mxu0 0.0
        %5952 = vmatpush1.msra.mxu0 %v5906
        %5953 = vmatprep.subr.mxu0 0.0
        %5954 = vmatpush2.msra.mxu0 0.0
        %5955 = vmatprep.subr.mxu0 0.0
        %5956 = vmatpush2.msra.mxu0 0.0
        %5957 = vmatprep.subr.mxu0 0.0
        %5958 = vmatpush2.msra.mxu0 0.0
        %5959 = vmatprep.subr.mxu0 0.0
        %5960 = vmatpush2.msra.mxu0 0.0
        %5961 = vmatprep.subr.mxu0 0.0
        %5962 = vmatpush2.msra.mxu0 0.0
        %5963 = vmatprep.subr.mxu0 0.0
        %5964 = vmatpush2.msra.mxu0 0.0
        %5965 = vmatprep.subr.mxu0 0.0
        %5966 = vmatpush2.msra.mxu0 0.0
        %5967 = vmatprep.subr.mxu0 0.0
        %5968 = vmatpush2.msra.mxu0 0.0
        %5969 = vmatprep.subr.mxu0 0.0
        %5970 = vmatpush2.msra.mxu0 0.0
        %5971 = vmatprep.subr.mxu0 0.0
        %5972 = vmatpush2.msra.mxu0 0.0
        %5973 = vmatprep.subr.mxu0 0.0
        %5974 = vmatpush2.msra.mxu0 0.0
        %5975 = vmatprep.subr.mxu0 0.0
        %5976 = vmatpush2.msra.mxu0 0.0
        %5977 = vmatprep.subr.mxu0 0.0
        %5978 = vmatpush2.msra.mxu0 0.0
        %5979 = vmatprep.subr.mxu0 0.0
        %5980 = vmatpush2.msra.mxu0 0.0
        %5981 = vmatprep.subr.mxu0 0.0
        %5982 = vmatpush2.msra.mxu0 0.0
        %5983 = vmatprep.subr.mxu0 0.0
        %5984 = vmatpush2.msra.mxu0 0.0
        %5985 = vmatprep.mubr.f32.mxu0 0.0
        %5986 = vmatmul.mubr.f32.gmra.mxu0 %v5919
        %v5987 = vpop.f32.mrf.mxu0
        %v5988 = vadd.f32 %v5916, %v5987
        %v5989 = vpop.f32.mrf.mxu0
        %5990 = vdwg.mxu0
        %v5991 = vmax.f32 %v5988, 0.0
        %s5992 = scalar_lea.vmem %s24, 64
        %v5993 = vld [vmem:[%s5992] sm:$0xff]
        %v5994 = vld [vmem:[%s5992 + $0x8] sm:$0xff]
        %v5995 = vld [vmem:[%s5992 + $0x10] sm:$0xff]
        %v5996 = vld [vmem:[%s5992 + $0x18] sm:$0xff]
        %v5997 = vld [vmem:[%s5992 + $0x20] sm:$0xff]
        %v5998 = vld [vmem:[%s5992 + $0x28] sm:$0xff]
        %v5999 = vld [vmem:[%s5992 + $0x30] sm:$0xff]
        %v6000 = vld [vmem:[%s5992 + $0x38] sm:$0xff]
        %v6002 = vsel %vm3495, %v5991, 0
        %6004 = vmatprep.subr.mxu0 0.0
        %6005 = vmatpush1.msra.mxu0 0.0
        %6006 = vmatprep.subr.mxu0 0.0
        %6007 = vmatpush1.msra.mxu0 0.0
        %6008 = vmatprep.subr.mxu0 0.0
        %6009 = vmatpush1.msra.mxu0 0.0
        %6010 = vmatprep.subr.mxu0 0.0
        %6011 = vmatpush1.msra.mxu0 0.0
        %6012 = vmatprep.subr.mxu0 0.0
        %6013 = vmatpush1.msra.mxu0 0.0
        %6014 = vmatprep.subr.mxu0 0.0
        %6015 = vmatpush1.msra.mxu0 0.0
        %6016 = vmatprep.subr.mxu0 0.0
        %6017 = vmatpush1.msra.mxu0 0.0
        %6018 = vmatprep.subr.mxu0 0.0
        %6019 = vmatpush1.msra.mxu0 0.0
        %6020 = vmatprep.subr.mxu0 0.0
        %6021 = vmatpush1.msra.mxu0 %v6000
        %6022 = vmatprep.subr.mxu0 0.0
        %6023 = vmatpush1.msra.mxu0 %v5999
        %6024 = vmatprep.subr.mxu0 0.0
        %6025 = vmatpush1.msra.mxu0 %v5998
        %6026 = vmatprep.subr.mxu0 0.0
        %6027 = vmatpush1.msra.mxu0 %v5997
        %6028 = vmatprep.subr.mxu0 0.0
        %6029 = vmatpush1.msra.mxu0 %v5996
        %6030 = vmatprep.subr.mxu0 0.0
        %6031 = vmatpush1.msra.mxu0 %v5995
        %6032 = vmatprep.subr.mxu0 0.0
        %6033 = vmatpush1.msra.mxu0 %v5994
        %6034 = vmatprep.subr.mxu0 0.0
        %6035 = vmatpush1.msra.mxu0 %v5993
        %6036 = vmatprep.subr.mxu0 0.0
        %6037 = vmatpush2.msra.mxu0 0.0
        %6038 = vmatprep.subr.mxu0 0.0
        %6039 = vmatpush2.msra.mxu0 0.0
        %6040 = vmatprep.subr.mxu0 0.0
        %6041 = vmatpush2.msra.mxu0 0.0
        %6042 = vmatprep.subr.mxu0 0.0
        %6043 = vmatpush2.msra.mxu0 0.0
        %6044 = vmatprep.subr.mxu0 0.0
        %6045 = vmatpush2.msra.mxu0 0.0
        %6046 = vmatprep.subr.mxu0 0.0
        %6047 = vmatpush2.msra.mxu0 0.0
        %6048 = vmatprep.subr.mxu0 0.0
        %6049 = vmatpush2.msra.mxu0 0.0
        %6050 = vmatprep.subr.mxu0 0.0
        %6051 = vmatpush2.msra.mxu0 0.0
        %6052 = vmatprep.subr.mxu0 0.0
        %6053 = vmatpush2.msra.mxu0 0.0
        %6054 = vmatprep.subr.mxu0 0.0
        %6055 = vmatpush2.msra.mxu0 0.0
        %6056 = vmatprep.subr.mxu0 0.0
        %6057 = vmatpush2.msra.mxu0 0.0
        %6058 = vmatprep.subr.mxu0 0.0
        %6059 = vmatpush2.msra.mxu0 0.0
        %6060 = vmatprep.subr.mxu0 0.0
        %6061 = vmatpush2.msra.mxu0 0.0
        %6062 = vmatprep.subr.mxu0 0.0
        %6063 = vmatpush2.msra.mxu0 0.0
        %6064 = vmatprep.subr.mxu0 0.0
        %6065 = vmatpush2.msra.mxu0 0.0
        %6066 = vmatprep.subr.mxu0 0.0
        %6067 = vmatpush2.msra.mxu0 0.0
        %6068 = vmatprep.mubr.f32.mxu0 0.0
        %6069 = vmatmul.mubr.f32.gmra.mxu0 %v6002
        %v6070 = vpop.f32.mrf.mxu0
        %v6071 = vadd.f32 0.0, %v6070
        %v6072 = vpop.f32.mrf.mxu0
        %6073 = vdwg.mxu0
        %v6074 = vadd.f32 %v5875, %v6071
        %s6075 = scalar_lea.vmem [#allocation26], 1
        %v6076 = vld [vmem:[%s6075] sm:$0x1]
        %v6078 = vlaneseq
        %v6079 = vshrl.u32 %v6078, 7
        %v6080 = vsub.s32 0, %v6079
        %v6081 = vrot.slane %v6076, %v6080
        %v6083 = vadd.f32 %v6074, %v6081
        %v6084 = vsel %vm1069, %v6083, 0.0
        %6085 = vadd.xlane.f32.xlu0 %v6084
        %v6086 = vpop.xlane.xlu0 %6085
        %v6087 = vmul.f32 %v6086, %v1073
        %v6088 = vsub.f32 %v6083, %v6087
        %v6089 = vmul.f32 %v6088, %v6088
        %v6090 = vsel %vm1069, %v6089, 0.0
        %6091 = vadd.xlane.f32.xlu0 %v6090
        %v6092 = vpop.xlane.xlu0 %6091
        %v6093 = vmul.f32 %v6092, %v1073
        %v6094 = vadd.f32 %v6093, 1e-05
        %v6095 = vrsqrt.pop %v6094
        %v6096 = vmul.f32 %v6088, %v6095
        %v6097 = vld [vmem:[#allocation14] sm:$0x1]
        %v6099 = vlaneseq
        %v6100 = vshrl.u32 %v6099, 7
        %v6101 = vsub.s32 0, %v6100
        %v6102 = vrot.slane %v6097, %v6101
        %v6104 = vmul.f32 %v6096, %v6102
        %v6105 = vld [vmem:[#allocation16] sm:$0x1]
        %v6107 = vlaneseq
        %v6108 = vshrl.u32 %v6107, 7
        %v6109 = vsub.s32 0, %v6108
        %v6110 = vrot.slane %v6105, %v6109
        %v6112 = vadd.f32 %v6104, %v6110
        %6113 = vst.msk [vmem:[%s1048] sm:$0xff] %vm1069, %v6112
        %s6114 = sand.u32 %s625, 1
        %s6115 = scalar_lea.sflag [#allocation4], %s6114
        %s6116 = sand.u32 %s625, 1
        %s6117 = smul.addr %s6116, 8
        %s6118 = scalar_lea.vmem [#allocation28], %s6117
        // Predicated region
        $region189: #{decoder_forward.1} parent=123 // pred_check
          %p6119 = pneg %p635
        $region190: #{decoder_forward.1} parent=123 // pred_check_branch
          %6121 = sbr.rel (%p6119) target = $region192
        $region191: #{decoder_forward.1} parent=123 // pred_region
          %s6123 = ssub.s32 128, 128
          %6124 = vsyncadd %s6115, %s6123
          %s6125 = smul.addr %s51, 128
          %s6126 = scalar_lea.hbm %s26, %s6125
          %s6128 = sshll.u32 %s6118, 4
          %s6129 = int_to_ptr.vmem [resolvable:$true] %s6128
          %6131 = dma.vmem_to_hbm [thread:$0]  %s6129, 128, %s6126, %s6115
        $region192: #{decoder_forward.1} parent=123 // pred_fallthru
          _
      $region124: #{decoder_forward.1} parent=5 // pred_fallthru
        _
      %p6132 = scmp.le.s32.totalorder 2, %s46
      // Predicated region
      $region193: #{decoder_forward.1} parent=5 // pred_check
        %p6133 = pneg %p6132
      $region194: #{decoder_forward.1} parent=5 // pred_check_branch
        %6135 = sbr.rel (%p6133) target = $region196
      $region195: #{decoder_forward.1} parent=5 // pred_region
        %s6136 = ssub.s32 %s46, 2
        // Predicated region
        $region197: #{decoder_forward.1} parent=195 // pred_check
          %p6137 = pneg %p641
        $region198: #{decoder_forward.1} parent=195 // pred_check_branch
          %6139 = sbr.rel (%p6137) target = $region200
        $region199: #{decoder_forward.1} parent=195 // pred_region
          %s6140 = sand.u32 %s626, 1
          %s6141 = scalar_lea.sflag [#allocation4], %s6140
          %s6142 = sand.u32 %s626, 1
          %s6143 = smul.addr %s6142, 8
          %s6144 = scalar_lea.vmem [#allocation28], %s6143
          %6145 = dma.done %s6141, 128
        $region200: #{decoder_forward.1} parent=195 // pred_fallthru
          _
      $region196: #{decoder_forward.1} parent=5 // pred_fallthru
        _
    $region6: #{decoder_forward.1} parent=1 // loop_footer
      %s50 = sadd.s32 1, %s46
    $region7: #{decoder_forward.1} parent=1 // loop_footer_branch
      %45 = sbr.rel target = $region3
    $region8: #{decoder_forward.1} parent=1 // loop_exit
      _
    %6146 = vsyncpa [#allocation3], 1
    %s6147 = scalar_lea.sflag [#allocation3], 1
    %6148 = vsyncpa %s6147, 1
    %6149 = vsyncpa [#allocation6], 1
    %6150 = vsyncpa [#allocation9], 1
    %6151 = vsyncpa [#allocation12], 1
    %6152 = vsyncpa [#allocation15], 1
    %6153 = vsyncpa [#allocation18], 1
    %6154 = vsyncpa [#allocation21], 1
    %6155 = vsyncpa [#allocation24], 1
    %6156 = vsyncpa [#allocation27], 1
    %6157 = vsyncpa [#allocation4], 1
    %s6158 = scalar_lea.sflag [#allocation4], 1
    %6159 = vsyncpa %s6158, 1

</llo_original>
